<compile_context>
chip_gen: v7x
topology: tpu7x:2x2x1
jax: 0.10.0
libtpu: 0.0.40
codegen_flags: <defaults>
</compile_context>

<pallas_src>
import functools

import jax
import jax.numpy as jnp
from jax import lax
from jax.experimental import pallas as pl
from jax.experimental.pallas import tpu as pltpu

EPS = 1e-5


# ---------------------------------------------------------------------------
# Kernels
# ---------------------------------------------------------------------------
def _conv1x1_stats_kernel(x_ref, w_ref, o_ref, st_ref):
    # y = x @ w (bf16 MXU operands, f32 accumulation) + per-tile sum / sumsq,
    # written with direct slice stores (no concatenated temp).
    y = jnp.dot(x_ref[...], w_ref[...], preferred_element_type=jnp.float32)
    o_ref[...] = y.astype(o_ref.dtype)
    st_ref[0, 0:1, :] = jnp.sum(y, axis=0, keepdims=True)
    st_ref[0, 1:2, :] = jnp.sum(y * y, axis=0, keepdims=True)


def _bn_relu_conv1x1_stats_kernel(x_ref, s_ref, t_ref, w_ref, o_ref, st_ref):
    # relu(x*scale + shift) @ w + per-tile stats of the conv output.
    a = jnp.maximum(x_ref[...].astype(jnp.float32) * s_ref[...] + t_ref[...], 0.0)
    y = jnp.dot(a.astype(jnp.bfloat16), w_ref[...],
                preferred_element_type=jnp.float32)
    o_ref[...] = y.astype(o_ref.dtype)
    st_ref[0, 0:1, :] = jnp.sum(y, axis=0, keepdims=True)
    st_ref[0, 1:2, :] = jnp.sum(y * y, axis=0, keepdims=True)


def _bn_add_relu_kernel(x_ref, s_ref, t_ref, r_ref, o_ref):
    y = (x_ref[...].astype(jnp.float32) * s_ref[...] + t_ref[...]
         + r_ref[...].astype(jnp.float32))
    o_ref[...] = jnp.maximum(y, 0.0).astype(o_ref.dtype)


def _bn_relu_conv3x3_stats_kernel(x_ref, s_ref, t_ref, w_ref, o_ref, st_ref,
                                  pad_ref, *, band):
    # x_ref: (1, H, W, P) UNPADDED bf16 conv1 output for one image.
    # BN1+ReLU are fused into the interior write of a VMEM-resident padded
    # image; only the 1-element halo ring is zeroed (cheap, every step, so it
    # is safe under parallel/megacore scheduling).  The 3x3 conv is computed
    # per row band: 9 matmuls whose LHS is (band*W, P), accumulated in vregs,
    # stored once as bf16, with the BN2 stats accumulated incrementally.
    _, hd, wd, pin = x_ref.shape
    pout = w_ref.shape[3]
    f32, bf16 = jnp.float32, jnp.bfloat16

    # Zero only the halo ring of the padded scratch (scratch is uninitialized).
    pad_ref[0:1, :, :] = jnp.zeros((1, wd + 2, pin), bf16)
    pad_ref[hd + 1:hd + 2, :, :] = jnp.zeros((1, wd + 2, pin), bf16)
    pad_ref[:, 0:1, :] = jnp.zeros((hd + 2, 1, pin), bf16)
    pad_ref[:, wd + 1:wd + 2, :] = jnp.zeros((hd + 2, 1, pin), bf16)

    a = jnp.maximum(x_ref[0].astype(f32) * s_ref[...] + t_ref[...], 0.0)
    pad_ref[1:hd + 1, 1:wd + 1, :] = a.astype(bf16)

    # Hoist the 9 (P_in, P_out) weight taps out of the band loop.
    w_taps = [[w_ref[dy, dx] for dx in range(3)] for dy in range(3)]

    s1 = jnp.zeros((1, pout), f32)
    s2 = jnp.zeros((1, pout), f32)
    for b in range(hd // band):                       # static unrolled bands
        y0 = b * band
        acc = jnp.zeros((band * wd, pout), f32)
        for dy in range(3):
            for dx in range(3):
                lhs = pad_ref[y0 + dy:y0 + dy + band, dx:dx + wd, :]
                acc = acc + jnp.dot(lhs.reshape(band * wd, pin),
                                    w_taps[dy][dx],
                                    preferred_element_type=f32)
        o_ref[0, y0:y0 + band, :, :] = acc.reshape(band, wd, pout).astype(o_ref.dtype)
        s1 = s1 + jnp.sum(acc, axis=0, keepdims=True)
        s2 = s2 + jnp.sum(acc * acc, axis=0, keepdims=True)
    st_ref[0, 0:1, :] = s1
    st_ref[0, 1:2, :] = s2


# ---------------------------------------------------------------------------
# Helpers
# ---------------------------------------------------------------------------
def _pick_row_tile(m, target):
    """Largest multiple of 8 that divides m and is <= target (else whole m)."""
    c = min(target, m)
    while c >= 8:
        if m % c == 0 and c % 8 == 0:
            return c
        c -= 1
    # TODO(synk): for shapes with no multiple-of-8 divisor this degenerates to
    # a single block; a masked last tile would keep pipelining in that case.
    return m


def _pick_band(h, w, target_rows=256):
    """Smallest divisor of h whose band*w reaches the MXU M target."""
    for band in range(1, h + 1):
        if h % band == 0 and band * w >= target_rows:
            return band
    return h


def _bn_scale_shift(partial, count, gamma, beta):
    """Finalize batch-norm stats from per-tile (sum, sumsq) partials."""
    tot = jnp.sum(partial, axis=0)                     # (2, C)
    mean = tot[0] / count
    var = jnp.maximum(tot[1] / count - mean * mean, 0.0)
    scale = gamma * lax.rsqrt(var + EPS)
    shift = beta - mean * scale
    return scale.reshape(1, -1), shift.reshape(1, -1)


def prepare_params(raw):
    """One-time weight layout prep: matmul-form, output-channels-last, bf16."""
    g1, b1, w1, g2, b2, w2, g3, b3, w3 = raw
    p = w1.shape[0]
    cin = w1.shape[1]
    w1m = jnp.transpose(w1.reshape(p, cin)).astype(jnp.bfloat16)        # (Cin, P)
    w2r = jnp.transpose(w2, (2, 3, 1, 0)).astype(jnp.bfloat16)          # (3,3,P,P)
    w3m = jnp.transpose(w3.reshape(4 * p, p)).astype(jnp.bfloat16)      # (P, 4P)
    return (g1.reshape(-1).astype(jnp.float32), b1.reshape(-1).astype(jnp.float32), w1m,
            g2.reshape(-1).astype(jnp.float32), b2.reshape(-1).astype(jnp.float32), w2r,
            g3.reshape(-1).astype(jnp.float32), b3.reshape(-1).astype(jnp.float32), w3m)


# ---------------------------------------------------------------------------
# Bottleneck forward
# ---------------------------------------------------------------------------
def bottleneck_forward(x_nchw, prepped, stride=1, row_tile=512):
    g1, b1, w1m, g2, b2, w2r, g3, b3, w3m = prepped
    n, cin, h, w = x_nchw.shape
    p = w1m.shape[1]
    assert cin == 4 * p and stride == 1, \
        "identity residual path requires inplanes == 4*planes and stride == 1"
    # TODO(synk): downsample is None in this configuration; a non-None
    # downsample (and stride != 1) residual path is not implemented.

    f32, bf16 = jnp.float32, jnp.bfloat16
    # Single NCHW->NHWC transpose emitted directly in bf16: it serves both as
    # the conv1 MXU input and the stage-4 residual (halves transpose+residual
    # HBM traffic vs keeping a separate f32 NHWC copy).
    x = jnp.transpose(x_nchw, (0, 2, 3, 1)).astype(bf16)       # NHWC bf16
    m = n * h * w
    x_flat = x.reshape(m, cin)

    tm = _pick_row_tile(m, row_tile)
    nt = m // tm
    band = _pick_band(h, w)
    parallel = pltpu.CompilerParams(dimension_semantics=("parallel",))

    # ---- stage 1: conv1 (1x1) + bn1 partial stats -------------------------
    h1, st1 = pl.pallas_call(
        _conv1x1_stats_kernel,
        out_shape=(jax.ShapeDtypeStruct((m, p), bf16),
                   jax.ShapeDtypeStruct((nt, 2, p), f32)),
        grid=(nt,),
        in_specs=[pl.BlockSpec((tm, cin), lambda i: (i, 0)),
                  pl.BlockSpec((cin, p), lambda i: (0, 0))],
        out_specs=(pl.BlockSpec((tm, p), lambda i: (i, 0)),
                   pl.BlockSpec((1, 2, p), lambda i: (i, 0, 0))),
        compiler_params=parallel,
    )(x_flat, w1m)
    s1, t1 = _bn_scale_shift(st1, m, g1, b1)

    # ---- stage 2: bn1+relu + conv2 (3x3, pad 1) + bn2 partial stats --------
    # Unpadded input; the zero halo is built in the VMEM scratch inside the
    # kernel, so conv1's activation makes exactly one HBM round trip.
    h2, st2 = pl.pallas_call(
        functools.partial(_bn_relu_conv3x3_stats_kernel, band=band),
        out_shape=(jax.ShapeDtypeStruct((n, h, w, p), bf16),
                   jax.ShapeDtypeStruct((n, 2, p), f32)),
        grid=(n,),
        in_specs=[pl.BlockSpec((1, h, w, p), lambda i: (i, 0, 0, 0)),
                  pl.BlockSpec((1, p), lambda i: (0, 0)),
                  pl.BlockSpec((1, p), lambda i: (0, 0)),
                  pl.BlockSpec((3, 3, p, p), lambda i: (0, 0, 0, 0))],
        out_specs=(pl.BlockSpec((1, h, w, p), lambda i: (i, 0, 0, 0)),
                   pl.BlockSpec((1, 2, p), lambda i: (i, 0, 0))),
        scratch_shapes=[pltpu.VMEM((h + 2, w + 2, p), bf16)],
        compiler_params=parallel,
    )(h1.reshape(n, h, w, p), s1, t1, w2r)
    s2, t2 = _bn_scale_shift(st2, m, g2, b2)

    # ---- stage 3: bn2+relu + conv3 (1x1) + bn3 partial stats ---------------
    h3, st3 = pl.pallas_call(
        _bn_relu_conv1x1_stats_kernel,
        out_shape=(jax.ShapeDtypeStruct((m, 4 * p), bf16),
                   jax.ShapeDtypeStruct((nt, 2, 4 * p), f32)),
        grid=(nt,),
        in_specs=[pl.BlockSpec((tm, p), lambda i: (i, 0)),
                  pl.BlockSpec((1, p), lambda i: (0, 0)),
                  pl.BlockSpec((1, p), lambda i: (0, 0)),
                  pl.BlockSpec((p, 4 * p), lambda i: (0, 0))],
        out_specs=(pl.BlockSpec((tm, 4 * p), lambda i: (i, 0)),
                   pl.BlockSpec((1, 2, 4 * p), lambda i: (i, 0, 0))),
        compiler_params=parallel,
    )(h2.reshape(m, p), s2, t2, w3m)
    s3, t3 = _bn_scale_shift(st3, m, g3, b3)

    # ---- stage 4: bn3 + residual add + relu --------------------------------
    # TODO(synk): emit bf16 here (and/or stay NHWC) if the downstream consumer
    # accepts it; f32 NCHW is kept to preserve the module's output semantics.
    out_flat = pl.pallas_call(
        _bn_add_relu_kernel,
        out_shape=jax.ShapeDtypeStruct((m, 4 * p), f32),
        grid=(nt,),
        in_specs=[pl.BlockSpec((tm, 4 * p), lambda i: (i, 0)),
                  pl.BlockSpec((1, 4 * p), lambda i: (0, 0)),
                  pl.BlockSpec((1, 4 * p), lambda i: (0, 0)),
                  pl.BlockSpec((tm, 4 * p), lambda i: (i, 0))],
        out_specs=pl.BlockSpec((tm, 4 * p), lambda i: (i, 0)),
        compiler_params=parallel,
    )(h3, s3, t3, x_flat)

    out = out_flat.reshape(n, h, w, 4 * p)
    return jnp.transpose(out, (0, 3, 1, 2))                    # back to NCHW


# ---------------------------------------------------------------------------
# Pure-JAX reference (training-mode BN) for correctness check
# ---------------------------------------------------------------------------
def ref_forward(x_nchw, raw, stride=1):
    g1, b1, w1, g2, b2, w2, g3, b3, w3 = raw
    x = jnp.transpose(x_nchw, (0, 2, 3, 1)).astype(jnp.float32)

    def bn(v, g, b):
        mu = v.mean(axis=(0, 1, 2))
        var = jnp.square(v - mu).mean(axis=(0, 1, 2))
        return (v - mu) * lax.rsqrt(var + EPS) * g.reshape(-1) + b.reshape(-1)

    def conv(v, wgt, s, pad):
        w_hwio = jnp.transpose(wgt, (2, 3, 1, 0))
        return lax.conv_general_dilated(v, w_hwio, (s, s), pad,
                                        dimension_numbers=("NHWC", "HWIO", "NHWC"),
                                        precision=lax.Precision.HIGHEST)

    out = conv(x, w1, 1, "VALID")
    out = jnp.maximum(bn(out, g1, b1), 0.0)
    out = conv(out, w2, stride, ((1, 1), (1, 1)))
    out = jnp.maximum(bn(out, g2, b2), 0.0)
    out = conv(out, w3, 1, "VALID")
    out = bn(out, g3, b3)
    out = jnp.maximum(out + x, 0.0)
    return jnp.transpose(out, (0, 3, 1, 2))


if __name__ == "__main__":
    n, planes, h, w = 2, 4, 16, 16
    inplanes = planes * 4                       # identity residual config
    key = jax.random.PRNGKey(0)
    k1, k2, k3, kx = jax.random.split(key, 4)

    # torch conv layout (O, I, kh, kw)
    w1 = jax.random.normal(k1, (planes, inplanes, 1, 1), jnp.float32) / jnp.sqrt(inplanes)
    w2 = jax.random.normal(k2, (planes, planes, 3, 3), jnp.float32) / jnp.sqrt(9.0 * planes)
    w3 = jax.random.normal(k3, (planes * 4, planes, 1, 1), jnp.float32) / jnp.sqrt(planes)
    g1 = jnp.linspace(0.8, 1.2, planes, dtype=jnp.float32)
    b1 = jnp.linspace(-0.1, 0.1, planes, dtype=jnp.float32)
    g2 = jnp.linspace(0.9, 1.1, planes, dtype=jnp.float32)
    b2 = jnp.linspace(-0.05, 0.05, planes, dtype=jnp.float32)
    g3 = jnp.linspace(0.8, 1.2, planes * 4, dtype=jnp.float32)
    b3 = jnp.linspace(-0.1, 0.1, planes * 4, dtype=jnp.float32)
    raw = (g1, b1, w1, g2, b2, w2, g3, b3, w3)
    prepped = prepare_params(raw)

    x = jax.random.normal(kx, (n, inplanes, h, w), jnp.float32)

    fwd = jax.jit(functools.partial(bottleneck_forward, stride=1, row_tile=256))
    out = jax.block_until_ready(fwd(x, prepped))
    ref = jax.block_until_ready(ref_forward(x, raw, stride=1))

    assert out.shape == (n, inplanes, h, w)
    max_err = float(jnp.max(jnp.abs(out - ref)))
    assert jnp.allclose(out, ref, atol=3e-2, rtol=3e-2), max_err
    print("KERNEL_OK")
</pallas_src>

<mosaic_0001>
module attributes {stable_mosaic.version = 11 : i64} {
  func.func @_conv1x1_stats_kernel(%arg0: i32, %arg1: memref<256x16xbf16, #tpu.memory_space<vmem>>, %arg2: memref<16x4xbf16, #tpu.memory_space<vmem>>, %arg3: memref<256x4xbf16, #tpu.memory_space<vmem>>, %arg4: memref<1x2x4xf32, #tpu.memory_space<vmem>>) attributes {dimension_semantics = [#tpu.dimension_semantics<parallel>], iteration_bounds = array<i64: 2>, scalar_prefetch = 0 : i64, scratch_operands = 0 : i64, tpu.core_type = #tpu.core_type<tc>, window_params = [{transform_indices = @transform_0, window_bounds = array<i64: 256, 16>}, {pipeline_mode = #tpu.pipeline_mode<synchronous>, transform_indices = @transform_1, window_bounds = array<i64: 16, 4>}, {transform_indices = @transform_2, window_bounds = array<i64: 256, 4>}, {transform_indices = @transform_3, window_bounds = array<i64: 1, 2, 4>}]} {
    %c0 = arith.constant 0 : index
    %c0_0 = arith.constant 0 : index
    %0 = vector.load %arg1[%c0, %c0_0] : memref<256x16xbf16, #tpu.memory_space<vmem>>, vector<256x16xbf16>
    %c0_1 = arith.constant 0 : index
    %c0_2 = arith.constant 0 : index
    %1 = vector.load %arg2[%c0_1, %c0_2] : memref<16x4xbf16, #tpu.memory_space<vmem>>, vector<16x4xbf16>
    %cst = arith.constant dense<0.000000e+00> : vector<256x4xf32>
    %2 = tpu.matmul %0, %1, %cst {dimension_numbers = #tpu.dot_dimension_numbers<[1], [0], [0], [1], [0, 0, 1, 1], [], []>} : vector<256x16xbf16>, vector<16x4xbf16>, vector<256x4xf32> -> vector<256x4xf32>
    %3 = arith.truncf %2 : vector<256x4xf32> to vector<256x4xbf16>
    %c0_3 = arith.constant 0 : index
    %c0_4 = arith.constant 0 : index
    %4 = vector.load %arg3[%c0_3, %c0_4] : memref<256x4xbf16, #tpu.memory_space<vmem>>, vector<256x4xbf16>
    tpu.vector_store %arg3[%c0_3, %c0_4], %3 {strides = array<i32>} : memref<256x4xbf16, #tpu.memory_space<vmem>>, vector<256x4xbf16>,
    %cst_5 = arith.constant dense<0.000000e+00> : vector<4xf32>
    %5 = vector.multi_reduction <add>, %2, %cst_5 [0] : vector<256x4xf32> to vector<4xf32>
    %6 = vector.shape_cast %5 : vector<4xf32> to vector<1x4xf32>
    %c0_6 = arith.constant 0 : index
    %c0_7 = arith.constant 0 : index
    %c0_8 = arith.constant 0 : index
    %7 = vector.load %arg4[%c0_6, %c0_7, %c0_8] : memref<1x2x4xf32, #tpu.memory_space<vmem>>, vector<1x1x4xf32>
    %8 = vector.shape_cast %7 : vector<1x1x4xf32> to vector<1x4xf32>
    %9 = vector.shape_cast %6 : vector<1x4xf32> to vector<1x1x4xf32>
    tpu.vector_store %arg4[%c0_6, %c0_7, %c0_8], %9 {strides = array<i32>} : memref<1x2x4xf32, #tpu.memory_space<vmem>>, vector<1x1x4xf32>,
    %10 = arith.mulf %2, %2 : vector<256x4xf32>
    %cst_9 = arith.constant dense<0.000000e+00> : vector<4xf32>
    %11 = vector.multi_reduction <add>, %10, %cst_9 [0] : vector<256x4xf32> to vector<4xf32>
    %12 = vector.shape_cast %11 : vector<4xf32> to vector<1x4xf32>
    %c0_10 = arith.constant 0 : index
    %c1 = arith.constant 1 : index
    %c0_11 = arith.constant 0 : index
    %13 = vector.load %arg4[%c0_10, %c1, %c0_11] : memref<1x2x4xf32, #tpu.memory_space<vmem>>, vector<1x1x4xf32>
    %14 = vector.shape_cast %13 : vector<1x1x4xf32> to vector<1x4xf32>
    %15 = vector.shape_cast %12 : vector<1x4xf32> to vector<1x1x4xf32>
    tpu.vector_store %arg4[%c0_10, %c1, %c0_11], %15 {strides = array<i32>} : memref<1x2x4xf32, #tpu.memory_space<vmem>>, vector<1x1x4xf32>,
    return
  }
  func.func @transform_0(%arg0: i32) -> (i32, i32) {
    %c0_i32 = arith.constant 0 : i32
    %c0_i32_0 = arith.constant 0 : i32
    return %arg0, %c0_i32 : i32, i32
  }
  func.func @transform_1(%arg0: i32) -> (i32, i32) {
    %c0_i32 = arith.constant 0 : i32
    %c0_i32_0 = arith.constant 0 : i32
    %c0_i32_1 = arith.constant 0 : i32
    return %c0_i32, %c0_i32_0 : i32, i32
  }
  func.func @transform_2(%arg0: i32) -> (i32, i32) {
    %c0_i32 = arith.constant 0 : i32
    %c0_i32_0 = arith.constant 0 : i32
    return %arg0, %c0_i32 : i32, i32
  }
  func.func @transform_3(%arg0: i32) -> (i32, i32, i32) {
    %c0_i32 = arith.constant 0 : i32
    %c0_i32_0 = arith.constant 0 : i32
    %c0_i32_1 = arith.constant 0 : i32
    return %arg0, %c0_i32, %c0_i32_0 : i32, i32, i32
  }
}

module attributes {stable_mosaic.version = 11 : i64} {
  func.func @_bn_relu_conv3x3_stats_kernel(%arg0: i32, %arg1: memref<1x16x16x4xbf16, #tpu.memory_space<vmem>>, %arg2: memref<1x4xf32, #tpu.memory_space<vmem>>, %arg3: memref<1x4xf32, #tpu.memory_space<vmem>>, %arg4: memref<3x3x4x4xbf16, #tpu.memory_space<vmem>>, %arg5: memref<1x16x16x4xbf16, #tpu.memory_space<vmem>>, %arg6: memref<1x2x4xf32, #tpu.memory_space<vmem>>, %arg7: memref<18x18x4xbf16, #tpu.memory_space<vmem>>) attributes {dimension_semantics = [#tpu.dimension_semantics<parallel>], iteration_bounds = array<i64: 2>, scalar_prefetch = 0 : i64, scratch_operands = 1 : i64, tpu.core_type = #tpu.core_type<tc>, window_params = [{transform_indices = @transform_0, window_bounds = array<i64: 1, 16, 16, 4>}, {pipeline_mode = #tpu.pipeline_mode<synchronous>, transform_indices = @transform_1, window_bounds = array<i64: 1, 4>}, {pipeline_mode = #tpu.pipeline_mode<synchronous>, transform_indices = @transform_2, window_bounds = array<i64: 1, 4>}, {pipeline_mode = #tpu.pipeline_mode<synchronous>, transform_indices = @transform_3, window_bounds = array<i64: 3, 3, 4, 4>}, {transform_indices = @transform_4, window_bounds = array<i64: 1, 16, 16, 4>}, {transform_indices = @transform_5, window_bounds = array<i64: 1, 2, 4>}]} {
    %cst = arith.constant 0.000000e+00 : bf16
    %0 = vector.broadcast %cst : bf16 to vector<1x18x4xbf16>
    %c0 = arith.constant 0 : index
    %c0_0 = arith.constant 0 : index
    %c0_1 = arith.constant 0 : index
    %1 = vector.load %arg7[%c0, %c0_0, %c0_1] : memref<18x18x4xbf16, #tpu.memory_space<vmem>>, vector<1x18x4xbf16>
    tpu.vector_store %arg7[%c0, %c0_0, %c0_1], %0 {strides = array<i32>} : memref<18x18x4xbf16, #tpu.memory_space<vmem>>, vector<1x18x4xbf16>,
    %cst_2 = arith.constant 0.000000e+00 : bf16
    %2 = vector.broadcast %cst_2 : bf16 to vector<1x18x4xbf16>
    %c17 = arith.constant 17 : index
    %c0_3 = arith.constant 0 : index
    %c0_4 = arith.constant 0 : index
    %3 = vector.load %arg7[%c17, %c0_3, %c0_4] : memref<18x18x4xbf16, #tpu.memory_space<vmem>>, vector<1x18x4xbf16>
    tpu.vector_store %arg7[%c17, %c0_3, %c0_4], %2 {strides = array<i32>} : memref<18x18x4xbf16, #tpu.memory_space<vmem>>, vector<1x18x4xbf16>,
    %cst_5 = arith.constant 0.000000e+00 : bf16
    %4 = vector.broadcast %cst_5 : bf16 to vector<18x1x4xbf16>
    %c0_6 = arith.constant 0 : index
    %c0_7 = arith.constant 0 : index
    %c0_8 = arith.constant 0 : index
    %5 = vector.load %arg7[%c0_6, %c0_7, %c0_8] : memref<18x18x4xbf16, #tpu.memory_space<vmem>>, vector<18x1x4xbf16>
    tpu.vector_store %arg7[%c0_6, %c0_7, %c0_8], %4 {strides = array<i32>} : memref<18x18x4xbf16, #tpu.memory_space<vmem>>, vector<18x1x4xbf16>,
    %cst_9 = arith.constant 0.000000e+00 : bf16
    %6 = vector.broadcast %cst_9 : bf16 to vector<18x1x4xbf16>
    %c0_10 = arith.constant 0 : index
    %c17_11 = arith.constant 17 : index
    %c0_12 = arith.constant 0 : index
    %7 = vector.load %arg7[%c0_10, %c17_11, %c0_12] : memref<18x18x4xbf16, #tpu.memory_space<vmem>>, vector<18x1x4xbf16>
    tpu.vector_store %arg7[%c0_10, %c17_11, %c0_12], %6 {strides = array<i32>} : memref<18x18x4xbf16, #tpu.memory_space<vmem>>, vector<18x1x4xbf16>,
    %c0_13 = arith.constant 0 : index
    %c0_14 = arith.constant 0 : index
    %c0_15 = arith.constant 0 : index
    %c0_16 = arith.constant 0 : index
    %8 = vector.load %arg1[%c0_13, %c0_14, %c0_15, %c0_16] : memref<1x16x16x4xbf16, #tpu.memory_space<vmem>>, vector<1x16x16x4xbf16>
    %9 = vector.shape_cast %8 : vector<1x16x16x4xbf16> to vector<16x16x4xbf16>
    %10 = arith.extf %9 : vector<16x16x4xbf16> to vector<16x16x4xf32>
    %c0_17 = arith.constant 0 : index
    %c0_18 = arith.constant 0 : index
    %11 = vector.load %arg2[%c0_17, %c0_18] : memref<1x4xf32, #tpu.memory_space<vmem>>, vector<1x4xf32>
    %12 = vector.shape_cast %11 : vector<1x4xf32> to vector<1x1x4xf32>
    %13 = vector.broadcast %12 : vector<1x1x4xf32> to vector<16x16x4xf32>
    %14 = arith.mulf %10, %13 : vector<16x16x4xf32>
    %c0_19 = arith.constant 0 : index
    %c0_20 = arith.constant 0 : index
    %15 = vector.load %arg3[%c0_19, %c0_20] : memref<1x4xf32, #tpu.memory_space<vmem>>, vector<1x4xf32>
    %16 = vector.shape_cast %15 : vector<1x4xf32> to vector<1x1x4xf32>
    %17 = vector.broadcast %16 : vector<1x1x4xf32> to vector<16x16x4xf32>
    %18 = arith.addf %14, %17 : vector<16x16x4xf32>
    %cst_21 = arith.constant 0.000000e+00 : f32
    %19 = vector.broadcast %cst_21 : f32 to vector<16x16x4xf32>
    %20 = arith.maximumf %18, %19 : vector<16x16x4xf32>
    %21 = arith.truncf %20 : vector<16x16x4xf32> to vector<16x16x4xbf16>
    %c1 = arith.constant 1 : index
    %c1_22 = arith.constant 1 : index
    %c0_23 = arith.constant 0 : index
    %22 = vector.load %arg7[%c1, %c1_22, %c0_23] : memref<18x18x4xbf16, #tpu.memory_space<vmem>>, vector<16x16x4xbf16>
    tpu.vector_store %arg7[%c1, %c1_22, %c0_23], %21 {strides = array<i32>} : memref<18x18x4xbf16, #tpu.memory_space<vmem>>, vector<16x16x4xbf16>,
    %c0_24 = arith.constant 0 : index
    %c0_25 = arith.constant 0 : index
    %c0_26 = arith.constant 0 : index
    %c0_27 = arith.constant 0 : index
    %23 = vector.load %arg4[%c0_24, %c0_25, %c0_26, %c0_27] : memref<3x3x4x4xbf16, #tpu.memory_space<vmem>>, vector<1x1x4x4xbf16>
    %24 = vector.shape_cast %23 : vector<1x1x4x4xbf16> to vector<4x4xbf16>
    %c0_28 = arith.constant 0 : index
    %c1_29 = arith.constant 1 : index
    %c0_30 = arith.constant 0 : index
    %c0_31 = arith.constant 0 : index
    %25 = vector.load %arg4[%c0_28, %c1_29, %c0_30, %c0_31] : memref<3x3x4x4xbf16, #tpu.memory_space<vmem>>, vector<1x1x4x4xbf16>
    %26 = vector.shape_cast %25 : vector<1x1x4x4xbf16> to vector<4x4xbf16>
    %c0_32 = arith.constant 0 : index
    %c2 = arith.constant 2 : index
    %c0_33 = arith.constant 0 : index
    %c0_34 = arith.constant 0 : index
    %27 = vector.load %arg4[%c0_32, %c2, %c0_33, %c0_34] : memref<3x3x4x4xbf16, #tpu.memory_space<vmem>>, vector<1x1x4x4xbf16>
    %28 = vector.shape_cast %27 : vector<1x1x4x4xbf16> to vector<4x4xbf16>
    %c1_35 = arith.constant 1 : index
    %c0_36 = arith.constant 0 : index
    %c0_37 = arith.constant 0 : index
    %c0_38 = arith.constant 0 : index
    %29 = vector.load %arg4[%c1_35, %c0_36, %c0_37, %c0_38] : memref<3x3x4x4xbf16, #tpu.memory_space<vmem>>, vector<1x1x4x4xbf16>
    %30 = vector.shape_cast %29 : vector<1x1x4x4xbf16> to vector<4x4xbf16>
    %c1_39 = arith.constant 1 : index
    %c1_40 = arith.constant 1 : index
    %c0_41 = arith.constant 0 : index
    %c0_42 = arith.constant 0 : index
    %31 = vector.load %arg4[%c1_39, %c1_40, %c0_41, %c0_42] : memref<3x3x4x4xbf16, #tpu.memory_space<vmem>>, vector<1x1x4x4xbf16>
    %32 = vector.shape_cast %31 : vector<1x1x4x4xbf16> to vector<4x4xbf16>
    %c1_43 = arith.constant 1 : index
    %c2_44 = arith.constant 2 : index
    %c0_45 = arith.constant 0 : index
    %c0_46 = arith.constant 0 : index
    %33 = vector.load %arg4[%c1_43, %c2_44, %c0_45, %c0_46] : memref<3x3x4x4xbf16, #tpu.memory_space<vmem>>, vector<1x1x4x4xbf16>
    %34 = vector.shape_cast %33 : vector<1x1x4x4xbf16> to vector<4x4xbf16>
    %c2_47 = arith.constant 2 : index
    %c0_48 = arith.constant 0 : index
    %c0_49 = arith.constant 0 : index
    %c0_50 = arith.constant 0 : index
    %35 = vector.load %arg4[%c2_47, %c0_48, %c0_49, %c0_50] : memref<3x3x4x4xbf16, #tpu.memory_space<vmem>>, vector<1x1x4x4xbf16>
    %36 = vector.shape_cast %35 : vector<1x1x4x4xbf16> to vector<4x4xbf16>
    %c2_51 = arith.constant 2 : index
    %c1_52 = arith.constant 1 : index
    %c0_53 = arith.constant 0 : index
    %c0_54 = arith.constant 0 : index
    %37 = vector.load %arg4[%c2_51, %c1_52, %c0_53, %c0_54] : memref<3x3x4x4xbf16, #tpu.memory_space<vmem>>, vector<1x1x4x4xbf16>
    %38 = vector.shape_cast %37 : vector<1x1x4x4xbf16> to vector<4x4xbf16>
    %c2_55 = arith.constant 2 : index
    %c2_56 = arith.constant 2 : index
    %c0_57 = arith.constant 0 : index
    %c0_58 = arith.constant 0 : index
    %39 = vector.load %arg4[%c2_55, %c2_56, %c0_57, %c0_58] : memref<3x3x4x4xbf16, #tpu.memory_space<vmem>>, vector<1x1x4x4xbf16>
    %40 = vector.shape_cast %39 : vector<1x1x4x4xbf16> to vector<4x4xbf16>
    %cst_59 = arith.constant 0.000000e+00 : f32
    %41 = vector.broadcast %cst_59 : f32 to vector<1x4xf32>
    %cst_60 = arith.constant 0.000000e+00 : f32
    %42 = vector.broadcast %cst_60 : f32 to vector<1x4xf32>
    %cst_61 = arith.constant 0.000000e+00 : f32
    %43 = vector.broadcast %cst_61 : f32 to vector<256x4xf32>
    %c0_62 = arith.constant 0 : index
    %c0_63 = arith.constant 0 : index
    %c0_64 = arith.constant 0 : index
    %44 = vector.load %arg7[%c0_62, %c0_63, %c0_64] : memref<18x18x4xbf16, #tpu.memory_space<vmem>>, vector<16x16x4xbf16>
    %45 = vector.shape_cast %44 : vector<16x16x4xbf16> to vector<256x4xbf16>
    %cst_65 = arith.constant dense<0.000000e+00> : vector<256x4xf32>
    %46 = tpu.matmul %45, %24, %cst_65 {dimension_numbers = #tpu.dot_dimension_numbers<[1], [0], [0], [1], [0, 0, 1, 1], [], []>} : vector<256x4xbf16>, vector<4x4xbf16>, vector<256x4xf32> -> vector<256x4xf32>
    %47 = arith.addf %43, %46 : vector<256x4xf32>
    %c0_66 = arith.constant 0 : index
    %c1_67 = arith.constant 1 : index
    %c0_68 = arith.constant 0 : index
    %48 = vector.load %arg7[%c0_66, %c1_67, %c0_68] : memref<18x18x4xbf16, #tpu.memory_space<vmem>>, vector<16x16x4xbf16>
    %49 = vector.shape_cast %48 : vector<16x16x4xbf16> to vector<256x4xbf16>
    %cst_69 = arith.constant dense<0.000000e+00> : vector<256x4xf32>
    %50 = tpu.matmul %49, %26, %cst_69 {dimension_numbers = #tpu.dot_dimension_numbers<[1], [0], [0], [1], [0, 0, 1, 1], [], []>} : vector<256x4xbf16>, vector<4x4xbf16>, vector<256x4xf32> -> vector<256x4xf32>
    %51 = arith.addf %47, %50 : vector<256x4xf32>
    %c0_70 = arith.constant 0 : index
    %c2_71 = arith.constant 2 : index
    %c0_72 = arith.constant 0 : index
    %52 = vector.load %arg7[%c0_70, %c2_71, %c0_72] : memref<18x18x4xbf16, #tpu.memory_space<vmem>>, vector<16x16x4xbf16>
    %53 = vector.shape_cast %52 : vector<16x16x4xbf16> to vector<256x4xbf16>
    %cst_73 = arith.constant dense<0.000000e+00> : vector<256x4xf32>
    %54 = tpu.matmul %53, %28, %cst_73 {dimension_numbers = #tpu.dot_dimension_numbers<[1], [0], [0], [1], [0, 0, 1, 1], [], []>} : vector<256x4xbf16>, vector<4x4xbf16>, vector<256x4xf32> -> vector<256x4xf32>
    %55 = arith.addf %51, %54 : vector<256x4xf32>
    %c1_74 = arith.constant 1 : index
    %c0_75 = arith.constant 0 : index
    %c0_76 = arith.constant 0 : index
    %56 = vector.load %arg7[%c1_74, %c0_75, %c0_76] : memref<18x18x4xbf16, #tpu.memory_space<vmem>>, vector<16x16x4xbf16>
    %57 = vector.shape_cast %56 : vector<16x16x4xbf16> to vector<256x4xbf16>
    %cst_77 = arith.constant dense<0.000000e+00> : vector<256x4xf32>
    %58 = tpu.matmul %57, %30, %cst_77 {dimension_numbers = #tpu.dot_dimension_numbers<[1], [0], [0], [1], [0, 0, 1, 1], [], []>} : vector<256x4xbf16>, vector<4x4xbf16>, vector<256x4xf32> -> vector<256x4xf32>
    %59 = arith.addf %55, %58 : vector<256x4xf32>
    %c1_78 = arith.constant 1 : index
    %c1_79 = arith.constant 1 : index
    %c0_80 = arith.constant 0 : index
    %60 = vector.load %arg7[%c1_78, %c1_79, %c0_80] : memref<18x18x4xbf16, #tpu.memory_space<vmem>>, vector<16x16x4xbf16>
    %61 = vector.shape_cast %60 : vector<16x16x4xbf16> to vector<256x4xbf16>
    %cst_81 = arith.constant dense<0.000000e+00> : vector<256x4xf32>
    %62 = tpu.matmul %61, %32, %cst_81 {dimension_numbers = #tpu.dot_dimension_numbers<[1], [0], [0], [1], [0, 0, 1, 1], [], []>} : vector<256x4xbf16>, vector<4x4xbf16>, vector<256x4xf32> -> vector<256x4xf32>
    %63 = arith.addf %59, %62 : vector<256x4xf32>
    %c1_82 = arith.constant 1 : index
    %c2_83 = arith.constant 2 : index
    %c0_84 = arith.constant 0 : index
    %64 = vector.load %arg7[%c1_82, %c2_83, %c0_84] : memref<18x18x4xbf16, #tpu.memory_space<vmem>>, vector<16x16x4xbf16>
    %65 = vector.shape_cast %64 : vector<16x16x4xbf16> to vector<256x4xbf16>
    %cst_85 = arith.constant dense<0.000000e+00> : vector<256x4xf32>
    %66 = tpu.matmul %65, %34, %cst_85 {dimension_numbers = #tpu.dot_dimension_numbers<[1], [0], [0], [1], [0, 0, 1, 1], [], []>} : vector<256x4xbf16>, vector<4x4xbf16>, vector<256x4xf32> -> vector<256x4xf32>
    %67 = arith.addf %63, %66 : vector<256x4xf32>
    %c2_86 = arith.constant 2 : index
    %c0_87 = arith.constant 0 : index
    %c0_88 = arith.constant 0 : index
    %68 = vector.load %arg7[%c2_86, %c0_87, %c0_88] : memref<18x18x4xbf16, #tpu.memory_space<vmem>>, vector<16x16x4xbf16>
    %69 = vector.shape_cast %68 : vector<16x16x4xbf16> to vector<256x4xbf16>
    %cst_89 = arith.constant dense<0.000000e+00> : vector<256x4xf32>
    %70 = tpu.matmul %69, %36, %cst_89 {dimension_numbers = #tpu.dot_dimension_numbers<[1], [0], [0], [1], [0, 0, 1, 1], [], []>} : vector<256x4xbf16>, vector<4x4xbf16>, vector<256x4xf32> -> vector<256x4xf32>
    %71 = arith.addf %67, %70 : vector<256x4xf32>
    %c2_90 = arith.constant 2 : index
    %c1_91 = arith.constant 1 : index
    %c0_92 = arith.constant 0 : index
    %72 = vector.load %arg7[%c2_90, %c1_91, %c0_92] : memref<18x18x4xbf16, #tpu.memory_space<vmem>>, vector<16x16x4xbf16>
    %73 = vector.shape_cast %72 : vector<16x16x4xbf16> to vector<256x4xbf16>
    %cst_93 = arith.constant dense<0.000000e+00> : vector<256x4xf32>
    %74 = tpu.matmul %73, %38, %cst_93 {dimension_numbers = #tpu.dot_dimension_numbers<[1], [0], [0], [1], [0, 0, 1, 1], [], []>} : vector<256x4xbf16>, vector<4x4xbf16>, vector<256x4xf32> -> vector<256x4xf32>
    %75 = arith.addf %71, %74 : vector<256x4xf32>
    %c2_94 = arith.constant 2 : index
    %c2_95 = arith.constant 2 : index
    %c0_96 = arith.constant 0 : index
    %76 = vector.load %arg7[%c2_94, %c2_95, %c0_96] : memref<18x18x4xbf16, #tpu.memory_space<vmem>>, vector<16x16x4xbf16>
    %77 = vector.shape_cast %76 : vector<16x16x4xbf16> to vector<256x4xbf16>
    %cst_97 = arith.constant dense<0.000000e+00> : vector<256x4xf32>
    %78 = tpu.matmul %77, %40, %cst_97 {dimension_numbers = #tpu.dot_dimension_numbers<[1], [0], [0], [1], [0, 0, 1, 1], [], []>} : vector<256x4xbf16>, vector<4x4xbf16>, vector<256x4xf32> -> vector<256x4xf32>
    %79 = arith.addf %75, %78 : vector<256x4xf32>
    %80 = vector.shape_cast %79 : vector<256x4xf32> to vector<16x16x4xf32>
    %81 = arith.truncf %80 : vector<16x16x4xf32> to vector<16x16x4xbf16>
    %c0_98 = arith.constant 0 : index
    %c0_99 = arith.constant 0 : index
    %c0_100 = arith.constant 0 : index
    %c0_101 = arith.constant 0 : index
    %82 = vector.load %arg5[%c0_98, %c0_99, %c0_100, %c0_101] : memref<1x16x16x4xbf16, #tpu.memory_space<vmem>>, vector<1x16x16x4xbf16>
    %83 = vector.shape_cast %82 : vector<1x16x16x4xbf16> to vector<16x16x4xbf16>
    %84 = vector.shape_cast %81 : vector<16x16x4xbf16> to vector<1x16x16x4xbf16>
    tpu.vector_store %arg5[%c0_98, %c0_99, %c0_100, %c0_101], %84 {strides = array<i32>} : memref<1x16x16x4xbf16, #tpu.memory_space<vmem>>, vector<1x16x16x4xbf16>,
    %cst_102 = arith.constant dense<0.000000e+00> : vector<4xf32>
    %85 = vector.multi_reduction <add>, %79, %cst_102 [0] : vector<256x4xf32> to vector<4xf32>
    %86 = vector.shape_cast %85 : vector<4xf32> to vector<1x4xf32>
    %87 = arith.addf %41, %86 : vector<1x4xf32>
    %88 = arith.mulf %79, %79 : vector<256x4xf32>
    %cst_103 = arith.constant dense<0.000000e+00> : vector<4xf32>
    %89 = vector.multi_reduction <add>, %88, %cst_103 [0] : vector<256x4xf32> to vector<4xf32>
    %90 = vector.shape_cast %89 : vector<4xf32> to vector<1x4xf32>
    %91 = arith.addf %42, %90 : vector<1x4xf32>
    %c0_104 = arith.constant 0 : index
    %c0_105 = arith.constant 0 : index
    %c0_106 = arith.constant 0 : index
    %92 = vector.load %arg6[%c0_104, %c0_105, %c0_106] : memref<1x2x4xf32, #tpu.memory_space<vmem>>, vector<1x1x4xf32>
    %93 = vector.shape_cast %92 : vector<1x1x4xf32> to vector<1x4xf32>
    %94 = vector.shape_cast %87 : vector<1x4xf32> to vector<1x1x4xf32>
    tpu.vector_store %arg6[%c0_104, %c0_105, %c0_106], %94 {strides = array<i32>} : memref<1x2x4xf32, #tpu.memory_space<vmem>>, vector<1x1x4xf32>,
    %c0_107 = arith.constant 0 : index
    %c1_108 = arith.constant 1 : index
    %c0_109 = arith.constant 0 : index
    %95 = vector.load %arg6[%c0_107, %c1_108, %c0_109] : memref<1x2x4xf32, #tpu.memory_space<vmem>>, vector<1x1x4xf32>
    %96 = vector.shape_cast %95 : vector<1x1x4xf32> to vector<1x4xf32>
    %97 = vector.shape_cast %91 : vector<1x4xf32> to vector<1x1x4xf32>
    tpu.vector_store %arg6[%c0_107, %c1_108, %c0_109], %97 {strides = array<i32>} : memref<1x2x4xf32, #tpu.memory_space<vmem>>, vector<1x1x4xf32>,
    return
  }
  func.func @transform_0(%arg0: i32) -> (i32, i32, i32, i32) {
    %c0_i32 = arith.constant 0 : i32
    %c0_i32_0 = arith.constant 0 : i32
    %c0_i32_1 = arith.constant 0 : i32
    %c0_i32_2 = arith.constant 0 : i32
    return %arg0, %c0_i32, %c0_i32_0, %c0_i32_1 : i32, i32, i32, i32
  }
  func.func @transform_1(%arg0: i32) -> (i32, i32) {
    %c0_i32 = arith.constant 0 : i32
    %c0_i32_0 = arith.constant 0 : i32
    %c0_i32_1 = arith.constant 0 : i32
    return %c0_i32, %c0_i32_0 : i32, i32
  }
  func.func @transform_2(%arg0: i32) -> (i32, i32) {
    %c0_i32 = arith.constant 0 : i32
    %c0_i32_0 = arith.constant 0 : i32
    %c0_i32_1 = arith.constant 0 : i32
    return %c0_i32, %c0_i32_0 : i32, i32
  }
  func.func @transform_3(%arg0: i32) -> (i32, i32, i32, i32) {
    %c0_i32 = arith.constant 0 : i32
    %c0_i32_0 = arith.constant 0 : i32
    %c0_i32_1 = arith.constant 0 : i32
    %c0_i32_2 = arith.constant 0 : i32
    %c0_i32_3 = arith.constant 0 : i32
    return %c0_i32, %c0_i32_0, %c0_i32_1, %c0_i32_2 : i32, i32, i32, i32
  }
  func.func @transform_4(%arg0: i32) -> (i32, i32, i32, i32) {
    %c0_i32 = arith.constant 0 : i32
    %c0_i32_0 = arith.constant 0 : i32
    %c0_i32_1 = arith.constant 0 : i32
    %c0_i32_2 = arith.constant 0 : i32
    return %arg0, %c0_i32, %c0_i32_0, %c0_i32_1 : i32, i32, i32, i32
  }
  func.func @transform_5(%arg0: i32) -> (i32, i32, i32) {
    %c0_i32 = arith.constant 0 : i32
    %c0_i32_0 = arith.constant 0 : i32
    %c0_i32_1 = arith.constant 0 : i32
    return %arg0, %c0_i32, %c0_i32_0 : i32, i32, i32
  }
}

module attributes {stable_mosaic.version = 11 : i64} {
  func.func @_bn_relu_conv1x1_stats_kernel(%arg0: i32, %arg1: memref<256x4xbf16, #tpu.memory_space<vmem>>, %arg2: memref<1x4xf32, #tpu.memory_space<vmem>>, %arg3: memref<1x4xf32, #tpu.memory_space<vmem>>, %arg4: memref<4x16xbf16, #tpu.memory_space<vmem>>, %arg5: memref<256x16xbf16, #tpu.memory_space<vmem>>, %arg6: memref<1x2x16xf32, #tpu.memory_space<vmem>>) attributes {dimension_semantics = [#tpu.dimension_semantics<parallel>], iteration_bounds = array<i64: 2>, scalar_prefetch = 0 : i64, scratch_operands = 0 : i64, tpu.core_type = #tpu.core_type<tc>, window_params = [{transform_indices = @transform_0, window_bounds = array<i64: 256, 4>}, {pipeline_mode = #tpu.pipeline_mode<synchronous>, transform_indices = @transform_1, window_bounds = array<i64: 1, 4>}, {pipeline_mode = #tpu.pipeline_mode<synchronous>, transform_indices = @transform_2, window_bounds = array<i64: 1, 4>}, {pipeline_mode = #tpu.pipeline_mode<synchronous>, transform_indices = @transform_3, window_bounds = array<i64: 4, 16>}, {transform_indices = @transform_4, window_bounds = array<i64: 256, 16>}, {transform_indices = @transform_5, window_bounds = array<i64: 1, 2, 16>}]} {
    %c0 = arith.constant 0 : index
    %c0_0 = arith.constant 0 : index
    %0 = vector.load %arg1[%c0, %c0_0] : memref<256x4xbf16, #tpu.memory_space<vmem>>, vector<256x4xbf16>
    %1 = arith.extf %0 : vector<256x4xbf16> to vector<256x4xf32>
    %c0_1 = arith.constant 0 : index
    %c0_2 = arith.constant 0 : index
    %2 = vector.load %arg2[%c0_1, %c0_2] : memref<1x4xf32, #tpu.memory_space<vmem>>, vector<1x4xf32>
    %3 = vector.broadcast %2 : vector<1x4xf32> to vector<256x4xf32>
    %4 = arith.mulf %1, %3 : vector<256x4xf32>
    %c0_3 = arith.constant 0 : index
    %c0_4 = arith.constant 0 : index
    %5 = vector.load %arg3[%c0_3, %c0_4] : memref<1x4xf32, #tpu.memory_space<vmem>>, vector<1x4xf32>
    %6 = vector.broadcast %5 : vector<1x4xf32> to vector<256x4xf32>
    %7 = arith.addf %4, %6 : vector<256x4xf32>
    %cst = arith.constant 0.000000e+00 : f32
    %8 = vector.broadcast %cst : f32 to vector<256x4xf32>
    %9 = arith.maximumf %7, %8 : vector<256x4xf32>
    %10 = arith.truncf %9 : vector<256x4xf32> to vector<256x4xbf16>
    %c0_5 = arith.constant 0 : index
    %c0_6 = arith.constant 0 : index
    %11 = vector.load %arg4[%c0_5, %c0_6] : memref<4x16xbf16, #tpu.memory_space<vmem>>, vector<4x16xbf16>
    %cst_7 = arith.constant dense<0.000000e+00> : vector<256x16xf32>
    %12 = tpu.matmul %10, %11, %cst_7 {dimension_numbers = #tpu.dot_dimension_numbers<[1], [0], [0], [1], [0, 0, 1, 1], [], []>} : vector<256x4xbf16>, vector<4x16xbf16>, vector<256x16xf32> -> vector<256x16xf32>
    %13 = arith.truncf %12 : vector<256x16xf32> to vector<256x16xbf16>
    %c0_8 = arith.constant 0 : index
    %c0_9 = arith.constant 0 : index
    %14 = vector.load %arg5[%c0_8, %c0_9] : memref<256x16xbf16, #tpu.memory_space<vmem>>, vector<256x16xbf16>
    tpu.vector_store %arg5[%c0_8, %c0_9], %13 {strides = array<i32>} : memref<256x16xbf16, #tpu.memory_space<vmem>>, vector<256x16xbf16>,
    %cst_10 = arith.constant dense<0.000000e+00> : vector<16xf32>
    %15 = vector.multi_reduction <add>, %12, %cst_10 [0] : vector<256x16xf32> to vector<16xf32>
    %16 = vector.shape_cast %15 : vector<16xf32> to vector<1x16xf32>
    %c0_11 = arith.constant 0 : index
    %c0_12 = arith.constant 0 : index
    %c0_13 = arith.constant 0 : index
    %17 = vector.load %arg6[%c0_11, %c0_12, %c0_13] : memref<1x2x16xf32, #tpu.memory_space<vmem>>, vector<1x1x16xf32>
    %18 = vector.shape_cast %17 : vector<1x1x16xf32> to vector<1x16xf32>
    %19 = vector.shape_cast %16 : vector<1x16xf32> to vector<1x1x16xf32>
    tpu.vector_store %arg6[%c0_11, %c0_12, %c0_13], %19 {strides = array<i32>} : memref<1x2x16xf32, #tpu.memory_space<vmem>>, vector<1x1x16xf32>,
    %20 = arith.mulf %12, %12 : vector<256x16xf32>
    %cst_14 = arith.constant dense<0.000000e+00> : vector<16xf32>
    %21 = vector.multi_reduction <add>, %20, %cst_14 [0] : vector<256x16xf32> to vector<16xf32>
    %22 = vector.shape_cast %21 : vector<16xf32> to vector<1x16xf32>
    %c0_15 = arith.constant 0 : index
    %c1 = arith.constant 1 : index
    %c0_16 = arith.constant 0 : index
    %23 = vector.load %arg6[%c0_15, %c1, %c0_16] : memref<1x2x16xf32, #tpu.memory_space<vmem>>, vector<1x1x16xf32>
    %24 = vector.shape_cast %23 : vector<1x1x16xf32> to vector<1x16xf32>
    %25 = vector.shape_cast %22 : vector<1x16xf32> to vector<1x1x16xf32>
    tpu.vector_store %arg6[%c0_15, %c1, %c0_16], %25 {strides = array<i32>} : memref<1x2x16xf32, #tpu.memory_space<vmem>>, vector<1x1x16xf32>,
    return
  }
  func.func @transform_0(%arg0: i32) -> (i32, i32) {
    %c0_i32 = arith.constant 0 : i32
    %c0_i32_0 = arith.constant 0 : i32
    return %arg0, %c0_i32 : i32, i32
  }
  func.func @transform_1(%arg0: i32) -> (i32, i32) {
    %c0_i32 = arith.constant 0 : i32
    %c0_i32_0 = arith.constant 0 : i32
    %c0_i32_1 = arith.constant 0 : i32
    return %c0_i32, %c0_i32_0 : i32, i32
  }
  func.func @transform_2(%arg0: i32) -> (i32, i32) {
    %c0_i32 = arith.constant 0 : i32
    %c0_i32_0 = arith.constant 0 : i32
    %c0_i32_1 = arith.constant 0 : i32
    return %c0_i32, %c0_i32_0 : i32, i32
  }
  func.func @transform_3(%arg0: i32) -> (i32, i32) {
    %c0_i32 = arith.constant 0 : i32
    %c0_i32_0 = arith.constant 0 : i32
    %c0_i32_1 = arith.constant 0 : i32
    return %c0_i32, %c0_i32_0 : i32, i32
  }
  func.func @transform_4(%arg0: i32) -> (i32, i32) {
    %c0_i32 = arith.constant 0 : i32
    %c0_i32_0 = arith.constant 0 : i32
    return %arg0, %c0_i32 : i32, i32
  }
  func.func @transform_5(%arg0: i32) -> (i32, i32, i32) {
    %c0_i32 = arith.constant 0 : i32
    %c0_i32_0 = arith.constant 0 : i32
    %c0_i32_1 = arith.constant 0 : i32
    return %arg0, %c0_i32, %c0_i32_0 : i32, i32, i32
  }
}

module attributes {stable_mosaic.version = 11 : i64} {
  func.func @_bn_add_relu_kernel(%arg0: i32, %arg1: memref<256x16xbf16, #tpu.memory_space<vmem>>, %arg2: memref<1x16xf32, #tpu.memory_space<vmem>>, %arg3: memref<1x16xf32, #tpu.memory_space<vmem>>, %arg4: memref<256x16xbf16, #tpu.memory_space<vmem>>, %arg5: memref<256x16xf32, #tpu.memory_space<vmem>>) attributes {dimension_semantics = [#tpu.dimension_semantics<parallel>], iteration_bounds = array<i64: 2>, scalar_prefetch = 0 : i64, scratch_operands = 0 : i64, tpu.core_type = #tpu.core_type<tc>, window_params = [{transform_indices = @transform_0, window_bounds = array<i64: 256, 16>}, {pipeline_mode = #tpu.pipeline_mode<synchronous>, transform_indices = @transform_1, window_bounds = array<i64: 1, 16>}, {pipeline_mode = #tpu.pipeline_mode<synchronous>, transform_indices = @transform_2, window_bounds = array<i64: 1, 16>}, {transform_indices = @transform_3, window_bounds = array<i64: 256, 16>}, {transform_indices = @transform_4, window_bounds = array<i64: 256, 16>}]} {
    %c0 = arith.constant 0 : index
    %c0_0 = arith.constant 0 : index
    %0 = vector.load %arg1[%c0, %c0_0] : memref<256x16xbf16, #tpu.memory_space<vmem>>, vector<256x16xbf16>
    %1 = arith.extf %0 : vector<256x16xbf16> to vector<256x16xf32>
    %c0_1 = arith.constant 0 : index
    %c0_2 = arith.constant 0 : index
    %2 = vector.load %arg2[%c0_1, %c0_2] : memref<1x16xf32, #tpu.memory_space<vmem>>, vector<1x16xf32>
    %3 = vector.broadcast %2 : vector<1x16xf32> to vector<256x16xf32>
    %4 = arith.mulf %1, %3 : vector<256x16xf32>
    %c0_3 = arith.constant 0 : index
    %c0_4 = arith.constant 0 : index
    %5 = vector.load %arg3[%c0_3, %c0_4] : memref<1x16xf32, #tpu.memory_space<vmem>>, vector<1x16xf32>
    %6 = vector.broadcast %5 : vector<1x16xf32> to vector<256x16xf32>
    %7 = arith.addf %4, %6 : vector<256x16xf32>
    %c0_5 = arith.constant 0 : index
    %c0_6 = arith.constant 0 : index
    %8 = vector.load %arg4[%c0_5, %c0_6] : memref<256x16xbf16, #tpu.memory_space<vmem>>, vector<256x16xbf16>
    %9 = arith.extf %8 : vector<256x16xbf16> to vector<256x16xf32>
    %10 = arith.addf %7, %9 : vector<256x16xf32>
    %cst = arith.constant 0.000000e+00 : f32
    %11 = vector.broadcast %cst : f32 to vector<256x16xf32>
    %12 = arith.maximumf %10, %11 : vector<256x16xf32>
    %c0_7 = arith.constant 0 : index
    %c0_8 = arith.constant 0 : index
    %13 = vector.load %arg5[%c0_7, %c0_8] : memref<256x16xf32, #tpu.memory_space<vmem>>, vector<256x16xf32>
    tpu.vector_store %arg5[%c0_7, %c0_8], %12 {strides = array<i32>} : memref<256x16xf32, #tpu.memory_space<vmem>>, vector<256x16xf32>,
    return
  }
  func.func @transform_0(%arg0: i32) -> (i32, i32) {
    %c0_i32 = arith.constant 0 : i32
    %c0_i32_0 = arith.constant 0 : i32
    return %arg0, %c0_i32 : i32, i32
  }
  func.func @transform_1(%arg0: i32) -> (i32, i32) {
    %c0_i32 = arith.constant 0 : i32
    %c0_i32_0 = arith.constant 0 : i32
    %c0_i32_1 = arith.constant 0 : i32
    return %c0_i32, %c0_i32_0 : i32, i32
  }
  func.func @transform_2(%arg0: i32) -> (i32, i32) {
    %c0_i32 = arith.constant 0 : i32
    %c0_i32_0 = arith.constant 0 : i32
    %c0_i32_1 = arith.constant 0 : i32
    return %c0_i32, %c0_i32_0 : i32, i32
  }
  func.func @transform_3(%arg0: i32) -> (i32, i32) {
    %c0_i32 = arith.constant 0 : i32
    %c0_i32_0 = arith.constant 0 : i32
    return %arg0, %c0_i32 : i32, i32
  }
  func.func @transform_4(%arg0: i32) -> (i32, i32) {
    %c0_i32 = arith.constant 0 : i32
    %c0_i32_0 = arith.constant 0 : i32
    return %arg0, %c0_i32 : i32, i32
  }
}

</mosaic_0001>

<llo_original>
// kernel: bottleneck_forward.4
$region0: #{bottleneck_forward.4}
  #allocation0 [shape = 'u32[]', space=smem, size = 0x4, offset = 0x4, fixed_abs, tag = 'smem constant byte address 0x4 - core index']
  #allocation1 [shape = 'u32[144,128]{1,0:T(1,128)}', space=vmem, size = 0x12000, scoped, tag = 'internal scratch']
  %s0 = inlined_call_operand.vmem [shape: bf16[512,16], index: 0, kind: input, shape index: {}]
  %s1 = inlined_call_operand.vmem [shape: bf16[16,4], index: 1, kind: input, shape index: {}]
  %s2 = inlined_call_operand.vmem [shape: bf16[512,4], index: 2, kind: output, shape index: {0}]
  %s3 = inlined_call_operand.vmem [shape: f32[2,2,4], index: 3, kind: output, shape index: {1}]
  %4 = xla_tuple %s2, %s3
  %s5 = sld [smem:[#allocation0]]
  $region49: #{bottleneck_forward.4} parent=0
    _
  %s7 = ssub.s32 1, %s5
  %s8 = scalar_select 0, %s7, %s5
  loop: start=0, step=1, limit=4
  $region2: #{bottleneck_forward.4} parent=0 // loop_pre_header
    _
  $region3: #{bottleneck_forward.4} parent=0 // loop_header
    %s10 = sphi 0, %s14
    %p11 = scmp.ge.s32.totalorder %s10, 4
    %s20 = sphi 0, %s22
    %s23 = sphi 0, %s20
    %s24 = sphi 0, %s23
    %s40 = sphi 0, %s24
    %s44 = sphi 0, %s44
    %s46 = sphi 0, %s44
    %s47 = sphi 0, %s46
    %s61 = sphi 0, %s47
    %s67 = sphi 0, %s69
    %s70 = sphi 0, %s67
    %s71 = sphi 0, %s70
    %s87 = sphi 0, %s71
    %s93 = sphi 0, %s95
    %s96 = sphi 0, %s93
    %s97 = sphi 0, %s96
    %s113 = sphi 0, %s97
  $region4: #{bottleneck_forward.4} parent=0 // loop_header_branch
    %13 = sbr.rel (%p11) target = $region8
  $region5: #{bottleneck_forward.4} parent=0 // loop_body
    %s15 = ssub.s32 %s10, 1
    %s16 = ssub.s32 %s10, 2
    %s17 = sadd.s32 %s10, 1
    %s18 = ssub.s32 %s10, %s17
    %p19 = scmp.eq.s32.totalorder %s18, 0
    %s21 = sadd.s32 %s20, 1
    %s22 = scalar_select %p19, %s20, %s21
    %p25 = pneg %p19
    %p26 = scmp.eq.s32.totalorder %s10, 1
    %p27 = por %p25, %p26
    %p28 = scmp.ne.s32.totalorder %s20, %s23
    %p29 = scmp.eq.s32.totalorder %s10, 0
    %p30 = por %p28, %p29
    %p31 = scmp.ne.s32.totalorder %s20, %s23
    %p32 = scmp.eq.s32.totalorder %s15, 1
    %p33 = por %p31, %p32
    %p34 = scmp.ne.s32.totalorder %s23, %s24
    %p35 = scmp.eq.s32.totalorder %s15, 0
    %p36 = por %p34, %p35
    %p37 = scmp.ne.s32.totalorder %s23, %s24
    %p38 = scmp.eq.s32.totalorder %s16, 1
    %p39 = por %p37, %p38
    %p41 = scmp.ne.s32.totalorder %s24, %s40
    %p42 = scmp.eq.s32.totalorder %s16, 0
    %p43 = por %p41, %p42
    %s45 = sadd.s32 %s44, 1
    %p48 = scmp.eq.s32.totalorder %s10, 1
    %p49 = scmp.ne.s32.totalorder %s44, %s46
    %p50 = scmp.eq.s32.totalorder %s10, 0
    %p51 = por %p49, %p50
    %p52 = scmp.ne.s32.totalorder %s44, %s46
    %p53 = scmp.eq.s32.totalorder %s15, 1
    %p54 = por %p52, %p53
    %p55 = scmp.ne.s32.totalorder %s46, %s47
    %p56 = scmp.eq.s32.totalorder %s15, 0
    %p57 = por %p55, %p56
    %p58 = scmp.ne.s32.totalorder %s46, %s47
    %p59 = scmp.eq.s32.totalorder %s16, 1
    %p60 = por %p58, %p59
    %p62 = scmp.ne.s32.totalorder %s47, %s61
    %p63 = scmp.eq.s32.totalorder %s16, 0
    %p64 = por %p62, %p63
    %s65 = ssub.s32 %s10, %s17
    %p66 = scmp.eq.s32.totalorder %s65, 0
    %s68 = sadd.s32 %s67, 1
    %s69 = scalar_select %p66, %s67, %s68
    %p72 = pneg %p66
    %p73 = scmp.eq.s32.totalorder %s10, 1
    %p74 = por %p72, %p73
    %p75 = scmp.ne.s32.totalorder %s67, %s70
    %p76 = scmp.eq.s32.totalorder %s10, 0
    %p77 = por %p75, %p76
    %p78 = scmp.ne.s32.totalorder %s67, %s70
    %p79 = scmp.eq.s32.totalorder %s15, 1
    %p80 = por %p78, %p79
    %p81 = scmp.ne.s32.totalorder %s70, %s71
    %p82 = scmp.eq.s32.totalorder %s15, 0
    %p83 = por %p81, %p82
    %p84 = scmp.ne.s32.totalorder %s70, %s71
    %p85 = scmp.eq.s32.totalorder %s16, 1
    %p86 = por %p84, %p85
    %p88 = scmp.ne.s32.totalorder %s71, %s87
    %p89 = scmp.eq.s32.totalorder %s16, 0
    %p90 = por %p88, %p89
    %s91 = ssub.s32 %s10, %s17
    %p92 = scmp.eq.s32.totalorder %s91, 0
    %s94 = sadd.s32 %s93, 1
    %s95 = scalar_select %p92, %s93, %s94
    %p98 = pneg %p92
    %p99 = scmp.eq.s32.totalorder %s10, 1
    %p100 = por %p98, %p99
    %p101 = scmp.ne.s32.totalorder %s93, %s96
    %p102 = scmp.eq.s32.totalorder %s10, 0
    %p103 = por %p101, %p102
    %p104 = scmp.ne.s32.totalorder %s93, %s96
    %p105 = scmp.eq.s32.totalorder %s15, 1
    %p106 = por %p104, %p105
    %p107 = scmp.ne.s32.totalorder %s96, %s97
    %p108 = scmp.eq.s32.totalorder %s15, 0
    %p109 = por %p107, %p108
    %p110 = scmp.ne.s32.totalorder %s96, %s97
    %p111 = scmp.eq.s32.totalorder %s16, 1
    %p112 = por %p110, %p111
    %p114 = scmp.ne.s32.totalorder %s97, %s113
    %p115 = scmp.eq.s32.totalorder %s16, 0
    %p116 = por %p114, %p115
    %p117 = scmp.le.s32.totalorder 1, %s10
    %p118 = scmp.lt.s32.totalorder %s10, 3
    %p119 = pnand %p117, %p118
    %p120 = pneg %p119
    // Predicated region
    $region9: #{bottleneck_forward.4} parent=5 // pred_check
      _
    $region10: #{bottleneck_forward.4} parent=5 // pred_check_branch
      %122 = sbr.rel (%p119) target = $region12
    $region11: #{bottleneck_forward.4} parent=5 // pred_region
      %s123 = ssub.s32 %s10, 1
      // Predicated region
      $region13: #{bottleneck_forward.4} parent=11 // pred_check
        %p124 = pneg %p57
      $region14: #{bottleneck_forward.4} parent=11 // pred_check_branch
        %126 = sbr.rel (%p124) target = $region16
      $region15: #{bottleneck_forward.4} parent=11 // pred_region
        _
      $region16: #{bottleneck_forward.4} parent=11 // pred_fallthru
        _
    $region12: #{bottleneck_forward.4} parent=5 // pred_fallthru
      _
    %p127 = scmp.lt.s32.totalorder %s10, 2
    // Predicated region
    $region17: #{bottleneck_forward.4} parent=5 // pred_check
      %p128 = pneg %p127
    $region18: #{bottleneck_forward.4} parent=5 // pred_check_branch
      %130 = sbr.rel (%p128) target = $region20
    $region19: #{bottleneck_forward.4} parent=5 // pred_region
      // Predicated region
      $region21: #{bottleneck_forward.4} parent=19 // pred_check
        %p131 = pneg %p30
      $region22: #{bottleneck_forward.4} parent=19 // pred_check_branch
        %133 = sbr.rel (%p131) target = $region24
      $region23: #{bottleneck_forward.4} parent=19 // pred_region
        %s134 = smul.u32 32, %s10
        %p135 = scmp.lt.s32.totalorder %s134, 63
        %s136 = scalar_select %p135, %s134, 63
        %s137 = smul.addr %s136, 4
        %s138 = scalar_lea.vmem %s0, %s137
        %s139 = smul.u32 32, %s10
      $region24: #{bottleneck_forward.4} parent=19 // pred_fallthru
        _
    $region20: #{bottleneck_forward.4} parent=5 // pred_fallthru
      _
    %p140 = scmp.le.s32.totalorder 1, %s10
    %p141 = scmp.lt.s32.totalorder %s10, 3
    %p142 = pnand %p140, %p141
    %p143 = pneg %p142
    // Predicated region
    $region25: #{bottleneck_forward.4} parent=5 // pred_check
      _
    $region26: #{bottleneck_forward.4} parent=5 // pred_check_branch
      %145 = sbr.rel (%p142) target = $region28
    $region27: #{bottleneck_forward.4} parent=5 // pred_region
      %s146 = ssub.s32 %s10, 1
      %s147 = smul.u32 32, %s15
      %p148 = scmp.lt.s32.totalorder %s147, 63
      %s149 = scalar_select %p148, %s147, 63
      %s150 = smul.addr %s149, 4
      %s151 = scalar_lea.vmem %s0, %s150
      %p152 = pneg %p36
      %p153 = pneg %p33
      %p154 = pneg %p57
      %p155 = pneg %p54
      %p156 = pneg %p83
      %p157 = pneg %p80
      %s158 = smul.u32 32, %s15
      %p159 = scmp.lt.s32.totalorder %s158, 63
      %s160 = scalar_select %p159, %s158, 63
      %s161 = smul.addr %s160, 4
      %s162 = scalar_lea.vmem %s2, %s161
      %p163 = pneg %p109
      %p164 = pneg %p106
      %p165 = scmp.lt.s32.totalorder %s15, 1
      %s166 = scalar_select %p165, %s15, 1
      %s167 = smul.addr %s166, 2
      %s168 = scalar_lea.vmem %s3, %s167
      %s169 = smul.u32 32, %s15
      %p170 = scmp.lt.s32.totalorder %s169, 63
      %s171 = scalar_select %p170, %s169, 63
      %s172 = smul.addr %s171, 4
      %s173 = scalar_lea.vmem %s0, %s172
      %s174 = smul.u32 32, %s15
      %s175 = smul.u32 32, %s15
      %p176 = scmp.lt.s32.totalorder %s175, 63
      %s177 = scalar_select %p176, %s175, 63
      %s178 = smul.addr %s177, 4
      %s179 = scalar_lea.vmem %s2, %s178
      %s180 = smul.u32 32, %s15
      %p181 = scmp.lt.s32.totalorder %s15, 1
      %s182 = scalar_select %p181, %s15, 1
      %s183 = smul.addr %s182, 2
      %s184 = scalar_lea.vmem %s3, %s183
      %v186 = vld [vmem:[%s173] sm:$0xf]
      %v187 = vld [vmem:[%s173 + $0x4] sm:$0xf]
      %v188 = vld [vmem:[%s173 + $0x8] sm:$0xf]
      %v189 = vld [vmem:[%s173 + $0xc] sm:$0xf]
      %v190 = vld [vmem:[%s173 + $0x10] sm:$0xf]
      %v191 = vld [vmem:[%s173 + $0x14] sm:$0xf]
      %v192 = vld [vmem:[%s173 + $0x18] sm:$0xf]
      %v193 = vld [vmem:[%s173 + $0x1c] sm:$0xf]
      %v194 = vld [vmem:[%s173 + $0x20] sm:$0xf]
      %v195 = vld [vmem:[%s173 + $0x24] sm:$0xf]
      %v196 = vld [vmem:[%s173 + $0x28] sm:$0xf]
      %v197 = vld [vmem:[%s173 + $0x2c] sm:$0xf]
      %v198 = vld [vmem:[%s173 + $0x30] sm:$0xf]
      %v199 = vld [vmem:[%s173 + $0x34] sm:$0xf]
      %v200 = vld [vmem:[%s173 + $0x38] sm:$0xf]
      %v201 = vld [vmem:[%s173 + $0x3c] sm:$0xf]
      %v202 = vld [vmem:[%s173 + $0x40] sm:$0xf]
      %v203 = vld [vmem:[%s173 + $0x44] sm:$0xf]
      %v204 = vld [vmem:[%s173 + $0x48] sm:$0xf]
      %v205 = vld [vmem:[%s173 + $0x4c] sm:$0xf]
      %v206 = vld [vmem:[%s173 + $0x50] sm:$0xf]
      %v207 = vld [vmem:[%s173 + $0x54] sm:$0xf]
      %v208 = vld [vmem:[%s173 + $0x58] sm:$0xf]
      %v209 = vld [vmem:[%s173 + $0x5c] sm:$0xf]
      %v210 = vld [vmem:[%s173 + $0x60] sm:$0xf]
      %v211 = vld [vmem:[%s173 + $0x64] sm:$0xf]
      %v212 = vld [vmem:[%s173 + $0x68] sm:$0xf]
      %v213 = vld [vmem:[%s173 + $0x6c] sm:$0xf]
      %v214 = vld [vmem:[%s173 + $0x70] sm:$0xf]
      %v215 = vld [vmem:[%s173 + $0x74] sm:$0xf]
      %v216 = vld [vmem:[%s173 + $0x78] sm:$0xf]
      %v217 = vld [vmem:[%s173 + $0x7c] sm:$0xf]
      %v218 = vld [vmem:[%s1] sm:$0xf]
      %v219 = vld [vmem:[%s1 + $0x4] sm:$0xf]
      %v252 = vunpack.c.l.b16 %v186
      %v253 = vunpack.c.l.b16 %v187
      %v254 = vunpack.c.l.b16 %v188
      %v255 = vunpack.c.l.b16 %v189
      %v256 = vunpack.c.l.b16 %v190
      %v257 = vunpack.c.l.b16 %v191
      %v258 = vunpack.c.l.b16 %v192
      %v259 = vunpack.c.l.b16 %v193
      %v260 = vunpack.c.l.b16 %v194
      %v261 = vunpack.c.l.b16 %v195
      %v262 = vunpack.c.l.b16 %v196
      %v263 = vunpack.c.l.b16 %v197
      %v264 = vunpack.c.l.b16 %v198
      %v265 = vunpack.c.l.b16 %v199
      %v266 = vunpack.c.l.b16 %v200
      %v267 = vunpack.c.l.b16 %v201
      %v268 = vunpack.c.l.b16 %v202
      %v269 = vunpack.c.l.b16 %v203
      %v270 = vunpack.c.l.b16 %v204
      %v271 = vunpack.c.l.b16 %v205
      %v272 = vunpack.c.l.b16 %v206
      %v273 = vunpack.c.l.b16 %v207
      %v274 = vunpack.c.l.b16 %v208
      %v275 = vunpack.c.l.b16 %v209
      %v276 = vunpack.c.l.b16 %v210
      %v277 = vunpack.c.l.b16 %v211
      %v278 = vunpack.c.l.b16 %v212
      %v279 = vunpack.c.l.b16 %v213
      %v280 = vunpack.c.l.b16 %v214
      %v281 = vunpack.c.l.b16 %v215
      %v282 = vunpack.c.l.b16 %v216
      %v283 = vunpack.c.l.b16 %v217
      %v284 = vpack.c.b16 %v253, %v252
      %v285 = vpack.c.b16 %v255, %v254
      %v286 = vpack.c.b16 %v257, %v256
      %v287 = vpack.c.b16 %v259, %v258
      %v288 = vpack.c.b16 %v261, %v260
      %v289 = vpack.c.b16 %v263, %v262
      %v290 = vpack.c.b16 %v265, %v264
      %v291 = vpack.c.b16 %v267, %v266
      %v292 = vpack.c.b16 %v269, %v268
      %v293 = vpack.c.b16 %v271, %v270
      %v294 = vpack.c.b16 %v273, %v272
      %v295 = vpack.c.b16 %v275, %v274
      %v296 = vpack.c.b16 %v277, %v276
      %v297 = vpack.c.b16 %v279, %v278
      %v298 = vpack.c.b16 %v281, %v280
      %v299 = vpack.c.b16 %v283, %v282
      %v302 = vunpack.c.l.b16 %v218
      %v303 = vunpack.c.l.b16 %v219
      %v304 = vpack.c.b16 %v303, %v302
      %vm306 = vcmask 130048
      %v308 = vsel %vm306, %v284, 0
      %v311 = vsel %vm306, %v285, 0
      %v314 = vsel %vm306, %v286, 0
      %v317 = vsel %vm306, %v287, 0
      %v320 = vsel %vm306, %v288, 0
      %v323 = vsel %vm306, %v289, 0
      %v326 = vsel %vm306, %v290, 0
      %v329 = vsel %vm306, %v291, 0
      %v332 = vsel %vm306, %v292, 0
      %v335 = vsel %vm306, %v293, 0
      %v338 = vsel %vm306, %v294, 0
      %v341 = vsel %vm306, %v295, 0
      %v344 = vsel %vm306, %v296, 0
      %v347 = vsel %vm306, %v297, 0
      %v350 = vsel %vm306, %v298, 0
      %v353 = vsel %vm306, %v299, 0
      %355 = vmatprep.subr.bf16.mxu0 0
      %356 = vmatpush1.bf16.msra.mxu0 %v304
      %357 = vmatprep.subr.bf16.mxu0 0
      %358 = vmatpush1.bf16.msra.mxu0 0
      %359 = vmatprep.subr.bf16.mxu0 0
      %360 = vmatpush1.bf16.msra.mxu0 0
      %361 = vmatprep.subr.bf16.mxu0 0
      %362 = vmatpush1.bf16.msra.mxu0 0
      %363 = vmatprep.subr.bf16.mxu0 0
      %364 = vmatpush1.bf16.msra.mxu0 0
      %365 = vmatprep.subr.bf16.mxu0 0
      %366 = vmatpush1.bf16.msra.mxu0 0
      %367 = vmatprep.subr.bf16.mxu0 0
      %368 = vmatpush1.bf16.msra.mxu0 0
      %369 = vmatprep.subr.bf16.mxu0 0
      %370 = vmatpush1.bf16.msra.mxu0 0
      %371 = vmatprep.subr.bf16.mxu0 0
      %372 = vmatpush1.bf16.msra.mxu0 0
      %373 = vmatprep.subr.bf16.mxu0 0
      %374 = vmatpush1.bf16.msra.mxu0 0
      %375 = vmatprep.subr.bf16.mxu0 0
      %376 = vmatpush1.bf16.msra.mxu0 0
      %377 = vmatprep.subr.bf16.mxu0 0
      %378 = vmatpush1.bf16.msra.mxu0 0
      %379 = vmatprep.subr.bf16.mxu0 0
      %380 = vmatpush1.bf16.msra.mxu0 0
      %381 = vmatprep.subr.bf16.mxu0 0
      %382 = vmatpush1.bf16.msra.mxu0 0
      %383 = vmatprep.subr.bf16.mxu0 0
      %384 = vmatpush1.bf16.msra.mxu0 0
      %385 = vmatprep.subr.bf16.mxu0 0
      %386 = vmatpush1.bf16.msra.mxu0 0
      %387 = vmatprep.mubr.bf16.mxu0 0
      %388 = vmatmul.mubr.bf16.gmra.mrb[0].mxu0 %v308
      %v389 = vpop.f32.mrb[0].mxu0
      %v390 = vadd.f32 0.0, %v389
      %v391 = vpop.f32.mrb[0].mxu0
      %v392 = vpop.f32.mrb[0].mxu0
      %v393 = vadd.f32 0.0, %v392
      %v394 = vpop.f32.mrb[0].mxu0
      %395 = vmatprep.mubr.bf16.mxu0 0
      %396 = vmatmul.mubr.bf16.gmra.mrb[0].mxu0 %v311
      %v397 = vpop.f32.mrb[0].mxu0
      %v398 = vadd.f32 0.0, %v397
      %v399 = vpop.f32.mrb[0].mxu0
      %v400 = vpop.f32.mrb[0].mxu0
      %v401 = vadd.f32 0.0, %v400
      %v402 = vpop.f32.mrb[0].mxu0
      %403 = vmatprep.mubr.bf16.mxu0 0
      %404 = vmatmul.mubr.bf16.gmra.mrb[0].mxu0 %v314
      %v405 = vpop.f32.mrb[0].mxu0
      %v406 = vadd.f32 0.0, %v405
      %v407 = vpop.f32.mrb[0].mxu0
      %v408 = vpop.f32.mrb[0].mxu0
      %v409 = vadd.f32 0.0, %v408
      %v410 = vpop.f32.mrb[0].mxu0
      %411 = vmatprep.mubr.bf16.mxu0 0
      %412 = vmatmul.mubr.bf16.gmra.mrb[0].mxu0 %v317
      %v413 = vpop.f32.mrb[0].mxu0
      %v414 = vadd.f32 0.0, %v413
      %v415 = vpop.f32.mrb[0].mxu0
      %v416 = vpop.f32.mrb[0].mxu0
      %v417 = vadd.f32 0.0, %v416
      %v418 = vpop.f32.mrb[0].mxu0
      %419 = vmatprep.mubr.bf16.mxu0 0
      %420 = vmatmul.mubr.bf16.gmra.mrb[0].mxu0 %v320
      %v421 = vpop.f32.mrb[0].mxu0
      %v422 = vadd.f32 0.0, %v421
      %v423 = vpop.f32.mrb[0].mxu0
      %v424 = vpop.f32.mrb[0].mxu0
      %v425 = vadd.f32 0.0, %v424
      %v426 = vpop.f32.mrb[0].mxu0
      %427 = vmatprep.mubr.bf16.mxu0 0
      %428 = vmatmul.mubr.bf16.gmra.mrb[0].mxu0 %v323
      %v429 = vpop.f32.mrb[0].mxu0
      %v430 = vadd.f32 0.0, %v429
      %v431 = vpop.f32.mrb[0].mxu0
      %v432 = vpop.f32.mrb[0].mxu0
      %v433 = vadd.f32 0.0, %v432
      %v434 = vpop.f32.mrb[0].mxu0
      %435 = vmatprep.mubr.bf16.mxu0 0
      %436 = vmatmul.mubr.bf16.gmra.mrb[0].mxu0 %v326
      %v437 = vpop.f32.mrb[0].mxu0
      %v438 = vadd.f32 0.0, %v437
      %v439 = vpop.f32.mrb[0].mxu0
      %v440 = vpop.f32.mrb[0].mxu0
      %v441 = vadd.f32 0.0, %v440
      %v442 = vpop.f32.mrb[0].mxu0
      %443 = vmatprep.mubr.bf16.mxu0 0
      %444 = vmatmul.mubr.bf16.gmra.mrb[0].mxu0 %v329
      %v445 = vpop.f32.mrb[0].mxu0
      %v446 = vadd.f32 0.0, %v445
      %v447 = vpop.f32.mrb[0].mxu0
      %v448 = vpop.f32.mrb[0].mxu0
      %v449 = vadd.f32 0.0, %v448
      %v450 = vpop.f32.mrb[0].mxu0
      %451 = vmatprep.mubr.bf16.mxu0 0
      %452 = vmatmul.mubr.bf16.gmra.mrb[0].mxu0 %v332
      %v453 = vpop.f32.mrb[0].mxu0
      %v454 = vadd.f32 0.0, %v453
      %v455 = vpop.f32.mrb[0].mxu0
      %v456 = vpop.f32.mrb[0].mxu0
      %v457 = vadd.f32 0.0, %v456
      %v458 = vpop.f32.mrb[0].mxu0
      %459 = vmatprep.mubr.bf16.mxu0 0
      %460 = vmatmul.mubr.bf16.gmra.mrb[0].mxu0 %v335
      %v461 = vpop.f32.mrb[0].mxu0
      %v462 = vadd.f32 0.0, %v461
      %v463 = vpop.f32.mrb[0].mxu0
      %v464 = vpop.f32.mrb[0].mxu0
      %v465 = vadd.f32 0.0, %v464
      %v466 = vpop.f32.mrb[0].mxu0
      %467 = vmatprep.mubr.bf16.mxu0 0
      %468 = vmatmul.mubr.bf16.gmra.mrb[0].mxu0 %v338
      %v469 = vpop.f32.mrb[0].mxu0
      %v470 = vadd.f32 0.0, %v469
      %v471 = vpop.f32.mrb[0].mxu0
      %v472 = vpop.f32.mrb[0].mxu0
      %v473 = vadd.f32 0.0, %v472
      %v474 = vpop.f32.mrb[0].mxu0
      %475 = vmatprep.mubr.bf16.mxu0 0
      %476 = vmatmul.mubr.bf16.gmra.mrb[0].mxu0 %v341
      %v477 = vpop.f32.mrb[0].mxu0
      %v478 = vadd.f32 0.0, %v477
      %v479 = vpop.f32.mrb[0].mxu0
      %v480 = vpop.f32.mrb[0].mxu0
      %v481 = vadd.f32 0.0, %v480
      %v482 = vpop.f32.mrb[0].mxu0
      %483 = vmatprep.mubr.bf16.mxu0 0
      %484 = vmatmul.mubr.bf16.gmra.mrb[0].mxu0 %v344
      %v485 = vpop.f32.mrb[0].mxu0
      %v486 = vadd.f32 0.0, %v485
      %v487 = vpop.f32.mrb[0].mxu0
      %v488 = vpop.f32.mrb[0].mxu0
      %v489 = vadd.f32 0.0, %v488
      %v490 = vpop.f32.mrb[0].mxu0
      %491 = vmatprep.mubr.bf16.mxu0 0
      %492 = vmatmul.mubr.bf16.gmra.mrb[0].mxu0 %v347
      %v493 = vpop.f32.mrb[0].mxu0
      %v494 = vadd.f32 0.0, %v493
      %v495 = vpop.f32.mrb[0].mxu0
      %v496 = vpop.f32.mrb[0].mxu0
      %v497 = vadd.f32 0.0, %v496
      %v498 = vpop.f32.mrb[0].mxu0
      %499 = vmatprep.mubr.bf16.mxu0 0
      %500 = vmatmul.mubr.bf16.gmra.mrb[0].mxu0 %v350
      %v501 = vpop.f32.mrb[0].mxu0
      %v502 = vadd.f32 0.0, %v501
      %v503 = vpop.f32.mrb[0].mxu0
      %v504 = vpop.f32.mrb[0].mxu0
      %v505 = vadd.f32 0.0, %v504
      %v506 = vpop.f32.mrb[0].mxu0
      %507 = vmatprep.mubr.bf16.mxu0 0
      %508 = vmatmul.mubr.bf16.gmra.mrb[0].mxu0 %v353
      %v509 = vpop.f32.mrb[0].mxu0
      %v510 = vadd.f32 0.0, %v509
      %v511 = vpop.f32.mrb[0].mxu0
      %v512 = vpop.f32.mrb[0].mxu0
      %v513 = vadd.f32 0.0, %v512
      %v514 = vpop.f32.mrb[0].mxu0
      %515 = vdwg.mxu0
      %v516 = vpack.c.bf16 %v393, %v390
      %v517 = vpack.c.bf16 %v401, %v398
      %v518 = vpack.c.bf16 %v409, %v406
      %v519 = vpack.c.bf16 %v417, %v414
      %v520 = vpack.c.bf16 %v425, %v422
      %v521 = vpack.c.bf16 %v433, %v430
      %v522 = vpack.c.bf16 %v441, %v438
      %v523 = vpack.c.bf16 %v449, %v446
      %v524 = vpack.c.bf16 %v457, %v454
      %v525 = vpack.c.bf16 %v465, %v462
      %v526 = vpack.c.bf16 %v473, %v470
      %v527 = vpack.c.bf16 %v481, %v478
      %v528 = vpack.c.bf16 %v489, %v486
      %v529 = vpack.c.bf16 %v497, %v494
      %v530 = vpack.c.bf16 %v505, %v502
      %v531 = vpack.c.bf16 %v513, %v510
      %v548 = vunpack.c.l.b16 %v516
      %v549 = vunpack.c.h.b16 %v516
      %v550 = vunpack.c.l.b16 %v517
      %v551 = vunpack.c.h.b16 %v517
      %v552 = vunpack.c.l.b16 %v518
      %v553 = vunpack.c.h.b16 %v518
      %v554 = vunpack.c.l.b16 %v519
      %v555 = vunpack.c.h.b16 %v519
      %v556 = vunpack.c.l.b16 %v520
      %v557 = vunpack.c.h.b16 %v520
      %v558 = vunpack.c.l.b16 %v521
      %v559 = vunpack.c.h.b16 %v521
      %v560 = vunpack.c.l.b16 %v522
      %v561 = vunpack.c.h.b16 %v522
      %v562 = vunpack.c.l.b16 %v523
      %v563 = vunpack.c.h.b16 %v523
      %v564 = vunpack.c.l.b16 %v524
      %v565 = vunpack.c.h.b16 %v524
      %v566 = vunpack.c.l.b16 %v525
      %v567 = vunpack.c.h.b16 %v525
      %v568 = vunpack.c.l.b16 %v526
      %v569 = vunpack.c.h.b16 %v526
      %v570 = vunpack.c.l.b16 %v527
      %v571 = vunpack.c.h.b16 %v527
      %v572 = vunpack.c.l.b16 %v528
      %v573 = vunpack.c.h.b16 %v528
      %v574 = vunpack.c.l.b16 %v529
      %v575 = vunpack.c.h.b16 %v529
      %v576 = vunpack.c.l.b16 %v530
      %v577 = vunpack.c.h.b16 %v530
      %v578 = vunpack.c.l.b16 %v531
      %v579 = vunpack.c.h.b16 %v531
      %v580 = vpack.c.b16 %v548, %v548
      %v581 = vpack.c.b16 %v549, %v549
      %v582 = vpack.c.b16 %v550, %v550
      %v583 = vpack.c.b16 %v551, %v551
      %v584 = vpack.c.b16 %v552, %v552
      %v585 = vpack.c.b16 %v553, %v553
      %v586 = vpack.c.b16 %v554, %v554
      %v587 = vpack.c.b16 %v555, %v555
      %v588 = vpack.c.b16 %v556, %v556
      %v589 = vpack.c.b16 %v557, %v557
      %v590 = vpack.c.b16 %v558, %v558
      %v591 = vpack.c.b16 %v559, %v559
      %v592 = vpack.c.b16 %v560, %v560
      %v593 = vpack.c.b16 %v561, %v561
      %v594 = vpack.c.b16 %v562, %v562
      %v595 = vpack.c.b16 %v563, %v563
      %v596 = vpack.c.b16 %v564, %v564
      %v597 = vpack.c.b16 %v565, %v565
      %v598 = vpack.c.b16 %v566, %v566
      %v599 = vpack.c.b16 %v567, %v567
      %v600 = vpack.c.b16 %v568, %v568
      %v601 = vpack.c.b16 %v569, %v569
      %v602 = vpack.c.b16 %v570, %v570
      %v603 = vpack.c.b16 %v571, %v571
      %v604 = vpack.c.b16 %v572, %v572
      %v605 = vpack.c.b16 %v573, %v573
      %v606 = vpack.c.b16 %v574, %v574
      %v607 = vpack.c.b16 %v575, %v575
      %v608 = vpack.c.b16 %v576, %v576
      %v609 = vpack.c.b16 %v577, %v577
      %v610 = vpack.c.b16 %v578, %v578
      %v611 = vpack.c.b16 %v579, %v579
      %vm644 = vcmask 27648
      %645 = vst.msk [vmem:[%s179] sm:$0xf] %vm644, %v580
      %646 = vst.msk [vmem:[%s179 + $0x4] sm:$0xf] %vm644, %v581
      %647 = vst.msk [vmem:[%s179 + $0x8] sm:$0xf] %vm644, %v582
      %648 = vst.msk [vmem:[%s179 + $0xc] sm:$0xf] %vm644, %v583
      %649 = vst.msk [vmem:[%s179 + $0x10] sm:$0xf] %vm644, %v584
      %650 = vst.msk [vmem:[%s179 + $0x14] sm:$0xf] %vm644, %v585
      %651 = vst.msk [vmem:[%s179 + $0x18] sm:$0xf] %vm644, %v586
      %652 = vst.msk [vmem:[%s179 + $0x1c] sm:$0xf] %vm644, %v587
      %653 = vst.msk [vmem:[%s179 + $0x20] sm:$0xf] %vm644, %v588
      %654 = vst.msk [vmem:[%s179 + $0x24] sm:$0xf] %vm644, %v589
      %655 = vst.msk [vmem:[%s179 + $0x28] sm:$0xf] %vm644, %v590
      %656 = vst.msk [vmem:[%s179 + $0x2c] sm:$0xf] %vm644, %v591
      %657 = vst.msk [vmem:[%s179 + $0x30] sm:$0xf] %vm644, %v592
      %658 = vst.msk [vmem:[%s179 + $0x34] sm:$0xf] %vm644, %v593
      %659 = vst.msk [vmem:[%s179 + $0x38] sm:$0xf] %vm644, %v594
      %660 = vst.msk [vmem:[%s179 + $0x3c] sm:$0xf] %vm644, %v595
      %661 = vst.msk [vmem:[%s179 + $0x40] sm:$0xf] %vm644, %v596
      %662 = vst.msk [vmem:[%s179 + $0x44] sm:$0xf] %vm644, %v597
      %663 = vst.msk [vmem:[%s179 + $0x48] sm:$0xf] %vm644, %v598
      %664 = vst.msk [vmem:[%s179 + $0x4c] sm:$0xf] %vm644, %v599
      %665 = vst.msk [vmem:[%s179 + $0x50] sm:$0xf] %vm644, %v600
      %666 = vst.msk [vmem:[%s179 + $0x54] sm:$0xf] %vm644, %v601
      %667 = vst.msk [vmem:[%s179 + $0x58] sm:$0xf] %vm644, %v602
      %668 = vst.msk [vmem:[%s179 + $0x5c] sm:$0xf] %vm644, %v603
      %669 = vst.msk [vmem:[%s179 + $0x60] sm:$0xf] %vm644, %v604
      %670 = vst.msk [vmem:[%s179 + $0x64] sm:$0xf] %vm644, %v605
      %671 = vst.msk [vmem:[%s179 + $0x68] sm:$0xf] %vm644, %v606
      %672 = vst.msk [vmem:[%s179 + $0x6c] sm:$0xf] %vm644, %v607
      %673 = vst.msk [vmem:[%s179 + $0x70] sm:$0xf] %vm644, %v608
      %674 = vst.msk [vmem:[%s179 + $0x74] sm:$0xf] %vm644, %v609
      %675 = vst.msk [vmem:[%s179 + $0x78] sm:$0xf] %vm644, %v610
      %676 = vst.msk [vmem:[%s179 + $0x7c] sm:$0xf] %vm644, %v611
      %vm677 = vcmask 31744
      %v678 = vsel %vm677, %v390, 0.0
      %v679 = vsel %vm677, %v393, 0.0
      %v680 = vadd.f32 %v678, %v679
      %v681 = vsel %vm677, %v398, 0.0
      %v682 = vadd.f32 %v680, %v681
      %v683 = vsel %vm677, %v401, 0.0
      %v684 = vadd.f32 %v682, %v683
      %v685 = vsel %vm677, %v406, 0.0
      %v686 = vadd.f32 %v684, %v685
      %v687 = vsel %vm677, %v409, 0.0
      %v688 = vadd.f32 %v686, %v687
      %v689 = vsel %vm677, %v414, 0.0
      %v690 = vadd.f32 %v688, %v689
      %v691 = vsel %vm677, %v417, 0.0
      %v692 = vadd.f32 %v690, %v691
      %v693 = vsel %vm677, %v422, 0.0
      %v694 = vadd.f32 %v692, %v693
      %v695 = vsel %vm677, %v425, 0.0
      %v696 = vadd.f32 %v694, %v695
      %v697 = vsel %vm677, %v430, 0.0
      %v698 = vadd.f32 %v696, %v697
      %v699 = vsel %vm677, %v433, 0.0
      %v700 = vadd.f32 %v698, %v699
      %v701 = vsel %vm677, %v438, 0.0
      %v702 = vadd.f32 %v700, %v701
      %v703 = vsel %vm677, %v441, 0.0
      %v704 = vadd.f32 %v702, %v703
      %v705 = vsel %vm677, %v446, 0.0
      %v706 = vadd.f32 %v704, %v705
      %v707 = vsel %vm677, %v449, 0.0
      %v708 = vadd.f32 %v706, %v707
      %v709 = vsel %vm677, %v454, 0.0
      %v710 = vadd.f32 %v708, %v709
      %v711 = vsel %vm677, %v457, 0.0
      %v712 = vadd.f32 %v710, %v711
      %v713 = vsel %vm677, %v462, 0.0
      %v714 = vadd.f32 %v712, %v713
      %v715 = vsel %vm677, %v465, 0.0
      %v716 = vadd.f32 %v714, %v715
      %v717 = vsel %vm677, %v470, 0.0
      %v718 = vadd.f32 %v716, %v717
      %v719 = vsel %vm677, %v473, 0.0
      %v720 = vadd.f32 %v718, %v719
      %v721 = vsel %vm677, %v478, 0.0
      %v722 = vadd.f32 %v720, %v721
      %v723 = vsel %vm677, %v481, 0.0
      %v724 = vadd.f32 %v722, %v723
      %v725 = vsel %vm677, %v486, 0.0
      %v726 = vadd.f32 %v724, %v725
      %v727 = vsel %vm677, %v489, 0.0
      %v728 = vadd.f32 %v726, %v727
      %v729 = vsel %vm677, %v494, 0.0
      %v730 = vadd.f32 %v728, %v729
      %v731 = vsel %vm677, %v497, 0.0
      %v732 = vadd.f32 %v730, %v731
      %v733 = vsel %vm677, %v502, 0.0
      %v734 = vadd.f32 %v732, %v733
      %v735 = vsel %vm677, %v505, 0.0
      %v736 = vadd.f32 %v734, %v735
      %v737 = vsel %vm677, %v510, 0.0
      %v738 = vadd.f32 %v736, %v737
      %v739 = vsel %vm677, %v513, 0.0
      %v740 = vadd.f32 %v738, %v739
      %v741 = vrot.slane %v740, 4
      %v742 = vadd.f32 %v740, %v741
      %v743 = vrot.slane %v742, 2
      %v744 = vadd.f32 %v742, %v743
      %v745 = vrot.slane %v744, 1
      %v746 = vadd.f32 %v744, %v745
      %vm747 = vcmask 24576
      %748 = vst.msk [vmem:[%s184] sm:$0x1] %vm747, %v746
      %v749 = vmul.f32 %v390, %v390
      %v750 = vmul.f32 %v393, %v393
      %v751 = vmul.f32 %v398, %v398
      %v752 = vmul.f32 %v401, %v401
      %v753 = vmul.f32 %v406, %v406
      %v754 = vmul.f32 %v409, %v409
      %v755 = vmul.f32 %v414, %v414
      %v756 = vmul.f32 %v417, %v417
      %v757 = vmul.f32 %v422, %v422
      %v758 = vmul.f32 %v425, %v425
      %v759 = vmul.f32 %v430, %v430
      %v760 = vmul.f32 %v433, %v433
      %v761 = vmul.f32 %v438, %v438
      %v762 = vmul.f32 %v441, %v441
      %v763 = vmul.f32 %v446, %v446
      %v764 = vmul.f32 %v449, %v449
      %v765 = vmul.f32 %v454, %v454
      %v766 = vmul.f32 %v457, %v457
      %v767 = vmul.f32 %v462, %v462
      %v768 = vmul.f32 %v465, %v465
      %v769 = vmul.f32 %v470, %v470
      %v770 = vmul.f32 %v473, %v473
      %v771 = vmul.f32 %v478, %v478
      %v772 = vmul.f32 %v481, %v481
      %v773 = vmul.f32 %v486, %v486
      %v774 = vmul.f32 %v489, %v489
      %v775 = vmul.f32 %v494, %v494
      %v776 = vmul.f32 %v497, %v497
      %v777 = vmul.f32 %v502, %v502
      %v778 = vmul.f32 %v505, %v505
      %v779 = vmul.f32 %v510, %v510
      %v780 = vmul.f32 %v513, %v513
      %v781 = vsel %vm677, %v749, 0.0
      %v782 = vsel %vm677, %v750, 0.0
      %v783 = vadd.f32 %v781, %v782
      %v784 = vsel %vm677, %v751, 0.0
      %v785 = vadd.f32 %v783, %v784
      %v786 = vsel %vm677, %v752, 0.0
      %v787 = vadd.f32 %v785, %v786
      %v788 = vsel %vm677, %v753, 0.0
      %v789 = vadd.f32 %v787, %v788
      %v790 = vsel %vm677, %v754, 0.0
      %v791 = vadd.f32 %v789, %v790
      %v792 = vsel %vm677, %v755, 0.0
      %v793 = vadd.f32 %v791, %v792
      %v794 = vsel %vm677, %v756, 0.0
      %v795 = vadd.f32 %v793, %v794
      %v796 = vsel %vm677, %v757, 0.0
      %v797 = vadd.f32 %v795, %v796
      %v798 = vsel %vm677, %v758, 0.0
      %v799 = vadd.f32 %v797, %v798
      %v800 = vsel %vm677, %v759, 0.0
      %v801 = vadd.f32 %v799, %v800
      %v802 = vsel %vm677, %v760, 0.0
      %v803 = vadd.f32 %v801, %v802
      %v804 = vsel %vm677, %v761, 0.0
      %v805 = vadd.f32 %v803, %v804
      %v806 = vsel %vm677, %v762, 0.0
      %v807 = vadd.f32 %v805, %v806
      %v808 = vsel %vm677, %v763, 0.0
      %v809 = vadd.f32 %v807, %v808
      %v810 = vsel %vm677, %v764, 0.0
      %v811 = vadd.f32 %v809, %v810
      %v812 = vsel %vm677, %v765, 0.0
      %v813 = vadd.f32 %v811, %v812
      %v814 = vsel %vm677, %v766, 0.0
      %v815 = vadd.f32 %v813, %v814
      %v816 = vsel %vm677, %v767, 0.0
      %v817 = vadd.f32 %v815, %v816
      %v818 = vsel %vm677, %v768, 0.0
      %v819 = vadd.f32 %v817, %v818
      %v820 = vsel %vm677, %v769, 0.0
      %v821 = vadd.f32 %v819, %v820
      %v822 = vsel %vm677, %v770, 0.0
      %v823 = vadd.f32 %v821, %v822
      %v824 = vsel %vm677, %v771, 0.0
      %v825 = vadd.f32 %v823, %v824
      %v826 = vsel %vm677, %v772, 0.0
      %v827 = vadd.f32 %v825, %v826
      %v828 = vsel %vm677, %v773, 0.0
      %v829 = vadd.f32 %v827, %v828
      %v830 = vsel %vm677, %v774, 0.0
      %v831 = vadd.f32 %v829, %v830
      %v832 = vsel %vm677, %v775, 0.0
      %v833 = vadd.f32 %v831, %v832
      %v834 = vsel %vm677, %v776, 0.0
      %v835 = vadd.f32 %v833, %v834
      %v836 = vsel %vm677, %v777, 0.0
      %v837 = vadd.f32 %v835, %v836
      %v838 = vsel %vm677, %v778, 0.0
      %v839 = vadd.f32 %v837, %v838
      %v840 = vsel %vm677, %v779, 0.0
      %v841 = vadd.f32 %v839, %v840
      %v842 = vsel %vm677, %v780, 0.0
      %v843 = vadd.f32 %v841, %v842
      %v844 = vrot.slane %v843, 4
      %v845 = vadd.f32 %v843, %v844
      %v846 = vrot.slane %v845, 2
      %v847 = vadd.f32 %v845, %v846
      %v848 = vrot.slane %v847, 1
      %v849 = vadd.f32 %v847, %v848
      %850 = vst.msk [vmem:[%s184 + $0x1] sm:$0x1] %vm747, %v849
      %s851 = smul.u32 32, %s15
      %p852 = scmp.lt.s32.totalorder %s851, 63
      %s853 = scalar_select %p852, %s851, 63
      %s854 = smul.addr %s853, 4
      %s855 = scalar_lea.vmem %s2, %s854
      %p856 = scmp.lt.s32.totalorder %s15, 1
      %s857 = scalar_select %p856, %s15, 1
      %s858 = smul.addr %s857, 2
      %s859 = scalar_lea.vmem %s3, %s858
      // Predicated region
      $region29: #{bottleneck_forward.4} parent=27 // pred_check
        %p860 = pneg %p80
      $region30: #{bottleneck_forward.4} parent=27 // pred_check_branch
        %862 = sbr.rel (%p860) target = $region32
      $region31: #{bottleneck_forward.4} parent=27 // pred_region
        %s863 = smul.u32 32, %s15
      $region32: #{bottleneck_forward.4} parent=27 // pred_fallthru
        _
      // Predicated region
      $region33: #{bottleneck_forward.4} parent=27 // pred_check
        %p864 = pneg %p106
      $region34: #{bottleneck_forward.4} parent=27 // pred_check_branch
        %866 = sbr.rel (%p864) target = $region36
      $region35: #{bottleneck_forward.4} parent=27 // pred_region
        _
      $region36: #{bottleneck_forward.4} parent=27 // pred_fallthru
        _
    $region28: #{bottleneck_forward.4} parent=5 // pred_fallthru
      _
    %p867 = scmp.le.s32.totalorder 2, %s10
    // Predicated region
    $region37: #{bottleneck_forward.4} parent=5 // pred_check
      %p868 = pneg %p867
    $region38: #{bottleneck_forward.4} parent=5 // pred_check_branch
      %870 = sbr.rel (%p868) target = $region40
    $region39: #{bottleneck_forward.4} parent=5 // pred_region
      %s871 = ssub.s32 %s10, 2
      // Predicated region
      $region41: #{bottleneck_forward.4} parent=39 // pred_check
        %p872 = pneg %p86
      $region42: #{bottleneck_forward.4} parent=39 // pred_check_branch
        %874 = sbr.rel (%p872) target = $region44
      $region43: #{bottleneck_forward.4} parent=39 // pred_region
        %s875 = smul.u32 32, %s16
        %p876 = scmp.lt.s32.totalorder %s875, 63
        %s877 = scalar_select %p876, %s875, 63
        %s878 = smul.addr %s877, 4
        %s879 = scalar_lea.vmem %s2, %s878
      $region44: #{bottleneck_forward.4} parent=39 // pred_fallthru
        _
      // Predicated region
      $region45: #{bottleneck_forward.4} parent=39 // pred_check
        %p880 = pneg %p112
      $region46: #{bottleneck_forward.4} parent=39 // pred_check_branch
        %882 = sbr.rel (%p880) target = $region48
      $region47: #{bottleneck_forward.4} parent=39 // pred_region
        %p883 = scmp.lt.s32.totalorder %s16, 1
        %s884 = scalar_select %p883, %s16, 1
        %s885 = smul.addr %s884, 2
        %s886 = scalar_lea.vmem %s3, %s885
      $region48: #{bottleneck_forward.4} parent=39 // pred_fallthru
        _
    $region40: #{bottleneck_forward.4} parent=5 // pred_fallthru
      _
  $region6: #{bottleneck_forward.4} parent=0 // loop_footer
    %s14 = sadd.s32 1, %s10
  $region7: #{bottleneck_forward.4} parent=0 // loop_footer_branch
    %9 = sbr.rel target = $region3
  $region8: #{bottleneck_forward.4} parent=0 // loop_exit
    _

// kernel: bottleneck_forward.6
$region0: #{bottleneck_forward.6}
  #allocation0 [shape = 'u32[]', space=smem, size = 0x4, offset = 0x4, fixed_abs, tag = 'smem constant byte address 0x4 - core index']
  #allocation1 [shape = 'u32[144,128]{1,0:T(1,128)}', space=vmem, size = 0x12000, scoped, tag = 'internal scratch']
  %s0 = inlined_call_operand.vmem [shape: bf16[512,4], index: 0, kind: input, shape index: {}]
  %s1 = inlined_call_operand.vmem [shape: f32[1,4], index: 1, kind: input, shape index: {}]
  %s2 = inlined_call_operand.vmem [shape: f32[1,4], index: 2, kind: input, shape index: {}]
  %s3 = inlined_call_operand.vmem [shape: bf16[4,16], index: 3, kind: input, shape index: {}]
  %s4 = inlined_call_operand.vmem [shape: bf16[512,16], index: 4, kind: output, shape index: {0}]
  %s5 = inlined_call_operand.vmem [shape: f32[2,2,16], index: 5, kind: output, shape index: {1}]
  %6 = xla_tuple %s4, %s5
  %s7 = sld [smem:[#allocation0]]
  $region57: #{bottleneck_forward.6} parent=0
    _
  %s9 = ssub.s32 1, %s7
  %s10 = scalar_select 0, %s9, %s7
  loop: start=0, step=1, limit=4
  $region2: #{bottleneck_forward.6} parent=0 // loop_pre_header
    _
  $region3: #{bottleneck_forward.6} parent=0 // loop_header
    %s12 = sphi 0, %s16
    %p13 = scmp.ge.s32.totalorder %s12, 4
    %s22 = sphi 0, %s24
    %s25 = sphi 0, %s22
    %s26 = sphi 0, %s25
    %s42 = sphi 0, %s26
    %s46 = sphi 0, %s46
    %s48 = sphi 0, %s46
    %s49 = sphi 0, %s48
    %s63 = sphi 0, %s49
    %s67 = sphi 0, %s67
    %s69 = sphi 0, %s67
    %s70 = sphi 0, %s69
    %s84 = sphi 0, %s70
    %s88 = sphi 0, %s88
    %s90 = sphi 0, %s88
    %s91 = sphi 0, %s90
    %s105 = sphi 0, %s91
    %s111 = sphi 0, %s113
    %s114 = sphi 0, %s111
    %s115 = sphi 0, %s114
    %s131 = sphi 0, %s115
    %s137 = sphi 0, %s139
    %s140 = sphi 0, %s137
    %s141 = sphi 0, %s140
    %s157 = sphi 0, %s141
  $region4: #{bottleneck_forward.6} parent=0 // loop_header_branch
    %15 = sbr.rel (%p13) target = $region8
  $region5: #{bottleneck_forward.6} parent=0 // loop_body
    %s17 = ssub.s32 %s12, 1
    %s18 = ssub.s32 %s12, 2
    %s19 = sadd.s32 %s12, 1
    %s20 = ssub.s32 %s12, %s19
    %p21 = scmp.eq.s32.totalorder %s20, 0
    %s23 = sadd.s32 %s22, 1
    %s24 = scalar_select %p21, %s22, %s23
    %p27 = pneg %p21
    %p28 = scmp.eq.s32.totalorder %s12, 1
    %p29 = por %p27, %p28
    %p30 = scmp.ne.s32.totalorder %s22, %s25
    %p31 = scmp.eq.s32.totalorder %s12, 0
    %p32 = por %p30, %p31
    %p33 = scmp.ne.s32.totalorder %s22, %s25
    %p34 = scmp.eq.s32.totalorder %s17, 1
    %p35 = por %p33, %p34
    %p36 = scmp.ne.s32.totalorder %s25, %s26
    %p37 = scmp.eq.s32.totalorder %s17, 0
    %p38 = por %p36, %p37
    %p39 = scmp.ne.s32.totalorder %s25, %s26
    %p40 = scmp.eq.s32.totalorder %s18, 1
    %p41 = por %p39, %p40
    %p43 = scmp.ne.s32.totalorder %s26, %s42
    %p44 = scmp.eq.s32.totalorder %s18, 0
    %p45 = por %p43, %p44
    %s47 = sadd.s32 %s46, 1
    %p50 = scmp.eq.s32.totalorder %s12, 1
    %p51 = scmp.ne.s32.totalorder %s46, %s48
    %p52 = scmp.eq.s32.totalorder %s12, 0
    %p53 = por %p51, %p52
    %p54 = scmp.ne.s32.totalorder %s46, %s48
    %p55 = scmp.eq.s32.totalorder %s17, 1
    %p56 = por %p54, %p55
    %p57 = scmp.ne.s32.totalorder %s48, %s49
    %p58 = scmp.eq.s32.totalorder %s17, 0
    %p59 = por %p57, %p58
    %p60 = scmp.ne.s32.totalorder %s48, %s49
    %p61 = scmp.eq.s32.totalorder %s18, 1
    %p62 = por %p60, %p61
    %p64 = scmp.ne.s32.totalorder %s49, %s63
    %p65 = scmp.eq.s32.totalorder %s18, 0
    %p66 = por %p64, %p65
    %s68 = sadd.s32 %s67, 1
    %p71 = scmp.eq.s32.totalorder %s12, 1
    %p72 = scmp.ne.s32.totalorder %s67, %s69
    %p73 = scmp.eq.s32.totalorder %s12, 0
    %p74 = por %p72, %p73
    %p75 = scmp.ne.s32.totalorder %s67, %s69
    %p76 = scmp.eq.s32.totalorder %s17, 1
    %p77 = por %p75, %p76
    %p78 = scmp.ne.s32.totalorder %s69, %s70
    %p79 = scmp.eq.s32.totalorder %s17, 0
    %p80 = por %p78, %p79
    %p81 = scmp.ne.s32.totalorder %s69, %s70
    %p82 = scmp.eq.s32.totalorder %s18, 1
    %p83 = por %p81, %p82
    %p85 = scmp.ne.s32.totalorder %s70, %s84
    %p86 = scmp.eq.s32.totalorder %s18, 0
    %p87 = por %p85, %p86
    %s89 = sadd.s32 %s88, 1
    %p92 = scmp.eq.s32.totalorder %s12, 1
    %p93 = scmp.ne.s32.totalorder %s88, %s90
    %p94 = scmp.eq.s32.totalorder %s12, 0
    %p95 = por %p93, %p94
    %p96 = scmp.ne.s32.totalorder %s88, %s90
    %p97 = scmp.eq.s32.totalorder %s17, 1
    %p98 = por %p96, %p97
    %p99 = scmp.ne.s32.totalorder %s90, %s91
    %p100 = scmp.eq.s32.totalorder %s17, 0
    %p101 = por %p99, %p100
    %p102 = scmp.ne.s32.totalorder %s90, %s91
    %p103 = scmp.eq.s32.totalorder %s18, 1
    %p104 = por %p102, %p103
    %p106 = scmp.ne.s32.totalorder %s91, %s105
    %p107 = scmp.eq.s32.totalorder %s18, 0
    %p108 = por %p106, %p107
    %s109 = ssub.s32 %s12, %s19
    %p110 = scmp.eq.s32.totalorder %s109, 0
    %s112 = sadd.s32 %s111, 1
    %s113 = scalar_select %p110, %s111, %s112
    %p116 = pneg %p110
    %p117 = scmp.eq.s32.totalorder %s12, 1
    %p118 = por %p116, %p117
    %p119 = scmp.ne.s32.totalorder %s111, %s114
    %p120 = scmp.eq.s32.totalorder %s12, 0
    %p121 = por %p119, %p120
    %p122 = scmp.ne.s32.totalorder %s111, %s114
    %p123 = scmp.eq.s32.totalorder %s17, 1
    %p124 = por %p122, %p123
    %p125 = scmp.ne.s32.totalorder %s114, %s115
    %p126 = scmp.eq.s32.totalorder %s17, 0
    %p127 = por %p125, %p126
    %p128 = scmp.ne.s32.totalorder %s114, %s115
    %p129 = scmp.eq.s32.totalorder %s18, 1
    %p130 = por %p128, %p129
    %p132 = scmp.ne.s32.totalorder %s115, %s131
    %p133 = scmp.eq.s32.totalorder %s18, 0
    %p134 = por %p132, %p133
    %s135 = ssub.s32 %s12, %s19
    %p136 = scmp.eq.s32.totalorder %s135, 0
    %s138 = sadd.s32 %s137, 1
    %s139 = scalar_select %p136, %s137, %s138
    %p142 = pneg %p136
    %p143 = scmp.eq.s32.totalorder %s12, 1
    %p144 = por %p142, %p143
    %p145 = scmp.ne.s32.totalorder %s137, %s140
    %p146 = scmp.eq.s32.totalorder %s12, 0
    %p147 = por %p145, %p146
    %p148 = scmp.ne.s32.totalorder %s137, %s140
    %p149 = scmp.eq.s32.totalorder %s17, 1
    %p150 = por %p148, %p149
    %p151 = scmp.ne.s32.totalorder %s140, %s141
    %p152 = scmp.eq.s32.totalorder %s17, 0
    %p153 = por %p151, %p152
    %p154 = scmp.ne.s32.totalorder %s140, %s141
    %p155 = scmp.eq.s32.totalorder %s18, 1
    %p156 = por %p154, %p155
    %p158 = scmp.ne.s32.totalorder %s141, %s157
    %p159 = scmp.eq.s32.totalorder %s18, 0
    %p160 = por %p158, %p159
    %p161 = scmp.le.s32.totalorder 1, %s12
    %p162 = scmp.lt.s32.totalorder %s12, 3
    %p163 = pnand %p161, %p162
    %p164 = pneg %p163
    // Predicated region
    $region9: #{bottleneck_forward.6} parent=5 // pred_check
      _
    $region10: #{bottleneck_forward.6} parent=5 // pred_check_branch
      %166 = sbr.rel (%p163) target = $region12
    $region11: #{bottleneck_forward.6} parent=5 // pred_region
      %s167 = ssub.s32 %s12, 1
      // Predicated region
      $region13: #{bottleneck_forward.6} parent=11 // pred_check
        %p168 = pneg %p59
      $region14: #{bottleneck_forward.6} parent=11 // pred_check_branch
        %170 = sbr.rel (%p168) target = $region16
      $region15: #{bottleneck_forward.6} parent=11 // pred_region
        _
      $region16: #{bottleneck_forward.6} parent=11 // pred_fallthru
        _
      // Predicated region
      $region17: #{bottleneck_forward.6} parent=11 // pred_check
        %p171 = pneg %p80
      $region18: #{bottleneck_forward.6} parent=11 // pred_check_branch
        %173 = sbr.rel (%p171) target = $region20
      $region19: #{bottleneck_forward.6} parent=11 // pred_region
        _
      $region20: #{bottleneck_forward.6} parent=11 // pred_fallthru
        _
      // Predicated region
      $region21: #{bottleneck_forward.6} parent=11 // pred_check
        %p174 = pneg %p101
      $region22: #{bottleneck_forward.6} parent=11 // pred_check_branch
        %176 = sbr.rel (%p174) target = $region24
      $region23: #{bottleneck_forward.6} parent=11 // pred_region
        _
      $region24: #{bottleneck_forward.6} parent=11 // pred_fallthru
        _
    $region12: #{bottleneck_forward.6} parent=5 // pred_fallthru
      _
    %p177 = scmp.lt.s32.totalorder %s12, 2
    // Predicated region
    $region25: #{bottleneck_forward.6} parent=5 // pred_check
      %p178 = pneg %p177
    $region26: #{bottleneck_forward.6} parent=5 // pred_check_branch
      %180 = sbr.rel (%p178) target = $region28
    $region27: #{bottleneck_forward.6} parent=5 // pred_region
      // Predicated region
      $region29: #{bottleneck_forward.6} parent=27 // pred_check
        %p181 = pneg %p32
      $region30: #{bottleneck_forward.6} parent=27 // pred_check_branch
        %183 = sbr.rel (%p181) target = $region32
      $region31: #{bottleneck_forward.6} parent=27 // pred_region
        %s184 = smul.u32 32, %s12
        %p185 = scmp.lt.s32.totalorder %s184, 63
        %s186 = scalar_select %p185, %s184, 63
        %s187 = smul.addr %s186, 4
        %s188 = scalar_lea.vmem %s0, %s187
        %s189 = smul.u32 32, %s12
      $region32: #{bottleneck_forward.6} parent=27 // pred_fallthru
        _
    $region28: #{bottleneck_forward.6} parent=5 // pred_fallthru
      _
    %p190 = scmp.le.s32.totalorder 1, %s12
    %p191 = scmp.lt.s32.totalorder %s12, 3
    %p192 = pnand %p190, %p191
    %p193 = pneg %p192
    // Predicated region
    $region33: #{bottleneck_forward.6} parent=5 // pred_check
      _
    $region34: #{bottleneck_forward.6} parent=5 // pred_check_branch
      %195 = sbr.rel (%p192) target = $region36
    $region35: #{bottleneck_forward.6} parent=5 // pred_region
      %s196 = ssub.s32 %s12, 1
      %s197 = smul.u32 32, %s17
      %p198 = scmp.lt.s32.totalorder %s197, 63
      %s199 = scalar_select %p198, %s197, 63
      %s200 = smul.addr %s199, 4
      %s201 = scalar_lea.vmem %s0, %s200
      %p202 = pneg %p38
      %p203 = pneg %p35
      %p204 = pneg %p59
      %p205 = pneg %p56
      %p206 = pneg %p80
      %p207 = pneg %p77
      %p208 = pneg %p101
      %p209 = pneg %p98
      %p210 = pneg %p127
      %p211 = pneg %p124
      %s212 = smul.u32 32, %s17
      %p213 = scmp.lt.s32.totalorder %s212, 63
      %s214 = scalar_select %p213, %s212, 63
      %s215 = smul.addr %s214, 4
      %s216 = scalar_lea.vmem %s4, %s215
      %p217 = pneg %p153
      %p218 = pneg %p150
      %p219 = scmp.lt.s32.totalorder %s17, 1
      %s220 = scalar_select %p219, %s17, 1
      %s221 = smul.addr %s220, 2
      %s222 = scalar_lea.vmem %s5, %s221
      %s223 = smul.u32 32, %s17
      %p224 = scmp.lt.s32.totalorder %s223, 63
      %s225 = scalar_select %p224, %s223, 63
      %s226 = smul.addr %s225, 4
      %s227 = scalar_lea.vmem %s0, %s226
      %s228 = smul.u32 32, %s17
      %s229 = smul.u32 32, %s17
      %p230 = scmp.lt.s32.totalorder %s229, 63
      %s231 = scalar_select %p230, %s229, 63
      %s232 = smul.addr %s231, 4
      %s233 = scalar_lea.vmem %s4, %s232
      %s234 = smul.u32 32, %s17
      %p235 = scmp.lt.s32.totalorder %s17, 1
      %s236 = scalar_select %p235, %s17, 1
      %s237 = smul.addr %s236, 2
      %s238 = scalar_lea.vmem %s5, %s237
      %v240 = vld [vmem:[%s227] sm:$0xf]
      %v241 = vld [vmem:[%s227 + $0x4] sm:$0xf]
      %v242 = vld [vmem:[%s227 + $0x8] sm:$0xf]
      %v243 = vld [vmem:[%s227 + $0xc] sm:$0xf]
      %v244 = vld [vmem:[%s227 + $0x10] sm:$0xf]
      %v245 = vld [vmem:[%s227 + $0x14] sm:$0xf]
      %v246 = vld [vmem:[%s227 + $0x18] sm:$0xf]
      %v247 = vld [vmem:[%s227 + $0x1c] sm:$0xf]
      %v248 = vld [vmem:[%s227 + $0x20] sm:$0xf]
      %v249 = vld [vmem:[%s227 + $0x24] sm:$0xf]
      %v250 = vld [vmem:[%s227 + $0x28] sm:$0xf]
      %v251 = vld [vmem:[%s227 + $0x2c] sm:$0xf]
      %v252 = vld [vmem:[%s227 + $0x30] sm:$0xf]
      %v253 = vld [vmem:[%s227 + $0x34] sm:$0xf]
      %v254 = vld [vmem:[%s227 + $0x38] sm:$0xf]
      %v255 = vld [vmem:[%s227 + $0x3c] sm:$0xf]
      %v256 = vld [vmem:[%s227 + $0x40] sm:$0xf]
      %v257 = vld [vmem:[%s227 + $0x44] sm:$0xf]
      %v258 = vld [vmem:[%s227 + $0x48] sm:$0xf]
      %v259 = vld [vmem:[%s227 + $0x4c] sm:$0xf]
      %v260 = vld [vmem:[%s227 + $0x50] sm:$0xf]
      %v261 = vld [vmem:[%s227 + $0x54] sm:$0xf]
      %v262 = vld [vmem:[%s227 + $0x58] sm:$0xf]
      %v263 = vld [vmem:[%s227 + $0x5c] sm:$0xf]
      %v264 = vld [vmem:[%s227 + $0x60] sm:$0xf]
      %v265 = vld [vmem:[%s227 + $0x64] sm:$0xf]
      %v266 = vld [vmem:[%s227 + $0x68] sm:$0xf]
      %v267 = vld [vmem:[%s227 + $0x6c] sm:$0xf]
      %v268 = vld [vmem:[%s227 + $0x70] sm:$0xf]
      %v269 = vld [vmem:[%s227 + $0x74] sm:$0xf]
      %v270 = vld [vmem:[%s227 + $0x78] sm:$0xf]
      %v271 = vld [vmem:[%s227 + $0x7c] sm:$0xf]
      %v272 = vunpack.c.l.bf16 %v240
      %v273 = vunpack.c.l.bf16 %v241
      %v274 = vunpack.c.l.bf16 %v242
      %v275 = vunpack.c.l.bf16 %v243
      %v276 = vunpack.c.l.bf16 %v244
      %v277 = vunpack.c.l.bf16 %v245
      %v278 = vunpack.c.l.bf16 %v246
      %v279 = vunpack.c.l.bf16 %v247
      %v280 = vunpack.c.l.bf16 %v248
      %v281 = vunpack.c.l.bf16 %v249
      %v282 = vunpack.c.l.bf16 %v250
      %v283 = vunpack.c.l.bf16 %v251
      %v284 = vunpack.c.l.bf16 %v252
      %v285 = vunpack.c.l.bf16 %v253
      %v286 = vunpack.c.l.bf16 %v254
      %v287 = vunpack.c.l.bf16 %v255
      %v288 = vunpack.c.l.bf16 %v256
      %v289 = vunpack.c.l.bf16 %v257
      %v290 = vunpack.c.l.bf16 %v258
      %v291 = vunpack.c.l.bf16 %v259
      %v292 = vunpack.c.l.bf16 %v260
      %v293 = vunpack.c.l.bf16 %v261
      %v294 = vunpack.c.l.bf16 %v262
      %v295 = vunpack.c.l.bf16 %v263
      %v296 = vunpack.c.l.bf16 %v264
      %v297 = vunpack.c.l.bf16 %v265
      %v298 = vunpack.c.l.bf16 %v266
      %v299 = vunpack.c.l.bf16 %v267
      %v300 = vunpack.c.l.bf16 %v268
      %v301 = vunpack.c.l.bf16 %v269
      %v302 = vunpack.c.l.bf16 %v270
      %v303 = vunpack.c.l.bf16 %v271
      %v304 = vld [vmem:[%s1] sm:$0x1]
      %v306 = vlaneseq
      %v307 = vshrl.u32 %v306, 7
      %v308 = vsub.s32 0, %v307
      %v309 = vrot.slane %v304, %v308
      %v311 = vmul.f32 %v272, %v309
      %v312 = vmul.f32 %v273, %v309
      %v313 = vmul.f32 %v274, %v309
      %v314 = vmul.f32 %v275, %v309
      %v315 = vmul.f32 %v276, %v309
      %v316 = vmul.f32 %v277, %v309
      %v317 = vmul.f32 %v278, %v309
      %v318 = vmul.f32 %v279, %v309
      %v319 = vmul.f32 %v280, %v309
      %v320 = vmul.f32 %v281, %v309
      %v321 = vmul.f32 %v282, %v309
      %v322 = vmul.f32 %v283, %v309
      %v323 = vmul.f32 %v284, %v309
      %v324 = vmul.f32 %v285, %v309
      %v325 = vmul.f32 %v286, %v309
      %v326 = vmul.f32 %v287, %v309
      %v327 = vmul.f32 %v288, %v309
      %v328 = vmul.f32 %v289, %v309
      %v329 = vmul.f32 %v290, %v309
      %v330 = vmul.f32 %v291, %v309
      %v331 = vmul.f32 %v292, %v309
      %v332 = vmul.f32 %v293, %v309
      %v333 = vmul.f32 %v294, %v309
      %v334 = vmul.f32 %v295, %v309
      %v335 = vmul.f32 %v296, %v309
      %v336 = vmul.f32 %v297, %v309
      %v337 = vmul.f32 %v298, %v309
      %v338 = vmul.f32 %v299, %v309
      %v339 = vmul.f32 %v300, %v309
      %v340 = vmul.f32 %v301, %v309
      %v341 = vmul.f32 %v302, %v309
      %v342 = vmul.f32 %v303, %v309
      %v343 = vld [vmem:[%s2] sm:$0x1]
      %v345 = vlaneseq
      %v346 = vshrl.u32 %v345, 7
      %v347 = vsub.s32 0, %v346
      %v348 = vrot.slane %v343, %v347
      %v350 = vadd.f32 %v311, %v348
      %v351 = vadd.f32 %v312, %v348
      %v352 = vadd.f32 %v313, %v348
      %v353 = vadd.f32 %v314, %v348
      %v354 = vadd.f32 %v315, %v348
      %v355 = vadd.f32 %v316, %v348
      %v356 = vadd.f32 %v317, %v348
      %v357 = vadd.f32 %v318, %v348
      %v358 = vadd.f32 %v319, %v348
      %v359 = vadd.f32 %v320, %v348
      %v360 = vadd.f32 %v321, %v348
      %v361 = vadd.f32 %v322, %v348
      %v362 = vadd.f32 %v323, %v348
      %v363 = vadd.f32 %v324, %v348
      %v364 = vadd.f32 %v325, %v348
      %v365 = vadd.f32 %v326, %v348
      %v366 = vadd.f32 %v327, %v348
      %v367 = vadd.f32 %v328, %v348
      %v368 = vadd.f32 %v329, %v348
      %v369 = vadd.f32 %v330, %v348
      %v370 = vadd.f32 %v331, %v348
      %v371 = vadd.f32 %v332, %v348
      %v372 = vadd.f32 %v333, %v348
      %v373 = vadd.f32 %v334, %v348
      %v374 = vadd.f32 %v335, %v348
      %v375 = vadd.f32 %v336, %v348
      %v376 = vadd.f32 %v337, %v348
      %v377 = vadd.f32 %v338, %v348
      %v378 = vadd.f32 %v339, %v348
      %v379 = vadd.f32 %v340, %v348
      %v380 = vadd.f32 %v341, %v348
      %v381 = vadd.f32 %v342, %v348
      %v382 = vmax.f32 %v350, 0.0
      %v383 = vmax.f32 %v351, 0.0
      %v384 = vmax.f32 %v352, 0.0
      %v385 = vmax.f32 %v353, 0.0
      %v386 = vmax.f32 %v354, 0.0
      %v387 = vmax.f32 %v355, 0.0
      %v388 = vmax.f32 %v356, 0.0
      %v389 = vmax.f32 %v357, 0.0
      %v390 = vmax.f32 %v358, 0.0
      %v391 = vmax.f32 %v359, 0.0
      %v392 = vmax.f32 %v360, 0.0
      %v393 = vmax.f32 %v361, 0.0
      %v394 = vmax.f32 %v362, 0.0
      %v395 = vmax.f32 %v363, 0.0
      %v396 = vmax.f32 %v364, 0.0
      %v397 = vmax.f32 %v365, 0.0
      %v398 = vmax.f32 %v366, 0.0
      %v399 = vmax.f32 %v367, 0.0
      %v400 = vmax.f32 %v368, 0.0
      %v401 = vmax.f32 %v369, 0.0
      %v402 = vmax.f32 %v370, 0.0
      %v403 = vmax.f32 %v371, 0.0
      %v404 = vmax.f32 %v372, 0.0
      %v405 = vmax.f32 %v373, 0.0
      %v406 = vmax.f32 %v374, 0.0
      %v407 = vmax.f32 %v375, 0.0
      %v408 = vmax.f32 %v376, 0.0
      %v409 = vmax.f32 %v377, 0.0
      %v410 = vmax.f32 %v378, 0.0
      %v411 = vmax.f32 %v379, 0.0
      %v412 = vmax.f32 %v380, 0.0
      %v413 = vmax.f32 %v381, 0.0
      %v414 = vpack.c.bf16 %v383, %v382
      %v415 = vpack.c.bf16 %v385, %v384
      %v416 = vpack.c.bf16 %v387, %v386
      %v417 = vpack.c.bf16 %v389, %v388
      %v418 = vpack.c.bf16 %v391, %v390
      %v419 = vpack.c.bf16 %v393, %v392
      %v420 = vpack.c.bf16 %v395, %v394
      %v421 = vpack.c.bf16 %v397, %v396
      %v422 = vpack.c.bf16 %v399, %v398
      %v423 = vpack.c.bf16 %v401, %v400
      %v424 = vpack.c.bf16 %v403, %v402
      %v425 = vpack.c.bf16 %v405, %v404
      %v426 = vpack.c.bf16 %v407, %v406
      %v427 = vpack.c.bf16 %v409, %v408
      %v428 = vpack.c.bf16 %v411, %v410
      %v429 = vpack.c.bf16 %v413, %v412
      %v430 = vld [vmem:[%s3] sm:$0x3]
      %vm431 = vcmask 31744
      %v433 = vsel %vm431, %v414, 0
      %v436 = vsel %vm431, %v415, 0
      %v439 = vsel %vm431, %v416, 0
      %v442 = vsel %vm431, %v417, 0
      %v445 = vsel %vm431, %v418, 0
      %v448 = vsel %vm431, %v419, 0
      %v451 = vsel %vm431, %v420, 0
      %v454 = vsel %vm431, %v421, 0
      %v457 = vsel %vm431, %v422, 0
      %v460 = vsel %vm431, %v423, 0
      %v463 = vsel %vm431, %v424, 0
      %v466 = vsel %vm431, %v425, 0
      %v469 = vsel %vm431, %v426, 0
      %v472 = vsel %vm431, %v427, 0
      %v475 = vsel %vm431, %v428, 0
      %v478 = vsel %vm431, %v429, 0
      %vm480 = vcmask 1041408
      %v482 = vsel %vm480, %v430, 0
      %484 = vmatprep.subr.bf16.mxu0 0
      %485 = vmatpush1.bf16.msra.mxu0 %v482
      %486 = vmatprep.subr.bf16.mxu0 0
      %487 = vmatpush1.bf16.msra.mxu0 0
      %488 = vmatprep.subr.bf16.mxu0 0
      %489 = vmatpush1.bf16.msra.mxu0 0
      %490 = vmatprep.subr.bf16.mxu0 0
      %491 = vmatpush1.bf16.msra.mxu0 0
      %492 = vmatprep.subr.bf16.mxu0 0
      %493 = vmatpush1.bf16.msra.mxu0 0
      %494 = vmatprep.subr.bf16.mxu0 0
      %495 = vmatpush1.bf16.msra.mxu0 0
      %496 = vmatprep.subr.bf16.mxu0 0
      %497 = vmatpush1.bf16.msra.mxu0 0
      %498 = vmatprep.subr.bf16.mxu0 0
      %499 = vmatpush1.bf16.msra.mxu0 0
      %500 = vmatprep.subr.bf16.mxu0 0
      %501 = vmatpush1.bf16.msra.mxu0 0
      %502 = vmatprep.subr.bf16.mxu0 0
      %503 = vmatpush1.bf16.msra.mxu0 0
      %504 = vmatprep.subr.bf16.mxu0 0
      %505 = vmatpush1.bf16.msra.mxu0 0
      %506 = vmatprep.subr.bf16.mxu0 0
      %507 = vmatpush1.bf16.msra.mxu0 0
      %508 = vmatprep.subr.bf16.mxu0 0
      %509 = vmatpush1.bf16.msra.mxu0 0
      %510 = vmatprep.subr.bf16.mxu0 0
      %511 = vmatpush1.bf16.msra.mxu0 0
      %512 = vmatprep.subr.bf16.mxu0 0
      %513 = vmatpush1.bf16.msra.mxu0 0
      %514 = vmatprep.subr.bf16.mxu0 0
      %515 = vmatpush1.bf16.msra.mxu0 0
      %516 = vmatprep.mubr.bf16.mxu0 0
      %517 = vmatmul.mubr.bf16.gmra.mrb[0].mxu0 %v433
      %v518 = vpop.f32.mrb[0].mxu0
      %v519 = vadd.f32 0.0, %v518
      %v520 = vpop.f32.mrb[0].mxu0
      %v521 = vpop.f32.mrb[0].mxu0
      %v522 = vadd.f32 0.0, %v521
      %v523 = vpop.f32.mrb[0].mxu0
      %524 = vmatprep.mubr.bf16.mxu0 0
      %525 = vmatmul.mubr.bf16.gmra.mrb[0].mxu0 %v436
      %v526 = vpop.f32.mrb[0].mxu0
      %v527 = vadd.f32 0.0, %v526
      %v528 = vpop.f32.mrb[0].mxu0
      %v529 = vpop.f32.mrb[0].mxu0
      %v530 = vadd.f32 0.0, %v529
      %v531 = vpop.f32.mrb[0].mxu0
      %532 = vmatprep.mubr.bf16.mxu0 0
      %533 = vmatmul.mubr.bf16.gmra.mrb[0].mxu0 %v439
      %v534 = vpop.f32.mrb[0].mxu0
      %v535 = vadd.f32 0.0, %v534
      %v536 = vpop.f32.mrb[0].mxu0
      %v537 = vpop.f32.mrb[0].mxu0
      %v538 = vadd.f32 0.0, %v537
      %v539 = vpop.f32.mrb[0].mxu0
      %540 = vmatprep.mubr.bf16.mxu0 0
      %541 = vmatmul.mubr.bf16.gmra.mrb[0].mxu0 %v442
      %v542 = vpop.f32.mrb[0].mxu0
      %v543 = vadd.f32 0.0, %v542
      %v544 = vpop.f32.mrb[0].mxu0
      %v545 = vpop.f32.mrb[0].mxu0
      %v546 = vadd.f32 0.0, %v545
      %v547 = vpop.f32.mrb[0].mxu0
      %548 = vmatprep.mubr.bf16.mxu0 0
      %549 = vmatmul.mubr.bf16.gmra.mrb[0].mxu0 %v445
      %v550 = vpop.f32.mrb[0].mxu0
      %v551 = vadd.f32 0.0, %v550
      %v552 = vpop.f32.mrb[0].mxu0
      %v553 = vpop.f32.mrb[0].mxu0
      %v554 = vadd.f32 0.0, %v553
      %v555 = vpop.f32.mrb[0].mxu0
      %556 = vmatprep.mubr.bf16.mxu0 0
      %557 = vmatmul.mubr.bf16.gmra.mrb[0].mxu0 %v448
      %v558 = vpop.f32.mrb[0].mxu0
      %v559 = vadd.f32 0.0, %v558
      %v560 = vpop.f32.mrb[0].mxu0
      %v561 = vpop.f32.mrb[0].mxu0
      %v562 = vadd.f32 0.0, %v561
      %v563 = vpop.f32.mrb[0].mxu0
      %564 = vmatprep.mubr.bf16.mxu0 0
      %565 = vmatmul.mubr.bf16.gmra.mrb[0].mxu0 %v451
      %v566 = vpop.f32.mrb[0].mxu0
      %v567 = vadd.f32 0.0, %v566
      %v568 = vpop.f32.mrb[0].mxu0
      %v569 = vpop.f32.mrb[0].mxu0
      %v570 = vadd.f32 0.0, %v569
      %v571 = vpop.f32.mrb[0].mxu0
      %572 = vmatprep.mubr.bf16.mxu0 0
      %573 = vmatmul.mubr.bf16.gmra.mrb[0].mxu0 %v454
      %v574 = vpop.f32.mrb[0].mxu0
      %v575 = vadd.f32 0.0, %v574
      %v576 = vpop.f32.mrb[0].mxu0
      %v577 = vpop.f32.mrb[0].mxu0
      %v578 = vadd.f32 0.0, %v577
      %v579 = vpop.f32.mrb[0].mxu0
      %580 = vmatprep.mubr.bf16.mxu0 0
      %581 = vmatmul.mubr.bf16.gmra.mrb[0].mxu0 %v457
      %v582 = vpop.f32.mrb[0].mxu0
      %v583 = vadd.f32 0.0, %v582
      %v584 = vpop.f32.mrb[0].mxu0
      %v585 = vpop.f32.mrb[0].mxu0
      %v586 = vadd.f32 0.0, %v585
      %v587 = vpop.f32.mrb[0].mxu0
      %588 = vmatprep.mubr.bf16.mxu0 0
      %589 = vmatmul.mubr.bf16.gmra.mrb[0].mxu0 %v460
      %v590 = vpop.f32.mrb[0].mxu0
      %v591 = vadd.f32 0.0, %v590
      %v592 = vpop.f32.mrb[0].mxu0
      %v593 = vpop.f32.mrb[0].mxu0
      %v594 = vadd.f32 0.0, %v593
      %v595 = vpop.f32.mrb[0].mxu0
      %596 = vmatprep.mubr.bf16.mxu0 0
      %597 = vmatmul.mubr.bf16.gmra.mrb[0].mxu0 %v463
      %v598 = vpop.f32.mrb[0].mxu0
      %v599 = vadd.f32 0.0, %v598
      %v600 = vpop.f32.mrb[0].mxu0
      %v601 = vpop.f32.mrb[0].mxu0
      %v602 = vadd.f32 0.0, %v601
      %v603 = vpop.f32.mrb[0].mxu0
      %604 = vmatprep.mubr.bf16.mxu0 0
      %605 = vmatmul.mubr.bf16.gmra.mrb[0].mxu0 %v466
      %v606 = vpop.f32.mrb[0].mxu0
      %v607 = vadd.f32 0.0, %v606
      %v608 = vpop.f32.mrb[0].mxu0
      %v609 = vpop.f32.mrb[0].mxu0
      %v610 = vadd.f32 0.0, %v609
      %v611 = vpop.f32.mrb[0].mxu0
      %612 = vmatprep.mubr.bf16.mxu0 0
      %613 = vmatmul.mubr.bf16.gmra.mrb[0].mxu0 %v469
      %v614 = vpop.f32.mrb[0].mxu0
      %v615 = vadd.f32 0.0, %v614
      %v616 = vpop.f32.mrb[0].mxu0
      %v617 = vpop.f32.mrb[0].mxu0
      %v618 = vadd.f32 0.0, %v617
      %v619 = vpop.f32.mrb[0].mxu0
      %620 = vmatprep.mubr.bf16.mxu0 0
      %621 = vmatmul.mubr.bf16.gmra.mrb[0].mxu0 %v472
      %v622 = vpop.f32.mrb[0].mxu0
      %v623 = vadd.f32 0.0, %v622
      %v624 = vpop.f32.mrb[0].mxu0
      %v625 = vpop.f32.mrb[0].mxu0
      %v626 = vadd.f32 0.0, %v625
      %v627 = vpop.f32.mrb[0].mxu0
      %628 = vmatprep.mubr.bf16.mxu0 0
      %629 = vmatmul.mubr.bf16.gmra.mrb[0].mxu0 %v475
      %v630 = vpop.f32.mrb[0].mxu0
      %v631 = vadd.f32 0.0, %v630
      %v632 = vpop.f32.mrb[0].mxu0
      %v633 = vpop.f32.mrb[0].mxu0
      %v634 = vadd.f32 0.0, %v633
      %v635 = vpop.f32.mrb[0].mxu0
      %636 = vmatprep.mubr.bf16.mxu0 0
      %637 = vmatmul.mubr.bf16.gmra.mrb[0].mxu0 %v478
      %v638 = vpop.f32.mrb[0].mxu0
      %v639 = vadd.f32 0.0, %v638
      %v640 = vpop.f32.mrb[0].mxu0
      %v641 = vpop.f32.mrb[0].mxu0
      %v642 = vadd.f32 0.0, %v641
      %v643 = vpop.f32.mrb[0].mxu0
      %644 = vdwg.mxu0
      %v645 = vpack.c.bf16 %v522, %v519
      %v646 = vpack.c.bf16 %v530, %v527
      %v647 = vpack.c.bf16 %v538, %v535
      %v648 = vpack.c.bf16 %v546, %v543
      %v649 = vpack.c.bf16 %v554, %v551
      %v650 = vpack.c.bf16 %v562, %v559
      %v651 = vpack.c.bf16 %v570, %v567
      %v652 = vpack.c.bf16 %v578, %v575
      %v653 = vpack.c.bf16 %v586, %v583
      %v654 = vpack.c.bf16 %v594, %v591
      %v655 = vpack.c.bf16 %v602, %v599
      %v656 = vpack.c.bf16 %v610, %v607
      %v657 = vpack.c.bf16 %v618, %v615
      %v658 = vpack.c.bf16 %v626, %v623
      %v659 = vpack.c.bf16 %v634, %v631
      %v660 = vpack.c.bf16 %v642, %v639
      %v677 = vunpack.c.l.b16 %v645
      %v678 = vunpack.c.h.b16 %v645
      %v679 = vunpack.c.l.b16 %v646
      %v680 = vunpack.c.h.b16 %v646
      %v681 = vunpack.c.l.b16 %v647
      %v682 = vunpack.c.h.b16 %v647
      %v683 = vunpack.c.l.b16 %v648
      %v684 = vunpack.c.h.b16 %v648
      %v685 = vunpack.c.l.b16 %v649
      %v686 = vunpack.c.h.b16 %v649
      %v687 = vunpack.c.l.b16 %v650
      %v688 = vunpack.c.h.b16 %v650
      %v689 = vunpack.c.l.b16 %v651
      %v690 = vunpack.c.h.b16 %v651
      %v691 = vunpack.c.l.b16 %v652
      %v692 = vunpack.c.h.b16 %v652
      %v693 = vunpack.c.l.b16 %v653
      %v694 = vunpack.c.h.b16 %v653
      %v695 = vunpack.c.l.b16 %v654
      %v696 = vunpack.c.h.b16 %v654
      %v697 = vunpack.c.l.b16 %v655
      %v698 = vunpack.c.h.b16 %v655
      %v699 = vunpack.c.l.b16 %v656
      %v700 = vunpack.c.h.b16 %v656
      %v701 = vunpack.c.l.b16 %v657
      %v702 = vunpack.c.h.b16 %v657
      %v703 = vunpack.c.l.b16 %v658
      %v704 = vunpack.c.h.b16 %v658
      %v705 = vunpack.c.l.b16 %v659
      %v706 = vunpack.c.h.b16 %v659
      %v707 = vunpack.c.l.b16 %v660
      %v708 = vunpack.c.h.b16 %v660
      %v709 = vpack.c.b16 %v677, %v677
      %v710 = vpack.c.b16 %v678, %v678
      %v711 = vpack.c.b16 %v679, %v679
      %v712 = vpack.c.b16 %v680, %v680
      %v713 = vpack.c.b16 %v681, %v681
      %v714 = vpack.c.b16 %v682, %v682
      %v715 = vpack.c.b16 %v683, %v683
      %v716 = vpack.c.b16 %v684, %v684
      %v717 = vpack.c.b16 %v685, %v685
      %v718 = vpack.c.b16 %v686, %v686
      %v719 = vpack.c.b16 %v687, %v687
      %v720 = vpack.c.b16 %v688, %v688
      %v721 = vpack.c.b16 %v689, %v689
      %v722 = vpack.c.b16 %v690, %v690
      %v723 = vpack.c.b16 %v691, %v691
      %v724 = vpack.c.b16 %v692, %v692
      %v725 = vpack.c.b16 %v693, %v693
      %v726 = vpack.c.b16 %v694, %v694
      %v727 = vpack.c.b16 %v695, %v695
      %v728 = vpack.c.b16 %v696, %v696
      %v729 = vpack.c.b16 %v697, %v697
      %v730 = vpack.c.b16 %v698, %v698
      %v731 = vpack.c.b16 %v699, %v699
      %v732 = vpack.c.b16 %v700, %v700
      %v733 = vpack.c.b16 %v701, %v701
      %v734 = vpack.c.b16 %v702, %v702
      %v735 = vpack.c.b16 %v703, %v703
      %v736 = vpack.c.b16 %v704, %v704
      %v737 = vpack.c.b16 %v705, %v705
      %v738 = vpack.c.b16 %v706, %v706
      %v739 = vpack.c.b16 %v707, %v707
      %v740 = vpack.c.b16 %v708, %v708
      %vm773 = vcmask 125952
      %774 = vst.msk [vmem:[%s233] sm:$0xf] %vm773, %v709
      %775 = vst.msk [vmem:[%s233 + $0x4] sm:$0xf] %vm773, %v710
      %776 = vst.msk [vmem:[%s233 + $0x8] sm:$0xf] %vm773, %v711
      %777 = vst.msk [vmem:[%s233 + $0xc] sm:$0xf] %vm773, %v712
      %778 = vst.msk [vmem:[%s233 + $0x10] sm:$0xf] %vm773, %v713
      %779 = vst.msk [vmem:[%s233 + $0x14] sm:$0xf] %vm773, %v714
      %780 = vst.msk [vmem:[%s233 + $0x18] sm:$0xf] %vm773, %v715
      %781 = vst.msk [vmem:[%s233 + $0x1c] sm:$0xf] %vm773, %v716
      %782 = vst.msk [vmem:[%s233 + $0x20] sm:$0xf] %vm773, %v717
      %783 = vst.msk [vmem:[%s233 + $0x24] sm:$0xf] %vm773, %v718
      %784 = vst.msk [vmem:[%s233 + $0x28] sm:$0xf] %vm773, %v719
      %785 = vst.msk [vmem:[%s233 + $0x2c] sm:$0xf] %vm773, %v720
      %786 = vst.msk [vmem:[%s233 + $0x30] sm:$0xf] %vm773, %v721
      %787 = vst.msk [vmem:[%s233 + $0x34] sm:$0xf] %vm773, %v722
      %788 = vst.msk [vmem:[%s233 + $0x38] sm:$0xf] %vm773, %v723
      %789 = vst.msk [vmem:[%s233 + $0x3c] sm:$0xf] %vm773, %v724
      %790 = vst.msk [vmem:[%s233 + $0x40] sm:$0xf] %vm773, %v725
      %791 = vst.msk [vmem:[%s233 + $0x44] sm:$0xf] %vm773, %v726
      %792 = vst.msk [vmem:[%s233 + $0x48] sm:$0xf] %vm773, %v727
      %793 = vst.msk [vmem:[%s233 + $0x4c] sm:$0xf] %vm773, %v728
      %794 = vst.msk [vmem:[%s233 + $0x50] sm:$0xf] %vm773, %v729
      %795 = vst.msk [vmem:[%s233 + $0x54] sm:$0xf] %vm773, %v730
      %796 = vst.msk [vmem:[%s233 + $0x58] sm:$0xf] %vm773, %v731
      %797 = vst.msk [vmem:[%s233 + $0x5c] sm:$0xf] %vm773, %v732
      %798 = vst.msk [vmem:[%s233 + $0x60] sm:$0xf] %vm773, %v733
      %799 = vst.msk [vmem:[%s233 + $0x64] sm:$0xf] %vm773, %v734
      %800 = vst.msk [vmem:[%s233 + $0x68] sm:$0xf] %vm773, %v735
      %801 = vst.msk [vmem:[%s233 + $0x6c] sm:$0xf] %vm773, %v736
      %802 = vst.msk [vmem:[%s233 + $0x70] sm:$0xf] %vm773, %v737
      %803 = vst.msk [vmem:[%s233 + $0x74] sm:$0xf] %vm773, %v738
      %804 = vst.msk [vmem:[%s233 + $0x78] sm:$0xf] %vm773, %v739
      %805 = vst.msk [vmem:[%s233 + $0x7c] sm:$0xf] %vm773, %v740
      %vm806 = vcmask 130048
      %v807 = vsel %vm806, %v519, 0.0
      %v808 = vsel %vm806, %v522, 0.0
      %v809 = vadd.f32 %v807, %v808
      %v810 = vsel %vm806, %v527, 0.0
      %v811 = vadd.f32 %v809, %v810
      %v812 = vsel %vm806, %v530, 0.0
      %v813 = vadd.f32 %v811, %v812
      %v814 = vsel %vm806, %v535, 0.0
      %v815 = vadd.f32 %v813, %v814
      %v816 = vsel %vm806, %v538, 0.0
      %v817 = vadd.f32 %v815, %v816
      %v818 = vsel %vm806, %v543, 0.0
      %v819 = vadd.f32 %v817, %v818
      %v820 = vsel %vm806, %v546, 0.0
      %v821 = vadd.f32 %v819, %v820
      %v822 = vsel %vm806, %v551, 0.0
      %v823 = vadd.f32 %v821, %v822
      %v824 = vsel %vm806, %v554, 0.0
      %v825 = vadd.f32 %v823, %v824
      %v826 = vsel %vm806, %v559, 0.0
      %v827 = vadd.f32 %v825, %v826
      %v828 = vsel %vm806, %v562, 0.0
      %v829 = vadd.f32 %v827, %v828
      %v830 = vsel %vm806, %v567, 0.0
      %v831 = vadd.f32 %v829, %v830
      %v832 = vsel %vm806, %v570, 0.0
      %v833 = vadd.f32 %v831, %v832
      %v834 = vsel %vm806, %v575, 0.0
      %v835 = vadd.f32 %v833, %v834
      %v836 = vsel %vm806, %v578, 0.0
      %v837 = vadd.f32 %v835, %v836
      %v838 = vsel %vm806, %v583, 0.0
      %v839 = vadd.f32 %v837, %v838
      %v840 = vsel %vm806, %v586, 0.0
      %v841 = vadd.f32 %v839, %v840
      %v842 = vsel %vm806, %v591, 0.0
      %v843 = vadd.f32 %v841, %v842
      %v844 = vsel %vm806, %v594, 0.0
      %v845 = vadd.f32 %v843, %v844
      %v846 = vsel %vm806, %v599, 0.0
      %v847 = vadd.f32 %v845, %v846
      %v848 = vsel %vm806, %v602, 0.0
      %v849 = vadd.f32 %v847, %v848
      %v850 = vsel %vm806, %v607, 0.0
      %v851 = vadd.f32 %v849, %v850
      %v852 = vsel %vm806, %v610, 0.0
      %v853 = vadd.f32 %v851, %v852
      %v854 = vsel %vm806, %v615, 0.0
      %v855 = vadd.f32 %v853, %v854
      %v856 = vsel %vm806, %v618, 0.0
      %v857 = vadd.f32 %v855, %v856
      %v858 = vsel %vm806, %v623, 0.0
      %v859 = vadd.f32 %v857, %v858
      %v860 = vsel %vm806, %v626, 0.0
      %v861 = vadd.f32 %v859, %v860
      %v862 = vsel %vm806, %v631, 0.0
      %v863 = vadd.f32 %v861, %v862
      %v864 = vsel %vm806, %v634, 0.0
      %v865 = vadd.f32 %v863, %v864
      %v866 = vsel %vm806, %v639, 0.0
      %v867 = vadd.f32 %v865, %v866
      %v868 = vsel %vm806, %v642, 0.0
      %v869 = vadd.f32 %v867, %v868
      %v870 = vrot.slane %v869, 4
      %v871 = vadd.f32 %v869, %v870
      %v872 = vrot.slane %v871, 2
      %v873 = vadd.f32 %v871, %v872
      %v874 = vrot.slane %v873, 1
      %v875 = vadd.f32 %v873, %v874
      %vm876 = vcmask 122880
      %877 = vst.msk [vmem:[%s238] sm:$0x1] %vm876, %v875
      %v878 = vmul.f32 %v519, %v519
      %v879 = vmul.f32 %v522, %v522
      %v880 = vmul.f32 %v527, %v527
      %v881 = vmul.f32 %v530, %v530
      %v882 = vmul.f32 %v535, %v535
      %v883 = vmul.f32 %v538, %v538
      %v884 = vmul.f32 %v543, %v543
      %v885 = vmul.f32 %v546, %v546
      %v886 = vmul.f32 %v551, %v551
      %v887 = vmul.f32 %v554, %v554
      %v888 = vmul.f32 %v559, %v559
      %v889 = vmul.f32 %v562, %v562
      %v890 = vmul.f32 %v567, %v567
      %v891 = vmul.f32 %v570, %v570
      %v892 = vmul.f32 %v575, %v575
      %v893 = vmul.f32 %v578, %v578
      %v894 = vmul.f32 %v583, %v583
      %v895 = vmul.f32 %v586, %v586
      %v896 = vmul.f32 %v591, %v591
      %v897 = vmul.f32 %v594, %v594
      %v898 = vmul.f32 %v599, %v599
      %v899 = vmul.f32 %v602, %v602
      %v900 = vmul.f32 %v607, %v607
      %v901 = vmul.f32 %v610, %v610
      %v902 = vmul.f32 %v615, %v615
      %v903 = vmul.f32 %v618, %v618
      %v904 = vmul.f32 %v623, %v623
      %v905 = vmul.f32 %v626, %v626
      %v906 = vmul.f32 %v631, %v631
      %v907 = vmul.f32 %v634, %v634
      %v908 = vmul.f32 %v639, %v639
      %v909 = vmul.f32 %v642, %v642
      %v910 = vsel %vm806, %v878, 0.0
      %v911 = vsel %vm806, %v879, 0.0
      %v912 = vadd.f32 %v910, %v911
      %v913 = vsel %vm806, %v880, 0.0
      %v914 = vadd.f32 %v912, %v913
      %v915 = vsel %vm806, %v881, 0.0
      %v916 = vadd.f32 %v914, %v915
      %v917 = vsel %vm806, %v882, 0.0
      %v918 = vadd.f32 %v916, %v917
      %v919 = vsel %vm806, %v883, 0.0
      %v920 = vadd.f32 %v918, %v919
      %v921 = vsel %vm806, %v884, 0.0
      %v922 = vadd.f32 %v920, %v921
      %v923 = vsel %vm806, %v885, 0.0
      %v924 = vadd.f32 %v922, %v923
      %v925 = vsel %vm806, %v886, 0.0
      %v926 = vadd.f32 %v924, %v925
      %v927 = vsel %vm806, %v887, 0.0
      %v928 = vadd.f32 %v926, %v927
      %v929 = vsel %vm806, %v888, 0.0
      %v930 = vadd.f32 %v928, %v929
      %v931 = vsel %vm806, %v889, 0.0
      %v932 = vadd.f32 %v930, %v931
      %v933 = vsel %vm806, %v890, 0.0
      %v934 = vadd.f32 %v932, %v933
      %v935 = vsel %vm806, %v891, 0.0
      %v936 = vadd.f32 %v934, %v935
      %v937 = vsel %vm806, %v892, 0.0
      %v938 = vadd.f32 %v936, %v937
      %v939 = vsel %vm806, %v893, 0.0
      %v940 = vadd.f32 %v938, %v939
      %v941 = vsel %vm806, %v894, 0.0
      %v942 = vadd.f32 %v940, %v941
      %v943 = vsel %vm806, %v895, 0.0
      %v944 = vadd.f32 %v942, %v943
      %v945 = vsel %vm806, %v896, 0.0
      %v946 = vadd.f32 %v944, %v945
      %v947 = vsel %vm806, %v897, 0.0
      %v948 = vadd.f32 %v946, %v947
      %v949 = vsel %vm806, %v898, 0.0
      %v950 = vadd.f32 %v948, %v949
      %v951 = vsel %vm806, %v899, 0.0
      %v952 = vadd.f32 %v950, %v951
      %v953 = vsel %vm806, %v900, 0.0
      %v954 = vadd.f32 %v952, %v953
      %v955 = vsel %vm806, %v901, 0.0
      %v956 = vadd.f32 %v954, %v955
      %v957 = vsel %vm806, %v902, 0.0
      %v958 = vadd.f32 %v956, %v957
      %v959 = vsel %vm806, %v903, 0.0
      %v960 = vadd.f32 %v958, %v959
      %v961 = vsel %vm806, %v904, 0.0
      %v962 = vadd.f32 %v960, %v961
      %v963 = vsel %vm806, %v905, 0.0
      %v964 = vadd.f32 %v962, %v963
      %v965 = vsel %vm806, %v906, 0.0
      %v966 = vadd.f32 %v964, %v965
      %v967 = vsel %vm806, %v907, 0.0
      %v968 = vadd.f32 %v966, %v967
      %v969 = vsel %vm806, %v908, 0.0
      %v970 = vadd.f32 %v968, %v969
      %v971 = vsel %vm806, %v909, 0.0
      %v972 = vadd.f32 %v970, %v971
      %v973 = vrot.slane %v972, 4
      %v974 = vadd.f32 %v972, %v973
      %v975 = vrot.slane %v974, 2
      %v976 = vadd.f32 %v974, %v975
      %v977 = vrot.slane %v976, 1
      %v978 = vadd.f32 %v976, %v977
      %979 = vst.msk [vmem:[%s238 + $0x1] sm:$0x1] %vm876, %v978
      %s980 = smul.u32 32, %s17
      %p981 = scmp.lt.s32.totalorder %s980, 63
      %s982 = scalar_select %p981, %s980, 63
      %s983 = smul.addr %s982, 4
      %s984 = scalar_lea.vmem %s4, %s983
      %p985 = scmp.lt.s32.totalorder %s17, 1
      %s986 = scalar_select %p985, %s17, 1
      %s987 = smul.addr %s986, 2
      %s988 = scalar_lea.vmem %s5, %s987
      // Predicated region
      $region37: #{bottleneck_forward.6} parent=35 // pred_check
        %p989 = pneg %p124
      $region38: #{bottleneck_forward.6} parent=35 // pred_check_branch
        %991 = sbr.rel (%p989) target = $region40
      $region39: #{bottleneck_forward.6} parent=35 // pred_region
        %s992 = smul.u32 32, %s17
      $region40: #{bottleneck_forward.6} parent=35 // pred_fallthru
        _
      // Predicated region
      $region41: #{bottleneck_forward.6} parent=35 // pred_check
        %p993 = pneg %p150
      $region42: #{bottleneck_forward.6} parent=35 // pred_check_branch
        %995 = sbr.rel (%p993) target = $region44
      $region43: #{bottleneck_forward.6} parent=35 // pred_region
        _
      $region44: #{bottleneck_forward.6} parent=35 // pred_fallthru
        _
    $region36: #{bottleneck_forward.6} parent=5 // pred_fallthru
      _
    %p996 = scmp.le.s32.totalorder 2, %s12
    // Predicated region
    $region45: #{bottleneck_forward.6} parent=5 // pred_check
      %p997 = pneg %p996
    $region46: #{bottleneck_forward.6} parent=5 // pred_check_branch
      %999 = sbr.rel (%p997) target = $region48
    $region47: #{bottleneck_forward.6} parent=5 // pred_region
      %s1000 = ssub.s32 %s12, 2
      // Predicated region
      $region49: #{bottleneck_forward.6} parent=47 // pred_check
        %p1001 = pneg %p130
      $region50: #{bottleneck_forward.6} parent=47 // pred_check_branch
        %1003 = sbr.rel (%p1001) target = $region52
      $region51: #{bottleneck_forward.6} parent=47 // pred_region
        %s1004 = smul.u32 32, %s18
        %p1005 = scmp.lt.s32.totalorder %s1004, 63
        %s1006 = scalar_select %p1005, %s1004, 63
        %s1007 = smul.addr %s1006, 4
        %s1008 = scalar_lea.vmem %s4, %s1007
      $region52: #{bottleneck_forward.6} parent=47 // pred_fallthru
        _
      // Predicated region
      $region53: #{bottleneck_forward.6} parent=47 // pred_check
        %p1009 = pneg %p156
      $region54: #{bottleneck_forward.6} parent=47 // pred_check_branch
        %1011 = sbr.rel (%p1009) target = $region56
      $region55: #{bottleneck_forward.6} parent=47 // pred_region
        %p1012 = scmp.lt.s32.totalorder %s18, 1
        %s1013 = scalar_select %p1012, %s18, 1
        %s1014 = smul.addr %s1013, 2
        %s1015 = scalar_lea.vmem %s5, %s1014
      $region56: #{bottleneck_forward.6} parent=47 // pred_fallthru
        _
    $region48: #{bottleneck_forward.6} parent=5 // pred_fallthru
      _
  $region6: #{bottleneck_forward.6} parent=0 // loop_footer
    %s16 = sadd.s32 1, %s12
  $region7: #{bottleneck_forward.6} parent=0 // loop_footer_branch
    %11 = sbr.rel target = $region3
  $region8: #{bottleneck_forward.6} parent=0 // loop_exit
    _

// kernel: bottleneck_forward.7
$region0: #{bottleneck_forward.7}
  #allocation0 [shape = 'u32[]', space=smem, size = 0x4, offset = 0x4, fixed_abs, tag = 'smem constant byte address 0x4 - core index']
  #allocation1 [shape = 'u32[144,128]{1,0:T(1,128)}', space=vmem, size = 0x12000, scoped, tag = 'internal scratch']
  %s0 = inlined_call_operand.vmem [shape: bf16[512,16], index: 0, kind: input, shape index: {}]
  %s1 = inlined_call_operand.vmem [shape: f32[1,16], index: 1, kind: input, shape index: {}]
  %s2 = inlined_call_operand.vmem [shape: f32[1,16], index: 2, kind: input, shape index: {}]
  %s3 = inlined_call_operand.vmem [shape: bf16[512,16], index: 3, kind: input, shape index: {}]
  %s4 = inlined_call_operand.vmem [shape: f32[512,16], index: 4, kind: output, shape index: {}]
  %s5 = sld [smem:[#allocation0]]
  $region49: #{bottleneck_forward.7} parent=0
    _
  %s7 = ssub.s32 1, %s5
  %s8 = scalar_select 0, %s7, %s5
  loop: start=0, step=1, limit=4
  $region2: #{bottleneck_forward.7} parent=0 // loop_pre_header
    _
  $region3: #{bottleneck_forward.7} parent=0 // loop_header
    %s10 = sphi 0, %s14
    %p11 = scmp.ge.s32.totalorder %s10, 4
    %s20 = sphi 0, %s22
    %s23 = sphi 0, %s20
    %s24 = sphi 0, %s23
    %s40 = sphi 0, %s24
    %s44 = sphi 0, %s44
    %s46 = sphi 0, %s44
    %s47 = sphi 0, %s46
    %s61 = sphi 0, %s47
    %s65 = sphi 0, %s65
    %s67 = sphi 0, %s65
    %s68 = sphi 0, %s67
    %s82 = sphi 0, %s68
    %s88 = sphi 0, %s90
    %s91 = sphi 0, %s88
    %s92 = sphi 0, %s91
    %s108 = sphi 0, %s92
    %s114 = sphi 0, %s116
    %s117 = sphi 0, %s114
    %s118 = sphi 0, %s117
    %s134 = sphi 0, %s118
  $region4: #{bottleneck_forward.7} parent=0 // loop_header_branch
    %13 = sbr.rel (%p11) target = $region8
  $region5: #{bottleneck_forward.7} parent=0 // loop_body
    %s15 = ssub.s32 %s10, 1
    %s16 = ssub.s32 %s10, 2
    %s17 = sadd.s32 %s10, 1
    %s18 = ssub.s32 %s10, %s17
    %p19 = scmp.eq.s32.totalorder %s18, 0
    %s21 = sadd.s32 %s20, 1
    %s22 = scalar_select %p19, %s20, %s21
    %p25 = pneg %p19
    %p26 = scmp.eq.s32.totalorder %s10, 1
    %p27 = por %p25, %p26
    %p28 = scmp.ne.s32.totalorder %s20, %s23
    %p29 = scmp.eq.s32.totalorder %s10, 0
    %p30 = por %p28, %p29
    %p31 = scmp.ne.s32.totalorder %s20, %s23
    %p32 = scmp.eq.s32.totalorder %s15, 1
    %p33 = por %p31, %p32
    %p34 = scmp.ne.s32.totalorder %s23, %s24
    %p35 = scmp.eq.s32.totalorder %s15, 0
    %p36 = por %p34, %p35
    %p37 = scmp.ne.s32.totalorder %s23, %s24
    %p38 = scmp.eq.s32.totalorder %s16, 1
    %p39 = por %p37, %p38
    %p41 = scmp.ne.s32.totalorder %s24, %s40
    %p42 = scmp.eq.s32.totalorder %s16, 0
    %p43 = por %p41, %p42
    %s45 = sadd.s32 %s44, 1
    %p48 = scmp.eq.s32.totalorder %s10, 1
    %p49 = scmp.ne.s32.totalorder %s44, %s46
    %p50 = scmp.eq.s32.totalorder %s10, 0
    %p51 = por %p49, %p50
    %p52 = scmp.ne.s32.totalorder %s44, %s46
    %p53 = scmp.eq.s32.totalorder %s15, 1
    %p54 = por %p52, %p53
    %p55 = scmp.ne.s32.totalorder %s46, %s47
    %p56 = scmp.eq.s32.totalorder %s15, 0
    %p57 = por %p55, %p56
    %p58 = scmp.ne.s32.totalorder %s46, %s47
    %p59 = scmp.eq.s32.totalorder %s16, 1
    %p60 = por %p58, %p59
    %p62 = scmp.ne.s32.totalorder %s47, %s61
    %p63 = scmp.eq.s32.totalorder %s16, 0
    %p64 = por %p62, %p63
    %s66 = sadd.s32 %s65, 1
    %p69 = scmp.eq.s32.totalorder %s10, 1
    %p70 = scmp.ne.s32.totalorder %s65, %s67
    %p71 = scmp.eq.s32.totalorder %s10, 0
    %p72 = por %p70, %p71
    %p73 = scmp.ne.s32.totalorder %s65, %s67
    %p74 = scmp.eq.s32.totalorder %s15, 1
    %p75 = por %p73, %p74
    %p76 = scmp.ne.s32.totalorder %s67, %s68
    %p77 = scmp.eq.s32.totalorder %s15, 0
    %p78 = por %p76, %p77
    %p79 = scmp.ne.s32.totalorder %s67, %s68
    %p80 = scmp.eq.s32.totalorder %s16, 1
    %p81 = por %p79, %p80
    %p83 = scmp.ne.s32.totalorder %s68, %s82
    %p84 = scmp.eq.s32.totalorder %s16, 0
    %p85 = por %p83, %p84
    %s86 = ssub.s32 %s10, %s17
    %p87 = scmp.eq.s32.totalorder %s86, 0
    %s89 = sadd.s32 %s88, 1
    %s90 = scalar_select %p87, %s88, %s89
    %p93 = pneg %p87
    %p94 = scmp.eq.s32.totalorder %s10, 1
    %p95 = por %p93, %p94
    %p96 = scmp.ne.s32.totalorder %s88, %s91
    %p97 = scmp.eq.s32.totalorder %s10, 0
    %p98 = por %p96, %p97
    %p99 = scmp.ne.s32.totalorder %s88, %s91
    %p100 = scmp.eq.s32.totalorder %s15, 1
    %p101 = por %p99, %p100
    %p102 = scmp.ne.s32.totalorder %s91, %s92
    %p103 = scmp.eq.s32.totalorder %s15, 0
    %p104 = por %p102, %p103
    %p105 = scmp.ne.s32.totalorder %s91, %s92
    %p106 = scmp.eq.s32.totalorder %s16, 1
    %p107 = por %p105, %p106
    %p109 = scmp.ne.s32.totalorder %s92, %s108
    %p110 = scmp.eq.s32.totalorder %s16, 0
    %p111 = por %p109, %p110
    %s112 = ssub.s32 %s10, %s17
    %p113 = scmp.eq.s32.totalorder %s112, 0
    %s115 = sadd.s32 %s114, 1
    %s116 = scalar_select %p113, %s114, %s115
    %p119 = pneg %p113
    %p120 = scmp.eq.s32.totalorder %s10, 1
    %p121 = por %p119, %p120
    %p122 = scmp.ne.s32.totalorder %s114, %s117
    %p123 = scmp.eq.s32.totalorder %s10, 0
    %p124 = por %p122, %p123
    %p125 = scmp.ne.s32.totalorder %s114, %s117
    %p126 = scmp.eq.s32.totalorder %s15, 1
    %p127 = por %p125, %p126
    %p128 = scmp.ne.s32.totalorder %s117, %s118
    %p129 = scmp.eq.s32.totalorder %s15, 0
    %p130 = por %p128, %p129
    %p131 = scmp.ne.s32.totalorder %s117, %s118
    %p132 = scmp.eq.s32.totalorder %s16, 1
    %p133 = por %p131, %p132
    %p135 = scmp.ne.s32.totalorder %s118, %s134
    %p136 = scmp.eq.s32.totalorder %s16, 0
    %p137 = por %p135, %p136
    %p138 = scmp.le.s32.totalorder 1, %s10
    %p139 = scmp.lt.s32.totalorder %s10, 3
    %p140 = pnand %p138, %p139
    %p141 = pneg %p140
    // Predicated region
    $region9: #{bottleneck_forward.7} parent=5 // pred_check
      _
    $region10: #{bottleneck_forward.7} parent=5 // pred_check_branch
      %143 = sbr.rel (%p140) target = $region12
    $region11: #{bottleneck_forward.7} parent=5 // pred_region
      %s144 = ssub.s32 %s10, 1
      // Predicated region
      $region13: #{bottleneck_forward.7} parent=11 // pred_check
        %p145 = pneg %p57
      $region14: #{bottleneck_forward.7} parent=11 // pred_check_branch
        %147 = sbr.rel (%p145) target = $region16
      $region15: #{bottleneck_forward.7} parent=11 // pred_region
        _
      $region16: #{bottleneck_forward.7} parent=11 // pred_fallthru
        _
      // Predicated region
      $region17: #{bottleneck_forward.7} parent=11 // pred_check
        %p148 = pneg %p78
      $region18: #{bottleneck_forward.7} parent=11 // pred_check_branch
        %150 = sbr.rel (%p148) target = $region20
      $region19: #{bottleneck_forward.7} parent=11 // pred_region
        _
      $region20: #{bottleneck_forward.7} parent=11 // pred_fallthru
        _
    $region12: #{bottleneck_forward.7} parent=5 // pred_fallthru
      _
    %p151 = scmp.lt.s32.totalorder %s10, 2
    // Predicated region
    $region21: #{bottleneck_forward.7} parent=5 // pred_check
      %p152 = pneg %p151
    $region22: #{bottleneck_forward.7} parent=5 // pred_check_branch
      %154 = sbr.rel (%p152) target = $region24
    $region23: #{bottleneck_forward.7} parent=5 // pred_region
      // Predicated region
      $region25: #{bottleneck_forward.7} parent=23 // pred_check
        %p155 = pneg %p30
      $region26: #{bottleneck_forward.7} parent=23 // pred_check_branch
        %157 = sbr.rel (%p155) target = $region28
      $region27: #{bottleneck_forward.7} parent=23 // pred_region
        %s158 = smul.u32 32, %s10
        %p159 = scmp.lt.s32.totalorder %s158, 63
        %s160 = scalar_select %p159, %s158, 63
        %s161 = smul.addr %s160, 4
        %s162 = scalar_lea.vmem %s0, %s161
        %s163 = smul.u32 32, %s10
      $region28: #{bottleneck_forward.7} parent=23 // pred_fallthru
        _
      // Predicated region
      $region29: #{bottleneck_forward.7} parent=23 // pred_check
        %p164 = pneg %p98
      $region30: #{bottleneck_forward.7} parent=23 // pred_check_branch
        %166 = sbr.rel (%p164) target = $region32
      $region31: #{bottleneck_forward.7} parent=23 // pred_region
        %s167 = smul.u32 32, %s10
        %p168 = scmp.lt.s32.totalorder %s167, 63
        %s169 = scalar_select %p168, %s167, 63
        %s170 = smul.addr %s169, 4
        %s171 = scalar_lea.vmem %s3, %s170
        %s172 = smul.u32 32, %s10
      $region32: #{bottleneck_forward.7} parent=23 // pred_fallthru
        _
    $region24: #{bottleneck_forward.7} parent=5 // pred_fallthru
      _
    %p173 = scmp.le.s32.totalorder 1, %s10
    %p174 = scmp.lt.s32.totalorder %s10, 3
    %p175 = pnand %p173, %p174
    %p176 = pneg %p175
    // Predicated region
    $region33: #{bottleneck_forward.7} parent=5 // pred_check
      _
    $region34: #{bottleneck_forward.7} parent=5 // pred_check_branch
      %178 = sbr.rel (%p175) target = $region36
    $region35: #{bottleneck_forward.7} parent=5 // pred_region
      %s179 = ssub.s32 %s10, 1
      %s180 = smul.u32 32, %s15
      %p181 = scmp.lt.s32.totalorder %s180, 63
      %s182 = scalar_select %p181, %s180, 63
      %s183 = smul.addr %s182, 4
      %s184 = scalar_lea.vmem %s0, %s183
      %p185 = pneg %p36
      %p186 = pneg %p33
      %p187 = pneg %p57
      %p188 = pneg %p54
      %p189 = pneg %p78
      %p190 = pneg %p75
      %s191 = smul.u32 32, %s15
      %p192 = scmp.lt.s32.totalorder %s191, 63
      %s193 = scalar_select %p192, %s191, 63
      %s194 = smul.addr %s193, 4
      %s195 = scalar_lea.vmem %s3, %s194
      %p196 = pneg %p104
      %p197 = pneg %p101
      %p198 = pneg %p130
      %p199 = pneg %p127
      %s200 = smul.u32 32, %s15
      %p201 = scmp.lt.s32.totalorder %s200, 63
      %s202 = scalar_select %p201, %s200, 63
      %s203 = smul.addr %s202, 8
      %s204 = scalar_lea.vmem %s4, %s203
      %s205 = smul.u32 32, %s15
      %p206 = scmp.lt.s32.totalorder %s205, 63
      %s207 = scalar_select %p206, %s205, 63
      %s208 = smul.addr %s207, 4
      %s209 = scalar_lea.vmem %s0, %s208
      %s210 = smul.u32 32, %s15
      %s211 = smul.u32 32, %s15
      %p212 = scmp.lt.s32.totalorder %s211, 63
      %s213 = scalar_select %p212, %s211, 63
      %s214 = smul.addr %s213, 4
      %s215 = scalar_lea.vmem %s3, %s214
      %s216 = smul.u32 32, %s15
      %s217 = smul.u32 32, %s15
      %p218 = scmp.lt.s32.totalorder %s217, 63
      %s219 = scalar_select %p218, %s217, 63
      %s220 = smul.addr %s219, 8
      %s221 = scalar_lea.vmem %s4, %s220
      %s222 = smul.u32 32, %s15
      %v223 = vld [vmem:[%s209] sm:$0xf]
      %v224 = vld [vmem:[%s209 + $0x4] sm:$0xf]
      %v225 = vld [vmem:[%s209 + $0x8] sm:$0xf]
      %v226 = vld [vmem:[%s209 + $0xc] sm:$0xf]
      %v227 = vld [vmem:[%s209 + $0x10] sm:$0xf]
      %v228 = vld [vmem:[%s209 + $0x14] sm:$0xf]
      %v229 = vld [vmem:[%s209 + $0x18] sm:$0xf]
      %v230 = vld [vmem:[%s209 + $0x1c] sm:$0xf]
      %v231 = vld [vmem:[%s209 + $0x20] sm:$0xf]
      %v232 = vld [vmem:[%s209 + $0x24] sm:$0xf]
      %v233 = vld [vmem:[%s209 + $0x28] sm:$0xf]
      %v234 = vld [vmem:[%s209 + $0x2c] sm:$0xf]
      %v235 = vld [vmem:[%s209 + $0x30] sm:$0xf]
      %v236 = vld [vmem:[%s209 + $0x34] sm:$0xf]
      %v237 = vld [vmem:[%s209 + $0x38] sm:$0xf]
      %v238 = vld [vmem:[%s209 + $0x3c] sm:$0xf]
      %v239 = vld [vmem:[%s209 + $0x40] sm:$0xf]
      %v240 = vld [vmem:[%s209 + $0x44] sm:$0xf]
      %v241 = vld [vmem:[%s209 + $0x48] sm:$0xf]
      %v242 = vld [vmem:[%s209 + $0x4c] sm:$0xf]
      %v243 = vld [vmem:[%s209 + $0x50] sm:$0xf]
      %v244 = vld [vmem:[%s209 + $0x54] sm:$0xf]
      %v245 = vld [vmem:[%s209 + $0x58] sm:$0xf]
      %v246 = vld [vmem:[%s209 + $0x5c] sm:$0xf]
      %v247 = vld [vmem:[%s209 + $0x60] sm:$0xf]
      %v248 = vld [vmem:[%s209 + $0x64] sm:$0xf]
      %v249 = vld [vmem:[%s209 + $0x68] sm:$0xf]
      %v250 = vld [vmem:[%s209 + $0x6c] sm:$0xf]
      %v251 = vld [vmem:[%s209 + $0x70] sm:$0xf]
      %v252 = vld [vmem:[%s209 + $0x74] sm:$0xf]
      %v253 = vld [vmem:[%s209 + $0x78] sm:$0xf]
      %v254 = vld [vmem:[%s209 + $0x7c] sm:$0xf]
      %v255 = vunpack.c.l.bf16 %v223
      %v256 = vunpack.c.l.bf16 %v224
      %v257 = vunpack.c.l.bf16 %v225
      %v258 = vunpack.c.l.bf16 %v226
      %v259 = vunpack.c.l.bf16 %v227
      %v260 = vunpack.c.l.bf16 %v228
      %v261 = vunpack.c.l.bf16 %v229
      %v262 = vunpack.c.l.bf16 %v230
      %v263 = vunpack.c.l.bf16 %v231
      %v264 = vunpack.c.l.bf16 %v232
      %v265 = vunpack.c.l.bf16 %v233
      %v266 = vunpack.c.l.bf16 %v234
      %v267 = vunpack.c.l.bf16 %v235
      %v268 = vunpack.c.l.bf16 %v236
      %v269 = vunpack.c.l.bf16 %v237
      %v270 = vunpack.c.l.bf16 %v238
      %v271 = vunpack.c.l.bf16 %v239
      %v272 = vunpack.c.l.bf16 %v240
      %v273 = vunpack.c.l.bf16 %v241
      %v274 = vunpack.c.l.bf16 %v242
      %v275 = vunpack.c.l.bf16 %v243
      %v276 = vunpack.c.l.bf16 %v244
      %v277 = vunpack.c.l.bf16 %v245
      %v278 = vunpack.c.l.bf16 %v246
      %v279 = vunpack.c.l.bf16 %v247
      %v280 = vunpack.c.l.bf16 %v248
      %v281 = vunpack.c.l.bf16 %v249
      %v282 = vunpack.c.l.bf16 %v250
      %v283 = vunpack.c.l.bf16 %v251
      %v284 = vunpack.c.l.bf16 %v252
      %v285 = vunpack.c.l.bf16 %v253
      %v286 = vunpack.c.l.bf16 %v254
      %v287 = vld [vmem:[%s1] sm:$0x1]
      %v289 = vlaneseq
      %v290 = vshrl.u32 %v289, 7
      %v291 = vsub.s32 0, %v290
      %v292 = vrot.slane %v287, %v291
      %v294 = vmul.f32 %v255, %v292
      %v295 = vmul.f32 %v256, %v292
      %v296 = vmul.f32 %v257, %v292
      %v297 = vmul.f32 %v258, %v292
      %v298 = vmul.f32 %v259, %v292
      %v299 = vmul.f32 %v260, %v292
      %v300 = vmul.f32 %v261, %v292
      %v301 = vmul.f32 %v262, %v292
      %v302 = vmul.f32 %v263, %v292
      %v303 = vmul.f32 %v264, %v292
      %v304 = vmul.f32 %v265, %v292
      %v305 = vmul.f32 %v266, %v292
      %v306 = vmul.f32 %v267, %v292
      %v307 = vmul.f32 %v268, %v292
      %v308 = vmul.f32 %v269, %v292
      %v309 = vmul.f32 %v270, %v292
      %v310 = vmul.f32 %v271, %v292
      %v311 = vmul.f32 %v272, %v292
      %v312 = vmul.f32 %v273, %v292
      %v313 = vmul.f32 %v274, %v292
      %v314 = vmul.f32 %v275, %v292
      %v315 = vmul.f32 %v276, %v292
      %v316 = vmul.f32 %v277, %v292
      %v317 = vmul.f32 %v278, %v292
      %v318 = vmul.f32 %v279, %v292
      %v319 = vmul.f32 %v280, %v292
      %v320 = vmul.f32 %v281, %v292
      %v321 = vmul.f32 %v282, %v292
      %v322 = vmul.f32 %v283, %v292
      %v323 = vmul.f32 %v284, %v292
      %v324 = vmul.f32 %v285, %v292
      %v325 = vmul.f32 %v286, %v292
      %v326 = vld [vmem:[%s2] sm:$0x1]
      %v328 = vlaneseq
      %v329 = vshrl.u32 %v328, 7
      %v330 = vsub.s32 0, %v329
      %v331 = vrot.slane %v326, %v330
      %v333 = vadd.f32 %v294, %v331
      %v334 = vadd.f32 %v295, %v331
      %v335 = vadd.f32 %v296, %v331
      %v336 = vadd.f32 %v297, %v331
      %v337 = vadd.f32 %v298, %v331
      %v338 = vadd.f32 %v299, %v331
      %v339 = vadd.f32 %v300, %v331
      %v340 = vadd.f32 %v301, %v331
      %v341 = vadd.f32 %v302, %v331
      %v342 = vadd.f32 %v303, %v331
      %v343 = vadd.f32 %v304, %v331
      %v344 = vadd.f32 %v305, %v331
      %v345 = vadd.f32 %v306, %v331
      %v346 = vadd.f32 %v307, %v331
      %v347 = vadd.f32 %v308, %v331
      %v348 = vadd.f32 %v309, %v331
      %v349 = vadd.f32 %v310, %v331
      %v350 = vadd.f32 %v311, %v331
      %v351 = vadd.f32 %v312, %v331
      %v352 = vadd.f32 %v313, %v331
      %v353 = vadd.f32 %v314, %v331
      %v354 = vadd.f32 %v315, %v331
      %v355 = vadd.f32 %v316, %v331
      %v356 = vadd.f32 %v317, %v331
      %v357 = vadd.f32 %v318, %v331
      %v358 = vadd.f32 %v319, %v331
      %v359 = vadd.f32 %v320, %v331
      %v360 = vadd.f32 %v321, %v331
      %v361 = vadd.f32 %v322, %v331
      %v362 = vadd.f32 %v323, %v331
      %v363 = vadd.f32 %v324, %v331
      %v364 = vadd.f32 %v325, %v331
      %v365 = vld [vmem:[%s215] sm:$0xf]
      %v366 = vld [vmem:[%s215 + $0x4] sm:$0xf]
      %v367 = vld [vmem:[%s215 + $0x8] sm:$0xf]
      %v368 = vld [vmem:[%s215 + $0xc] sm:$0xf]
      %v369 = vld [vmem:[%s215 + $0x10] sm:$0xf]
      %v370 = vld [vmem:[%s215 + $0x14] sm:$0xf]
      %v371 = vld [vmem:[%s215 + $0x18] sm:$0xf]
      %v372 = vld [vmem:[%s215 + $0x1c] sm:$0xf]
      %v373 = vld [vmem:[%s215 + $0x20] sm:$0xf]
      %v374 = vld [vmem:[%s215 + $0x24] sm:$0xf]
      %v375 = vld [vmem:[%s215 + $0x28] sm:$0xf]
      %v376 = vld [vmem:[%s215 + $0x2c] sm:$0xf]
      %v377 = vld [vmem:[%s215 + $0x30] sm:$0xf]
      %v378 = vld [vmem:[%s215 + $0x34] sm:$0xf]
      %v379 = vld [vmem:[%s215 + $0x38] sm:$0xf]
      %v380 = vld [vmem:[%s215 + $0x3c] sm:$0xf]
      %v381 = vld [vmem:[%s215 + $0x40] sm:$0xf]
      %v382 = vld [vmem:[%s215 + $0x44] sm:$0xf]
      %v383 = vld [vmem:[%s215 + $0x48] sm:$0xf]
      %v384 = vld [vmem:[%s215 + $0x4c] sm:$0xf]
      %v385 = vld [vmem:[%s215 + $0x50] sm:$0xf]
      %v386 = vld [vmem:[%s215 + $0x54] sm:$0xf]
      %v387 = vld [vmem:[%s215 + $0x58] sm:$0xf]
      %v388 = vld [vmem:[%s215 + $0x5c] sm:$0xf]
      %v389 = vld [vmem:[%s215 + $0x60] sm:$0xf]
      %v390 = vld [vmem:[%s215 + $0x64] sm:$0xf]
      %v391 = vld [vmem:[%s215 + $0x68] sm:$0xf]
      %v392 = vld [vmem:[%s215 + $0x6c] sm:$0xf]
      %v393 = vld [vmem:[%s215 + $0x70] sm:$0xf]
      %v394 = vld [vmem:[%s215 + $0x74] sm:$0xf]
      %v395 = vld [vmem:[%s215 + $0x78] sm:$0xf]
      %v396 = vld [vmem:[%s215 + $0x7c] sm:$0xf]
      %v397 = vunpack.c.l.bf16 %v365
      %v398 = vunpack.c.l.bf16 %v366
      %v399 = vunpack.c.l.bf16 %v367
      %v400 = vunpack.c.l.bf16 %v368
      %v401 = vunpack.c.l.bf16 %v369
      %v402 = vunpack.c.l.bf16 %v370
      %v403 = vunpack.c.l.bf16 %v371
      %v404 = vunpack.c.l.bf16 %v372
      %v405 = vunpack.c.l.bf16 %v373
      %v406 = vunpack.c.l.bf16 %v374
      %v407 = vunpack.c.l.bf16 %v375
      %v408 = vunpack.c.l.bf16 %v376
      %v409 = vunpack.c.l.bf16 %v377
      %v410 = vunpack.c.l.bf16 %v378
      %v411 = vunpack.c.l.bf16 %v379
      %v412 = vunpack.c.l.bf16 %v380
      %v413 = vunpack.c.l.bf16 %v381
      %v414 = vunpack.c.l.bf16 %v382
      %v415 = vunpack.c.l.bf16 %v383
      %v416 = vunpack.c.l.bf16 %v384
      %v417 = vunpack.c.l.bf16 %v385
      %v418 = vunpack.c.l.bf16 %v386
      %v419 = vunpack.c.l.bf16 %v387
      %v420 = vunpack.c.l.bf16 %v388
      %v421 = vunpack.c.l.bf16 %v389
      %v422 = vunpack.c.l.bf16 %v390
      %v423 = vunpack.c.l.bf16 %v391
      %v424 = vunpack.c.l.bf16 %v392
      %v425 = vunpack.c.l.bf16 %v393
      %v426 = vunpack.c.l.bf16 %v394
      %v427 = vunpack.c.l.bf16 %v395
      %v428 = vunpack.c.l.bf16 %v396
      %v429 = vadd.f32 %v333, %v397
      %v430 = vadd.f32 %v334, %v398
      %v431 = vadd.f32 %v335, %v399
      %v432 = vadd.f32 %v336, %v400
      %v433 = vadd.f32 %v337, %v401
      %v434 = vadd.f32 %v338, %v402
      %v435 = vadd.f32 %v339, %v403
      %v436 = vadd.f32 %v340, %v404
      %v437 = vadd.f32 %v341, %v405
      %v438 = vadd.f32 %v342, %v406
      %v439 = vadd.f32 %v343, %v407
      %v440 = vadd.f32 %v344, %v408
      %v441 = vadd.f32 %v345, %v409
      %v442 = vadd.f32 %v346, %v410
      %v443 = vadd.f32 %v347, %v411
      %v444 = vadd.f32 %v348, %v412
      %v445 = vadd.f32 %v349, %v413
      %v446 = vadd.f32 %v350, %v414
      %v447 = vadd.f32 %v351, %v415
      %v448 = vadd.f32 %v352, %v416
      %v449 = vadd.f32 %v353, %v417
      %v450 = vadd.f32 %v354, %v418
      %v451 = vadd.f32 %v355, %v419
      %v452 = vadd.f32 %v356, %v420
      %v453 = vadd.f32 %v357, %v421
      %v454 = vadd.f32 %v358, %v422
      %v455 = vadd.f32 %v359, %v423
      %v456 = vadd.f32 %v360, %v424
      %v457 = vadd.f32 %v361, %v425
      %v458 = vadd.f32 %v362, %v426
      %v459 = vadd.f32 %v363, %v427
      %v460 = vadd.f32 %v364, %v428
      %v461 = vmax.f32 %v429, 0.0
      %v462 = vmax.f32 %v430, 0.0
      %v463 = vmax.f32 %v431, 0.0
      %v464 = vmax.f32 %v432, 0.0
      %v465 = vmax.f32 %v433, 0.0
      %v466 = vmax.f32 %v434, 0.0
      %v467 = vmax.f32 %v435, 0.0
      %v468 = vmax.f32 %v436, 0.0
      %v469 = vmax.f32 %v437, 0.0
      %v470 = vmax.f32 %v438, 0.0
      %v471 = vmax.f32 %v439, 0.0
      %v472 = vmax.f32 %v440, 0.0
      %v473 = vmax.f32 %v441, 0.0
      %v474 = vmax.f32 %v442, 0.0
      %v475 = vmax.f32 %v443, 0.0
      %v476 = vmax.f32 %v444, 0.0
      %v477 = vmax.f32 %v445, 0.0
      %v478 = vmax.f32 %v446, 0.0
      %v479 = vmax.f32 %v447, 0.0
      %v480 = vmax.f32 %v448, 0.0
      %v481 = vmax.f32 %v449, 0.0
      %v482 = vmax.f32 %v450, 0.0
      %v483 = vmax.f32 %v451, 0.0
      %v484 = vmax.f32 %v452, 0.0
      %v485 = vmax.f32 %v453, 0.0
      %v486 = vmax.f32 %v454, 0.0
      %v487 = vmax.f32 %v455, 0.0
      %v488 = vmax.f32 %v456, 0.0
      %v489 = vmax.f32 %v457, 0.0
      %v490 = vmax.f32 %v458, 0.0
      %v491 = vmax.f32 %v459, 0.0
      %v492 = vmax.f32 %v460, 0.0
      %vm493 = vcmask 130048
      %494 = vst.msk [vmem:[%s221] sm:$0xff] %vm493, %v461
      %495 = vst.msk [vmem:[%s221 + $0x8] sm:$0xff] %vm493, %v462
      %496 = vst.msk [vmem:[%s221 + $0x10] sm:$0xff] %vm493, %v463
      %497 = vst.msk [vmem:[%s221 + $0x18] sm:$0xff] %vm493, %v464
      %498 = vst.msk [vmem:[%s221 + $0x20] sm:$0xff] %vm493, %v465
      %499 = vst.msk [vmem:[%s221 + $0x28] sm:$0xff] %vm493, %v466
      %500 = vst.msk [vmem:[%s221 + $0x30] sm:$0xff] %vm493, %v467
      %501 = vst.msk [vmem:[%s221 + $0x38] sm:$0xff] %vm493, %v468
      %502 = vst.msk [vmem:[%s221 + $0x40] sm:$0xff] %vm493, %v469
      %503 = vst.msk [vmem:[%s221 + $0x48] sm:$0xff] %vm493, %v470
      %504 = vst.msk [vmem:[%s221 + $0x50] sm:$0xff] %vm493, %v471
      %505 = vst.msk [vmem:[%s221 + $0x58] sm:$0xff] %vm493, %v472
      %506 = vst.msk [vmem:[%s221 + $0x60] sm:$0xff] %vm493, %v473
      %507 = vst.msk [vmem:[%s221 + $0x68] sm:$0xff] %vm493, %v474
      %508 = vst.msk [vmem:[%s221 + $0x70] sm:$0xff] %vm493, %v475
      %509 = vst.msk [vmem:[%s221 + $0x78] sm:$0xff] %vm493, %v476
      %510 = vst.msk [vmem:[%s221 + $0x80] sm:$0xff] %vm493, %v477
      %511 = vst.msk [vmem:[%s221 + $0x88] sm:$0xff] %vm493, %v478
      %512 = vst.msk [vmem:[%s221 + $0x90] sm:$0xff] %vm493, %v479
      %513 = vst.msk [vmem:[%s221 + $0x98] sm:$0xff] %vm493, %v480
      %514 = vst.msk [vmem:[%s221 + $0xa0] sm:$0xff] %vm493, %v481
      %515 = vst.msk [vmem:[%s221 + $0xa8] sm:$0xff] %vm493, %v482
      %516 = vst.msk [vmem:[%s221 + $0xb0] sm:$0xff] %vm493, %v483
      %517 = vst.msk [vmem:[%s221 + $0xb8] sm:$0xff] %vm493, %v484
      %518 = vst.msk [vmem:[%s221 + $0xc0] sm:$0xff] %vm493, %v485
      %519 = vst.msk [vmem:[%s221 + $0xc8] sm:$0xff] %vm493, %v486
      %520 = vst.msk [vmem:[%s221 + $0xd0] sm:$0xff] %vm493, %v487
      %521 = vst.msk [vmem:[%s221 + $0xd8] sm:$0xff] %vm493, %v488
      %522 = vst.msk [vmem:[%s221 + $0xe0] sm:$0xff] %vm493, %v489
      %523 = vst.msk [vmem:[%s221 + $0xe8] sm:$0xff] %vm493, %v490
      %524 = vst.msk [vmem:[%s221 + $0xf0] sm:$0xff] %vm493, %v491
      %525 = vst.msk [vmem:[%s221 + $0xf8] sm:$0xff] %vm493, %v492
      %s526 = smul.u32 32, %s15
      %p527 = scmp.lt.s32.totalorder %s526, 63
      %s528 = scalar_select %p527, %s526, 63
      %s529 = smul.addr %s528, 8
      %s530 = scalar_lea.vmem %s4, %s529
      // Predicated region
      $region37: #{bottleneck_forward.7} parent=35 // pred_check
        %p531 = pneg %p127
      $region38: #{bottleneck_forward.7} parent=35 // pred_check_branch
        %533 = sbr.rel (%p531) target = $region40
      $region39: #{bottleneck_forward.7} parent=35 // pred_region
        %s534 = smul.u32 32, %s15
      $region40: #{bottleneck_forward.7} parent=35 // pred_fallthru
        _
    $region36: #{bottleneck_forward.7} parent=5 // pred_fallthru
      _
    %p535 = scmp.le.s32.totalorder 2, %s10
    // Predicated region
    $region41: #{bottleneck_forward.7} parent=5 // pred_check
      %p536 = pneg %p535
    $region42: #{bottleneck_forward.7} parent=5 // pred_check_branch
      %538 = sbr.rel (%p536) target = $region44
    $region43: #{bottleneck_forward.7} parent=5 // pred_region
      %s539 = ssub.s32 %s10, 2
      // Predicated region
      $region45: #{bottleneck_forward.7} parent=43 // pred_check
        %p540 = pneg %p133
      $region46: #{bottleneck_forward.7} parent=43 // pred_check_branch
        %542 = sbr.rel (%p540) target = $region48
      $region47: #{bottleneck_forward.7} parent=43 // pred_region
        %s543 = smul.u32 32, %s16
        %p544 = scmp.lt.s32.totalorder %s543, 63
        %s545 = scalar_select %p544, %s543, 63
        %s546 = smul.addr %s545, 8
        %s547 = scalar_lea.vmem %s4, %s546
      $region48: #{bottleneck_forward.7} parent=43 // pred_fallthru
        _
    $region44: #{bottleneck_forward.7} parent=5 // pred_fallthru
      _
  $region6: #{bottleneck_forward.7} parent=0 // loop_footer
    %s14 = sadd.s32 1, %s10
  $region7: #{bottleneck_forward.7} parent=0 // loop_footer_branch
    %9 = sbr.rel target = $region3
  $region8: #{bottleneck_forward.7} parent=0 // loop_exit
    _

// kernel: bottleneck_forward.5
$region0: #{bottleneck_forward.5}
  #allocation0 [shape = 'u32[]', space=smem, size = 0x4, offset = 0x4, fixed_abs, tag = 'smem constant byte address 0x4 - core index']
  #allocation1 [shape = 'u32[144,128]{1,0:T(1,128)}', space=vmem, size = 0x12000, scoped, tag = 'internal scratch']
  #allocation2 [shape = 'bf16[18,18,4]{2,1,0:T(8,128)(2,1)}', space=vmem, size = 0x1b000, scoped, tag = 'scratch operand']
  %s0 = inlined_call_operand.vmem [shape: bf16[2,16,16,4], index: 0, kind: input, shape index: {}]
  %s1 = inlined_call_operand.vmem [shape: f32[1,4], index: 1, kind: input, shape index: {}]
  %s2 = inlined_call_operand.vmem [shape: f32[1,4], index: 2, kind: input, shape index: {}]
  %s3 = inlined_call_operand.vmem [shape: bf16[3,3,4,4], index: 3, kind: input, shape index: {}]
  %s4 = inlined_call_operand.vmem [shape: bf16[2,16,16,4], index: 4, kind: output, shape index: {0}]
  %s5 = inlined_call_operand.vmem [shape: f32[2,2,4], index: 5, kind: output, shape index: {1}]
  %6 = xla_tuple %s4, %s5
  %s7 = sld [smem:[#allocation0]]
  $region57: #{bottleneck_forward.5} parent=0
    _
  %s9 = ssub.s32 1, %s7
  %s10 = scalar_select 0, %s9, %s7
  loop: start=0, step=1, limit=4
  $region2: #{bottleneck_forward.5} parent=0 // loop_pre_header
    _
  $region3: #{bottleneck_forward.5} parent=0 // loop_header
    %s12 = sphi 0, %s16
    %p13 = scmp.ge.s32.totalorder %s12, 4
    %s22 = sphi 0, %s24
    %s25 = sphi 0, %s22
    %s26 = sphi 0, %s25
    %s42 = sphi 0, %s26
    %s46 = sphi 0, %s46
    %s48 = sphi 0, %s46
    %s49 = sphi 0, %s48
    %s63 = sphi 0, %s49
    %s67 = sphi 0, %s67
    %s69 = sphi 0, %s67
    %s70 = sphi 0, %s69
    %s84 = sphi 0, %s70
    %s88 = sphi 0, %s88
    %s90 = sphi 0, %s88
    %s91 = sphi 0, %s90
    %s105 = sphi 0, %s91
    %s111 = sphi 0, %s113
    %s114 = sphi 0, %s111
    %s115 = sphi 0, %s114
    %s131 = sphi 0, %s115
    %s137 = sphi 0, %s139
    %s140 = sphi 0, %s137
    %s141 = sphi 0, %s140
    %s157 = sphi 0, %s141
  $region4: #{bottleneck_forward.5} parent=0 // loop_header_branch
    %15 = sbr.rel (%p13) target = $region8
  $region5: #{bottleneck_forward.5} parent=0 // loop_body
    %s17 = ssub.s32 %s12, 1
    %s18 = ssub.s32 %s12, 2
    %s19 = sadd.s32 %s12, 1
    %s20 = ssub.s32 %s12, %s19
    %p21 = scmp.eq.s32.totalorder %s20, 0
    %s23 = sadd.s32 %s22, 1
    %s24 = scalar_select %p21, %s22, %s23
    %p27 = pneg %p21
    %p28 = scmp.eq.s32.totalorder %s12, 1
    %p29 = por %p27, %p28
    %p30 = scmp.ne.s32.totalorder %s22, %s25
    %p31 = scmp.eq.s32.totalorder %s12, 0
    %p32 = por %p30, %p31
    %p33 = scmp.ne.s32.totalorder %s22, %s25
    %p34 = scmp.eq.s32.totalorder %s17, 1
    %p35 = por %p33, %p34
    %p36 = scmp.ne.s32.totalorder %s25, %s26
    %p37 = scmp.eq.s32.totalorder %s17, 0
    %p38 = por %p36, %p37
    %p39 = scmp.ne.s32.totalorder %s25, %s26
    %p40 = scmp.eq.s32.totalorder %s18, 1
    %p41 = por %p39, %p40
    %p43 = scmp.ne.s32.totalorder %s26, %s42
    %p44 = scmp.eq.s32.totalorder %s18, 0
    %p45 = por %p43, %p44
    %s47 = sadd.s32 %s46, 1
    %p50 = scmp.eq.s32.totalorder %s12, 1
    %p51 = scmp.ne.s32.totalorder %s46, %s48
    %p52 = scmp.eq.s32.totalorder %s12, 0
    %p53 = por %p51, %p52
    %p54 = scmp.ne.s32.totalorder %s46, %s48
    %p55 = scmp.eq.s32.totalorder %s17, 1
    %p56 = por %p54, %p55
    %p57 = scmp.ne.s32.totalorder %s48, %s49
    %p58 = scmp.eq.s32.totalorder %s17, 0
    %p59 = por %p57, %p58
    %p60 = scmp.ne.s32.totalorder %s48, %s49
    %p61 = scmp.eq.s32.totalorder %s18, 1
    %p62 = por %p60, %p61
    %p64 = scmp.ne.s32.totalorder %s49, %s63
    %p65 = scmp.eq.s32.totalorder %s18, 0
    %p66 = por %p64, %p65
    %s68 = sadd.s32 %s67, 1
    %p71 = scmp.eq.s32.totalorder %s12, 1
    %p72 = scmp.ne.s32.totalorder %s67, %s69
    %p73 = scmp.eq.s32.totalorder %s12, 0
    %p74 = por %p72, %p73
    %p75 = scmp.ne.s32.totalorder %s67, %s69
    %p76 = scmp.eq.s32.totalorder %s17, 1
    %p77 = por %p75, %p76
    %p78 = scmp.ne.s32.totalorder %s69, %s70
    %p79 = scmp.eq.s32.totalorder %s17, 0
    %p80 = por %p78, %p79
    %p81 = scmp.ne.s32.totalorder %s69, %s70
    %p82 = scmp.eq.s32.totalorder %s18, 1
    %p83 = por %p81, %p82
    %p85 = scmp.ne.s32.totalorder %s70, %s84
    %p86 = scmp.eq.s32.totalorder %s18, 0
    %p87 = por %p85, %p86
    %s89 = sadd.s32 %s88, 1
    %p92 = scmp.eq.s32.totalorder %s12, 1
    %p93 = scmp.ne.s32.totalorder %s88, %s90
    %p94 = scmp.eq.s32.totalorder %s12, 0
    %p95 = por %p93, %p94
    %p96 = scmp.ne.s32.totalorder %s88, %s90
    %p97 = scmp.eq.s32.totalorder %s17, 1
    %p98 = por %p96, %p97
    %p99 = scmp.ne.s32.totalorder %s90, %s91
    %p100 = scmp.eq.s32.totalorder %s17, 0
    %p101 = por %p99, %p100
    %p102 = scmp.ne.s32.totalorder %s90, %s91
    %p103 = scmp.eq.s32.totalorder %s18, 1
    %p104 = por %p102, %p103
    %p106 = scmp.ne.s32.totalorder %s91, %s105
    %p107 = scmp.eq.s32.totalorder %s18, 0
    %p108 = por %p106, %p107
    %s109 = ssub.s32 %s12, %s19
    %p110 = scmp.eq.s32.totalorder %s109, 0
    %s112 = sadd.s32 %s111, 1
    %s113 = scalar_select %p110, %s111, %s112
    %p116 = pneg %p110
    %p117 = scmp.eq.s32.totalorder %s12, 1
    %p118 = por %p116, %p117
    %p119 = scmp.ne.s32.totalorder %s111, %s114
    %p120 = scmp.eq.s32.totalorder %s12, 0
    %p121 = por %p119, %p120
    %p122 = scmp.ne.s32.totalorder %s111, %s114
    %p123 = scmp.eq.s32.totalorder %s17, 1
    %p124 = por %p122, %p123
    %p125 = scmp.ne.s32.totalorder %s114, %s115
    %p126 = scmp.eq.s32.totalorder %s17, 0
    %p127 = por %p125, %p126
    %p128 = scmp.ne.s32.totalorder %s114, %s115
    %p129 = scmp.eq.s32.totalorder %s18, 1
    %p130 = por %p128, %p129
    %p132 = scmp.ne.s32.totalorder %s115, %s131
    %p133 = scmp.eq.s32.totalorder %s18, 0
    %p134 = por %p132, %p133
    %s135 = ssub.s32 %s12, %s19
    %p136 = scmp.eq.s32.totalorder %s135, 0
    %s138 = sadd.s32 %s137, 1
    %s139 = scalar_select %p136, %s137, %s138
    %p142 = pneg %p136
    %p143 = scmp.eq.s32.totalorder %s12, 1
    %p144 = por %p142, %p143
    %p145 = scmp.ne.s32.totalorder %s137, %s140
    %p146 = scmp.eq.s32.totalorder %s12, 0
    %p147 = por %p145, %p146
    %p148 = scmp.ne.s32.totalorder %s137, %s140
    %p149 = scmp.eq.s32.totalorder %s17, 1
    %p150 = por %p148, %p149
    %p151 = scmp.ne.s32.totalorder %s140, %s141
    %p152 = scmp.eq.s32.totalorder %s17, 0
    %p153 = por %p151, %p152
    %p154 = scmp.ne.s32.totalorder %s140, %s141
    %p155 = scmp.eq.s32.totalorder %s18, 1
    %p156 = por %p154, %p155
    %p158 = scmp.ne.s32.totalorder %s141, %s157
    %p159 = scmp.eq.s32.totalorder %s18, 0
    %p160 = por %p158, %p159
    %p161 = scmp.le.s32.totalorder 1, %s12
    %p162 = scmp.lt.s32.totalorder %s12, 3
    %p163 = pnand %p161, %p162
    %p164 = pneg %p163
    // Predicated region
    $region9: #{bottleneck_forward.5} parent=5 // pred_check
      _
    $region10: #{bottleneck_forward.5} parent=5 // pred_check_branch
      %166 = sbr.rel (%p163) target = $region12
    $region11: #{bottleneck_forward.5} parent=5 // pred_region
      %s167 = ssub.s32 %s12, 1
      // Predicated region
      $region13: #{bottleneck_forward.5} parent=11 // pred_check
        %p168 = pneg %p59
      $region14: #{bottleneck_forward.5} parent=11 // pred_check_branch
        %170 = sbr.rel (%p168) target = $region16
      $region15: #{bottleneck_forward.5} parent=11 // pred_region
        _
      $region16: #{bottleneck_forward.5} parent=11 // pred_fallthru
        _
      // Predicated region
      $region17: #{bottleneck_forward.5} parent=11 // pred_check
        %p171 = pneg %p80
      $region18: #{bottleneck_forward.5} parent=11 // pred_check_branch
        %173 = sbr.rel (%p171) target = $region20
      $region19: #{bottleneck_forward.5} parent=11 // pred_region
        _
      $region20: #{bottleneck_forward.5} parent=11 // pred_fallthru
        _
      // Predicated region
      $region21: #{bottleneck_forward.5} parent=11 // pred_check
        %p174 = pneg %p101
      $region22: #{bottleneck_forward.5} parent=11 // pred_check_branch
        %176 = sbr.rel (%p174) target = $region24
      $region23: #{bottleneck_forward.5} parent=11 // pred_region
        _
      $region24: #{bottleneck_forward.5} parent=11 // pred_fallthru
        _
    $region12: #{bottleneck_forward.5} parent=5 // pred_fallthru
      _
    %p177 = scmp.lt.s32.totalorder %s12, 2
    // Predicated region
    $region25: #{bottleneck_forward.5} parent=5 // pred_check
      %p178 = pneg %p177
    $region26: #{bottleneck_forward.5} parent=5 // pred_check_branch
      %180 = sbr.rel (%p178) target = $region28
    $region27: #{bottleneck_forward.5} parent=5 // pred_region
      // Predicated region
      $region29: #{bottleneck_forward.5} parent=27 // pred_check
        %p181 = pneg %p32
      $region30: #{bottleneck_forward.5} parent=27 // pred_check_branch
        %183 = sbr.rel (%p181) target = $region32
      $region31: #{bottleneck_forward.5} parent=27 // pred_region
        %p184 = scmp.lt.s32.totalorder %s12, 1
        %s185 = scalar_select %p184, %s12, 1
        %s186 = smul.addr %s185, 32
        %s187 = smul.addr %s186, 4
        %s188 = scalar_lea.vmem %s0, %s187
      $region32: #{bottleneck_forward.5} parent=27 // pred_fallthru
        _
    $region28: #{bottleneck_forward.5} parent=5 // pred_fallthru
      _
    %p189 = scmp.le.s32.totalorder 1, %s12
    %p190 = scmp.lt.s32.totalorder %s12, 3
    %p191 = pnand %p189, %p190
    %p192 = pneg %p191
    // Predicated region
    $region33: #{bottleneck_forward.5} parent=5 // pred_check
      _
    $region34: #{bottleneck_forward.5} parent=5 // pred_check_branch
      %194 = sbr.rel (%p191) target = $region36
    $region35: #{bottleneck_forward.5} parent=5 // pred_region
      %s195 = ssub.s32 %s12, 1
      %p196 = scmp.lt.s32.totalorder %s17, 1
      %s197 = scalar_select %p196, %s17, 1
      %s198 = smul.addr %s197, 32
      %s199 = smul.addr %s198, 4
      %s200 = scalar_lea.vmem %s0, %s199
      %p201 = pneg %p38
      %p202 = pneg %p35
      %p203 = pneg %p59
      %p204 = pneg %p56
      %p205 = pneg %p80
      %p206 = pneg %p77
      %p207 = pneg %p101
      %p208 = pneg %p98
      %p209 = pneg %p127
      %p210 = pneg %p124
      %p211 = scmp.lt.s32.totalorder %s17, 1
      %s212 = scalar_select %p211, %s17, 1
      %s213 = smul.addr %s212, 32
      %s214 = smul.addr %s213, 4
      %s215 = scalar_lea.vmem %s4, %s214
      %p216 = pneg %p153
      %p217 = pneg %p150
      %p218 = scmp.lt.s32.totalorder %s17, 1
      %s219 = scalar_select %p218, %s17, 1
      %s220 = smul.addr %s219, 2
      %s221 = scalar_lea.vmem %s5, %s220
      %p222 = scmp.lt.s32.totalorder %s17, 1
      %s223 = scalar_select %p222, %s17, 1
      %s224 = smul.addr %s223, 32
      %s225 = smul.addr %s224, 4
      %s226 = scalar_lea.vmem %s0, %s225
      %p227 = scmp.lt.s32.totalorder %s17, 1
      %s228 = scalar_select %p227, %s17, 1
      %s229 = smul.addr %s228, 32
      %s230 = smul.addr %s229, 4
      %s231 = scalar_lea.vmem %s4, %s230
      %p232 = scmp.lt.s32.totalorder %s17, 1
      %s233 = scalar_select %p232, %s17, 1
      %s234 = smul.addr %s233, 2
      %s235 = scalar_lea.vmem %s5, %s234
      %vm237 = vcmask 27648
      %238 = vst.msk [vmem:[#allocation2] sm:$0xf] %vm237, 0
      %239 = vst.msk [vmem:[#allocation2 + $0x4] sm:$0xf] %vm237, 0
      %vm240 = vcmask 24576
      %241 = vst.msk [vmem:[#allocation2 + $0x8] sm:$0x1] %vm240, 0
      %s242 = scalar_lea.vmem [#allocation2], 204
      %243 = vst.msk [vmem:[%s242] sm:$0xf] %vm237, 0
      %244 = vst.msk [vmem:[%s242 + $0x4] sm:$0xf] %vm237, 0
      %245 = vst.msk [vmem:[%s242 + $0x8] sm:$0x1] %vm240, 0
      %vm246 = vcmask 24576
      %vm247 = vsmask.f32 256
      %vm248 = vmand %vm246, %vm247
      %v249 = vld [vmem:[#allocation2] sm:$0x1]
      %v250 = vsel %vm248, 0, %v249
      %251 = vst [vmem:[#allocation2] sm:$0x1] %v250
      %v252 = vld [vmem:[#allocation2 + $0xc] sm:$0x1]
      %v253 = vsel %vm248, 0, %v252
      %254 = vst [vmem:[#allocation2 + $0xc] sm:$0x1] %v253
      %v255 = vld [vmem:[#allocation2 + $0x18] sm:$0x1]
      %v256 = vsel %vm248, 0, %v255
      %257 = vst [vmem:[#allocation2 + $0x18] sm:$0x1] %v256
      %v258 = vld [vmem:[#allocation2 + $0x24] sm:$0x1]
      %v259 = vsel %vm248, 0, %v258
      %260 = vst [vmem:[#allocation2 + $0x24] sm:$0x1] %v259
      %v261 = vld [vmem:[#allocation2 + $0x30] sm:$0x1]
      %v262 = vsel %vm248, 0, %v261
      %263 = vst [vmem:[#allocation2 + $0x30] sm:$0x1] %v262
      %v264 = vld [vmem:[#allocation2 + $0x3c] sm:$0x1]
      %v265 = vsel %vm248, 0, %v264
      %266 = vst [vmem:[#allocation2 + $0x3c] sm:$0x1] %v265
      %v267 = vld [vmem:[#allocation2 + $0x48] sm:$0x1]
      %v268 = vsel %vm248, 0, %v267
      %269 = vst [vmem:[#allocation2 + $0x48] sm:$0x1] %v268
      %v270 = vld [vmem:[#allocation2 + $0x54] sm:$0x1]
      %v271 = vsel %vm248, 0, %v270
      %272 = vst [vmem:[#allocation2 + $0x54] sm:$0x1] %v271
      %v273 = vld [vmem:[#allocation2 + $0x60] sm:$0x1]
      %v274 = vsel %vm248, 0, %v273
      %275 = vst [vmem:[#allocation2 + $0x60] sm:$0x1] %v274
      %v276 = vld [vmem:[#allocation2 + $0x6c] sm:$0x1]
      %v277 = vsel %vm248, 0, %v276
      %278 = vst [vmem:[#allocation2 + $0x6c] sm:$0x1] %v277
      %v279 = vld [vmem:[#allocation2 + $0x78] sm:$0x1]
      %v280 = vsel %vm248, 0, %v279
      %281 = vst [vmem:[#allocation2 + $0x78] sm:$0x1] %v280
      %v282 = vld [vmem:[#allocation2 + $0x84] sm:$0x1]
      %v283 = vsel %vm248, 0, %v282
      %284 = vst [vmem:[#allocation2 + $0x84] sm:$0x1] %v283
      %v285 = vld [vmem:[#allocation2 + $0x90] sm:$0x1]
      %v286 = vsel %vm248, 0, %v285
      %287 = vst [vmem:[#allocation2 + $0x90] sm:$0x1] %v286
      %v288 = vld [vmem:[#allocation2 + $0x9c] sm:$0x1]
      %v289 = vsel %vm248, 0, %v288
      %290 = vst [vmem:[#allocation2 + $0x9c] sm:$0x1] %v289
      %v291 = vld [vmem:[#allocation2 + $0xa8] sm:$0x1]
      %v292 = vsel %vm248, 0, %v291
      %293 = vst [vmem:[#allocation2 + $0xa8] sm:$0x1] %v292
      %v294 = vld [vmem:[#allocation2 + $0xb4] sm:$0x1]
      %v295 = vsel %vm248, 0, %v294
      %296 = vst [vmem:[#allocation2 + $0xb4] sm:$0x1] %v295
      %v297 = vld [vmem:[#allocation2 + $0xc0] sm:$0x1]
      %v298 = vsel %vm248, 0, %v297
      %299 = vst [vmem:[#allocation2 + $0xc0] sm:$0x1] %v298
      %v300 = vld [vmem:[#allocation2 + $0xcc] sm:$0x1]
      %v301 = vsel %vm248, 0, %v300
      %302 = vst [vmem:[#allocation2 + $0xcc] sm:$0x1] %v301
      %vm303 = vsmask.f32 7938
      %vm304 = vmand %vm246, %vm303
      %v305 = vld [vmem:[#allocation2 + $0x8] sm:$0x1]
      %v306 = vsel %vm304, 0, %v305
      %307 = vst [vmem:[#allocation2 + $0x8] sm:$0x1] %v306
      %v308 = vld [vmem:[#allocation2 + $0x14] sm:$0x1]
      %v309 = vsel %vm304, 0, %v308
      %310 = vst [vmem:[#allocation2 + $0x14] sm:$0x1] %v309
      %v311 = vld [vmem:[#allocation2 + $0x20] sm:$0x1]
      %v312 = vsel %vm304, 0, %v311
      %313 = vst [vmem:[#allocation2 + $0x20] sm:$0x1] %v312
      %v314 = vld [vmem:[#allocation2 + $0x2c] sm:$0x1]
      %v315 = vsel %vm304, 0, %v314
      %316 = vst [vmem:[#allocation2 + $0x2c] sm:$0x1] %v315
      %v317 = vld [vmem:[#allocation2 + $0x38] sm:$0x1]
      %v318 = vsel %vm304, 0, %v317
      %319 = vst [vmem:[#allocation2 + $0x38] sm:$0x1] %v318
      %v320 = vld [vmem:[#allocation2 + $0x44] sm:$0x1]
      %v321 = vsel %vm304, 0, %v320
      %322 = vst [vmem:[#allocation2 + $0x44] sm:$0x1] %v321
      %v323 = vld [vmem:[#allocation2 + $0x50] sm:$0x1]
      %v324 = vsel %vm304, 0, %v323
      %325 = vst [vmem:[#allocation2 + $0x50] sm:$0x1] %v324
      %v326 = vld [vmem:[#allocation2 + $0x5c] sm:$0x1]
      %v327 = vsel %vm304, 0, %v326
      %328 = vst [vmem:[#allocation2 + $0x5c] sm:$0x1] %v327
      %v329 = vld [vmem:[#allocation2 + $0x68] sm:$0x1]
      %v330 = vsel %vm304, 0, %v329
      %331 = vst [vmem:[#allocation2 + $0x68] sm:$0x1] %v330
      %v332 = vld [vmem:[#allocation2 + $0x74] sm:$0x1]
      %v333 = vsel %vm304, 0, %v332
      %334 = vst [vmem:[#allocation2 + $0x74] sm:$0x1] %v333
      %v335 = vld [vmem:[#allocation2 + $0x80] sm:$0x1]
      %v336 = vsel %vm304, 0, %v335
      %337 = vst [vmem:[#allocation2 + $0x80] sm:$0x1] %v336
      %v338 = vld [vmem:[#allocation2 + $0x8c] sm:$0x1]
      %v339 = vsel %vm304, 0, %v338
      %340 = vst [vmem:[#allocation2 + $0x8c] sm:$0x1] %v339
      %v341 = vld [vmem:[#allocation2 + $0x98] sm:$0x1]
      %v342 = vsel %vm304, 0, %v341
      %343 = vst [vmem:[#allocation2 + $0x98] sm:$0x1] %v342
      %v344 = vld [vmem:[#allocation2 + $0xa4] sm:$0x1]
      %v345 = vsel %vm304, 0, %v344
      %346 = vst [vmem:[#allocation2 + $0xa4] sm:$0x1] %v345
      %v347 = vld [vmem:[#allocation2 + $0xb0] sm:$0x1]
      %v348 = vsel %vm304, 0, %v347
      %349 = vst [vmem:[#allocation2 + $0xb0] sm:$0x1] %v348
      %v350 = vld [vmem:[#allocation2 + $0xbc] sm:$0x1]
      %v351 = vsel %vm304, 0, %v350
      %352 = vst [vmem:[#allocation2 + $0xbc] sm:$0x1] %v351
      %v353 = vld [vmem:[#allocation2 + $0xc8] sm:$0x1]
      %v354 = vsel %vm304, 0, %v353
      %355 = vst [vmem:[#allocation2 + $0xc8] sm:$0x1] %v354
      %v356 = vld [vmem:[#allocation2 + $0xd4] sm:$0x1]
      %v357 = vsel %vm304, 0, %v356
      %358 = vst [vmem:[#allocation2 + $0xd4] sm:$0x1] %v357
      %v359 = vld [vmem:[%s226] sm:$0xf]
      %v360 = vld [vmem:[%s226 + $0x4] sm:$0xf]
      %v361 = vld [vmem:[%s226 + $0x8] sm:$0xf]
      %v362 = vld [vmem:[%s226 + $0xc] sm:$0xf]
      %v363 = vld [vmem:[%s226 + $0x10] sm:$0xf]
      %v364 = vld [vmem:[%s226 + $0x14] sm:$0xf]
      %v365 = vld [vmem:[%s226 + $0x18] sm:$0xf]
      %v366 = vld [vmem:[%s226 + $0x1c] sm:$0xf]
      %v367 = vld [vmem:[%s226 + $0x20] sm:$0xf]
      %v368 = vld [vmem:[%s226 + $0x24] sm:$0xf]
      %v369 = vld [vmem:[%s226 + $0x28] sm:$0xf]
      %v370 = vld [vmem:[%s226 + $0x2c] sm:$0xf]
      %v371 = vld [vmem:[%s226 + $0x30] sm:$0xf]
      %v372 = vld [vmem:[%s226 + $0x34] sm:$0xf]
      %v373 = vld [vmem:[%s226 + $0x38] sm:$0xf]
      %v374 = vld [vmem:[%s226 + $0x3c] sm:$0xf]
      %v375 = vld [vmem:[%s226 + $0x40] sm:$0xf]
      %v376 = vld [vmem:[%s226 + $0x44] sm:$0xf]
      %v377 = vld [vmem:[%s226 + $0x48] sm:$0xf]
      %v378 = vld [vmem:[%s226 + $0x4c] sm:$0xf]
      %v379 = vld [vmem:[%s226 + $0x50] sm:$0xf]
      %v380 = vld [vmem:[%s226 + $0x54] sm:$0xf]
      %v381 = vld [vmem:[%s226 + $0x58] sm:$0xf]
      %v382 = vld [vmem:[%s226 + $0x5c] sm:$0xf]
      %v383 = vld [vmem:[%s226 + $0x60] sm:$0xf]
      %v384 = vld [vmem:[%s226 + $0x64] sm:$0xf]
      %v385 = vld [vmem:[%s226 + $0x68] sm:$0xf]
      %v386 = vld [vmem:[%s226 + $0x6c] sm:$0xf]
      %v387 = vld [vmem:[%s226 + $0x70] sm:$0xf]
      %v388 = vld [vmem:[%s226 + $0x74] sm:$0xf]
      %v389 = vld [vmem:[%s226 + $0x78] sm:$0xf]
      %v390 = vld [vmem:[%s226 + $0x7c] sm:$0xf]
      %v391 = vunpack.c.l.bf16 %v359
      %v392 = vunpack.c.l.bf16 %v360
      %v393 = vunpack.c.l.bf16 %v361
      %v394 = vunpack.c.l.bf16 %v362
      %v395 = vunpack.c.l.bf16 %v363
      %v396 = vunpack.c.l.bf16 %v364
      %v397 = vunpack.c.l.bf16 %v365
      %v398 = vunpack.c.l.bf16 %v366
      %v399 = vunpack.c.l.bf16 %v367
      %v400 = vunpack.c.l.bf16 %v368
      %v401 = vunpack.c.l.bf16 %v369
      %v402 = vunpack.c.l.bf16 %v370
      %v403 = vunpack.c.l.bf16 %v371
      %v404 = vunpack.c.l.bf16 %v372
      %v405 = vunpack.c.l.bf16 %v373
      %v406 = vunpack.c.l.bf16 %v374
      %v407 = vunpack.c.l.bf16 %v375
      %v408 = vunpack.c.l.bf16 %v376
      %v409 = vunpack.c.l.bf16 %v377
      %v410 = vunpack.c.l.bf16 %v378
      %v411 = vunpack.c.l.bf16 %v379
      %v412 = vunpack.c.l.bf16 %v380
      %v413 = vunpack.c.l.bf16 %v381
      %v414 = vunpack.c.l.bf16 %v382
      %v415 = vunpack.c.l.bf16 %v383
      %v416 = vunpack.c.l.bf16 %v384
      %v417 = vunpack.c.l.bf16 %v385
      %v418 = vunpack.c.l.bf16 %v386
      %v419 = vunpack.c.l.bf16 %v387
      %v420 = vunpack.c.l.bf16 %v388
      %v421 = vunpack.c.l.bf16 %v389
      %v422 = vunpack.c.l.bf16 %v390
      %v423 = vld [vmem:[%s1] sm:$0x1]
      %v425 = vlaneseq
      %v426 = vshrl.u32 %v425, 7
      %v427 = vsub.s32 0, %v426
      %v428 = vrot.slane %v423, %v427
      %v430 = vmul.f32 %v391, %v428
      %v431 = vmul.f32 %v392, %v428
      %v432 = vmul.f32 %v393, %v428
      %v433 = vmul.f32 %v394, %v428
      %v434 = vmul.f32 %v395, %v428
      %v435 = vmul.f32 %v396, %v428
      %v436 = vmul.f32 %v397, %v428
      %v437 = vmul.f32 %v398, %v428
      %v438 = vmul.f32 %v399, %v428
      %v439 = vmul.f32 %v400, %v428
      %v440 = vmul.f32 %v401, %v428
      %v441 = vmul.f32 %v402, %v428
      %v442 = vmul.f32 %v403, %v428
      %v443 = vmul.f32 %v404, %v428
      %v444 = vmul.f32 %v405, %v428
      %v445 = vmul.f32 %v406, %v428
      %v446 = vmul.f32 %v407, %v428
      %v447 = vmul.f32 %v408, %v428
      %v448 = vmul.f32 %v409, %v428
      %v449 = vmul.f32 %v410, %v428
      %v450 = vmul.f32 %v411, %v428
      %v451 = vmul.f32 %v412, %v428
      %v452 = vmul.f32 %v413, %v428
      %v453 = vmul.f32 %v414, %v428
      %v454 = vmul.f32 %v415, %v428
      %v455 = vmul.f32 %v416, %v428
      %v456 = vmul.f32 %v417, %v428
      %v457 = vmul.f32 %v418, %v428
      %v458 = vmul.f32 %v419, %v428
      %v459 = vmul.f32 %v420, %v428
      %v460 = vmul.f32 %v421, %v428
      %v461 = vmul.f32 %v422, %v428
      %v462 = vld [vmem:[%s2] sm:$0x1]
      %v464 = vlaneseq
      %v465 = vshrl.u32 %v464, 7
      %v466 = vsub.s32 0, %v465
      %v467 = vrot.slane %v462, %v466
      %v469 = vadd.f32 %v430, %v467
      %v470 = vadd.f32 %v431, %v467
      %v471 = vadd.f32 %v432, %v467
      %v472 = vadd.f32 %v433, %v467
      %v473 = vadd.f32 %v434, %v467
      %v474 = vadd.f32 %v435, %v467
      %v475 = vadd.f32 %v436, %v467
      %v476 = vadd.f32 %v437, %v467
      %v477 = vadd.f32 %v438, %v467
      %v478 = vadd.f32 %v439, %v467
      %v479 = vadd.f32 %v440, %v467
      %v480 = vadd.f32 %v441, %v467
      %v481 = vadd.f32 %v442, %v467
      %v482 = vadd.f32 %v443, %v467
      %v483 = vadd.f32 %v444, %v467
      %v484 = vadd.f32 %v445, %v467
      %v485 = vadd.f32 %v446, %v467
      %v486 = vadd.f32 %v447, %v467
      %v487 = vadd.f32 %v448, %v467
      %v488 = vadd.f32 %v449, %v467
      %v489 = vadd.f32 %v450, %v467
      %v490 = vadd.f32 %v451, %v467
      %v491 = vadd.f32 %v452, %v467
      %v492 = vadd.f32 %v453, %v467
      %v493 = vadd.f32 %v454, %v467
      %v494 = vadd.f32 %v455, %v467
      %v495 = vadd.f32 %v456, %v467
      %v496 = vadd.f32 %v457, %v467
      %v497 = vadd.f32 %v458, %v467
      %v498 = vadd.f32 %v459, %v467
      %v499 = vadd.f32 %v460, %v467
      %v500 = vadd.f32 %v461, %v467
      %v501 = vmax.f32 %v469, 0.0
      %v502 = vmax.f32 %v470, 0.0
      %v503 = vmax.f32 %v471, 0.0
      %v504 = vmax.f32 %v472, 0.0
      %v505 = vmax.f32 %v473, 0.0
      %v506 = vmax.f32 %v474, 0.0
      %v507 = vmax.f32 %v475, 0.0
      %v508 = vmax.f32 %v476, 0.0
      %v509 = vmax.f32 %v477, 0.0
      %v510 = vmax.f32 %v478, 0.0
      %v511 = vmax.f32 %v479, 0.0
      %v512 = vmax.f32 %v480, 0.0
      %v513 = vmax.f32 %v481, 0.0
      %v514 = vmax.f32 %v482, 0.0
      %v515 = vmax.f32 %v483, 0.0
      %v516 = vmax.f32 %v484, 0.0
      %v517 = vmax.f32 %v485, 0.0
      %v518 = vmax.f32 %v486, 0.0
      %v519 = vmax.f32 %v487, 0.0
      %v520 = vmax.f32 %v488, 0.0
      %v521 = vmax.f32 %v489, 0.0
      %v522 = vmax.f32 %v490, 0.0
      %v523 = vmax.f32 %v491, 0.0
      %v524 = vmax.f32 %v492, 0.0
      %v525 = vmax.f32 %v493, 0.0
      %v526 = vmax.f32 %v494, 0.0
      %v527 = vmax.f32 %v495, 0.0
      %v528 = vmax.f32 %v496, 0.0
      %v529 = vmax.f32 %v497, 0.0
      %v530 = vmax.f32 %v498, 0.0
      %v531 = vmax.f32 %v499, 0.0
      %v532 = vmax.f32 %v500, 0.0
      %v533 = vpack.c.bf16 %v502, %v501
      %v534 = vpack.c.bf16 %v504, %v503
      %v535 = vpack.c.bf16 %v506, %v505
      %v536 = vpack.c.bf16 %v508, %v507
      %v537 = vpack.c.bf16 %v510, %v509
      %v538 = vpack.c.bf16 %v512, %v511
      %v539 = vpack.c.bf16 %v514, %v513
      %v540 = vpack.c.bf16 %v516, %v515
      %v541 = vpack.c.bf16 %v518, %v517
      %v542 = vpack.c.bf16 %v520, %v519
      %v543 = vpack.c.bf16 %v522, %v521
      %v544 = vpack.c.bf16 %v524, %v523
      %v545 = vpack.c.bf16 %v526, %v525
      %v546 = vpack.c.bf16 %v528, %v527
      %v547 = vpack.c.bf16 %v530, %v529
      %v548 = vpack.c.bf16 %v532, %v531
      %v565 = vunpack.c.l.b16 %v533
      %v566 = vunpack.c.h.b16 %v533
      %v567 = vunpack.c.l.b16 %v534
      %v568 = vunpack.c.h.b16 %v534
      %v569 = vunpack.c.l.b16 %v535
      %v570 = vunpack.c.h.b16 %v535
      %v571 = vunpack.c.l.b16 %v536
      %v572 = vunpack.c.h.b16 %v536
      %v573 = vunpack.c.l.b16 %v537
      %v574 = vunpack.c.h.b16 %v537
      %v575 = vunpack.c.l.b16 %v538
      %v576 = vunpack.c.h.b16 %v538
      %v577 = vunpack.c.l.b16 %v539
      %v578 = vunpack.c.h.b16 %v539
      %v579 = vunpack.c.l.b16 %v540
      %v580 = vunpack.c.h.b16 %v540
      %v581 = vunpack.c.l.b16 %v541
      %v582 = vunpack.c.h.b16 %v541
      %v583 = vunpack.c.l.b16 %v542
      %v584 = vunpack.c.h.b16 %v542
      %v585 = vunpack.c.l.b16 %v543
      %v586 = vunpack.c.h.b16 %v543
      %v587 = vunpack.c.l.b16 %v544
      %v588 = vunpack.c.h.b16 %v544
      %v589 = vunpack.c.l.b16 %v545
      %v590 = vunpack.c.h.b16 %v545
      %v591 = vunpack.c.l.b16 %v546
      %v592 = vunpack.c.h.b16 %v546
      %v593 = vunpack.c.l.b16 %v547
      %v594 = vunpack.c.h.b16 %v547
      %v595 = vunpack.c.l.b16 %v548
      %v596 = vunpack.c.h.b16 %v548
      %v597 = vpack.c.b16 %v565, %v565
      %v598 = vpack.c.b16 %v566, %v566
      %v599 = vpack.c.b16 %v567, %v567
      %v600 = vpack.c.b16 %v568, %v568
      %v601 = vpack.c.b16 %v569, %v569
      %v602 = vpack.c.b16 %v570, %v570
      %v603 = vpack.c.b16 %v571, %v571
      %v604 = vpack.c.b16 %v572, %v572
      %v605 = vpack.c.b16 %v573, %v573
      %v606 = vpack.c.b16 %v574, %v574
      %v607 = vpack.c.b16 %v575, %v575
      %v608 = vpack.c.b16 %v576, %v576
      %v609 = vpack.c.b16 %v577, %v577
      %v610 = vpack.c.b16 %v578, %v578
      %v611 = vpack.c.b16 %v579, %v579
      %v612 = vpack.c.b16 %v580, %v580
      %v613 = vpack.c.b16 %v581, %v581
      %v614 = vpack.c.b16 %v582, %v582
      %v615 = vpack.c.b16 %v583, %v583
      %v616 = vpack.c.b16 %v584, %v584
      %v617 = vpack.c.b16 %v585, %v585
      %v618 = vpack.c.b16 %v586, %v586
      %v619 = vpack.c.b16 %v587, %v587
      %v620 = vpack.c.b16 %v588, %v588
      %v621 = vpack.c.b16 %v589, %v589
      %v622 = vpack.c.b16 %v590, %v590
      %v623 = vpack.c.b16 %v591, %v591
      %v624 = vpack.c.b16 %v592, %v592
      %v625 = vpack.c.b16 %v593, %v593
      %v626 = vpack.c.b16 %v594, %v594
      %v627 = vpack.c.b16 %v595, %v595
      %v628 = vpack.c.b16 %v596, %v596
      %vm629 = vsmask.f32 4368
      %vm630 = vmor %vm247, %vm629
      %v632 = vshrl.u32 %v597, 16
      %v634 = vrot.slane %v632, 7
      %v635 = vshll.u32 %v597, 16
      %v637 = vor.u32 %v634, %v635
      %v638 = vrot.slane %v634, 4
      %v640 = vshrl.u32 %v598, 16
      %v642 = vrot.slane %v640, 7
      %v643 = vshll.u32 %v598, 16
      %v645 = vor.u32 %v642, %v643
      %v646 = vsel %vm630, %v638, %v645
      %v647 = vrot.slane %v642, 4
      %v649 = vshrl.u32 %v599, 16
      %v651 = vrot.slane %v649, 7
      %v652 = vshll.u32 %v599, 16
      %v654 = vor.u32 %v651, %v652
      %v655 = vrot.slane %v651, 4
      %v657 = vshrl.u32 %v600, 16
      %v659 = vrot.slane %v657, 7
      %v660 = vshll.u32 %v600, 16
      %v662 = vor.u32 %v659, %v660
      %v663 = vsel %vm630, %v655, %v662
      %v664 = vrot.slane %v659, 4
      %v666 = vshrl.u32 %v601, 16
      %v668 = vrot.slane %v666, 7
      %v669 = vshll.u32 %v601, 16
      %v671 = vor.u32 %v668, %v669
      %v672 = vrot.slane %v668, 4
      %v674 = vshrl.u32 %v602, 16
      %v676 = vrot.slane %v674, 7
      %v677 = vshll.u32 %v602, 16
      %v679 = vor.u32 %v676, %v677
      %v680 = vsel %vm630, %v672, %v679
      %v681 = vrot.slane %v676, 4
      %v683 = vshrl.u32 %v603, 16
      %v685 = vrot.slane %v683, 7
      %v686 = vshll.u32 %v603, 16
      %v688 = vor.u32 %v685, %v686
      %v689 = vrot.slane %v685, 4
      %v691 = vshrl.u32 %v604, 16
      %v693 = vrot.slane %v691, 7
      %v694 = vshll.u32 %v604, 16
      %v696 = vor.u32 %v693, %v694
      %v697 = vsel %vm630, %v689, %v696
      %v698 = vrot.slane %v693, 4
      %v700 = vshrl.u32 %v605, 16
      %v702 = vrot.slane %v700, 7
      %v703 = vshll.u32 %v605, 16
      %v705 = vor.u32 %v702, %v703
      %v706 = vrot.slane %v702, 4
      %v708 = vshrl.u32 %v606, 16
      %v710 = vrot.slane %v708, 7
      %v711 = vshll.u32 %v606, 16
      %v713 = vor.u32 %v710, %v711
      %v714 = vsel %vm630, %v706, %v713
      %v715 = vrot.slane %v710, 4
      %v717 = vshrl.u32 %v607, 16
      %v719 = vrot.slane %v717, 7
      %v720 = vshll.u32 %v607, 16
      %v722 = vor.u32 %v719, %v720
      %v723 = vrot.slane %v719, 4
      %v725 = vshrl.u32 %v608, 16
      %v727 = vrot.slane %v725, 7
      %v728 = vshll.u32 %v608, 16
      %v730 = vor.u32 %v727, %v728
      %v731 = vsel %vm630, %v723, %v730
      %v732 = vrot.slane %v727, 4
      %v734 = vshrl.u32 %v609, 16
      %v736 = vrot.slane %v734, 7
      %v737 = vshll.u32 %v609, 16
      %v739 = vor.u32 %v736, %v737
      %v740 = vrot.slane %v736, 4
      %v742 = vshrl.u32 %v610, 16
      %v744 = vrot.slane %v742, 7
      %v745 = vshll.u32 %v610, 16
      %v747 = vor.u32 %v744, %v745
      %v748 = vsel %vm630, %v740, %v747
      %v749 = vrot.slane %v744, 4
      %v751 = vshrl.u32 %v611, 16
      %v753 = vrot.slane %v751, 7
      %v754 = vshll.u32 %v611, 16
      %v756 = vor.u32 %v753, %v754
      %v757 = vrot.slane %v753, 4
      %v759 = vshrl.u32 %v612, 16
      %v761 = vrot.slane %v759, 7
      %v762 = vshll.u32 %v612, 16
      %v764 = vor.u32 %v761, %v762
      %v765 = vsel %vm630, %v757, %v764
      %v766 = vrot.slane %v761, 4
      %v768 = vshrl.u32 %v613, 16
      %v770 = vrot.slane %v768, 7
      %v771 = vshll.u32 %v613, 16
      %v773 = vor.u32 %v770, %v771
      %v774 = vrot.slane %v770, 4
      %v776 = vshrl.u32 %v614, 16
      %v778 = vrot.slane %v776, 7
      %v779 = vshll.u32 %v614, 16
      %v781 = vor.u32 %v778, %v779
      %v782 = vsel %vm630, %v774, %v781
      %v783 = vrot.slane %v778, 4
      %v785 = vshrl.u32 %v615, 16
      %v787 = vrot.slane %v785, 7
      %v788 = vshll.u32 %v615, 16
      %v790 = vor.u32 %v787, %v788
      %v791 = vrot.slane %v787, 4
      %v793 = vshrl.u32 %v616, 16
      %v795 = vrot.slane %v793, 7
      %v796 = vshll.u32 %v616, 16
      %v798 = vor.u32 %v795, %v796
      %v799 = vsel %vm630, %v791, %v798
      %v800 = vrot.slane %v795, 4
      %v802 = vshrl.u32 %v617, 16
      %v804 = vrot.slane %v802, 7
      %v805 = vshll.u32 %v617, 16
      %v807 = vor.u32 %v804, %v805
      %v808 = vrot.slane %v804, 4
      %v810 = vshrl.u32 %v618, 16
      %v812 = vrot.slane %v810, 7
      %v813 = vshll.u32 %v618, 16
      %v815 = vor.u32 %v812, %v813
      %v816 = vsel %vm630, %v808, %v815
      %v817 = vrot.slane %v812, 4
      %v819 = vshrl.u32 %v619, 16
      %v821 = vrot.slane %v819, 7
      %v822 = vshll.u32 %v619, 16
      %v824 = vor.u32 %v821, %v822
      %v825 = vrot.slane %v821, 4
      %v827 = vshrl.u32 %v620, 16
      %v829 = vrot.slane %v827, 7
      %v830 = vshll.u32 %v620, 16
      %v832 = vor.u32 %v829, %v830
      %v833 = vsel %vm630, %v825, %v832
      %v834 = vrot.slane %v829, 4
      %v836 = vshrl.u32 %v621, 16
      %v838 = vrot.slane %v836, 7
      %v839 = vshll.u32 %v621, 16
      %v841 = vor.u32 %v838, %v839
      %v842 = vrot.slane %v838, 4
      %v844 = vshrl.u32 %v622, 16
      %v846 = vrot.slane %v844, 7
      %v847 = vshll.u32 %v622, 16
      %v849 = vor.u32 %v846, %v847
      %v850 = vsel %vm630, %v842, %v849
      %v851 = vrot.slane %v846, 4
      %v853 = vshrl.u32 %v623, 16
      %v855 = vrot.slane %v853, 7
      %v856 = vshll.u32 %v623, 16
      %v858 = vor.u32 %v855, %v856
      %v859 = vrot.slane %v855, 4
      %v861 = vshrl.u32 %v624, 16
      %v863 = vrot.slane %v861, 7
      %v864 = vshll.u32 %v624, 16
      %v866 = vor.u32 %v863, %v864
      %v867 = vsel %vm630, %v859, %v866
      %v868 = vrot.slane %v863, 4
      %v870 = vshrl.u32 %v625, 16
      %v872 = vrot.slane %v870, 7
      %v873 = vshll.u32 %v625, 16
      %v875 = vor.u32 %v872, %v873
      %v876 = vrot.slane %v872, 4
      %v878 = vshrl.u32 %v626, 16
      %v880 = vrot.slane %v878, 7
      %v881 = vshll.u32 %v626, 16
      %v883 = vor.u32 %v880, %v881
      %v884 = vsel %vm630, %v876, %v883
      %v885 = vrot.slane %v880, 4
      %v887 = vshrl.u32 %v627, 16
      %v889 = vrot.slane %v887, 7
      %v890 = vshll.u32 %v627, 16
      %v892 = vor.u32 %v889, %v890
      %v893 = vrot.slane %v889, 4
      %v895 = vshrl.u32 %v628, 16
      %v897 = vrot.slane %v895, 7
      %v898 = vshll.u32 %v628, 16
      %v900 = vor.u32 %v897, %v898
      %v901 = vsel %vm630, %v893, %v900
      %v902 = vrot.slane %v897, 4
      %s951 = scalar_lea.vmem [#allocation2], 12
      %vm952 = vcmask 27648
      %vm953 = vmand %vm952, %vm303
      %v954 = vld [vmem:[%s951] sm:$0xf]
      %v955 = vsel %vm953, %v637, %v954
      %956 = vst [vmem:[%s951] sm:$0xf] %v955
      %957 = vst.msk [vmem:[%s951 + $0x4] sm:$0xf] %vm237, %v646
      %v958 = vld [vmem:[%s951 + $0x8] sm:$0x1]
      %v959 = vsel %vm248, %v647, %v958
      %960 = vst [vmem:[%s951 + $0x8] sm:$0x1] %v959
      %v961 = vld [vmem:[%s951 + $0xc] sm:$0xf]
      %v962 = vsel %vm953, %v654, %v961
      %963 = vst [vmem:[%s951 + $0xc] sm:$0xf] %v962
      %964 = vst.msk [vmem:[%s951 + $0x10] sm:$0xf] %vm237, %v663
      %v965 = vld [vmem:[%s951 + $0x14] sm:$0x1]
      %v966 = vsel %vm248, %v664, %v965
      %967 = vst [vmem:[%s951 + $0x14] sm:$0x1] %v966
      %v968 = vld [vmem:[%s951 + $0x18] sm:$0xf]
      %v969 = vsel %vm953, %v671, %v968
      %970 = vst [vmem:[%s951 + $0x18] sm:$0xf] %v969
      %971 = vst.msk [vmem:[%s951 + $0x1c] sm:$0xf] %vm237, %v680
      %v972 = vld [vmem:[%s951 + $0x20] sm:$0x1]
      %v973 = vsel %vm248, %v681, %v972
      %974 = vst [vmem:[%s951 + $0x20] sm:$0x1] %v973
      %v975 = vld [vmem:[%s951 + $0x24] sm:$0xf]
      %v976 = vsel %vm953, %v688, %v975
      %977 = vst [vmem:[%s951 + $0x24] sm:$0xf] %v976
      %978 = vst.msk [vmem:[%s951 + $0x28] sm:$0xf] %vm237, %v697
      %v979 = vld [vmem:[%s951 + $0x2c] sm:$0x1]
      %v980 = vsel %vm248, %v698, %v979
      %981 = vst [vmem:[%s951 + $0x2c] sm:$0x1] %v980
      %v982 = vld [vmem:[%s951 + $0x30] sm:$0xf]
      %v983 = vsel %vm953, %v705, %v982
      %984 = vst [vmem:[%s951 + $0x30] sm:$0xf] %v983
      %985 = vst.msk [vmem:[%s951 + $0x34] sm:$0xf] %vm237, %v714
      %v986 = vld [vmem:[%s951 + $0x38] sm:$0x1]
      %v987 = vsel %vm248, %v715, %v986
      %988 = vst [vmem:[%s951 + $0x38] sm:$0x1] %v987
      %v989 = vld [vmem:[%s951 + $0x3c] sm:$0xf]
      %v990 = vsel %vm953, %v722, %v989
      %991 = vst [vmem:[%s951 + $0x3c] sm:$0xf] %v990
      %992 = vst.msk [vmem:[%s951 + $0x40] sm:$0xf] %vm237, %v731
      %v993 = vld [vmem:[%s951 + $0x44] sm:$0x1]
      %v994 = vsel %vm248, %v732, %v993
      %995 = vst [vmem:[%s951 + $0x44] sm:$0x1] %v994
      %v996 = vld [vmem:[%s951 + $0x48] sm:$0xf]
      %v997 = vsel %vm953, %v739, %v996
      %998 = vst [vmem:[%s951 + $0x48] sm:$0xf] %v997
      %999 = vst.msk [vmem:[%s951 + $0x4c] sm:$0xf] %vm237, %v748
      %v1000 = vld [vmem:[%s951 + $0x50] sm:$0x1]
      %v1001 = vsel %vm248, %v749, %v1000
      %1002 = vst [vmem:[%s951 + $0x50] sm:$0x1] %v1001
      %v1003 = vld [vmem:[%s951 + $0x54] sm:$0xf]
      %v1004 = vsel %vm953, %v756, %v1003
      %1005 = vst [vmem:[%s951 + $0x54] sm:$0xf] %v1004
      %1006 = vst.msk [vmem:[%s951 + $0x58] sm:$0xf] %vm237, %v765
      %v1007 = vld [vmem:[%s951 + $0x5c] sm:$0x1]
      %v1008 = vsel %vm248, %v766, %v1007
      %1009 = vst [vmem:[%s951 + $0x5c] sm:$0x1] %v1008
      %v1010 = vld [vmem:[%s951 + $0x60] sm:$0xf]
      %v1011 = vsel %vm953, %v773, %v1010
      %1012 = vst [vmem:[%s951 + $0x60] sm:$0xf] %v1011
      %1013 = vst.msk [vmem:[%s951 + $0x64] sm:$0xf] %vm237, %v782
      %v1014 = vld [vmem:[%s951 + $0x68] sm:$0x1]
      %v1015 = vsel %vm248, %v783, %v1014
      %1016 = vst [vmem:[%s951 + $0x68] sm:$0x1] %v1015
      %v1017 = vld [vmem:[%s951 + $0x6c] sm:$0xf]
      %v1018 = vsel %vm953, %v790, %v1017
      %1019 = vst [vmem:[%s951 + $0x6c] sm:$0xf] %v1018
      %1020 = vst.msk [vmem:[%s951 + $0x70] sm:$0xf] %vm237, %v799
      %v1021 = vld [vmem:[%s951 + $0x74] sm:$0x1]
      %v1022 = vsel %vm248, %v800, %v1021
      %1023 = vst [vmem:[%s951 + $0x74] sm:$0x1] %v1022
      %v1024 = vld [vmem:[%s951 + $0x78] sm:$0xf]
      %v1025 = vsel %vm953, %v807, %v1024
      %1026 = vst [vmem:[%s951 + $0x78] sm:$0xf] %v1025
      %1027 = vst.msk [vmem:[%s951 + $0x7c] sm:$0xf] %vm237, %v816
      %v1028 = vld [vmem:[%s951 + $0x80] sm:$0x1]
      %v1029 = vsel %vm248, %v817, %v1028
      %1030 = vst [vmem:[%s951 + $0x80] sm:$0x1] %v1029
      %v1031 = vld [vmem:[%s951 + $0x84] sm:$0xf]
      %v1032 = vsel %vm953, %v824, %v1031
      %1033 = vst [vmem:[%s951 + $0x84] sm:$0xf] %v1032
      %1034 = vst.msk [vmem:[%s951 + $0x88] sm:$0xf] %vm237, %v833
      %v1035 = vld [vmem:[%s951 + $0x8c] sm:$0x1]
      %v1036 = vsel %vm248, %v834, %v1035
      %1037 = vst [vmem:[%s951 + $0x8c] sm:$0x1] %v1036
      %v1038 = vld [vmem:[%s951 + $0x90] sm:$0xf]
      %v1039 = vsel %vm953, %v841, %v1038
      %1040 = vst [vmem:[%s951 + $0x90] sm:$0xf] %v1039
      %1041 = vst.msk [vmem:[%s951 + $0x94] sm:$0xf] %vm237, %v850
      %v1042 = vld [vmem:[%s951 + $0x98] sm:$0x1]
      %v1043 = vsel %vm248, %v851, %v1042
      %1044 = vst [vmem:[%s951 + $0x98] sm:$0x1] %v1043
      %v1045 = vld [vmem:[%s951 + $0x9c] sm:$0xf]
      %v1046 = vsel %vm953, %v858, %v1045
      %1047 = vst [vmem:[%s951 + $0x9c] sm:$0xf] %v1046
      %1048 = vst.msk [vmem:[%s951 + $0xa0] sm:$0xf] %vm237, %v867
      %v1049 = vld [vmem:[%s951 + $0xa4] sm:$0x1]
      %v1050 = vsel %vm248, %v868, %v1049
      %1051 = vst [vmem:[%s951 + $0xa4] sm:$0x1] %v1050
      %v1052 = vld [vmem:[%s951 + $0xa8] sm:$0xf]
      %v1053 = vsel %vm953, %v875, %v1052
      %1054 = vst [vmem:[%s951 + $0xa8] sm:$0xf] %v1053
      %1055 = vst.msk [vmem:[%s951 + $0xac] sm:$0xf] %vm237, %v884
      %v1056 = vld [vmem:[%s951 + $0xb0] sm:$0x1]
      %v1057 = vsel %vm248, %v885, %v1056
      %1058 = vst [vmem:[%s951 + $0xb0] sm:$0x1] %v1057
      %v1059 = vld [vmem:[%s951 + $0xb4] sm:$0xf]
      %v1060 = vsel %vm953, %v892, %v1059
      %1061 = vst [vmem:[%s951 + $0xb4] sm:$0xf] %v1060
      %1062 = vst.msk [vmem:[%s951 + $0xb8] sm:$0xf] %vm237, %v901
      %v1063 = vld [vmem:[%s951 + $0xbc] sm:$0x1]
      %v1064 = vsel %vm248, %v902, %v1063
      %1065 = vst [vmem:[%s951 + $0xbc] sm:$0x1] %v1064
      %v1066 = vld [vmem:[%s3] sm:$0x3]
      %s1067 = scalar_lea.vmem %s3, 2
      %v1068 = vld [vmem:[%s1067] sm:$0x3]
      %s1069 = scalar_lea.vmem %s3, 4
      %v1070 = vld [vmem:[%s1069] sm:$0x3]
      %s1071 = scalar_lea.vmem %s3, 6
      %v1072 = vld [vmem:[%s1071] sm:$0x3]
      %s1073 = scalar_lea.vmem %s3, 8
      %v1074 = vld [vmem:[%s1073] sm:$0x3]
      %s1075 = scalar_lea.vmem %s3, 10
      %v1076 = vld [vmem:[%s1075] sm:$0x3]
      %s1077 = scalar_lea.vmem %s3, 12
      %v1078 = vld [vmem:[%s1077] sm:$0x3]
      %s1079 = scalar_lea.vmem %s3, 14
      %v1080 = vld [vmem:[%s1079] sm:$0x3]
      %s1081 = scalar_lea.vmem %s3, 16
      %v1082 = vld [vmem:[%s1081] sm:$0x3]
      %v1083 = vld [vmem:[#allocation2] sm:$0xf]
      %v1084 = vld [vmem:[#allocation2 + $0x4] sm:$0xf]
      %v1085 = vld [vmem:[#allocation2 + $0xc] sm:$0xf]
      %v1086 = vld [vmem:[#allocation2 + $0x10] sm:$0xf]
      %v1087 = vld [vmem:[#allocation2 + $0x18] sm:$0xf]
      %v1088 = vld [vmem:[#allocation2 + $0x1c] sm:$0xf]
      %v1089 = vld [vmem:[#allocation2 + $0x24] sm:$0xf]
      %v1090 = vld [vmem:[#allocation2 + $0x28] sm:$0xf]
      %v1091 = vld [vmem:[#allocation2 + $0x30] sm:$0xf]
      %v1092 = vld [vmem:[#allocation2 + $0x34] sm:$0xf]
      %v1093 = vld [vmem:[#allocation2 + $0x3c] sm:$0xf]
      %v1094 = vld [vmem:[#allocation2 + $0x40] sm:$0xf]
      %v1095 = vld [vmem:[#allocation2 + $0x48] sm:$0xf]
      %v1096 = vld [vmem:[#allocation2 + $0x4c] sm:$0xf]
      %v1097 = vld [vmem:[#allocation2 + $0x54] sm:$0xf]
      %v1098 = vld [vmem:[#allocation2 + $0x58] sm:$0xf]
      %v1099 = vld [vmem:[#allocation2 + $0x60] sm:$0xf]
      %v1100 = vld [vmem:[#allocation2 + $0x64] sm:$0xf]
      %v1101 = vld [vmem:[#allocation2 + $0x6c] sm:$0xf]
      %v1102 = vld [vmem:[#allocation2 + $0x70] sm:$0xf]
      %v1103 = vld [vmem:[#allocation2 + $0x78] sm:$0xf]
      %v1104 = vld [vmem:[#allocation2 + $0x7c] sm:$0xf]
      %v1105 = vld [vmem:[#allocation2 + $0x84] sm:$0xf]
      %v1106 = vld [vmem:[#allocation2 + $0x88] sm:$0xf]
      %v1107 = vld [vmem:[#allocation2 + $0x90] sm:$0xf]
      %v1108 = vld [vmem:[#allocation2 + $0x94] sm:$0xf]
      %v1109 = vld [vmem:[#allocation2 + $0x9c] sm:$0xf]
      %v1110 = vld [vmem:[#allocation2 + $0xa0] sm:$0xf]
      %v1111 = vld [vmem:[#allocation2 + $0xa8] sm:$0xf]
      %v1112 = vld [vmem:[#allocation2 + $0xac] sm:$0xf]
      %v1113 = vld [vmem:[#allocation2 + $0xb4] sm:$0xf]
      %v1114 = vld [vmem:[#allocation2 + $0xb8] sm:$0xf]
      %v1115 = vld [vmem:[#allocation2 + $0x8] sm:$0x1]
      %v1116 = vld [vmem:[#allocation2 + $0x14] sm:$0x1]
      %v1117 = vld [vmem:[#allocation2 + $0x20] sm:$0x1]
      %v1118 = vld [vmem:[#allocation2 + $0x2c] sm:$0x1]
      %v1119 = vld [vmem:[#allocation2 + $0x38] sm:$0x1]
      %v1120 = vld [vmem:[#allocation2 + $0x44] sm:$0x1]
      %v1121 = vld [vmem:[#allocation2 + $0x50] sm:$0x1]
      %v1122 = vld [vmem:[#allocation2 + $0x5c] sm:$0x1]
      %v1123 = vld [vmem:[#allocation2 + $0x68] sm:$0x1]
      %v1124 = vld [vmem:[#allocation2 + $0x74] sm:$0x1]
      %v1125 = vld [vmem:[#allocation2 + $0x80] sm:$0x1]
      %v1126 = vld [vmem:[#allocation2 + $0x8c] sm:$0x1]
      %v1127 = vld [vmem:[#allocation2 + $0x98] sm:$0x1]
      %v1128 = vld [vmem:[#allocation2 + $0xa4] sm:$0x1]
      %v1129 = vld [vmem:[#allocation2 + $0xb0] sm:$0x1]
      %v1130 = vld [vmem:[#allocation2 + $0xbc] sm:$0x1]
      %vm1131 = vsmask.f32 3328
      %vm1132 = vsmask.f32 7440
      %vm1133 = vmor %vm1131, %vm1132
      %v1135 = vshrl.u32 %v1083, 16
      %v1137 = vrot.slane %v1135, 4
      %v1138 = vshll.u32 %v1083, 16
      %v1140 = vrot.slane %v1138, 5
      %v1141 = vor.u32 %v1137, %v1140
      %v1142 = vrot.slane %v1141, 4
      %v1144 = vshll.u32 %v1084, 16
      %v1146 = vrot.slane %v1144, 5
      %v1147 = vsel %vm1133, %v1142, %v1146
      %v1148 = vshrl.u32 %v1084, 16
      %v1150 = vrot.slane %v1148, 4
      %v1151 = vor.u32 %v1150, %v1146
      %v1152 = vrot.slane %v1151, 4
      %v1154 = vshll.u32 %v1115, 16
      %v1156 = vrot.slane %v1154, 5
      %v1157 = vsel %vm1133, %v1152, %v1156
      %v1159 = vshrl.u32 %v1085, 16
      %v1161 = vrot.slane %v1159, 4
      %v1162 = vshll.u32 %v1085, 16
      %v1164 = vrot.slane %v1162, 5
      %v1165 = vor.u32 %v1161, %v1164
      %v1166 = vrot.slane %v1165, 4
      %v1168 = vshll.u32 %v1086, 16
      %v1170 = vrot.slane %v1168, 5
      %v1171 = vsel %vm1133, %v1166, %v1170
      %v1172 = vshrl.u32 %v1086, 16
      %v1174 = vrot.slane %v1172, 4
      %v1175 = vor.u32 %v1174, %v1170
      %v1176 = vrot.slane %v1175, 4
      %v1178 = vshll.u32 %v1116, 16
      %v1180 = vrot.slane %v1178, 5
      %v1181 = vsel %vm1133, %v1176, %v1180
      %v1183 = vshrl.u32 %v1087, 16
      %v1185 = vrot.slane %v1183, 4
      %v1186 = vshll.u32 %v1087, 16
      %v1188 = vrot.slane %v1186, 5
      %v1189 = vor.u32 %v1185, %v1188
      %v1190 = vrot.slane %v1189, 4
      %v1192 = vshll.u32 %v1088, 16
      %v1194 = vrot.slane %v1192, 5
      %v1195 = vsel %vm1133, %v1190, %v1194
      %v1196 = vshrl.u32 %v1088, 16
      %v1198 = vrot.slane %v1196, 4
      %v1199 = vor.u32 %v1198, %v1194
      %v1200 = vrot.slane %v1199, 4
      %v1202 = vshll.u32 %v1117, 16
      %v1204 = vrot.slane %v1202, 5
      %v1205 = vsel %vm1133, %v1200, %v1204
      %v1207 = vshrl.u32 %v1089, 16
      %v1209 = vrot.slane %v1207, 4
      %v1210 = vshll.u32 %v1089, 16
      %v1212 = vrot.slane %v1210, 5
      %v1213 = vor.u32 %v1209, %v1212
      %v1214 = vrot.slane %v1213, 4
      %v1216 = vshll.u32 %v1090, 16
      %v1218 = vrot.slane %v1216, 5
      %v1219 = vsel %vm1133, %v1214, %v1218
      %v1220 = vshrl.u32 %v1090, 16
      %v1222 = vrot.slane %v1220, 4
      %v1223 = vor.u32 %v1222, %v1218
      %v1224 = vrot.slane %v1223, 4
      %v1226 = vshll.u32 %v1118, 16
      %v1228 = vrot.slane %v1226, 5
      %v1229 = vsel %vm1133, %v1224, %v1228
      %v1231 = vshrl.u32 %v1091, 16
      %v1233 = vrot.slane %v1231, 4
      %v1234 = vshll.u32 %v1091, 16
      %v1236 = vrot.slane %v1234, 5
      %v1237 = vor.u32 %v1233, %v1236
      %v1238 = vrot.slane %v1237, 4
      %v1240 = vshll.u32 %v1092, 16
      %v1242 = vrot.slane %v1240, 5
      %v1243 = vsel %vm1133, %v1238, %v1242
      %v1244 = vshrl.u32 %v1092, 16
      %v1246 = vrot.slane %v1244, 4
      %v1247 = vor.u32 %v1246, %v1242
      %v1248 = vrot.slane %v1247, 4
      %v1250 = vshll.u32 %v1119, 16
      %v1252 = vrot.slane %v1250, 5
      %v1253 = vsel %vm1133, %v1248, %v1252
      %v1255 = vshrl.u32 %v1093, 16
      %v1257 = vrot.slane %v1255, 4
      %v1258 = vshll.u32 %v1093, 16
      %v1260 = vrot.slane %v1258, 5
      %v1261 = vor.u32 %v1257, %v1260
      %v1262 = vrot.slane %v1261, 4
      %v1264 = vshll.u32 %v1094, 16
      %v1266 = vrot.slane %v1264, 5
      %v1267 = vsel %vm1133, %v1262, %v1266
      %v1268 = vshrl.u32 %v1094, 16
      %v1270 = vrot.slane %v1268, 4
      %v1271 = vor.u32 %v1270, %v1266
      %v1272 = vrot.slane %v1271, 4
      %v1274 = vshll.u32 %v1120, 16
      %v1276 = vrot.slane %v1274, 5
      %v1277 = vsel %vm1133, %v1272, %v1276
      %v1279 = vshrl.u32 %v1095, 16
      %v1281 = vrot.slane %v1279, 4
      %v1282 = vshll.u32 %v1095, 16
      %v1284 = vrot.slane %v1282, 5
      %v1285 = vor.u32 %v1281, %v1284
      %v1286 = vrot.slane %v1285, 4
      %v1288 = vshll.u32 %v1096, 16
      %v1290 = vrot.slane %v1288, 5
      %v1291 = vsel %vm1133, %v1286, %v1290
      %v1292 = vshrl.u32 %v1096, 16
      %v1294 = vrot.slane %v1292, 4
      %v1295 = vor.u32 %v1294, %v1290
      %v1296 = vrot.slane %v1295, 4
      %v1298 = vshll.u32 %v1121, 16
      %v1300 = vrot.slane %v1298, 5
      %v1301 = vsel %vm1133, %v1296, %v1300
      %v1303 = vshrl.u32 %v1097, 16
      %v1305 = vrot.slane %v1303, 4
      %v1306 = vshll.u32 %v1097, 16
      %v1308 = vrot.slane %v1306, 5
      %v1309 = vor.u32 %v1305, %v1308
      %v1310 = vrot.slane %v1309, 4
      %v1312 = vshll.u32 %v1098, 16
      %v1314 = vrot.slane %v1312, 5
      %v1315 = vsel %vm1133, %v1310, %v1314
      %v1316 = vshrl.u32 %v1098, 16
      %v1318 = vrot.slane %v1316, 4
      %v1319 = vor.u32 %v1318, %v1314
      %v1320 = vrot.slane %v1319, 4
      %v1322 = vshll.u32 %v1122, 16
      %v1324 = vrot.slane %v1322, 5
      %v1325 = vsel %vm1133, %v1320, %v1324
      %v1327 = vshrl.u32 %v1099, 16
      %v1329 = vrot.slane %v1327, 4
      %v1330 = vshll.u32 %v1099, 16
      %v1332 = vrot.slane %v1330, 5
      %v1333 = vor.u32 %v1329, %v1332
      %v1334 = vrot.slane %v1333, 4
      %v1336 = vshll.u32 %v1100, 16
      %v1338 = vrot.slane %v1336, 5
      %v1339 = vsel %vm1133, %v1334, %v1338
      %v1340 = vshrl.u32 %v1100, 16
      %v1342 = vrot.slane %v1340, 4
      %v1343 = vor.u32 %v1342, %v1338
      %v1344 = vrot.slane %v1343, 4
      %v1346 = vshll.u32 %v1123, 16
      %v1348 = vrot.slane %v1346, 5
      %v1349 = vsel %vm1133, %v1344, %v1348
      %v1351 = vshrl.u32 %v1101, 16
      %v1353 = vrot.slane %v1351, 4
      %v1354 = vshll.u32 %v1101, 16
      %v1356 = vrot.slane %v1354, 5
      %v1357 = vor.u32 %v1353, %v1356
      %v1358 = vrot.slane %v1357, 4
      %v1360 = vshll.u32 %v1102, 16
      %v1362 = vrot.slane %v1360, 5
      %v1363 = vsel %vm1133, %v1358, %v1362
      %v1364 = vshrl.u32 %v1102, 16
      %v1366 = vrot.slane %v1364, 4
      %v1367 = vor.u32 %v1366, %v1362
      %v1368 = vrot.slane %v1367, 4
      %v1370 = vshll.u32 %v1124, 16
      %v1372 = vrot.slane %v1370, 5
      %v1373 = vsel %vm1133, %v1368, %v1372
      %v1375 = vshrl.u32 %v1103, 16
      %v1377 = vrot.slane %v1375, 4
      %v1378 = vshll.u32 %v1103, 16
      %v1380 = vrot.slane %v1378, 5
      %v1381 = vor.u32 %v1377, %v1380
      %v1382 = vrot.slane %v1381, 4
      %v1384 = vshll.u32 %v1104, 16
      %v1386 = vrot.slane %v1384, 5
      %v1387 = vsel %vm1133, %v1382, %v1386
      %v1388 = vshrl.u32 %v1104, 16
      %v1390 = vrot.slane %v1388, 4
      %v1391 = vor.u32 %v1390, %v1386
      %v1392 = vrot.slane %v1391, 4
      %v1394 = vshll.u32 %v1125, 16
      %v1396 = vrot.slane %v1394, 5
      %v1397 = vsel %vm1133, %v1392, %v1396
      %v1399 = vshrl.u32 %v1105, 16
      %v1401 = vrot.slane %v1399, 4
      %v1402 = vshll.u32 %v1105, 16
      %v1404 = vrot.slane %v1402, 5
      %v1405 = vor.u32 %v1401, %v1404
      %v1406 = vrot.slane %v1405, 4
      %v1408 = vshll.u32 %v1106, 16
      %v1410 = vrot.slane %v1408, 5
      %v1411 = vsel %vm1133, %v1406, %v1410
      %v1412 = vshrl.u32 %v1106, 16
      %v1414 = vrot.slane %v1412, 4
      %v1415 = vor.u32 %v1414, %v1410
      %v1416 = vrot.slane %v1415, 4
      %v1418 = vshll.u32 %v1126, 16
      %v1420 = vrot.slane %v1418, 5
      %v1421 = vsel %vm1133, %v1416, %v1420
      %v1423 = vshrl.u32 %v1107, 16
      %v1425 = vrot.slane %v1423, 4
      %v1426 = vshll.u32 %v1107, 16
      %v1428 = vrot.slane %v1426, 5
      %v1429 = vor.u32 %v1425, %v1428
      %v1430 = vrot.slane %v1429, 4
      %v1432 = vshll.u32 %v1108, 16
      %v1434 = vrot.slane %v1432, 5
      %v1435 = vsel %vm1133, %v1430, %v1434
      %v1436 = vshrl.u32 %v1108, 16
      %v1438 = vrot.slane %v1436, 4
      %v1439 = vor.u32 %v1438, %v1434
      %v1440 = vrot.slane %v1439, 4
      %v1442 = vshll.u32 %v1127, 16
      %v1444 = vrot.slane %v1442, 5
      %v1445 = vsel %vm1133, %v1440, %v1444
      %v1447 = vshrl.u32 %v1109, 16
      %v1449 = vrot.slane %v1447, 4
      %v1450 = vshll.u32 %v1109, 16
      %v1452 = vrot.slane %v1450, 5
      %v1453 = vor.u32 %v1449, %v1452
      %v1454 = vrot.slane %v1453, 4
      %v1456 = vshll.u32 %v1110, 16
      %v1458 = vrot.slane %v1456, 5
      %v1459 = vsel %vm1133, %v1454, %v1458
      %v1460 = vshrl.u32 %v1110, 16
      %v1462 = vrot.slane %v1460, 4
      %v1463 = vor.u32 %v1462, %v1458
      %v1464 = vrot.slane %v1463, 4
      %v1466 = vshll.u32 %v1128, 16
      %v1468 = vrot.slane %v1466, 5
      %v1469 = vsel %vm1133, %v1464, %v1468
      %v1471 = vshrl.u32 %v1111, 16
      %v1473 = vrot.slane %v1471, 4
      %v1474 = vshll.u32 %v1111, 16
      %v1476 = vrot.slane %v1474, 5
      %v1477 = vor.u32 %v1473, %v1476
      %v1478 = vrot.slane %v1477, 4
      %v1480 = vshll.u32 %v1112, 16
      %v1482 = vrot.slane %v1480, 5
      %v1483 = vsel %vm1133, %v1478, %v1482
      %v1484 = vshrl.u32 %v1112, 16
      %v1486 = vrot.slane %v1484, 4
      %v1487 = vor.u32 %v1486, %v1482
      %v1488 = vrot.slane %v1487, 4
      %v1490 = vshll.u32 %v1129, 16
      %v1492 = vrot.slane %v1490, 5
      %v1493 = vsel %vm1133, %v1488, %v1492
      %v1495 = vshrl.u32 %v1113, 16
      %v1497 = vrot.slane %v1495, 4
      %v1498 = vshll.u32 %v1113, 16
      %v1500 = vrot.slane %v1498, 5
      %v1501 = vor.u32 %v1497, %v1500
      %v1502 = vrot.slane %v1501, 4
      %v1504 = vshll.u32 %v1114, 16
      %v1506 = vrot.slane %v1504, 5
      %v1507 = vsel %vm1133, %v1502, %v1506
      %v1508 = vshrl.u32 %v1114, 16
      %v1510 = vrot.slane %v1508, 4
      %v1511 = vor.u32 %v1510, %v1506
      %v1512 = vrot.slane %v1511, 4
      %v1514 = vshll.u32 %v1130, 16
      %v1516 = vrot.slane %v1514, 5
      %v1517 = vsel %vm1133, %v1512, %v1516
      %v1518 = vunpack.c.l.b16 %v1147
      %v1519 = vunpack.c.l.b16 %v1157
      %v1520 = vunpack.c.l.b16 %v1171
      %v1521 = vunpack.c.l.b16 %v1181
      %v1522 = vunpack.c.l.b16 %v1195
      %v1523 = vunpack.c.l.b16 %v1205
      %v1524 = vunpack.c.l.b16 %v1219
      %v1525 = vunpack.c.l.b16 %v1229
      %v1526 = vunpack.c.l.b16 %v1243
      %v1527 = vunpack.c.l.b16 %v1253
      %v1528 = vunpack.c.l.b16 %v1267
      %v1529 = vunpack.c.l.b16 %v1277
      %v1530 = vunpack.c.l.b16 %v1291
      %v1531 = vunpack.c.l.b16 %v1301
      %v1532 = vunpack.c.l.b16 %v1315
      %v1533 = vunpack.c.l.b16 %v1325
      %v1534 = vunpack.c.l.b16 %v1339
      %v1535 = vunpack.c.l.b16 %v1349
      %v1536 = vunpack.c.l.b16 %v1363
      %v1537 = vunpack.c.l.b16 %v1373
      %v1538 = vunpack.c.l.b16 %v1387
      %v1539 = vunpack.c.l.b16 %v1397
      %v1540 = vunpack.c.l.b16 %v1411
      %v1541 = vunpack.c.l.b16 %v1421
      %v1542 = vunpack.c.l.b16 %v1435
      %v1543 = vunpack.c.l.b16 %v1445
      %v1544 = vunpack.c.l.b16 %v1459
      %v1545 = vunpack.c.l.b16 %v1469
      %v1546 = vunpack.c.l.b16 %v1483
      %v1547 = vunpack.c.l.b16 %v1493
      %v1548 = vunpack.c.l.b16 %v1507
      %v1549 = vunpack.c.l.b16 %v1517
      %v1550 = vpack.c.b16 %v1519, %v1518
      %v1551 = vpack.c.b16 %v1521, %v1520
      %v1552 = vpack.c.b16 %v1523, %v1522
      %v1553 = vpack.c.b16 %v1525, %v1524
      %v1554 = vpack.c.b16 %v1527, %v1526
      %v1555 = vpack.c.b16 %v1529, %v1528
      %v1556 = vpack.c.b16 %v1531, %v1530
      %v1557 = vpack.c.b16 %v1533, %v1532
      %v1558 = vpack.c.b16 %v1535, %v1534
      %v1559 = vpack.c.b16 %v1537, %v1536
      %v1560 = vpack.c.b16 %v1539, %v1538
      %v1561 = vpack.c.b16 %v1541, %v1540
      %v1562 = vpack.c.b16 %v1543, %v1542
      %v1563 = vpack.c.b16 %v1545, %v1544
      %v1564 = vpack.c.b16 %v1547, %v1546
      %v1565 = vpack.c.b16 %v1549, %v1548
      %vm1566 = vcmask 31744
      %v1568 = vsel %vm1566, %v1550, 0
      %v1571 = vsel %vm1566, %v1551, 0
      %v1574 = vsel %vm1566, %v1552, 0
      %v1577 = vsel %vm1566, %v1553, 0
      %v1580 = vsel %vm1566, %v1554, 0
      %v1583 = vsel %vm1566, %v1555, 0
      %v1586 = vsel %vm1566, %v1556, 0
      %v1589 = vsel %vm1566, %v1557, 0
      %v1592 = vsel %vm1566, %v1558, 0
      %v1595 = vsel %vm1566, %v1559, 0
      %v1598 = vsel %vm1566, %v1560, 0
      %v1601 = vsel %vm1566, %v1561, 0
      %v1604 = vsel %vm1566, %v1562, 0
      %v1607 = vsel %vm1566, %v1563, 0
      %v1610 = vsel %vm1566, %v1564, 0
      %v1613 = vsel %vm1566, %v1565, 0
      %vm1615 = vcmask 1041408
      %v1617 = vsel %vm1615, %v1068, 0
      %1619 = vmatprep.subr.bf16.mxu0 0
      %1620 = vmatpush1.bf16.msra.mxu0 %v1617
      %1621 = vmatprep.subr.bf16.mxu0 0
      %1622 = vmatpush1.bf16.msra.mxu0 0
      %1623 = vmatprep.subr.bf16.mxu0 0
      %1624 = vmatpush1.bf16.msra.mxu0 0
      %1625 = vmatprep.subr.bf16.mxu0 0
      %1626 = vmatpush1.bf16.msra.mxu0 0
      %1627 = vmatprep.subr.bf16.mxu0 0
      %1628 = vmatpush1.bf16.msra.mxu0 0
      %1629 = vmatprep.subr.bf16.mxu0 0
      %1630 = vmatpush1.bf16.msra.mxu0 0
      %1631 = vmatprep.subr.bf16.mxu0 0
      %1632 = vmatpush1.bf16.msra.mxu0 0
      %1633 = vmatprep.subr.bf16.mxu0 0
      %1634 = vmatpush1.bf16.msra.mxu0 0
      %1635 = vmatprep.subr.bf16.mxu0 0
      %1636 = vmatpush1.bf16.msra.mxu0 0
      %1637 = vmatprep.subr.bf16.mxu0 0
      %1638 = vmatpush1.bf16.msra.mxu0 0
      %1639 = vmatprep.subr.bf16.mxu0 0
      %1640 = vmatpush1.bf16.msra.mxu0 0
      %1641 = vmatprep.subr.bf16.mxu0 0
      %1642 = vmatpush1.bf16.msra.mxu0 0
      %1643 = vmatprep.subr.bf16.mxu0 0
      %1644 = vmatpush1.bf16.msra.mxu0 0
      %1645 = vmatprep.subr.bf16.mxu0 0
      %1646 = vmatpush1.bf16.msra.mxu0 0
      %1647 = vmatprep.subr.bf16.mxu0 0
      %1648 = vmatpush1.bf16.msra.mxu0 0
      %1649 = vmatprep.subr.bf16.mxu0 0
      %1650 = vmatpush1.bf16.msra.mxu0 0
      %1651 = vmatprep.mubr.bf16.mxu0 0
      %1652 = vmatmul.mubr.bf16.gmra.mrb[0].mxu0 %v1568
      %v1653 = vpop.f32.mrb[0].mxu0
      %v1654 = vadd.f32 0.0, %v1653
      %v1655 = vpop.f32.mrb[0].mxu0
      %v1656 = vpop.f32.mrb[0].mxu0
      %v1657 = vadd.f32 0.0, %v1656
      %v1658 = vpop.f32.mrb[0].mxu0
      %1659 = vmatprep.mubr.bf16.mxu0 0
      %1660 = vmatmul.mubr.bf16.gmra.mrb[0].mxu0 %v1571
      %v1661 = vpop.f32.mrb[0].mxu0
      %v1662 = vadd.f32 0.0, %v1661
      %v1663 = vpop.f32.mrb[0].mxu0
      %v1664 = vpop.f32.mrb[0].mxu0
      %v1665 = vadd.f32 0.0, %v1664
      %v1666 = vpop.f32.mrb[0].mxu0
      %1667 = vmatprep.mubr.bf16.mxu0 0
      %1668 = vmatmul.mubr.bf16.gmra.mrb[0].mxu0 %v1574
      %v1669 = vpop.f32.mrb[0].mxu0
      %v1670 = vadd.f32 0.0, %v1669
      %v1671 = vpop.f32.mrb[0].mxu0
      %v1672 = vpop.f32.mrb[0].mxu0
      %v1673 = vadd.f32 0.0, %v1672
      %v1674 = vpop.f32.mrb[0].mxu0
      %1675 = vmatprep.mubr.bf16.mxu0 0
      %1676 = vmatmul.mubr.bf16.gmra.mrb[0].mxu0 %v1577
      %v1677 = vpop.f32.mrb[0].mxu0
      %v1678 = vadd.f32 0.0, %v1677
      %v1679 = vpop.f32.mrb[0].mxu0
      %v1680 = vpop.f32.mrb[0].mxu0
      %v1681 = vadd.f32 0.0, %v1680
      %v1682 = vpop.f32.mrb[0].mxu0
      %1683 = vmatprep.mubr.bf16.mxu0 0
      %1684 = vmatmul.mubr.bf16.gmra.mrb[0].mxu0 %v1580
      %v1685 = vpop.f32.mrb[0].mxu0
      %v1686 = vadd.f32 0.0, %v1685
      %v1687 = vpop.f32.mrb[0].mxu0
      %v1688 = vpop.f32.mrb[0].mxu0
      %v1689 = vadd.f32 0.0, %v1688
      %v1690 = vpop.f32.mrb[0].mxu0
      %1691 = vmatprep.mubr.bf16.mxu0 0
      %1692 = vmatmul.mubr.bf16.gmra.mrb[0].mxu0 %v1583
      %v1693 = vpop.f32.mrb[0].mxu0
      %v1694 = vadd.f32 0.0, %v1693
      %v1695 = vpop.f32.mrb[0].mxu0
      %v1696 = vpop.f32.mrb[0].mxu0
      %v1697 = vadd.f32 0.0, %v1696
      %v1698 = vpop.f32.mrb[0].mxu0
      %1699 = vmatprep.mubr.bf16.mxu0 0
      %1700 = vmatmul.mubr.bf16.gmra.mrb[0].mxu0 %v1586
      %v1701 = vpop.f32.mrb[0].mxu0
      %v1702 = vadd.f32 0.0, %v1701
      %v1703 = vpop.f32.mrb[0].mxu0
      %v1704 = vpop.f32.mrb[0].mxu0
      %v1705 = vadd.f32 0.0, %v1704
      %v1706 = vpop.f32.mrb[0].mxu0
      %1707 = vmatprep.mubr.bf16.mxu0 0
      %1708 = vmatmul.mubr.bf16.gmra.mrb[0].mxu0 %v1589
      %v1709 = vpop.f32.mrb[0].mxu0
      %v1710 = vadd.f32 0.0, %v1709
      %v1711 = vpop.f32.mrb[0].mxu0
      %v1712 = vpop.f32.mrb[0].mxu0
      %v1713 = vadd.f32 0.0, %v1712
      %v1714 = vpop.f32.mrb[0].mxu0
      %1715 = vmatprep.mubr.bf16.mxu0 0
      %1716 = vmatmul.mubr.bf16.gmra.mrb[0].mxu0 %v1592
      %v1717 = vpop.f32.mrb[0].mxu0
      %v1718 = vadd.f32 0.0, %v1717
      %v1719 = vpop.f32.mrb[0].mxu0
      %v1720 = vpop.f32.mrb[0].mxu0
      %v1721 = vadd.f32 0.0, %v1720
      %v1722 = vpop.f32.mrb[0].mxu0
      %1723 = vmatprep.mubr.bf16.mxu0 0
      %1724 = vmatmul.mubr.bf16.gmra.mrb[0].mxu0 %v1595
      %v1725 = vpop.f32.mrb[0].mxu0
      %v1726 = vadd.f32 0.0, %v1725
      %v1727 = vpop.f32.mrb[0].mxu0
      %v1728 = vpop.f32.mrb[0].mxu0
      %v1729 = vadd.f32 0.0, %v1728
      %v1730 = vpop.f32.mrb[0].mxu0
      %1731 = vmatprep.mubr.bf16.mxu0 0
      %1732 = vmatmul.mubr.bf16.gmra.mrb[0].mxu0 %v1598
      %v1733 = vpop.f32.mrb[0].mxu0
      %v1734 = vadd.f32 0.0, %v1733
      %v1735 = vpop.f32.mrb[0].mxu0
      %v1736 = vpop.f32.mrb[0].mxu0
      %v1737 = vadd.f32 0.0, %v1736
      %v1738 = vpop.f32.mrb[0].mxu0
      %1739 = vmatprep.mubr.bf16.mxu0 0
      %1740 = vmatmul.mubr.bf16.gmra.mrb[0].mxu0 %v1601
      %v1741 = vpop.f32.mrb[0].mxu0
      %v1742 = vadd.f32 0.0, %v1741
      %v1743 = vpop.f32.mrb[0].mxu0
      %v1744 = vpop.f32.mrb[0].mxu0
      %v1745 = vadd.f32 0.0, %v1744
      %v1746 = vpop.f32.mrb[0].mxu0
      %1747 = vmatprep.mubr.bf16.mxu0 0
      %1748 = vmatmul.mubr.bf16.gmra.mrb[0].mxu0 %v1604
      %v1749 = vpop.f32.mrb[0].mxu0
      %v1750 = vadd.f32 0.0, %v1749
      %v1751 = vpop.f32.mrb[0].mxu0
      %v1752 = vpop.f32.mrb[0].mxu0
      %v1753 = vadd.f32 0.0, %v1752
      %v1754 = vpop.f32.mrb[0].mxu0
      %1755 = vmatprep.mubr.bf16.mxu0 0
      %1756 = vmatmul.mubr.bf16.gmra.mrb[0].mxu0 %v1607
      %v1757 = vpop.f32.mrb[0].mxu0
      %v1758 = vadd.f32 0.0, %v1757
      %v1759 = vpop.f32.mrb[0].mxu0
      %v1760 = vpop.f32.mrb[0].mxu0
      %v1761 = vadd.f32 0.0, %v1760
      %v1762 = vpop.f32.mrb[0].mxu0
      %1763 = vmatprep.mubr.bf16.mxu0 0
      %1764 = vmatmul.mubr.bf16.gmra.mrb[0].mxu0 %v1610
      %v1765 = vpop.f32.mrb[0].mxu0
      %v1766 = vadd.f32 0.0, %v1765
      %v1767 = vpop.f32.mrb[0].mxu0
      %v1768 = vpop.f32.mrb[0].mxu0
      %v1769 = vadd.f32 0.0, %v1768
      %v1770 = vpop.f32.mrb[0].mxu0
      %1771 = vmatprep.mubr.bf16.mxu0 0
      %1772 = vmatmul.mubr.bf16.gmra.mrb[0].mxu0 %v1613
      %v1773 = vpop.f32.mrb[0].mxu0
      %v1774 = vadd.f32 0.0, %v1773
      %v1775 = vpop.f32.mrb[0].mxu0
      %v1776 = vpop.f32.mrb[0].mxu0
      %v1777 = vadd.f32 0.0, %v1776
      %v1778 = vpop.f32.mrb[0].mxu0
      %1779 = vdwg.mxu0
      %v1812 = vunpack.c.l.b16 %v1083
      %v1813 = vunpack.c.l.b16 %v1084
      %v1814 = vunpack.c.l.b16 %v1085
      %v1815 = vunpack.c.l.b16 %v1086
      %v1816 = vunpack.c.l.b16 %v1087
      %v1817 = vunpack.c.l.b16 %v1088
      %v1818 = vunpack.c.l.b16 %v1089
      %v1819 = vunpack.c.l.b16 %v1090
      %v1820 = vunpack.c.l.b16 %v1091
      %v1821 = vunpack.c.l.b16 %v1092
      %v1822 = vunpack.c.l.b16 %v1093
      %v1823 = vunpack.c.l.b16 %v1094
      %v1824 = vunpack.c.l.b16 %v1095
      %v1825 = vunpack.c.l.b16 %v1096
      %v1826 = vunpack.c.l.b16 %v1097
      %v1827 = vunpack.c.l.b16 %v1098
      %v1828 = vunpack.c.l.b16 %v1099
      %v1829 = vunpack.c.l.b16 %v1100
      %v1830 = vunpack.c.l.b16 %v1101
      %v1831 = vunpack.c.l.b16 %v1102
      %v1832 = vunpack.c.l.b16 %v1103
      %v1833 = vunpack.c.l.b16 %v1104
      %v1834 = vunpack.c.l.b16 %v1105
      %v1835 = vunpack.c.l.b16 %v1106
      %v1836 = vunpack.c.l.b16 %v1107
      %v1837 = vunpack.c.l.b16 %v1108
      %v1838 = vunpack.c.l.b16 %v1109
      %v1839 = vunpack.c.l.b16 %v1110
      %v1840 = vunpack.c.l.b16 %v1111
      %v1841 = vunpack.c.l.b16 %v1112
      %v1842 = vunpack.c.l.b16 %v1113
      %v1843 = vunpack.c.l.b16 %v1114
      %v1844 = vpack.c.b16 %v1813, %v1812
      %v1845 = vpack.c.b16 %v1815, %v1814
      %v1846 = vpack.c.b16 %v1817, %v1816
      %v1847 = vpack.c.b16 %v1819, %v1818
      %v1848 = vpack.c.b16 %v1821, %v1820
      %v1849 = vpack.c.b16 %v1823, %v1822
      %v1850 = vpack.c.b16 %v1825, %v1824
      %v1851 = vpack.c.b16 %v1827, %v1826
      %v1852 = vpack.c.b16 %v1829, %v1828
      %v1853 = vpack.c.b16 %v1831, %v1830
      %v1854 = vpack.c.b16 %v1833, %v1832
      %v1855 = vpack.c.b16 %v1835, %v1834
      %v1856 = vpack.c.b16 %v1837, %v1836
      %v1857 = vpack.c.b16 %v1839, %v1838
      %v1858 = vpack.c.b16 %v1841, %v1840
      %v1859 = vpack.c.b16 %v1843, %v1842
      %v1861 = vsel %vm1566, %v1844, 0
      %v1864 = vsel %vm1566, %v1845, 0
      %v1867 = vsel %vm1566, %v1846, 0
      %v1870 = vsel %vm1566, %v1847, 0
      %v1873 = vsel %vm1566, %v1848, 0
      %v1876 = vsel %vm1566, %v1849, 0
      %v1879 = vsel %vm1566, %v1850, 0
      %v1882 = vsel %vm1566, %v1851, 0
      %v1885 = vsel %vm1566, %v1852, 0
      %v1888 = vsel %vm1566, %v1853, 0
      %v1891 = vsel %vm1566, %v1854, 0
      %v1894 = vsel %vm1566, %v1855, 0
      %v1897 = vsel %vm1566, %v1856, 0
      %v1900 = vsel %vm1566, %v1857, 0
      %v1903 = vsel %vm1566, %v1858, 0
      %v1906 = vsel %vm1566, %v1859, 0
      %v1909 = vsel %vm1615, %v1066, 0
      %1911 = vmatprep.subr.bf16.mxu0 0
      %1912 = vmatpush1.bf16.msra.mxu0 %v1909
      %1913 = vmatprep.subr.bf16.mxu0 0
      %1914 = vmatpush1.bf16.msra.mxu0 0
      %1915 = vmatprep.subr.bf16.mxu0 0
      %1916 = vmatpush1.bf16.msra.mxu0 0
      %1917 = vmatprep.subr.bf16.mxu0 0
      %1918 = vmatpush1.bf16.msra.mxu0 0
      %1919 = vmatprep.subr.bf16.mxu0 0
      %1920 = vmatpush1.bf16.msra.mxu0 0
      %1921 = vmatprep.subr.bf16.mxu0 0
      %1922 = vmatpush1.bf16.msra.mxu0 0
      %1923 = vmatprep.subr.bf16.mxu0 0
      %1924 = vmatpush1.bf16.msra.mxu0 0
      %1925 = vmatprep.subr.bf16.mxu0 0
      %1926 = vmatpush1.bf16.msra.mxu0 0
      %1927 = vmatprep.subr.bf16.mxu0 0
      %1928 = vmatpush1.bf16.msra.mxu0 0
      %1929 = vmatprep.subr.bf16.mxu0 0
      %1930 = vmatpush1.bf16.msra.mxu0 0
      %1931 = vmatprep.subr.bf16.mxu0 0
      %1932 = vmatpush1.bf16.msra.mxu0 0
      %1933 = vmatprep.subr.bf16.mxu0 0
      %1934 = vmatpush1.bf16.msra.mxu0 0
      %1935 = vmatprep.subr.bf16.mxu0 0
      %1936 = vmatpush1.bf16.msra.mxu0 0
      %1937 = vmatprep.subr.bf16.mxu0 0
      %1938 = vmatpush1.bf16.msra.mxu0 0
      %1939 = vmatprep.subr.bf16.mxu0 0
      %1940 = vmatpush1.bf16.msra.mxu0 0
      %1941 = vmatprep.subr.bf16.mxu0 0
      %1942 = vmatpush1.bf16.msra.mxu0 0
      %1943 = vmatprep.mubr.bf16.mxu0 0
      %1944 = vmatmul.mubr.bf16.gmra.mrb[0].mxu0 %v1861
      %v1945 = vpop.f32.mrb[0].mxu0
      %v1946 = vadd.f32 %v1654, %v1945
      %v1947 = vpop.f32.mrb[0].mxu0
      %v1948 = vpop.f32.mrb[0].mxu0
      %v1949 = vadd.f32 %v1657, %v1948
      %v1950 = vpop.f32.mrb[0].mxu0
      %1951 = vmatprep.mubr.bf16.mxu0 0
      %1952 = vmatmul.mubr.bf16.gmra.mrb[0].mxu0 %v1864
      %v1953 = vpop.f32.mrb[0].mxu0
      %v1954 = vadd.f32 %v1662, %v1953
      %v1955 = vpop.f32.mrb[0].mxu0
      %v1956 = vpop.f32.mrb[0].mxu0
      %v1957 = vadd.f32 %v1665, %v1956
      %v1958 = vpop.f32.mrb[0].mxu0
      %1959 = vmatprep.mubr.bf16.mxu0 0
      %1960 = vmatmul.mubr.bf16.gmra.mrb[0].mxu0 %v1867
      %v1961 = vpop.f32.mrb[0].mxu0
      %v1962 = vadd.f32 %v1670, %v1961
      %v1963 = vpop.f32.mrb[0].mxu0
      %v1964 = vpop.f32.mrb[0].mxu0
      %v1965 = vadd.f32 %v1673, %v1964
      %v1966 = vpop.f32.mrb[0].mxu0
      %1967 = vmatprep.mubr.bf16.mxu0 0
      %1968 = vmatmul.mubr.bf16.gmra.mrb[0].mxu0 %v1870
      %v1969 = vpop.f32.mrb[0].mxu0
      %v1970 = vadd.f32 %v1678, %v1969
      %v1971 = vpop.f32.mrb[0].mxu0
      %v1972 = vpop.f32.mrb[0].mxu0
      %v1973 = vadd.f32 %v1681, %v1972
      %v1974 = vpop.f32.mrb[0].mxu0
      %1975 = vmatprep.mubr.bf16.mxu0 0
      %1976 = vmatmul.mubr.bf16.gmra.mrb[0].mxu0 %v1873
      %v1977 = vpop.f32.mrb[0].mxu0
      %v1978 = vadd.f32 %v1686, %v1977
      %v1979 = vpop.f32.mrb[0].mxu0
      %v1980 = vpop.f32.mrb[0].mxu0
      %v1981 = vadd.f32 %v1689, %v1980
      %v1982 = vpop.f32.mrb[0].mxu0
      %1983 = vmatprep.mubr.bf16.mxu0 0
      %1984 = vmatmul.mubr.bf16.gmra.mrb[0].mxu0 %v1876
      %v1985 = vpop.f32.mrb[0].mxu0
      %v1986 = vadd.f32 %v1694, %v1985
      %v1987 = vpop.f32.mrb[0].mxu0
      %v1988 = vpop.f32.mrb[0].mxu0
      %v1989 = vadd.f32 %v1697, %v1988
      %v1990 = vpop.f32.mrb[0].mxu0
      %1991 = vmatprep.mubr.bf16.mxu0 0
      %1992 = vmatmul.mubr.bf16.gmra.mrb[0].mxu0 %v1879
      %v1993 = vpop.f32.mrb[0].mxu0
      %v1994 = vadd.f32 %v1702, %v1993
      %v1995 = vpop.f32.mrb[0].mxu0
      %v1996 = vpop.f32.mrb[0].mxu0
      %v1997 = vadd.f32 %v1705, %v1996
      %v1998 = vpop.f32.mrb[0].mxu0
      %1999 = vmatprep.mubr.bf16.mxu0 0
      %2000 = vmatmul.mubr.bf16.gmra.mrb[0].mxu0 %v1882
      %v2001 = vpop.f32.mrb[0].mxu0
      %v2002 = vadd.f32 %v1710, %v2001
      %v2003 = vpop.f32.mrb[0].mxu0
      %v2004 = vpop.f32.mrb[0].mxu0
      %v2005 = vadd.f32 %v1713, %v2004
      %v2006 = vpop.f32.mrb[0].mxu0
      %2007 = vmatprep.mubr.bf16.mxu0 0
      %2008 = vmatmul.mubr.bf16.gmra.mrb[0].mxu0 %v1885
      %v2009 = vpop.f32.mrb[0].mxu0
      %v2010 = vadd.f32 %v1718, %v2009
      %v2011 = vpop.f32.mrb[0].mxu0
      %v2012 = vpop.f32.mrb[0].mxu0
      %v2013 = vadd.f32 %v1721, %v2012
      %v2014 = vpop.f32.mrb[0].mxu0
      %2015 = vmatprep.mubr.bf16.mxu0 0
      %2016 = vmatmul.mubr.bf16.gmra.mrb[0].mxu0 %v1888
      %v2017 = vpop.f32.mrb[0].mxu0
      %v2018 = vadd.f32 %v1726, %v2017
      %v2019 = vpop.f32.mrb[0].mxu0
      %v2020 = vpop.f32.mrb[0].mxu0
      %v2021 = vadd.f32 %v1729, %v2020
      %v2022 = vpop.f32.mrb[0].mxu0
      %2023 = vmatprep.mubr.bf16.mxu0 0
      %2024 = vmatmul.mubr.bf16.gmra.mrb[0].mxu0 %v1891
      %v2025 = vpop.f32.mrb[0].mxu0
      %v2026 = vadd.f32 %v1734, %v2025
      %v2027 = vpop.f32.mrb[0].mxu0
      %v2028 = vpop.f32.mrb[0].mxu0
      %v2029 = vadd.f32 %v1737, %v2028
      %v2030 = vpop.f32.mrb[0].mxu0
      %2031 = vmatprep.mubr.bf16.mxu0 0
      %2032 = vmatmul.mubr.bf16.gmra.mrb[0].mxu0 %v1894
      %v2033 = vpop.f32.mrb[0].mxu0
      %v2034 = vadd.f32 %v1742, %v2033
      %v2035 = vpop.f32.mrb[0].mxu0
      %v2036 = vpop.f32.mrb[0].mxu0
      %v2037 = vadd.f32 %v1745, %v2036
      %v2038 = vpop.f32.mrb[0].mxu0
      %2039 = vmatprep.mubr.bf16.mxu0 0
      %2040 = vmatmul.mubr.bf16.gmra.mrb[0].mxu0 %v1897
      %v2041 = vpop.f32.mrb[0].mxu0
      %v2042 = vadd.f32 %v1750, %v2041
      %v2043 = vpop.f32.mrb[0].mxu0
      %v2044 = vpop.f32.mrb[0].mxu0
      %v2045 = vadd.f32 %v1753, %v2044
      %v2046 = vpop.f32.mrb[0].mxu0
      %2047 = vmatprep.mubr.bf16.mxu0 0
      %2048 = vmatmul.mubr.bf16.gmra.mrb[0].mxu0 %v1900
      %v2049 = vpop.f32.mrb[0].mxu0
      %v2050 = vadd.f32 %v1758, %v2049
      %v2051 = vpop.f32.mrb[0].mxu0
      %v2052 = vpop.f32.mrb[0].mxu0
      %v2053 = vadd.f32 %v1761, %v2052
      %v2054 = vpop.f32.mrb[0].mxu0
      %2055 = vmatprep.mubr.bf16.mxu0 0
      %2056 = vmatmul.mubr.bf16.gmra.mrb[0].mxu0 %v1903
      %v2057 = vpop.f32.mrb[0].mxu0
      %v2058 = vadd.f32 %v1766, %v2057
      %v2059 = vpop.f32.mrb[0].mxu0
      %v2060 = vpop.f32.mrb[0].mxu0
      %v2061 = vadd.f32 %v1769, %v2060
      %v2062 = vpop.f32.mrb[0].mxu0
      %2063 = vmatprep.mubr.bf16.mxu0 0
      %2064 = vmatmul.mubr.bf16.gmra.mrb[0].mxu0 %v1906
      %v2065 = vpop.f32.mrb[0].mxu0
      %v2066 = vadd.f32 %v1774, %v2065
      %v2067 = vpop.f32.mrb[0].mxu0
      %v2068 = vpop.f32.mrb[0].mxu0
      %v2069 = vadd.f32 %v1777, %v2068
      %v2070 = vpop.f32.mrb[0].mxu0
      %2071 = vdwg.mxu0
      %v2072 = vld [vmem:[#allocation2] sm:$0xe]
      %v2073 = vld [vmem:[#allocation2 + $0xc] sm:$0xe]
      %v2074 = vld [vmem:[#allocation2 + $0x18] sm:$0xe]
      %v2075 = vld [vmem:[#allocation2 + $0x24] sm:$0xe]
      %v2076 = vld [vmem:[#allocation2 + $0x30] sm:$0xe]
      %v2077 = vld [vmem:[#allocation2 + $0x3c] sm:$0xe]
      %v2078 = vld [vmem:[#allocation2 + $0x48] sm:$0xe]
      %v2079 = vld [vmem:[#allocation2 + $0x54] sm:$0xe]
      %v2080 = vld [vmem:[#allocation2 + $0x60] sm:$0xe]
      %v2081 = vld [vmem:[#allocation2 + $0x6c] sm:$0xe]
      %v2082 = vld [vmem:[#allocation2 + $0x78] sm:$0xe]
      %v2083 = vld [vmem:[#allocation2 + $0x84] sm:$0xe]
      %v2084 = vld [vmem:[#allocation2 + $0x90] sm:$0xe]
      %v2085 = vld [vmem:[#allocation2 + $0x9c] sm:$0xe]
      %v2086 = vld [vmem:[#allocation2 + $0xa8] sm:$0xe]
      %v2087 = vld [vmem:[#allocation2 + $0xb4] sm:$0xe]
      %vm2120 = vcmask 1042432
      %vm2121 = vcmask 1046532
      %vm2122 = vmor %vm2120, %vm2121
      %v2123 = vrot.slane %v2072, 5
      %v2124 = vrot.slane %v2123, 4
      %v2125 = vrot.slane %v1084, 5
      %v2126 = vsel %vm2122, %v2124, %v2125
      %v2127 = vrot.slane %v2125, 4
      %v2128 = vrot.slane %v1115, 5
      %v2129 = vsel %vm2122, %v2127, %v2128
      %v2130 = vrot.slane %v2073, 5
      %v2131 = vrot.slane %v2130, 4
      %v2132 = vrot.slane %v1086, 5
      %v2133 = vsel %vm2122, %v2131, %v2132
      %v2134 = vrot.slane %v2132, 4
      %v2135 = vrot.slane %v1116, 5
      %v2136 = vsel %vm2122, %v2134, %v2135
      %v2137 = vrot.slane %v2074, 5
      %v2138 = vrot.slane %v2137, 4
      %v2139 = vrot.slane %v1088, 5
      %v2140 = vsel %vm2122, %v2138, %v2139
      %v2141 = vrot.slane %v2139, 4
      %v2142 = vrot.slane %v1117, 5
      %v2143 = vsel %vm2122, %v2141, %v2142
      %v2144 = vrot.slane %v2075, 5
      %v2145 = vrot.slane %v2144, 4
      %v2146 = vrot.slane %v1090, 5
      %v2147 = vsel %vm2122, %v2145, %v2146
      %v2148 = vrot.slane %v2146, 4
      %v2149 = vrot.slane %v1118, 5
      %v2150 = vsel %vm2122, %v2148, %v2149
      %v2151 = vrot.slane %v2076, 5
      %v2152 = vrot.slane %v2151, 4
      %v2153 = vrot.slane %v1092, 5
      %v2154 = vsel %vm2122, %v2152, %v2153
      %v2155 = vrot.slane %v2153, 4
      %v2156 = vrot.slane %v1119, 5
      %v2157 = vsel %vm2122, %v2155, %v2156
      %v2158 = vrot.slane %v2077, 5
      %v2159 = vrot.slane %v2158, 4
      %v2160 = vrot.slane %v1094, 5
      %v2161 = vsel %vm2122, %v2159, %v2160
      %v2162 = vrot.slane %v2160, 4
      %v2163 = vrot.slane %v1120, 5
      %v2164 = vsel %vm2122, %v2162, %v2163
      %v2165 = vrot.slane %v2078, 5
      %v2166 = vrot.slane %v2165, 4
      %v2167 = vrot.slane %v1096, 5
      %v2168 = vsel %vm2122, %v2166, %v2167
      %v2169 = vrot.slane %v2167, 4
      %v2170 = vrot.slane %v1121, 5
      %v2171 = vsel %vm2122, %v2169, %v2170
      %v2172 = vrot.slane %v2079, 5
      %v2173 = vrot.slane %v2172, 4
      %v2174 = vrot.slane %v1098, 5
      %v2175 = vsel %vm2122, %v2173, %v2174
      %v2176 = vrot.slane %v2174, 4
      %v2177 = vrot.slane %v1122, 5
      %v2178 = vsel %vm2122, %v2176, %v2177
      %v2179 = vrot.slane %v2080, 5
      %v2180 = vrot.slane %v2179, 4
      %v2181 = vrot.slane %v1100, 5
      %v2182 = vsel %vm2122, %v2180, %v2181
      %v2183 = vrot.slane %v2181, 4
      %v2184 = vrot.slane %v1123, 5
      %v2185 = vsel %vm2122, %v2183, %v2184
      %v2186 = vrot.slane %v2081, 5
      %v2187 = vrot.slane %v2186, 4
      %v2188 = vrot.slane %v1102, 5
      %v2189 = vsel %vm2122, %v2187, %v2188
      %v2190 = vrot.slane %v2188, 4
      %v2191 = vrot.slane %v1124, 5
      %v2192 = vsel %vm2122, %v2190, %v2191
      %v2193 = vrot.slane %v2082, 5
      %v2194 = vrot.slane %v2193, 4
      %v2195 = vrot.slane %v1104, 5
      %v2196 = vsel %vm2122, %v2194, %v2195
      %v2197 = vrot.slane %v2195, 4
      %v2198 = vrot.slane %v1125, 5
      %v2199 = vsel %vm2122, %v2197, %v2198
      %v2200 = vrot.slane %v2083, 5
      %v2201 = vrot.slane %v2200, 4
      %v2202 = vrot.slane %v1106, 5
      %v2203 = vsel %vm2122, %v2201, %v2202
      %v2204 = vrot.slane %v2202, 4
      %v2205 = vrot.slane %v1126, 5
      %v2206 = vsel %vm2122, %v2204, %v2205
      %v2207 = vrot.slane %v2084, 5
      %v2208 = vrot.slane %v2207, 4
      %v2209 = vrot.slane %v1108, 5
      %v2210 = vsel %vm2122, %v2208, %v2209
      %v2211 = vrot.slane %v2209, 4
      %v2212 = vrot.slane %v1127, 5
      %v2213 = vsel %vm2122, %v2211, %v2212
      %v2214 = vrot.slane %v2085, 5
      %v2215 = vrot.slane %v2214, 4
      %v2216 = vrot.slane %v1110, 5
      %v2217 = vsel %vm2122, %v2215, %v2216
      %v2218 = vrot.slane %v2216, 4
      %v2219 = vrot.slane %v1128, 5
      %v2220 = vsel %vm2122, %v2218, %v2219
      %v2221 = vrot.slane %v2086, 5
      %v2222 = vrot.slane %v2221, 4
      %v2223 = vrot.slane %v1112, 5
      %v2224 = vsel %vm2122, %v2222, %v2223
      %v2225 = vrot.slane %v2223, 4
      %v2226 = vrot.slane %v1129, 5
      %v2227 = vsel %vm2122, %v2225, %v2226
      %v2228 = vrot.slane %v2087, 5
      %v2229 = vrot.slane %v2228, 4
      %v2230 = vrot.slane %v1114, 5
      %v2231 = vsel %vm2122, %v2229, %v2230
      %v2232 = vrot.slane %v2230, 4
      %v2233 = vrot.slane %v1130, 5
      %v2234 = vsel %vm2122, %v2232, %v2233
      %v2235 = vunpack.c.l.b16 %v2126
      %v2236 = vunpack.c.l.b16 %v2129
      %v2237 = vunpack.c.l.b16 %v2133
      %v2238 = vunpack.c.l.b16 %v2136
      %v2239 = vunpack.c.l.b16 %v2140
      %v2240 = vunpack.c.l.b16 %v2143
      %v2241 = vunpack.c.l.b16 %v2147
      %v2242 = vunpack.c.l.b16 %v2150
      %v2243 = vunpack.c.l.b16 %v2154
      %v2244 = vunpack.c.l.b16 %v2157
      %v2245 = vunpack.c.l.b16 %v2161
      %v2246 = vunpack.c.l.b16 %v2164
      %v2247 = vunpack.c.l.b16 %v2168
      %v2248 = vunpack.c.l.b16 %v2171
      %v2249 = vunpack.c.l.b16 %v2175
      %v2250 = vunpack.c.l.b16 %v2178
      %v2251 = vunpack.c.l.b16 %v2182
      %v2252 = vunpack.c.l.b16 %v2185
      %v2253 = vunpack.c.l.b16 %v2189
      %v2254 = vunpack.c.l.b16 %v2192
      %v2255 = vunpack.c.l.b16 %v2196
      %v2256 = vunpack.c.l.b16 %v2199
      %v2257 = vunpack.c.l.b16 %v2203
      %v2258 = vunpack.c.l.b16 %v2206
      %v2259 = vunpack.c.l.b16 %v2210
      %v2260 = vunpack.c.l.b16 %v2213
      %v2261 = vunpack.c.l.b16 %v2217
      %v2262 = vunpack.c.l.b16 %v2220
      %v2263 = vunpack.c.l.b16 %v2224
      %v2264 = vunpack.c.l.b16 %v2227
      %v2265 = vunpack.c.l.b16 %v2231
      %v2266 = vunpack.c.l.b16 %v2234
      %v2267 = vpack.c.b16 %v2236, %v2235
      %v2268 = vpack.c.b16 %v2238, %v2237
      %v2269 = vpack.c.b16 %v2240, %v2239
      %v2270 = vpack.c.b16 %v2242, %v2241
      %v2271 = vpack.c.b16 %v2244, %v2243
      %v2272 = vpack.c.b16 %v2246, %v2245
      %v2273 = vpack.c.b16 %v2248, %v2247
      %v2274 = vpack.c.b16 %v2250, %v2249
      %v2275 = vpack.c.b16 %v2252, %v2251
      %v2276 = vpack.c.b16 %v2254, %v2253
      %v2277 = vpack.c.b16 %v2256, %v2255
      %v2278 = vpack.c.b16 %v2258, %v2257
      %v2279 = vpack.c.b16 %v2260, %v2259
      %v2280 = vpack.c.b16 %v2262, %v2261
      %v2281 = vpack.c.b16 %v2264, %v2263
      %v2282 = vpack.c.b16 %v2266, %v2265
      %v2284 = vsel %vm1566, %v2267, 0
      %v2287 = vsel %vm1566, %v2268, 0
      %v2290 = vsel %vm1566, %v2269, 0
      %v2293 = vsel %vm1566, %v2270, 0
      %v2296 = vsel %vm1566, %v2271, 0
      %v2299 = vsel %vm1566, %v2272, 0
      %v2302 = vsel %vm1566, %v2273, 0
      %v2305 = vsel %vm1566, %v2274, 0
      %v2308 = vsel %vm1566, %v2275, 0
      %v2311 = vsel %vm1566, %v2276, 0
      %v2314 = vsel %vm1566, %v2277, 0
      %v2317 = vsel %vm1566, %v2278, 0
      %v2320 = vsel %vm1566, %v2279, 0
      %v2323 = vsel %vm1566, %v2280, 0
      %v2326 = vsel %vm1566, %v2281, 0
      %v2329 = vsel %vm1566, %v2282, 0
      %v2332 = vsel %vm1615, %v1070, 0
      %2334 = vmatprep.subr.bf16.mxu0 0
      %2335 = vmatpush1.bf16.msra.mxu0 %v2332
      %2336 = vmatprep.subr.bf16.mxu0 0
      %2337 = vmatpush1.bf16.msra.mxu0 0
      %2338 = vmatprep.subr.bf16.mxu0 0
      %2339 = vmatpush1.bf16.msra.mxu0 0
      %2340 = vmatprep.subr.bf16.mxu0 0
      %2341 = vmatpush1.bf16.msra.mxu0 0
      %2342 = vmatprep.subr.bf16.mxu0 0
      %2343 = vmatpush1.bf16.msra.mxu0 0
      %2344 = vmatprep.subr.bf16.mxu0 0
      %2345 = vmatpush1.bf16.msra.mxu0 0
      %2346 = vmatprep.subr.bf16.mxu0 0
      %2347 = vmatpush1.bf16.msra.mxu0 0
      %2348 = vmatprep.subr.bf16.mxu0 0
      %2349 = vmatpush1.bf16.msra.mxu0 0
      %2350 = vmatprep.subr.bf16.mxu0 0
      %2351 = vmatpush1.bf16.msra.mxu0 0
      %2352 = vmatprep.subr.bf16.mxu0 0
      %2353 = vmatpush1.bf16.msra.mxu0 0
      %2354 = vmatprep.subr.bf16.mxu0 0
      %2355 = vmatpush1.bf16.msra.mxu0 0
      %2356 = vmatprep.subr.bf16.mxu0 0
      %2357 = vmatpush1.bf16.msra.mxu0 0
      %2358 = vmatprep.subr.bf16.mxu0 0
      %2359 = vmatpush1.bf16.msra.mxu0 0
      %2360 = vmatprep.subr.bf16.mxu0 0
      %2361 = vmatpush1.bf16.msra.mxu0 0
      %2362 = vmatprep.subr.bf16.mxu0 0
      %2363 = vmatpush1.bf16.msra.mxu0 0
      %2364 = vmatprep.subr.bf16.mxu0 0
      %2365 = vmatpush1.bf16.msra.mxu0 0
      %2366 = vmatprep.mubr.bf16.mxu0 0
      %2367 = vmatmul.mubr.bf16.gmra.mrb[0].mxu0 %v2284
      %v2368 = vpop.f32.mrb[0].mxu0
      %v2369 = vadd.f32 0.0, %v2368
      %v2370 = vpop.f32.mrb[0].mxu0
      %v2371 = vpop.f32.mrb[0].mxu0
      %v2372 = vadd.f32 0.0, %v2371
      %v2373 = vpop.f32.mrb[0].mxu0
      %2374 = vmatprep.mubr.bf16.mxu0 0
      %2375 = vmatmul.mubr.bf16.gmra.mrb[0].mxu0 %v2287
      %v2376 = vpop.f32.mrb[0].mxu0
      %v2377 = vadd.f32 0.0, %v2376
      %v2378 = vpop.f32.mrb[0].mxu0
      %v2379 = vpop.f32.mrb[0].mxu0
      %v2380 = vadd.f32 0.0, %v2379
      %v2381 = vpop.f32.mrb[0].mxu0
      %2382 = vmatprep.mubr.bf16.mxu0 0
      %2383 = vmatmul.mubr.bf16.gmra.mrb[0].mxu0 %v2290
      %v2384 = vpop.f32.mrb[0].mxu0
      %v2385 = vadd.f32 0.0, %v2384
      %v2386 = vpop.f32.mrb[0].mxu0
      %v2387 = vpop.f32.mrb[0].mxu0
      %v2388 = vadd.f32 0.0, %v2387
      %v2389 = vpop.f32.mrb[0].mxu0
      %2390 = vmatprep.mubr.bf16.mxu0 0
      %2391 = vmatmul.mubr.bf16.gmra.mrb[0].mxu0 %v2293
      %v2392 = vpop.f32.mrb[0].mxu0
      %v2393 = vadd.f32 0.0, %v2392
      %v2394 = vpop.f32.mrb[0].mxu0
      %v2395 = vpop.f32.mrb[0].mxu0
      %v2396 = vadd.f32 0.0, %v2395
      %v2397 = vpop.f32.mrb[0].mxu0
      %2398 = vmatprep.mubr.bf16.mxu0 0
      %2399 = vmatmul.mubr.bf16.gmra.mrb[0].mxu0 %v2296
      %v2400 = vpop.f32.mrb[0].mxu0
      %v2401 = vadd.f32 0.0, %v2400
      %v2402 = vpop.f32.mrb[0].mxu0
      %v2403 = vpop.f32.mrb[0].mxu0
      %v2404 = vadd.f32 0.0, %v2403
      %v2405 = vpop.f32.mrb[0].mxu0
      %2406 = vmatprep.mubr.bf16.mxu0 0
      %2407 = vmatmul.mubr.bf16.gmra.mrb[0].mxu0 %v2299
      %v2408 = vpop.f32.mrb[0].mxu0
      %v2409 = vadd.f32 0.0, %v2408
      %v2410 = vpop.f32.mrb[0].mxu0
      %v2411 = vpop.f32.mrb[0].mxu0
      %v2412 = vadd.f32 0.0, %v2411
      %v2413 = vpop.f32.mrb[0].mxu0
      %2414 = vmatprep.mubr.bf16.mxu0 0
      %2415 = vmatmul.mubr.bf16.gmra.mrb[0].mxu0 %v2302
      %v2416 = vpop.f32.mrb[0].mxu0
      %v2417 = vadd.f32 0.0, %v2416
      %v2418 = vpop.f32.mrb[0].mxu0
      %v2419 = vpop.f32.mrb[0].mxu0
      %v2420 = vadd.f32 0.0, %v2419
      %v2421 = vpop.f32.mrb[0].mxu0
      %2422 = vmatprep.mubr.bf16.mxu0 0
      %2423 = vmatmul.mubr.bf16.gmra.mrb[0].mxu0 %v2305
      %v2424 = vpop.f32.mrb[0].mxu0
      %v2425 = vadd.f32 0.0, %v2424
      %v2426 = vpop.f32.mrb[0].mxu0
      %v2427 = vpop.f32.mrb[0].mxu0
      %v2428 = vadd.f32 0.0, %v2427
      %v2429 = vpop.f32.mrb[0].mxu0
      %2430 = vmatprep.mubr.bf16.mxu0 0
      %2431 = vmatmul.mubr.bf16.gmra.mrb[0].mxu0 %v2308
      %v2432 = vpop.f32.mrb[0].mxu0
      %v2433 = vadd.f32 0.0, %v2432
      %v2434 = vpop.f32.mrb[0].mxu0
      %v2435 = vpop.f32.mrb[0].mxu0
      %v2436 = vadd.f32 0.0, %v2435
      %v2437 = vpop.f32.mrb[0].mxu0
      %2438 = vmatprep.mubr.bf16.mxu0 0
      %2439 = vmatmul.mubr.bf16.gmra.mrb[0].mxu0 %v2311
      %v2440 = vpop.f32.mrb[0].mxu0
      %v2441 = vadd.f32 0.0, %v2440
      %v2442 = vpop.f32.mrb[0].mxu0
      %v2443 = vpop.f32.mrb[0].mxu0
      %v2444 = vadd.f32 0.0, %v2443
      %v2445 = vpop.f32.mrb[0].mxu0
      %2446 = vmatprep.mubr.bf16.mxu0 0
      %2447 = vmatmul.mubr.bf16.gmra.mrb[0].mxu0 %v2314
      %v2448 = vpop.f32.mrb[0].mxu0
      %v2449 = vadd.f32 0.0, %v2448
      %v2450 = vpop.f32.mrb[0].mxu0
      %v2451 = vpop.f32.mrb[0].mxu0
      %v2452 = vadd.f32 0.0, %v2451
      %v2453 = vpop.f32.mrb[0].mxu0
      %2454 = vmatprep.mubr.bf16.mxu0 0
      %2455 = vmatmul.mubr.bf16.gmra.mrb[0].mxu0 %v2317
      %v2456 = vpop.f32.mrb[0].mxu0
      %v2457 = vadd.f32 0.0, %v2456
      %v2458 = vpop.f32.mrb[0].mxu0
      %v2459 = vpop.f32.mrb[0].mxu0
      %v2460 = vadd.f32 0.0, %v2459
      %v2461 = vpop.f32.mrb[0].mxu0
      %2462 = vmatprep.mubr.bf16.mxu0 0
      %2463 = vmatmul.mubr.bf16.gmra.mrb[0].mxu0 %v2320
      %v2464 = vpop.f32.mrb[0].mxu0
      %v2465 = vadd.f32 0.0, %v2464
      %v2466 = vpop.f32.mrb[0].mxu0
      %v2467 = vpop.f32.mrb[0].mxu0
      %v2468 = vadd.f32 0.0, %v2467
      %v2469 = vpop.f32.mrb[0].mxu0
      %2470 = vmatprep.mubr.bf16.mxu0 0
      %2471 = vmatmul.mubr.bf16.gmra.mrb[0].mxu0 %v2323
      %v2472 = vpop.f32.mrb[0].mxu0
      %v2473 = vadd.f32 0.0, %v2472
      %v2474 = vpop.f32.mrb[0].mxu0
      %v2475 = vpop.f32.mrb[0].mxu0
      %v2476 = vadd.f32 0.0, %v2475
      %v2477 = vpop.f32.mrb[0].mxu0
      %2478 = vmatprep.mubr.bf16.mxu0 0
      %2479 = vmatmul.mubr.bf16.gmra.mrb[0].mxu0 %v2326
      %v2480 = vpop.f32.mrb[0].mxu0
      %v2481 = vadd.f32 0.0, %v2480
      %v2482 = vpop.f32.mrb[0].mxu0
      %v2483 = vpop.f32.mrb[0].mxu0
      %v2484 = vadd.f32 0.0, %v2483
      %v2485 = vpop.f32.mrb[0].mxu0
      %2486 = vmatprep.mubr.bf16.mxu0 0
      %2487 = vmatmul.mubr.bf16.gmra.mrb[0].mxu0 %v2329
      %v2488 = vpop.f32.mrb[0].mxu0
      %v2489 = vadd.f32 0.0, %v2488
      %v2490 = vpop.f32.mrb[0].mxu0
      %v2491 = vpop.f32.mrb[0].mxu0
      %v2492 = vadd.f32 0.0, %v2491
      %v2493 = vpop.f32.mrb[0].mxu0
      %2494 = vdwg.mxu0
      %v2495 = vadd.f32 %v1946, %v2369
      %v2496 = vadd.f32 %v1949, %v2372
      %v2497 = vadd.f32 %v1954, %v2377
      %v2498 = vadd.f32 %v1957, %v2380
      %v2499 = vadd.f32 %v1962, %v2385
      %v2500 = vadd.f32 %v1965, %v2388
      %v2501 = vadd.f32 %v1970, %v2393
      %v2502 = vadd.f32 %v1973, %v2396
      %v2503 = vadd.f32 %v1978, %v2401
      %v2504 = vadd.f32 %v1981, %v2404
      %v2505 = vadd.f32 %v1986, %v2409
      %v2506 = vadd.f32 %v1989, %v2412
      %v2507 = vadd.f32 %v1994, %v2417
      %v2508 = vadd.f32 %v1997, %v2420
      %v2509 = vadd.f32 %v2002, %v2425
      %v2510 = vadd.f32 %v2005, %v2428
      %v2511 = vadd.f32 %v2010, %v2433
      %v2512 = vadd.f32 %v2013, %v2436
      %v2513 = vadd.f32 %v2018, %v2441
      %v2514 = vadd.f32 %v2021, %v2444
      %v2515 = vadd.f32 %v2026, %v2449
      %v2516 = vadd.f32 %v2029, %v2452
      %v2517 = vadd.f32 %v2034, %v2457
      %v2518 = vadd.f32 %v2037, %v2460
      %v2519 = vadd.f32 %v2042, %v2465
      %v2520 = vadd.f32 %v2045, %v2468
      %v2521 = vadd.f32 %v2050, %v2473
      %v2522 = vadd.f32 %v2053, %v2476
      %v2523 = vadd.f32 %v2058, %v2481
      %v2524 = vadd.f32 %v2061, %v2484
      %v2525 = vadd.f32 %v2066, %v2489
      %v2526 = vadd.f32 %v2069, %v2492
      %v2527 = vld [vmem:[%s951] sm:$0xf]
      %v2528 = vld [vmem:[%s951 + $0x4] sm:$0xf]
      %v2529 = vld [vmem:[%s951 + $0xc] sm:$0xf]
      %v2530 = vld [vmem:[%s951 + $0x10] sm:$0xf]
      %v2531 = vld [vmem:[%s951 + $0x18] sm:$0xf]
      %v2532 = vld [vmem:[%s951 + $0x1c] sm:$0xf]
      %v2533 = vld [vmem:[%s951 + $0x24] sm:$0xf]
      %v2534 = vld [vmem:[%s951 + $0x28] sm:$0xf]
      %v2535 = vld [vmem:[%s951 + $0x30] sm:$0xf]
      %v2536 = vld [vmem:[%s951 + $0x34] sm:$0xf]
      %v2537 = vld [vmem:[%s951 + $0x3c] sm:$0xf]
      %v2538 = vld [vmem:[%s951 + $0x40] sm:$0xf]
      %v2539 = vld [vmem:[%s951 + $0x48] sm:$0xf]
      %v2540 = vld [vmem:[%s951 + $0x4c] sm:$0xf]
      %v2541 = vld [vmem:[%s951 + $0x54] sm:$0xf]
      %v2542 = vld [vmem:[%s951 + $0x58] sm:$0xf]
      %v2543 = vld [vmem:[%s951 + $0x60] sm:$0xf]
      %v2544 = vld [vmem:[%s951 + $0x64] sm:$0xf]
      %v2545 = vld [vmem:[%s951 + $0x6c] sm:$0xf]
      %v2546 = vld [vmem:[%s951 + $0x70] sm:$0xf]
      %v2547 = vld [vmem:[%s951 + $0x78] sm:$0xf]
      %v2548 = vld [vmem:[%s951 + $0x7c] sm:$0xf]
      %v2549 = vld [vmem:[%s951 + $0x84] sm:$0xf]
      %v2550 = vld [vmem:[%s951 + $0x88] sm:$0xf]
      %v2551 = vld [vmem:[%s951 + $0x90] sm:$0xf]
      %v2552 = vld [vmem:[%s951 + $0x94] sm:$0xf]
      %v2553 = vld [vmem:[%s951 + $0x9c] sm:$0xf]
      %v2554 = vld [vmem:[%s951 + $0xa0] sm:$0xf]
      %v2555 = vld [vmem:[%s951 + $0xa8] sm:$0xf]
      %v2556 = vld [vmem:[%s951 + $0xac] sm:$0xf]
      %v2557 = vld [vmem:[%s951 + $0xb4] sm:$0xf]
      %v2558 = vld [vmem:[%s951 + $0xb8] sm:$0xf]
      %v2591 = vunpack.c.l.b16 %v2527
      %v2592 = vunpack.c.l.b16 %v2528
      %v2593 = vunpack.c.l.b16 %v2529
      %v2594 = vunpack.c.l.b16 %v2530
      %v2595 = vunpack.c.l.b16 %v2531
      %v2596 = vunpack.c.l.b16 %v2532
      %v2597 = vunpack.c.l.b16 %v2533
      %v2598 = vunpack.c.l.b16 %v2534
      %v2599 = vunpack.c.l.b16 %v2535
      %v2600 = vunpack.c.l.b16 %v2536
      %v2601 = vunpack.c.l.b16 %v2537
      %v2602 = vunpack.c.l.b16 %v2538
      %v2603 = vunpack.c.l.b16 %v2539
      %v2604 = vunpack.c.l.b16 %v2540
      %v2605 = vunpack.c.l.b16 %v2541
      %v2606 = vunpack.c.l.b16 %v2542
      %v2607 = vunpack.c.l.b16 %v2543
      %v2608 = vunpack.c.l.b16 %v2544
      %v2609 = vunpack.c.l.b16 %v2545
      %v2610 = vunpack.c.l.b16 %v2546
      %v2611 = vunpack.c.l.b16 %v2547
      %v2612 = vunpack.c.l.b16 %v2548
      %v2613 = vunpack.c.l.b16 %v2549
      %v2614 = vunpack.c.l.b16 %v2550
      %v2615 = vunpack.c.l.b16 %v2551
      %v2616 = vunpack.c.l.b16 %v2552
      %v2617 = vunpack.c.l.b16 %v2553
      %v2618 = vunpack.c.l.b16 %v2554
      %v2619 = vunpack.c.l.b16 %v2555
      %v2620 = vunpack.c.l.b16 %v2556
      %v2621 = vunpack.c.l.b16 %v2557
      %v2622 = vunpack.c.l.b16 %v2558
      %v2623 = vpack.c.b16 %v2592, %v2591
      %v2624 = vpack.c.b16 %v2594, %v2593
      %v2625 = vpack.c.b16 %v2596, %v2595
      %v2626 = vpack.c.b16 %v2598, %v2597
      %v2627 = vpack.c.b16 %v2600, %v2599
      %v2628 = vpack.c.b16 %v2602, %v2601
      %v2629 = vpack.c.b16 %v2604, %v2603
      %v2630 = vpack.c.b16 %v2606, %v2605
      %v2631 = vpack.c.b16 %v2608, %v2607
      %v2632 = vpack.c.b16 %v2610, %v2609
      %v2633 = vpack.c.b16 %v2612, %v2611
      %v2634 = vpack.c.b16 %v2614, %v2613
      %v2635 = vpack.c.b16 %v2616, %v2615
      %v2636 = vpack.c.b16 %v2618, %v2617
      %v2637 = vpack.c.b16 %v2620, %v2619
      %v2638 = vpack.c.b16 %v2622, %v2621
      %v2640 = vsel %vm1566, %v2623, 0
      %v2643 = vsel %vm1566, %v2624, 0
      %v2646 = vsel %vm1566, %v2625, 0
      %v2649 = vsel %vm1566, %v2626, 0
      %v2652 = vsel %vm1566, %v2627, 0
      %v2655 = vsel %vm1566, %v2628, 0
      %v2658 = vsel %vm1566, %v2629, 0
      %v2661 = vsel %vm1566, %v2630, 0
      %v2664 = vsel %vm1566, %v2631, 0
      %v2667 = vsel %vm1566, %v2632, 0
      %v2670 = vsel %vm1566, %v2633, 0
      %v2673 = vsel %vm1566, %v2634, 0
      %v2676 = vsel %vm1566, %v2635, 0
      %v2679 = vsel %vm1566, %v2636, 0
      %v2682 = vsel %vm1566, %v2637, 0
      %v2685 = vsel %vm1566, %v2638, 0
      %v2688 = vsel %vm1615, %v1072, 0
      %2690 = vmatprep.subr.bf16.mxu0 0
      %2691 = vmatpush1.bf16.msra.mxu0 %v2688
      %2692 = vmatprep.subr.bf16.mxu0 0
      %2693 = vmatpush1.bf16.msra.mxu0 0
      %2694 = vmatprep.subr.bf16.mxu0 0
      %2695 = vmatpush1.bf16.msra.mxu0 0
      %2696 = vmatprep.subr.bf16.mxu0 0
      %2697 = vmatpush1.bf16.msra.mxu0 0
      %2698 = vmatprep.subr.bf16.mxu0 0
      %2699 = vmatpush1.bf16.msra.mxu0 0
      %2700 = vmatprep.subr.bf16.mxu0 0
      %2701 = vmatpush1.bf16.msra.mxu0 0
      %2702 = vmatprep.subr.bf16.mxu0 0
      %2703 = vmatpush1.bf16.msra.mxu0 0
      %2704 = vmatprep.subr.bf16.mxu0 0
      %2705 = vmatpush1.bf16.msra.mxu0 0
      %2706 = vmatprep.subr.bf16.mxu0 0
      %2707 = vmatpush1.bf16.msra.mxu0 0
      %2708 = vmatprep.subr.bf16.mxu0 0
      %2709 = vmatpush1.bf16.msra.mxu0 0
      %2710 = vmatprep.subr.bf16.mxu0 0
      %2711 = vmatpush1.bf16.msra.mxu0 0
      %2712 = vmatprep.subr.bf16.mxu0 0
      %2713 = vmatpush1.bf16.msra.mxu0 0
      %2714 = vmatprep.subr.bf16.mxu0 0
      %2715 = vmatpush1.bf16.msra.mxu0 0
      %2716 = vmatprep.subr.bf16.mxu0 0
      %2717 = vmatpush1.bf16.msra.mxu0 0
      %2718 = vmatprep.subr.bf16.mxu0 0
      %2719 = vmatpush1.bf16.msra.mxu0 0
      %2720 = vmatprep.subr.bf16.mxu0 0
      %2721 = vmatpush1.bf16.msra.mxu0 0
      %2722 = vmatprep.mubr.bf16.mxu0 0
      %2723 = vmatmul.mubr.bf16.gmra.mrb[0].mxu0 %v2640
      %v2724 = vpop.f32.mrb[0].mxu0
      %v2725 = vadd.f32 0.0, %v2724
      %v2726 = vpop.f32.mrb[0].mxu0
      %v2727 = vpop.f32.mrb[0].mxu0
      %v2728 = vadd.f32 0.0, %v2727
      %v2729 = vpop.f32.mrb[0].mxu0
      %2730 = vmatprep.mubr.bf16.mxu0 0
      %2731 = vmatmul.mubr.bf16.gmra.mrb[0].mxu0 %v2643
      %v2732 = vpop.f32.mrb[0].mxu0
      %v2733 = vadd.f32 0.0, %v2732
      %v2734 = vpop.f32.mrb[0].mxu0
      %v2735 = vpop.f32.mrb[0].mxu0
      %v2736 = vadd.f32 0.0, %v2735
      %v2737 = vpop.f32.mrb[0].mxu0
      %2738 = vmatprep.mubr.bf16.mxu0 0
      %2739 = vmatmul.mubr.bf16.gmra.mrb[0].mxu0 %v2646
      %v2740 = vpop.f32.mrb[0].mxu0
      %v2741 = vadd.f32 0.0, %v2740
      %v2742 = vpop.f32.mrb[0].mxu0
      %v2743 = vpop.f32.mrb[0].mxu0
      %v2744 = vadd.f32 0.0, %v2743
      %v2745 = vpop.f32.mrb[0].mxu0
      %2746 = vmatprep.mubr.bf16.mxu0 0
      %2747 = vmatmul.mubr.bf16.gmra.mrb[0].mxu0 %v2649
      %v2748 = vpop.f32.mrb[0].mxu0
      %v2749 = vadd.f32 0.0, %v2748
      %v2750 = vpop.f32.mrb[0].mxu0
      %v2751 = vpop.f32.mrb[0].mxu0
      %v2752 = vadd.f32 0.0, %v2751
      %v2753 = vpop.f32.mrb[0].mxu0
      %2754 = vmatprep.mubr.bf16.mxu0 0
      %2755 = vmatmul.mubr.bf16.gmra.mrb[0].mxu0 %v2652
      %v2756 = vpop.f32.mrb[0].mxu0
      %v2757 = vadd.f32 0.0, %v2756
      %v2758 = vpop.f32.mrb[0].mxu0
      %v2759 = vpop.f32.mrb[0].mxu0
      %v2760 = vadd.f32 0.0, %v2759
      %v2761 = vpop.f32.mrb[0].mxu0
      %2762 = vmatprep.mubr.bf16.mxu0 0
      %2763 = vmatmul.mubr.bf16.gmra.mrb[0].mxu0 %v2655
      %v2764 = vpop.f32.mrb[0].mxu0
      %v2765 = vadd.f32 0.0, %v2764
      %v2766 = vpop.f32.mrb[0].mxu0
      %v2767 = vpop.f32.mrb[0].mxu0
      %v2768 = vadd.f32 0.0, %v2767
      %v2769 = vpop.f32.mrb[0].mxu0
      %2770 = vmatprep.mubr.bf16.mxu0 0
      %2771 = vmatmul.mubr.bf16.gmra.mrb[0].mxu0 %v2658
      %v2772 = vpop.f32.mrb[0].mxu0
      %v2773 = vadd.f32 0.0, %v2772
      %v2774 = vpop.f32.mrb[0].mxu0
      %v2775 = vpop.f32.mrb[0].mxu0
      %v2776 = vadd.f32 0.0, %v2775
      %v2777 = vpop.f32.mrb[0].mxu0
      %2778 = vmatprep.mubr.bf16.mxu0 0
      %2779 = vmatmul.mubr.bf16.gmra.mrb[0].mxu0 %v2661
      %v2780 = vpop.f32.mrb[0].mxu0
      %v2781 = vadd.f32 0.0, %v2780
      %v2782 = vpop.f32.mrb[0].mxu0
      %v2783 = vpop.f32.mrb[0].mxu0
      %v2784 = vadd.f32 0.0, %v2783
      %v2785 = vpop.f32.mrb[0].mxu0
      %2786 = vmatprep.mubr.bf16.mxu0 0
      %2787 = vmatmul.mubr.bf16.gmra.mrb[0].mxu0 %v2664
      %v2788 = vpop.f32.mrb[0].mxu0
      %v2789 = vadd.f32 0.0, %v2788
      %v2790 = vpop.f32.mrb[0].mxu0
      %v2791 = vpop.f32.mrb[0].mxu0
      %v2792 = vadd.f32 0.0, %v2791
      %v2793 = vpop.f32.mrb[0].mxu0
      %2794 = vmatprep.mubr.bf16.mxu0 0
      %2795 = vmatmul.mubr.bf16.gmra.mrb[0].mxu0 %v2667
      %v2796 = vpop.f32.mrb[0].mxu0
      %v2797 = vadd.f32 0.0, %v2796
      %v2798 = vpop.f32.mrb[0].mxu0
      %v2799 = vpop.f32.mrb[0].mxu0
      %v2800 = vadd.f32 0.0, %v2799
      %v2801 = vpop.f32.mrb[0].mxu0
      %2802 = vmatprep.mubr.bf16.mxu0 0
      %2803 = vmatmul.mubr.bf16.gmra.mrb[0].mxu0 %v2670
      %v2804 = vpop.f32.mrb[0].mxu0
      %v2805 = vadd.f32 0.0, %v2804
      %v2806 = vpop.f32.mrb[0].mxu0
      %v2807 = vpop.f32.mrb[0].mxu0
      %v2808 = vadd.f32 0.0, %v2807
      %v2809 = vpop.f32.mrb[0].mxu0
      %2810 = vmatprep.mubr.bf16.mxu0 0
      %2811 = vmatmul.mubr.bf16.gmra.mrb[0].mxu0 %v2673
      %v2812 = vpop.f32.mrb[0].mxu0
      %v2813 = vadd.f32 0.0, %v2812
      %v2814 = vpop.f32.mrb[0].mxu0
      %v2815 = vpop.f32.mrb[0].mxu0
      %v2816 = vadd.f32 0.0, %v2815
      %v2817 = vpop.f32.mrb[0].mxu0
      %2818 = vmatprep.mubr.bf16.mxu0 0
      %2819 = vmatmul.mubr.bf16.gmra.mrb[0].mxu0 %v2676
      %v2820 = vpop.f32.mrb[0].mxu0
      %v2821 = vadd.f32 0.0, %v2820
      %v2822 = vpop.f32.mrb[0].mxu0
      %v2823 = vpop.f32.mrb[0].mxu0
      %v2824 = vadd.f32 0.0, %v2823
      %v2825 = vpop.f32.mrb[0].mxu0
      %2826 = vmatprep.mubr.bf16.mxu0 0
      %2827 = vmatmul.mubr.bf16.gmra.mrb[0].mxu0 %v2679
      %v2828 = vpop.f32.mrb[0].mxu0
      %v2829 = vadd.f32 0.0, %v2828
      %v2830 = vpop.f32.mrb[0].mxu0
      %v2831 = vpop.f32.mrb[0].mxu0
      %v2832 = vadd.f32 0.0, %v2831
      %v2833 = vpop.f32.mrb[0].mxu0
      %2834 = vmatprep.mubr.bf16.mxu0 0
      %2835 = vmatmul.mubr.bf16.gmra.mrb[0].mxu0 %v2682
      %v2836 = vpop.f32.mrb[0].mxu0
      %v2837 = vadd.f32 0.0, %v2836
      %v2838 = vpop.f32.mrb[0].mxu0
      %v2839 = vpop.f32.mrb[0].mxu0
      %v2840 = vadd.f32 0.0, %v2839
      %v2841 = vpop.f32.mrb[0].mxu0
      %2842 = vmatprep.mubr.bf16.mxu0 0
      %2843 = vmatmul.mubr.bf16.gmra.mrb[0].mxu0 %v2685
      %v2844 = vpop.f32.mrb[0].mxu0
      %v2845 = vadd.f32 0.0, %v2844
      %v2846 = vpop.f32.mrb[0].mxu0
      %v2847 = vpop.f32.mrb[0].mxu0
      %v2848 = vadd.f32 0.0, %v2847
      %v2849 = vpop.f32.mrb[0].mxu0
      %2850 = vdwg.mxu0
      %v2851 = vadd.f32 %v2495, %v2725
      %v2852 = vadd.f32 %v2496, %v2728
      %v2853 = vadd.f32 %v2497, %v2733
      %v2854 = vadd.f32 %v2498, %v2736
      %v2855 = vadd.f32 %v2499, %v2741
      %v2856 = vadd.f32 %v2500, %v2744
      %v2857 = vadd.f32 %v2501, %v2749
      %v2858 = vadd.f32 %v2502, %v2752
      %v2859 = vadd.f32 %v2503, %v2757
      %v2860 = vadd.f32 %v2504, %v2760
      %v2861 = vadd.f32 %v2505, %v2765
      %v2862 = vadd.f32 %v2506, %v2768
      %v2863 = vadd.f32 %v2507, %v2773
      %v2864 = vadd.f32 %v2508, %v2776
      %v2865 = vadd.f32 %v2509, %v2781
      %v2866 = vadd.f32 %v2510, %v2784
      %v2867 = vadd.f32 %v2511, %v2789
      %v2868 = vadd.f32 %v2512, %v2792
      %v2869 = vadd.f32 %v2513, %v2797
      %v2870 = vadd.f32 %v2514, %v2800
      %v2871 = vadd.f32 %v2515, %v2805
      %v2872 = vadd.f32 %v2516, %v2808
      %v2873 = vadd.f32 %v2517, %v2813
      %v2874 = vadd.f32 %v2518, %v2816
      %v2875 = vadd.f32 %v2519, %v2821
      %v2876 = vadd.f32 %v2520, %v2824
      %v2877 = vadd.f32 %v2521, %v2829
      %v2878 = vadd.f32 %v2522, %v2832
      %v2879 = vadd.f32 %v2523, %v2837
      %v2880 = vadd.f32 %v2524, %v2840
      %v2881 = vadd.f32 %v2525, %v2845
      %v2882 = vadd.f32 %v2526, %v2848
      %v2883 = vld [vmem:[%s951] sm:$0xf]
      %v2884 = vld [vmem:[%s951 + $0x4] sm:$0xf]
      %v2885 = vld [vmem:[%s951 + $0x8] sm:$0x1]
      %v2886 = vld [vmem:[%s951 + $0xc] sm:$0xf]
      %v2887 = vld [vmem:[%s951 + $0x10] sm:$0xf]
      %v2888 = vld [vmem:[%s951 + $0x14] sm:$0x1]
      %v2889 = vld [vmem:[%s951 + $0x18] sm:$0xf]
      %v2890 = vld [vmem:[%s951 + $0x1c] sm:$0xf]
      %v2891 = vld [vmem:[%s951 + $0x20] sm:$0x1]
      %v2892 = vld [vmem:[%s951 + $0x24] sm:$0xf]
      %v2893 = vld [vmem:[%s951 + $0x28] sm:$0xf]
      %v2894 = vld [vmem:[%s951 + $0x2c] sm:$0x1]
      %v2895 = vld [vmem:[%s951 + $0x30] sm:$0xf]
      %v2896 = vld [vmem:[%s951 + $0x34] sm:$0xf]
      %v2897 = vld [vmem:[%s951 + $0x38] sm:$0x1]
      %v2898 = vld [vmem:[%s951 + $0x3c] sm:$0xf]
      %v2899 = vld [vmem:[%s951 + $0x40] sm:$0xf]
      %v2900 = vld [vmem:[%s951 + $0x44] sm:$0x1]
      %v2901 = vld [vmem:[%s951 + $0x48] sm:$0xf]
      %v2902 = vld [vmem:[%s951 + $0x4c] sm:$0xf]
      %v2903 = vld [vmem:[%s951 + $0x50] sm:$0x1]
      %v2904 = vld [vmem:[%s951 + $0x54] sm:$0xf]
      %v2905 = vld [vmem:[%s951 + $0x58] sm:$0xf]
      %v2906 = vld [vmem:[%s951 + $0x5c] sm:$0x1]
      %v2907 = vld [vmem:[%s951 + $0x60] sm:$0xf]
      %v2908 = vld [vmem:[%s951 + $0x64] sm:$0xf]
      %v2909 = vld [vmem:[%s951 + $0x68] sm:$0x1]
      %v2910 = vld [vmem:[%s951 + $0x6c] sm:$0xf]
      %v2911 = vld [vmem:[%s951 + $0x70] sm:$0xf]
      %v2912 = vld [vmem:[%s951 + $0x74] sm:$0x1]
      %v2913 = vld [vmem:[%s951 + $0x78] sm:$0xf]
      %v2914 = vld [vmem:[%s951 + $0x7c] sm:$0xf]
      %v2915 = vld [vmem:[%s951 + $0x80] sm:$0x1]
      %v2916 = vld [vmem:[%s951 + $0x84] sm:$0xf]
      %v2917 = vld [vmem:[%s951 + $0x88] sm:$0xf]
      %v2918 = vld [vmem:[%s951 + $0x8c] sm:$0x1]
      %v2919 = vld [vmem:[%s951 + $0x90] sm:$0xf]
      %v2920 = vld [vmem:[%s951 + $0x94] sm:$0xf]
      %v2921 = vld [vmem:[%s951 + $0x98] sm:$0x1]
      %v2922 = vld [vmem:[%s951 + $0x9c] sm:$0xf]
      %v2923 = vld [vmem:[%s951 + $0xa0] sm:$0xf]
      %v2924 = vld [vmem:[%s951 + $0xa4] sm:$0x1]
      %v2925 = vld [vmem:[%s951 + $0xa8] sm:$0xf]
      %v2926 = vld [vmem:[%s951 + $0xac] sm:$0xf]
      %v2927 = vld [vmem:[%s951 + $0xb0] sm:$0x1]
      %v2928 = vld [vmem:[%s951 + $0xb4] sm:$0xf]
      %v2929 = vld [vmem:[%s951 + $0xb8] sm:$0xf]
      %v2930 = vld [vmem:[%s951 + $0xbc] sm:$0x1]
      %v2932 = vshrl.u32 %v2883, 16
      %v2934 = vrot.slane %v2932, 4
      %v2935 = vshll.u32 %v2883, 16
      %v2937 = vrot.slane %v2935, 5
      %v2938 = vor.u32 %v2934, %v2937
      %v2939 = vrot.slane %v2938, 4
      %v2941 = vshll.u32 %v2884, 16
      %v2943 = vrot.slane %v2941, 5
      %v2944 = vsel %vm1133, %v2939, %v2943
      %v2945 = vshrl.u32 %v2884, 16
      %v2947 = vrot.slane %v2945, 4
      %v2948 = vor.u32 %v2947, %v2943
      %v2949 = vrot.slane %v2948, 4
      %v2951 = vshll.u32 %v2885, 16
      %v2953 = vrot.slane %v2951, 5
      %v2954 = vsel %vm1133, %v2949, %v2953
      %v2956 = vshrl.u32 %v2886, 16
      %v2958 = vrot.slane %v2956, 4
      %v2959 = vshll.u32 %v2886, 16
      %v2961 = vrot.slane %v2959, 5
      %v2962 = vor.u32 %v2958, %v2961
      %v2963 = vrot.slane %v2962, 4
      %v2965 = vshll.u32 %v2887, 16
      %v2967 = vrot.slane %v2965, 5
      %v2968 = vsel %vm1133, %v2963, %v2967
      %v2969 = vshrl.u32 %v2887, 16
      %v2971 = vrot.slane %v2969, 4
      %v2972 = vor.u32 %v2971, %v2967
      %v2973 = vrot.slane %v2972, 4
      %v2975 = vshll.u32 %v2888, 16
      %v2977 = vrot.slane %v2975, 5
      %v2978 = vsel %vm1133, %v2973, %v2977
      %v2980 = vshrl.u32 %v2889, 16
      %v2982 = vrot.slane %v2980, 4
      %v2983 = vshll.u32 %v2889, 16
      %v2985 = vrot.slane %v2983, 5
      %v2986 = vor.u32 %v2982, %v2985
      %v2987 = vrot.slane %v2986, 4
      %v2989 = vshll.u32 %v2890, 16
      %v2991 = vrot.slane %v2989, 5
      %v2992 = vsel %vm1133, %v2987, %v2991
      %v2993 = vshrl.u32 %v2890, 16
      %v2995 = vrot.slane %v2993, 4
      %v2996 = vor.u32 %v2995, %v2991
      %v2997 = vrot.slane %v2996, 4
      %v2999 = vshll.u32 %v2891, 16
      %v3001 = vrot.slane %v2999, 5
      %v3002 = vsel %vm1133, %v2997, %v3001
      %v3004 = vshrl.u32 %v2892, 16
      %v3006 = vrot.slane %v3004, 4
      %v3007 = vshll.u32 %v2892, 16
      %v3009 = vrot.slane %v3007, 5
      %v3010 = vor.u32 %v3006, %v3009
      %v3011 = vrot.slane %v3010, 4
      %v3013 = vshll.u32 %v2893, 16
      %v3015 = vrot.slane %v3013, 5
      %v3016 = vsel %vm1133, %v3011, %v3015
      %v3017 = vshrl.u32 %v2893, 16
      %v3019 = vrot.slane %v3017, 4
      %v3020 = vor.u32 %v3019, %v3015
      %v3021 = vrot.slane %v3020, 4
      %v3023 = vshll.u32 %v2894, 16
      %v3025 = vrot.slane %v3023, 5
      %v3026 = vsel %vm1133, %v3021, %v3025
      %v3028 = vshrl.u32 %v2895, 16
      %v3030 = vrot.slane %v3028, 4
      %v3031 = vshll.u32 %v2895, 16
      %v3033 = vrot.slane %v3031, 5
      %v3034 = vor.u32 %v3030, %v3033
      %v3035 = vrot.slane %v3034, 4
      %v3037 = vshll.u32 %v2896, 16
      %v3039 = vrot.slane %v3037, 5
      %v3040 = vsel %vm1133, %v3035, %v3039
      %v3041 = vshrl.u32 %v2896, 16
      %v3043 = vrot.slane %v3041, 4
      %v3044 = vor.u32 %v3043, %v3039
      %v3045 = vrot.slane %v3044, 4
      %v3047 = vshll.u32 %v2897, 16
      %v3049 = vrot.slane %v3047, 5
      %v3050 = vsel %vm1133, %v3045, %v3049
      %v3052 = vshrl.u32 %v2898, 16
      %v3054 = vrot.slane %v3052, 4
      %v3055 = vshll.u32 %v2898, 16
      %v3057 = vrot.slane %v3055, 5
      %v3058 = vor.u32 %v3054, %v3057
      %v3059 = vrot.slane %v3058, 4
      %v3061 = vshll.u32 %v2899, 16
      %v3063 = vrot.slane %v3061, 5
      %v3064 = vsel %vm1133, %v3059, %v3063
      %v3065 = vshrl.u32 %v2899, 16
      %v3067 = vrot.slane %v3065, 4
      %v3068 = vor.u32 %v3067, %v3063
      %v3069 = vrot.slane %v3068, 4
      %v3071 = vshll.u32 %v2900, 16
      %v3073 = vrot.slane %v3071, 5
      %v3074 = vsel %vm1133, %v3069, %v3073
      %v3076 = vshrl.u32 %v2901, 16
      %v3078 = vrot.slane %v3076, 4
      %v3079 = vshll.u32 %v2901, 16
      %v3081 = vrot.slane %v3079, 5
      %v3082 = vor.u32 %v3078, %v3081
      %v3083 = vrot.slane %v3082, 4
      %v3085 = vshll.u32 %v2902, 16
      %v3087 = vrot.slane %v3085, 5
      %v3088 = vsel %vm1133, %v3083, %v3087
      %v3089 = vshrl.u32 %v2902, 16
      %v3091 = vrot.slane %v3089, 4
      %v3092 = vor.u32 %v3091, %v3087
      %v3093 = vrot.slane %v3092, 4
      %v3095 = vshll.u32 %v2903, 16
      %v3097 = vrot.slane %v3095, 5
      %v3098 = vsel %vm1133, %v3093, %v3097
      %v3100 = vshrl.u32 %v2904, 16
      %v3102 = vrot.slane %v3100, 4
      %v3103 = vshll.u32 %v2904, 16
      %v3105 = vrot.slane %v3103, 5
      %v3106 = vor.u32 %v3102, %v3105
      %v3107 = vrot.slane %v3106, 4
      %v3109 = vshll.u32 %v2905, 16
      %v3111 = vrot.slane %v3109, 5
      %v3112 = vsel %vm1133, %v3107, %v3111
      %v3113 = vshrl.u32 %v2905, 16
      %v3115 = vrot.slane %v3113, 4
      %v3116 = vor.u32 %v3115, %v3111
      %v3117 = vrot.slane %v3116, 4
      %v3119 = vshll.u32 %v2906, 16
      %v3121 = vrot.slane %v3119, 5
      %v3122 = vsel %vm1133, %v3117, %v3121
      %v3124 = vshrl.u32 %v2907, 16
      %v3126 = vrot.slane %v3124, 4
      %v3127 = vshll.u32 %v2907, 16
      %v3129 = vrot.slane %v3127, 5
      %v3130 = vor.u32 %v3126, %v3129
      %v3131 = vrot.slane %v3130, 4
      %v3133 = vshll.u32 %v2908, 16
      %v3135 = vrot.slane %v3133, 5
      %v3136 = vsel %vm1133, %v3131, %v3135
      %v3137 = vshrl.u32 %v2908, 16
      %v3139 = vrot.slane %v3137, 4
      %v3140 = vor.u32 %v3139, %v3135
      %v3141 = vrot.slane %v3140, 4
      %v3143 = vshll.u32 %v2909, 16
      %v3145 = vrot.slane %v3143, 5
      %v3146 = vsel %vm1133, %v3141, %v3145
      %v3148 = vshrl.u32 %v2910, 16
      %v3150 = vrot.slane %v3148, 4
      %v3151 = vshll.u32 %v2910, 16
      %v3153 = vrot.slane %v3151, 5
      %v3154 = vor.u32 %v3150, %v3153
      %v3155 = vrot.slane %v3154, 4
      %v3157 = vshll.u32 %v2911, 16
      %v3159 = vrot.slane %v3157, 5
      %v3160 = vsel %vm1133, %v3155, %v3159
      %v3161 = vshrl.u32 %v2911, 16
      %v3163 = vrot.slane %v3161, 4
      %v3164 = vor.u32 %v3163, %v3159
      %v3165 = vrot.slane %v3164, 4
      %v3167 = vshll.u32 %v2912, 16
      %v3169 = vrot.slane %v3167, 5
      %v3170 = vsel %vm1133, %v3165, %v3169
      %v3172 = vshrl.u32 %v2913, 16
      %v3174 = vrot.slane %v3172, 4
      %v3175 = vshll.u32 %v2913, 16
      %v3177 = vrot.slane %v3175, 5
      %v3178 = vor.u32 %v3174, %v3177
      %v3179 = vrot.slane %v3178, 4
      %v3181 = vshll.u32 %v2914, 16
      %v3183 = vrot.slane %v3181, 5
      %v3184 = vsel %vm1133, %v3179, %v3183
      %v3185 = vshrl.u32 %v2914, 16
      %v3187 = vrot.slane %v3185, 4
      %v3188 = vor.u32 %v3187, %v3183
      %v3189 = vrot.slane %v3188, 4
      %v3191 = vshll.u32 %v2915, 16
      %v3193 = vrot.slane %v3191, 5
      %v3194 = vsel %vm1133, %v3189, %v3193
      %v3196 = vshrl.u32 %v2916, 16
      %v3198 = vrot.slane %v3196, 4
      %v3199 = vshll.u32 %v2916, 16
      %v3201 = vrot.slane %v3199, 5
      %v3202 = vor.u32 %v3198, %v3201
      %v3203 = vrot.slane %v3202, 4
      %v3205 = vshll.u32 %v2917, 16
      %v3207 = vrot.slane %v3205, 5
      %v3208 = vsel %vm1133, %v3203, %v3207
      %v3209 = vshrl.u32 %v2917, 16
      %v3211 = vrot.slane %v3209, 4
      %v3212 = vor.u32 %v3211, %v3207
      %v3213 = vrot.slane %v3212, 4
      %v3215 = vshll.u32 %v2918, 16
      %v3217 = vrot.slane %v3215, 5
      %v3218 = vsel %vm1133, %v3213, %v3217
      %v3220 = vshrl.u32 %v2919, 16
      %v3222 = vrot.slane %v3220, 4
      %v3223 = vshll.u32 %v2919, 16
      %v3225 = vrot.slane %v3223, 5
      %v3226 = vor.u32 %v3222, %v3225
      %v3227 = vrot.slane %v3226, 4
      %v3229 = vshll.u32 %v2920, 16
      %v3231 = vrot.slane %v3229, 5
      %v3232 = vsel %vm1133, %v3227, %v3231
      %v3233 = vshrl.u32 %v2920, 16
      %v3235 = vrot.slane %v3233, 4
      %v3236 = vor.u32 %v3235, %v3231
      %v3237 = vrot.slane %v3236, 4
      %v3239 = vshll.u32 %v2921, 16
      %v3241 = vrot.slane %v3239, 5
      %v3242 = vsel %vm1133, %v3237, %v3241
      %v3244 = vshrl.u32 %v2922, 16
      %v3246 = vrot.slane %v3244, 4
      %v3247 = vshll.u32 %v2922, 16
      %v3249 = vrot.slane %v3247, 5
      %v3250 = vor.u32 %v3246, %v3249
      %v3251 = vrot.slane %v3250, 4
      %v3253 = vshll.u32 %v2923, 16
      %v3255 = vrot.slane %v3253, 5
      %v3256 = vsel %vm1133, %v3251, %v3255
      %v3257 = vshrl.u32 %v2923, 16
      %v3259 = vrot.slane %v3257, 4
      %v3260 = vor.u32 %v3259, %v3255
      %v3261 = vrot.slane %v3260, 4
      %v3263 = vshll.u32 %v2924, 16
      %v3265 = vrot.slane %v3263, 5
      %v3266 = vsel %vm1133, %v3261, %v3265
      %v3268 = vshrl.u32 %v2925, 16
      %v3270 = vrot.slane %v3268, 4
      %v3271 = vshll.u32 %v2925, 16
      %v3273 = vrot.slane %v3271, 5
      %v3274 = vor.u32 %v3270, %v3273
      %v3275 = vrot.slane %v3274, 4
      %v3277 = vshll.u32 %v2926, 16
      %v3279 = vrot.slane %v3277, 5
      %v3280 = vsel %vm1133, %v3275, %v3279
      %v3281 = vshrl.u32 %v2926, 16
      %v3283 = vrot.slane %v3281, 4
      %v3284 = vor.u32 %v3283, %v3279
      %v3285 = vrot.slane %v3284, 4
      %v3287 = vshll.u32 %v2927, 16
      %v3289 = vrot.slane %v3287, 5
      %v3290 = vsel %vm1133, %v3285, %v3289
      %v3292 = vshrl.u32 %v2928, 16
      %v3294 = vrot.slane %v3292, 4
      %v3295 = vshll.u32 %v2928, 16
      %v3297 = vrot.slane %v3295, 5
      %v3298 = vor.u32 %v3294, %v3297
      %v3299 = vrot.slane %v3298, 4
      %v3301 = vshll.u32 %v2929, 16
      %v3303 = vrot.slane %v3301, 5
      %v3304 = vsel %vm1133, %v3299, %v3303
      %v3305 = vshrl.u32 %v2929, 16
      %v3307 = vrot.slane %v3305, 4
      %v3308 = vor.u32 %v3307, %v3303
      %v3309 = vrot.slane %v3308, 4
      %v3311 = vshll.u32 %v2930, 16
      %v3313 = vrot.slane %v3311, 5
      %v3314 = vsel %vm1133, %v3309, %v3313
      %v3315 = vunpack.c.l.b16 %v2944
      %v3316 = vunpack.c.l.b16 %v2954
      %v3317 = vunpack.c.l.b16 %v2968
      %v3318 = vunpack.c.l.b16 %v2978
      %v3319 = vunpack.c.l.b16 %v2992
      %v3320 = vunpack.c.l.b16 %v3002
      %v3321 = vunpack.c.l.b16 %v3016
      %v3322 = vunpack.c.l.b16 %v3026
      %v3323 = vunpack.c.l.b16 %v3040
      %v3324 = vunpack.c.l.b16 %v3050
      %v3325 = vunpack.c.l.b16 %v3064
      %v3326 = vunpack.c.l.b16 %v3074
      %v3327 = vunpack.c.l.b16 %v3088
      %v3328 = vunpack.c.l.b16 %v3098
      %v3329 = vunpack.c.l.b16 %v3112
      %v3330 = vunpack.c.l.b16 %v3122
      %v3331 = vunpack.c.l.b16 %v3136
      %v3332 = vunpack.c.l.b16 %v3146
      %v3333 = vunpack.c.l.b16 %v3160
      %v3334 = vunpack.c.l.b16 %v3170
      %v3335 = vunpack.c.l.b16 %v3184
      %v3336 = vunpack.c.l.b16 %v3194
      %v3337 = vunpack.c.l.b16 %v3208
      %v3338 = vunpack.c.l.b16 %v3218
      %v3339 = vunpack.c.l.b16 %v3232
      %v3340 = vunpack.c.l.b16 %v3242
      %v3341 = vunpack.c.l.b16 %v3256
      %v3342 = vunpack.c.l.b16 %v3266
      %v3343 = vunpack.c.l.b16 %v3280
      %v3344 = vunpack.c.l.b16 %v3290
      %v3345 = vunpack.c.l.b16 %v3304
      %v3346 = vunpack.c.l.b16 %v3314
      %v3347 = vpack.c.b16 %v3316, %v3315
      %v3348 = vpack.c.b16 %v3318, %v3317
      %v3349 = vpack.c.b16 %v3320, %v3319
      %v3350 = vpack.c.b16 %v3322, %v3321
      %v3351 = vpack.c.b16 %v3324, %v3323
      %v3352 = vpack.c.b16 %v3326, %v3325
      %v3353 = vpack.c.b16 %v3328, %v3327
      %v3354 = vpack.c.b16 %v3330, %v3329
      %v3355 = vpack.c.b16 %v3332, %v3331
      %v3356 = vpack.c.b16 %v3334, %v3333
      %v3357 = vpack.c.b16 %v3336, %v3335
      %v3358 = vpack.c.b16 %v3338, %v3337
      %v3359 = vpack.c.b16 %v3340, %v3339
      %v3360 = vpack.c.b16 %v3342, %v3341
      %v3361 = vpack.c.b16 %v3344, %v3343
      %v3362 = vpack.c.b16 %v3346, %v3345
      %v3364 = vsel %vm1566, %v3347, 0
      %v3367 = vsel %vm1566, %v3348, 0
      %v3370 = vsel %vm1566, %v3349, 0
      %v3373 = vsel %vm1566, %v3350, 0
      %v3376 = vsel %vm1566, %v3351, 0
      %v3379 = vsel %vm1566, %v3352, 0
      %v3382 = vsel %vm1566, %v3353, 0
      %v3385 = vsel %vm1566, %v3354, 0
      %v3388 = vsel %vm1566, %v3355, 0
      %v3391 = vsel %vm1566, %v3356, 0
      %v3394 = vsel %vm1566, %v3357, 0
      %v3397 = vsel %vm1566, %v3358, 0
      %v3400 = vsel %vm1566, %v3359, 0
      %v3403 = vsel %vm1566, %v3360, 0
      %v3406 = vsel %vm1566, %v3361, 0
      %v3409 = vsel %vm1566, %v3362, 0
      %v3412 = vsel %vm1615, %v1074, 0
      %3414 = vmatprep.subr.bf16.mxu0 0
      %3415 = vmatpush1.bf16.msra.mxu0 %v3412
      %3416 = vmatprep.subr.bf16.mxu0 0
      %3417 = vmatpush1.bf16.msra.mxu0 0
      %3418 = vmatprep.subr.bf16.mxu0 0
      %3419 = vmatpush1.bf16.msra.mxu0 0
      %3420 = vmatprep.subr.bf16.mxu0 0
      %3421 = vmatpush1.bf16.msra.mxu0 0
      %3422 = vmatprep.subr.bf16.mxu0 0
      %3423 = vmatpush1.bf16.msra.mxu0 0
      %3424 = vmatprep.subr.bf16.mxu0 0
      %3425 = vmatpush1.bf16.msra.mxu0 0
      %3426 = vmatprep.subr.bf16.mxu0 0
      %3427 = vmatpush1.bf16.msra.mxu0 0
      %3428 = vmatprep.subr.bf16.mxu0 0
      %3429 = vmatpush1.bf16.msra.mxu0 0
      %3430 = vmatprep.subr.bf16.mxu0 0
      %3431 = vmatpush1.bf16.msra.mxu0 0
      %3432 = vmatprep.subr.bf16.mxu0 0
      %3433 = vmatpush1.bf16.msra.mxu0 0
      %3434 = vmatprep.subr.bf16.mxu0 0
      %3435 = vmatpush1.bf16.msra.mxu0 0
      %3436 = vmatprep.subr.bf16.mxu0 0
      %3437 = vmatpush1.bf16.msra.mxu0 0
      %3438 = vmatprep.subr.bf16.mxu0 0
      %3439 = vmatpush1.bf16.msra.mxu0 0
      %3440 = vmatprep.subr.bf16.mxu0 0
      %3441 = vmatpush1.bf16.msra.mxu0 0
      %3442 = vmatprep.subr.bf16.mxu0 0
      %3443 = vmatpush1.bf16.msra.mxu0 0
      %3444 = vmatprep.subr.bf16.mxu0 0
      %3445 = vmatpush1.bf16.msra.mxu0 0
      %3446 = vmatprep.mubr.bf16.mxu0 0
      %3447 = vmatmul.mubr.bf16.gmra.mrb[0].mxu0 %v3364
      %v3448 = vpop.f32.mrb[0].mxu0
      %v3449 = vadd.f32 0.0, %v3448
      %v3450 = vpop.f32.mrb[0].mxu0
      %v3451 = vpop.f32.mrb[0].mxu0
      %v3452 = vadd.f32 0.0, %v3451
      %v3453 = vpop.f32.mrb[0].mxu0
      %3454 = vmatprep.mubr.bf16.mxu0 0
      %3455 = vmatmul.mubr.bf16.gmra.mrb[0].mxu0 %v3367
      %v3456 = vpop.f32.mrb[0].mxu0
      %v3457 = vadd.f32 0.0, %v3456
      %v3458 = vpop.f32.mrb[0].mxu0
      %v3459 = vpop.f32.mrb[0].mxu0
      %v3460 = vadd.f32 0.0, %v3459
      %v3461 = vpop.f32.mrb[0].mxu0
      %3462 = vmatprep.mubr.bf16.mxu0 0
      %3463 = vmatmul.mubr.bf16.gmra.mrb[0].mxu0 %v3370
      %v3464 = vpop.f32.mrb[0].mxu0
      %v3465 = vadd.f32 0.0, %v3464
      %v3466 = vpop.f32.mrb[0].mxu0
      %v3467 = vpop.f32.mrb[0].mxu0
      %v3468 = vadd.f32 0.0, %v3467
      %v3469 = vpop.f32.mrb[0].mxu0
      %3470 = vmatprep.mubr.bf16.mxu0 0
      %3471 = vmatmul.mubr.bf16.gmra.mrb[0].mxu0 %v3373
      %v3472 = vpop.f32.mrb[0].mxu0
      %v3473 = vadd.f32 0.0, %v3472
      %v3474 = vpop.f32.mrb[0].mxu0
      %v3475 = vpop.f32.mrb[0].mxu0
      %v3476 = vadd.f32 0.0, %v3475
      %v3477 = vpop.f32.mrb[0].mxu0
      %3478 = vmatprep.mubr.bf16.mxu0 0
      %3479 = vmatmul.mubr.bf16.gmra.mrb[0].mxu0 %v3376
      %v3480 = vpop.f32.mrb[0].mxu0
      %v3481 = vadd.f32 0.0, %v3480
      %v3482 = vpop.f32.mrb[0].mxu0
      %v3483 = vpop.f32.mrb[0].mxu0
      %v3484 = vadd.f32 0.0, %v3483
      %v3485 = vpop.f32.mrb[0].mxu0
      %3486 = vmatprep.mubr.bf16.mxu0 0
      %3487 = vmatmul.mubr.bf16.gmra.mrb[0].mxu0 %v3379
      %v3488 = vpop.f32.mrb[0].mxu0
      %v3489 = vadd.f32 0.0, %v3488
      %v3490 = vpop.f32.mrb[0].mxu0
      %v3491 = vpop.f32.mrb[0].mxu0
      %v3492 = vadd.f32 0.0, %v3491
      %v3493 = vpop.f32.mrb[0].mxu0
      %3494 = vmatprep.mubr.bf16.mxu0 0
      %3495 = vmatmul.mubr.bf16.gmra.mrb[0].mxu0 %v3382
      %v3496 = vpop.f32.mrb[0].mxu0
      %v3497 = vadd.f32 0.0, %v3496
      %v3498 = vpop.f32.mrb[0].mxu0
      %v3499 = vpop.f32.mrb[0].mxu0
      %v3500 = vadd.f32 0.0, %v3499
      %v3501 = vpop.f32.mrb[0].mxu0
      %3502 = vmatprep.mubr.bf16.mxu0 0
      %3503 = vmatmul.mubr.bf16.gmra.mrb[0].mxu0 %v3385
      %v3504 = vpop.f32.mrb[0].mxu0
      %v3505 = vadd.f32 0.0, %v3504
      %v3506 = vpop.f32.mrb[0].mxu0
      %v3507 = vpop.f32.mrb[0].mxu0
      %v3508 = vadd.f32 0.0, %v3507
      %v3509 = vpop.f32.mrb[0].mxu0
      %3510 = vmatprep.mubr.bf16.mxu0 0
      %3511 = vmatmul.mubr.bf16.gmra.mrb[0].mxu0 %v3388
      %v3512 = vpop.f32.mrb[0].mxu0
      %v3513 = vadd.f32 0.0, %v3512
      %v3514 = vpop.f32.mrb[0].mxu0
      %v3515 = vpop.f32.mrb[0].mxu0
      %v3516 = vadd.f32 0.0, %v3515
      %v3517 = vpop.f32.mrb[0].mxu0
      %3518 = vmatprep.mubr.bf16.mxu0 0
      %3519 = vmatmul.mubr.bf16.gmra.mrb[0].mxu0 %v3391
      %v3520 = vpop.f32.mrb[0].mxu0
      %v3521 = vadd.f32 0.0, %v3520
      %v3522 = vpop.f32.mrb[0].mxu0
      %v3523 = vpop.f32.mrb[0].mxu0
      %v3524 = vadd.f32 0.0, %v3523
      %v3525 = vpop.f32.mrb[0].mxu0
      %3526 = vmatprep.mubr.bf16.mxu0 0
      %3527 = vmatmul.mubr.bf16.gmra.mrb[0].mxu0 %v3394
      %v3528 = vpop.f32.mrb[0].mxu0
      %v3529 = vadd.f32 0.0, %v3528
      %v3530 = vpop.f32.mrb[0].mxu0
      %v3531 = vpop.f32.mrb[0].mxu0
      %v3532 = vadd.f32 0.0, %v3531
      %v3533 = vpop.f32.mrb[0].mxu0
      %3534 = vmatprep.mubr.bf16.mxu0 0
      %3535 = vmatmul.mubr.bf16.gmra.mrb[0].mxu0 %v3397
      %v3536 = vpop.f32.mrb[0].mxu0
      %v3537 = vadd.f32 0.0, %v3536
      %v3538 = vpop.f32.mrb[0].mxu0
      %v3539 = vpop.f32.mrb[0].mxu0
      %v3540 = vadd.f32 0.0, %v3539
      %v3541 = vpop.f32.mrb[0].mxu0
      %3542 = vmatprep.mubr.bf16.mxu0 0
      %3543 = vmatmul.mubr.bf16.gmra.mrb[0].mxu0 %v3400
      %v3544 = vpop.f32.mrb[0].mxu0
      %v3545 = vadd.f32 0.0, %v3544
      %v3546 = vpop.f32.mrb[0].mxu0
      %v3547 = vpop.f32.mrb[0].mxu0
      %v3548 = vadd.f32 0.0, %v3547
      %v3549 = vpop.f32.mrb[0].mxu0
      %3550 = vmatprep.mubr.bf16.mxu0 0
      %3551 = vmatmul.mubr.bf16.gmra.mrb[0].mxu0 %v3403
      %v3552 = vpop.f32.mrb[0].mxu0
      %v3553 = vadd.f32 0.0, %v3552
      %v3554 = vpop.f32.mrb[0].mxu0
      %v3555 = vpop.f32.mrb[0].mxu0
      %v3556 = vadd.f32 0.0, %v3555
      %v3557 = vpop.f32.mrb[0].mxu0
      %3558 = vmatprep.mubr.bf16.mxu0 0
      %3559 = vmatmul.mubr.bf16.gmra.mrb[0].mxu0 %v3406
      %v3560 = vpop.f32.mrb[0].mxu0
      %v3561 = vadd.f32 0.0, %v3560
      %v3562 = vpop.f32.mrb[0].mxu0
      %v3563 = vpop.f32.mrb[0].mxu0
      %v3564 = vadd.f32 0.0, %v3563
      %v3565 = vpop.f32.mrb[0].mxu0
      %3566 = vmatprep.mubr.bf16.mxu0 0
      %3567 = vmatmul.mubr.bf16.gmra.mrb[0].mxu0 %v3409
      %v3568 = vpop.f32.mrb[0].mxu0
      %v3569 = vadd.f32 0.0, %v3568
      %v3570 = vpop.f32.mrb[0].mxu0
      %v3571 = vpop.f32.mrb[0].mxu0
      %v3572 = vadd.f32 0.0, %v3571
      %v3573 = vpop.f32.mrb[0].mxu0
      %3574 = vdwg.mxu0
      %v3575 = vadd.f32 %v2851, %v3449
      %v3576 = vadd.f32 %v2852, %v3452
      %v3577 = vadd.f32 %v2853, %v3457
      %v3578 = vadd.f32 %v2854, %v3460
      %v3579 = vadd.f32 %v2855, %v3465
      %v3580 = vadd.f32 %v2856, %v3468
      %v3581 = vadd.f32 %v2857, %v3473
      %v3582 = vadd.f32 %v2858, %v3476
      %v3583 = vadd.f32 %v2859, %v3481
      %v3584 = vadd.f32 %v2860, %v3484
      %v3585 = vadd.f32 %v2861, %v3489
      %v3586 = vadd.f32 %v2862, %v3492
      %v3587 = vadd.f32 %v2863, %v3497
      %v3588 = vadd.f32 %v2864, %v3500
      %v3589 = vadd.f32 %v2865, %v3505
      %v3590 = vadd.f32 %v2866, %v3508
      %v3591 = vadd.f32 %v2867, %v3513
      %v3592 = vadd.f32 %v2868, %v3516
      %v3593 = vadd.f32 %v2869, %v3521
      %v3594 = vadd.f32 %v2870, %v3524
      %v3595 = vadd.f32 %v2871, %v3529
      %v3596 = vadd.f32 %v2872, %v3532
      %v3597 = vadd.f32 %v2873, %v3537
      %v3598 = vadd.f32 %v2874, %v3540
      %v3599 = vadd.f32 %v2875, %v3545
      %v3600 = vadd.f32 %v2876, %v3548
      %v3601 = vadd.f32 %v2877, %v3553
      %v3602 = vadd.f32 %v2878, %v3556
      %v3603 = vadd.f32 %v2879, %v3561
      %v3604 = vadd.f32 %v2880, %v3564
      %v3605 = vadd.f32 %v2881, %v3569
      %v3606 = vadd.f32 %v2882, %v3572
      %v3607 = vld [vmem:[%s951] sm:$0xe]
      %v3608 = vld [vmem:[%s951 + $0xc] sm:$0xe]
      %v3609 = vld [vmem:[%s951 + $0x18] sm:$0xe]
      %v3610 = vld [vmem:[%s951 + $0x24] sm:$0xe]
      %v3611 = vld [vmem:[%s951 + $0x30] sm:$0xe]
      %v3612 = vld [vmem:[%s951 + $0x3c] sm:$0xe]
      %v3613 = vld [vmem:[%s951 + $0x48] sm:$0xe]
      %v3614 = vld [vmem:[%s951 + $0x54] sm:$0xe]
      %v3615 = vld [vmem:[%s951 + $0x60] sm:$0xe]
      %v3616 = vld [vmem:[%s951 + $0x6c] sm:$0xe]
      %v3617 = vld [vmem:[%s951 + $0x78] sm:$0xe]
      %v3618 = vld [vmem:[%s951 + $0x84] sm:$0xe]
      %v3619 = vld [vmem:[%s951 + $0x90] sm:$0xe]
      %v3620 = vld [vmem:[%s951 + $0x9c] sm:$0xe]
      %v3621 = vld [vmem:[%s951 + $0xa8] sm:$0xe]
      %v3622 = vld [vmem:[%s951 + $0xb4] sm:$0xe]
      %v3671 = vrot.slane %v3607, 5
      %v3672 = vrot.slane %v3671, 4
      %v3673 = vrot.slane %v2884, 5
      %v3674 = vsel %vm2122, %v3672, %v3673
      %v3675 = vrot.slane %v3673, 4
      %v3676 = vrot.slane %v2885, 5
      %v3677 = vsel %vm2122, %v3675, %v3676
      %v3678 = vrot.slane %v3608, 5
      %v3679 = vrot.slane %v3678, 4
      %v3680 = vrot.slane %v2887, 5
      %v3681 = vsel %vm2122, %v3679, %v3680
      %v3682 = vrot.slane %v3680, 4
      %v3683 = vrot.slane %v2888, 5
      %v3684 = vsel %vm2122, %v3682, %v3683
      %v3685 = vrot.slane %v3609, 5
      %v3686 = vrot.slane %v3685, 4
      %v3687 = vrot.slane %v2890, 5
      %v3688 = vsel %vm2122, %v3686, %v3687
      %v3689 = vrot.slane %v3687, 4
      %v3690 = vrot.slane %v2891, 5
      %v3691 = vsel %vm2122, %v3689, %v3690
      %v3692 = vrot.slane %v3610, 5
      %v3693 = vrot.slane %v3692, 4
      %v3694 = vrot.slane %v2893, 5
      %v3695 = vsel %vm2122, %v3693, %v3694
      %v3696 = vrot.slane %v3694, 4
      %v3697 = vrot.slane %v2894, 5
      %v3698 = vsel %vm2122, %v3696, %v3697
      %v3699 = vrot.slane %v3611, 5
      %v3700 = vrot.slane %v3699, 4
      %v3701 = vrot.slane %v2896, 5
      %v3702 = vsel %vm2122, %v3700, %v3701
      %v3703 = vrot.slane %v3701, 4
      %v3704 = vrot.slane %v2897, 5
      %v3705 = vsel %vm2122, %v3703, %v3704
      %v3706 = vrot.slane %v3612, 5
      %v3707 = vrot.slane %v3706, 4
      %v3708 = vrot.slane %v2899, 5
      %v3709 = vsel %vm2122, %v3707, %v3708
      %v3710 = vrot.slane %v3708, 4
      %v3711 = vrot.slane %v2900, 5
      %v3712 = vsel %vm2122, %v3710, %v3711
      %v3713 = vrot.slane %v3613, 5
      %v3714 = vrot.slane %v3713, 4
      %v3715 = vrot.slane %v2902, 5
      %v3716 = vsel %vm2122, %v3714, %v3715
      %v3717 = vrot.slane %v3715, 4
      %v3718 = vrot.slane %v2903, 5
      %v3719 = vsel %vm2122, %v3717, %v3718
      %v3720 = vrot.slane %v3614, 5
      %v3721 = vrot.slane %v3720, 4
      %v3722 = vrot.slane %v2905, 5
      %v3723 = vsel %vm2122, %v3721, %v3722
      %v3724 = vrot.slane %v3722, 4
      %v3725 = vrot.slane %v2906, 5
      %v3726 = vsel %vm2122, %v3724, %v3725
      %v3727 = vrot.slane %v3615, 5
      %v3728 = vrot.slane %v3727, 4
      %v3729 = vrot.slane %v2908, 5
      %v3730 = vsel %vm2122, %v3728, %v3729
      %v3731 = vrot.slane %v3729, 4
      %v3732 = vrot.slane %v2909, 5
      %v3733 = vsel %vm2122, %v3731, %v3732
      %v3734 = vrot.slane %v3616, 5
      %v3735 = vrot.slane %v3734, 4
      %v3736 = vrot.slane %v2911, 5
      %v3737 = vsel %vm2122, %v3735, %v3736
      %v3738 = vrot.slane %v3736, 4
      %v3739 = vrot.slane %v2912, 5
      %v3740 = vsel %vm2122, %v3738, %v3739
      %v3741 = vrot.slane %v3617, 5
      %v3742 = vrot.slane %v3741, 4
      %v3743 = vrot.slane %v2914, 5
      %v3744 = vsel %vm2122, %v3742, %v3743
      %v3745 = vrot.slane %v3743, 4
      %v3746 = vrot.slane %v2915, 5
      %v3747 = vsel %vm2122, %v3745, %v3746
      %v3748 = vrot.slane %v3618, 5
      %v3749 = vrot.slane %v3748, 4
      %v3750 = vrot.slane %v2917, 5
      %v3751 = vsel %vm2122, %v3749, %v3750
      %v3752 = vrot.slane %v3750, 4
      %v3753 = vrot.slane %v2918, 5
      %v3754 = vsel %vm2122, %v3752, %v3753
      %v3755 = vrot.slane %v3619, 5
      %v3756 = vrot.slane %v3755, 4
      %v3757 = vrot.slane %v2920, 5
      %v3758 = vsel %vm2122, %v3756, %v3757
      %v3759 = vrot.slane %v3757, 4
      %v3760 = vrot.slane %v2921, 5
      %v3761 = vsel %vm2122, %v3759, %v3760
      %v3762 = vrot.slane %v3620, 5
      %v3763 = vrot.slane %v3762, 4
      %v3764 = vrot.slane %v2923, 5
      %v3765 = vsel %vm2122, %v3763, %v3764
      %v3766 = vrot.slane %v3764, 4
      %v3767 = vrot.slane %v2924, 5
      %v3768 = vsel %vm2122, %v3766, %v3767
      %v3769 = vrot.slane %v3621, 5
      %v3770 = vrot.slane %v3769, 4
      %v3771 = vrot.slane %v2926, 5
      %v3772 = vsel %vm2122, %v3770, %v3771
      %v3773 = vrot.slane %v3771, 4
      %v3774 = vrot.slane %v2927, 5
      %v3775 = vsel %vm2122, %v3773, %v3774
      %v3776 = vrot.slane %v3622, 5
      %v3777 = vrot.slane %v3776, 4
      %v3778 = vrot.slane %v2929, 5
      %v3779 = vsel %vm2122, %v3777, %v3778
      %v3780 = vrot.slane %v3778, 4
      %v3781 = vrot.slane %v2930, 5
      %v3782 = vsel %vm2122, %v3780, %v3781
      %v3783 = vunpack.c.l.b16 %v3674
      %v3784 = vunpack.c.l.b16 %v3677
      %v3785 = vunpack.c.l.b16 %v3681
      %v3786 = vunpack.c.l.b16 %v3684
      %v3787 = vunpack.c.l.b16 %v3688
      %v3788 = vunpack.c.l.b16 %v3691
      %v3789 = vunpack.c.l.b16 %v3695
      %v3790 = vunpack.c.l.b16 %v3698
      %v3791 = vunpack.c.l.b16 %v3702
      %v3792 = vunpack.c.l.b16 %v3705
      %v3793 = vunpack.c.l.b16 %v3709
      %v3794 = vunpack.c.l.b16 %v3712
      %v3795 = vunpack.c.l.b16 %v3716
      %v3796 = vunpack.c.l.b16 %v3719
      %v3797 = vunpack.c.l.b16 %v3723
      %v3798 = vunpack.c.l.b16 %v3726
      %v3799 = vunpack.c.l.b16 %v3730
      %v3800 = vunpack.c.l.b16 %v3733
      %v3801 = vunpack.c.l.b16 %v3737
      %v3802 = vunpack.c.l.b16 %v3740
      %v3803 = vunpack.c.l.b16 %v3744
      %v3804 = vunpack.c.l.b16 %v3747
      %v3805 = vunpack.c.l.b16 %v3751
      %v3806 = vunpack.c.l.b16 %v3754
      %v3807 = vunpack.c.l.b16 %v3758
      %v3808 = vunpack.c.l.b16 %v3761
      %v3809 = vunpack.c.l.b16 %v3765
      %v3810 = vunpack.c.l.b16 %v3768
      %v3811 = vunpack.c.l.b16 %v3772
      %v3812 = vunpack.c.l.b16 %v3775
      %v3813 = vunpack.c.l.b16 %v3779
      %v3814 = vunpack.c.l.b16 %v3782
      %v3815 = vpack.c.b16 %v3784, %v3783
      %v3816 = vpack.c.b16 %v3786, %v3785
      %v3817 = vpack.c.b16 %v3788, %v3787
      %v3818 = vpack.c.b16 %v3790, %v3789
      %v3819 = vpack.c.b16 %v3792, %v3791
      %v3820 = vpack.c.b16 %v3794, %v3793
      %v3821 = vpack.c.b16 %v3796, %v3795
      %v3822 = vpack.c.b16 %v3798, %v3797
      %v3823 = vpack.c.b16 %v3800, %v3799
      %v3824 = vpack.c.b16 %v3802, %v3801
      %v3825 = vpack.c.b16 %v3804, %v3803
      %v3826 = vpack.c.b16 %v3806, %v3805
      %v3827 = vpack.c.b16 %v3808, %v3807
      %v3828 = vpack.c.b16 %v3810, %v3809
      %v3829 = vpack.c.b16 %v3812, %v3811
      %v3830 = vpack.c.b16 %v3814, %v3813
      %v3832 = vsel %vm1566, %v3815, 0
      %v3835 = vsel %vm1566, %v3816, 0
      %v3838 = vsel %vm1566, %v3817, 0
      %v3841 = vsel %vm1566, %v3818, 0
      %v3844 = vsel %vm1566, %v3819, 0
      %v3847 = vsel %vm1566, %v3820, 0
      %v3850 = vsel %vm1566, %v3821, 0
      %v3853 = vsel %vm1566, %v3822, 0
      %v3856 = vsel %vm1566, %v3823, 0
      %v3859 = vsel %vm1566, %v3824, 0
      %v3862 = vsel %vm1566, %v3825, 0
      %v3865 = vsel %vm1566, %v3826, 0
      %v3868 = vsel %vm1566, %v3827, 0
      %v3871 = vsel %vm1566, %v3828, 0
      %v3874 = vsel %vm1566, %v3829, 0
      %v3877 = vsel %vm1566, %v3830, 0
      %v3880 = vsel %vm1615, %v1076, 0
      %3882 = vmatprep.subr.bf16.mxu0 0
      %3883 = vmatpush1.bf16.msra.mxu0 %v3880
      %3884 = vmatprep.subr.bf16.mxu0 0
      %3885 = vmatpush1.bf16.msra.mxu0 0
      %3886 = vmatprep.subr.bf16.mxu0 0
      %3887 = vmatpush1.bf16.msra.mxu0 0
      %3888 = vmatprep.subr.bf16.mxu0 0
      %3889 = vmatpush1.bf16.msra.mxu0 0
      %3890 = vmatprep.subr.bf16.mxu0 0
      %3891 = vmatpush1.bf16.msra.mxu0 0
      %3892 = vmatprep.subr.bf16.mxu0 0
      %3893 = vmatpush1.bf16.msra.mxu0 0
      %3894 = vmatprep.subr.bf16.mxu0 0
      %3895 = vmatpush1.bf16.msra.mxu0 0
      %3896 = vmatprep.subr.bf16.mxu0 0
      %3897 = vmatpush1.bf16.msra.mxu0 0
      %3898 = vmatprep.subr.bf16.mxu0 0
      %3899 = vmatpush1.bf16.msra.mxu0 0
      %3900 = vmatprep.subr.bf16.mxu0 0
      %3901 = vmatpush1.bf16.msra.mxu0 0
      %3902 = vmatprep.subr.bf16.mxu0 0
      %3903 = vmatpush1.bf16.msra.mxu0 0
      %3904 = vmatprep.subr.bf16.mxu0 0
      %3905 = vmatpush1.bf16.msra.mxu0 0
      %3906 = vmatprep.subr.bf16.mxu0 0
      %3907 = vmatpush1.bf16.msra.mxu0 0
      %3908 = vmatprep.subr.bf16.mxu0 0
      %3909 = vmatpush1.bf16.msra.mxu0 0
      %3910 = vmatprep.subr.bf16.mxu0 0
      %3911 = vmatpush1.bf16.msra.mxu0 0
      %3912 = vmatprep.subr.bf16.mxu0 0
      %3913 = vmatpush1.bf16.msra.mxu0 0
      %3914 = vmatprep.mubr.bf16.mxu0 0
      %3915 = vmatmul.mubr.bf16.gmra.mrb[0].mxu0 %v3832
      %v3916 = vpop.f32.mrb[0].mxu0
      %v3917 = vadd.f32 0.0, %v3916
      %v3918 = vpop.f32.mrb[0].mxu0
      %v3919 = vpop.f32.mrb[0].mxu0
      %v3920 = vadd.f32 0.0, %v3919
      %v3921 = vpop.f32.mrb[0].mxu0
      %3922 = vmatprep.mubr.bf16.mxu0 0
      %3923 = vmatmul.mubr.bf16.gmra.mrb[0].mxu0 %v3835
      %v3924 = vpop.f32.mrb[0].mxu0
      %v3925 = vadd.f32 0.0, %v3924
      %v3926 = vpop.f32.mrb[0].mxu0
      %v3927 = vpop.f32.mrb[0].mxu0
      %v3928 = vadd.f32 0.0, %v3927
      %v3929 = vpop.f32.mrb[0].mxu0
      %3930 = vmatprep.mubr.bf16.mxu0 0
      %3931 = vmatmul.mubr.bf16.gmra.mrb[0].mxu0 %v3838
      %v3932 = vpop.f32.mrb[0].mxu0
      %v3933 = vadd.f32 0.0, %v3932
      %v3934 = vpop.f32.mrb[0].mxu0
      %v3935 = vpop.f32.mrb[0].mxu0
      %v3936 = vadd.f32 0.0, %v3935
      %v3937 = vpop.f32.mrb[0].mxu0
      %3938 = vmatprep.mubr.bf16.mxu0 0
      %3939 = vmatmul.mubr.bf16.gmra.mrb[0].mxu0 %v3841
      %v3940 = vpop.f32.mrb[0].mxu0
      %v3941 = vadd.f32 0.0, %v3940
      %v3942 = vpop.f32.mrb[0].mxu0
      %v3943 = vpop.f32.mrb[0].mxu0
      %v3944 = vadd.f32 0.0, %v3943
      %v3945 = vpop.f32.mrb[0].mxu0
      %3946 = vmatprep.mubr.bf16.mxu0 0
      %3947 = vmatmul.mubr.bf16.gmra.mrb[0].mxu0 %v3844
      %v3948 = vpop.f32.mrb[0].mxu0
      %v3949 = vadd.f32 0.0, %v3948
      %v3950 = vpop.f32.mrb[0].mxu0
      %v3951 = vpop.f32.mrb[0].mxu0
      %v3952 = vadd.f32 0.0, %v3951
      %v3953 = vpop.f32.mrb[0].mxu0
      %3954 = vmatprep.mubr.bf16.mxu0 0
      %3955 = vmatmul.mubr.bf16.gmra.mrb[0].mxu0 %v3847
      %v3956 = vpop.f32.mrb[0].mxu0
      %v3957 = vadd.f32 0.0, %v3956
      %v3958 = vpop.f32.mrb[0].mxu0
      %v3959 = vpop.f32.mrb[0].mxu0
      %v3960 = vadd.f32 0.0, %v3959
      %v3961 = vpop.f32.mrb[0].mxu0
      %3962 = vmatprep.mubr.bf16.mxu0 0
      %3963 = vmatmul.mubr.bf16.gmra.mrb[0].mxu0 %v3850
      %v3964 = vpop.f32.mrb[0].mxu0
      %v3965 = vadd.f32 0.0, %v3964
      %v3966 = vpop.f32.mrb[0].mxu0
      %v3967 = vpop.f32.mrb[0].mxu0
      %v3968 = vadd.f32 0.0, %v3967
      %v3969 = vpop.f32.mrb[0].mxu0
      %3970 = vmatprep.mubr.bf16.mxu0 0
      %3971 = vmatmul.mubr.bf16.gmra.mrb[0].mxu0 %v3853
      %v3972 = vpop.f32.mrb[0].mxu0
      %v3973 = vadd.f32 0.0, %v3972
      %v3974 = vpop.f32.mrb[0].mxu0
      %v3975 = vpop.f32.mrb[0].mxu0
      %v3976 = vadd.f32 0.0, %v3975
      %v3977 = vpop.f32.mrb[0].mxu0
      %3978 = vmatprep.mubr.bf16.mxu0 0
      %3979 = vmatmul.mubr.bf16.gmra.mrb[0].mxu0 %v3856
      %v3980 = vpop.f32.mrb[0].mxu0
      %v3981 = vadd.f32 0.0, %v3980
      %v3982 = vpop.f32.mrb[0].mxu0
      %v3983 = vpop.f32.mrb[0].mxu0
      %v3984 = vadd.f32 0.0, %v3983
      %v3985 = vpop.f32.mrb[0].mxu0
      %3986 = vmatprep.mubr.bf16.mxu0 0
      %3987 = vmatmul.mubr.bf16.gmra.mrb[0].mxu0 %v3859
      %v3988 = vpop.f32.mrb[0].mxu0
      %v3989 = vadd.f32 0.0, %v3988
      %v3990 = vpop.f32.mrb[0].mxu0
      %v3991 = vpop.f32.mrb[0].mxu0
      %v3992 = vadd.f32 0.0, %v3991
      %v3993 = vpop.f32.mrb[0].mxu0
      %3994 = vmatprep.mubr.bf16.mxu0 0
      %3995 = vmatmul.mubr.bf16.gmra.mrb[0].mxu0 %v3862
      %v3996 = vpop.f32.mrb[0].mxu0
      %v3997 = vadd.f32 0.0, %v3996
      %v3998 = vpop.f32.mrb[0].mxu0
      %v3999 = vpop.f32.mrb[0].mxu0
      %v4000 = vadd.f32 0.0, %v3999
      %v4001 = vpop.f32.mrb[0].mxu0
      %4002 = vmatprep.mubr.bf16.mxu0 0
      %4003 = vmatmul.mubr.bf16.gmra.mrb[0].mxu0 %v3865
      %v4004 = vpop.f32.mrb[0].mxu0
      %v4005 = vadd.f32 0.0, %v4004
      %v4006 = vpop.f32.mrb[0].mxu0
      %v4007 = vpop.f32.mrb[0].mxu0
      %v4008 = vadd.f32 0.0, %v4007
      %v4009 = vpop.f32.mrb[0].mxu0
      %4010 = vmatprep.mubr.bf16.mxu0 0
      %4011 = vmatmul.mubr.bf16.gmra.mrb[0].mxu0 %v3868
      %v4012 = vpop.f32.mrb[0].mxu0
      %v4013 = vadd.f32 0.0, %v4012
      %v4014 = vpop.f32.mrb[0].mxu0
      %v4015 = vpop.f32.mrb[0].mxu0
      %v4016 = vadd.f32 0.0, %v4015
      %v4017 = vpop.f32.mrb[0].mxu0
      %4018 = vmatprep.mubr.bf16.mxu0 0
      %4019 = vmatmul.mubr.bf16.gmra.mrb[0].mxu0 %v3871
      %v4020 = vpop.f32.mrb[0].mxu0
      %v4021 = vadd.f32 0.0, %v4020
      %v4022 = vpop.f32.mrb[0].mxu0
      %v4023 = vpop.f32.mrb[0].mxu0
      %v4024 = vadd.f32 0.0, %v4023
      %v4025 = vpop.f32.mrb[0].mxu0
      %4026 = vmatprep.mubr.bf16.mxu0 0
      %4027 = vmatmul.mubr.bf16.gmra.mrb[0].mxu0 %v3874
      %v4028 = vpop.f32.mrb[0].mxu0
      %v4029 = vadd.f32 0.0, %v4028
      %v4030 = vpop.f32.mrb[0].mxu0
      %v4031 = vpop.f32.mrb[0].mxu0
      %v4032 = vadd.f32 0.0, %v4031
      %v4033 = vpop.f32.mrb[0].mxu0
      %4034 = vmatprep.mubr.bf16.mxu0 0
      %4035 = vmatmul.mubr.bf16.gmra.mrb[0].mxu0 %v3877
      %v4036 = vpop.f32.mrb[0].mxu0
      %v4037 = vadd.f32 0.0, %v4036
      %v4038 = vpop.f32.mrb[0].mxu0
      %v4039 = vpop.f32.mrb[0].mxu0
      %v4040 = vadd.f32 0.0, %v4039
      %v4041 = vpop.f32.mrb[0].mxu0
      %4042 = vdwg.mxu0
      %v4043 = vadd.f32 %v3575, %v3917
      %v4044 = vadd.f32 %v3576, %v3920
      %v4045 = vadd.f32 %v3577, %v3925
      %v4046 = vadd.f32 %v3578, %v3928
      %v4047 = vadd.f32 %v3579, %v3933
      %v4048 = vadd.f32 %v3580, %v3936
      %v4049 = vadd.f32 %v3581, %v3941
      %v4050 = vadd.f32 %v3582, %v3944
      %v4051 = vadd.f32 %v3583, %v3949
      %v4052 = vadd.f32 %v3584, %v3952
      %v4053 = vadd.f32 %v3585, %v3957
      %v4054 = vadd.f32 %v3586, %v3960
      %v4055 = vadd.f32 %v3587, %v3965
      %v4056 = vadd.f32 %v3588, %v3968
      %v4057 = vadd.f32 %v3589, %v3973
      %v4058 = vadd.f32 %v3590, %v3976
      %v4059 = vadd.f32 %v3591, %v3981
      %v4060 = vadd.f32 %v3592, %v3984
      %v4061 = vadd.f32 %v3593, %v3989
      %v4062 = vadd.f32 %v3594, %v3992
      %v4063 = vadd.f32 %v3595, %v3997
      %v4064 = vadd.f32 %v3596, %v4000
      %v4065 = vadd.f32 %v3597, %v4005
      %v4066 = vadd.f32 %v3598, %v4008
      %v4067 = vadd.f32 %v3599, %v4013
      %v4068 = vadd.f32 %v3600, %v4016
      %v4069 = vadd.f32 %v3601, %v4021
      %v4070 = vadd.f32 %v3602, %v4024
      %v4071 = vadd.f32 %v3603, %v4029
      %v4072 = vadd.f32 %v3604, %v4032
      %v4073 = vadd.f32 %v3605, %v4037
      %v4074 = vadd.f32 %v3606, %v4040
      %s4075 = scalar_lea.vmem [#allocation2], 24
      %v4076 = vld [vmem:[%s4075] sm:$0xf]
      %v4077 = vld [vmem:[%s4075 + $0x4] sm:$0xf]
      %v4078 = vld [vmem:[%s4075 + $0xc] sm:$0xf]
      %v4079 = vld [vmem:[%s4075 + $0x10] sm:$0xf]
      %v4080 = vld [vmem:[%s4075 + $0x18] sm:$0xf]
      %v4081 = vld [vmem:[%s4075 + $0x1c] sm:$0xf]
      %v4082 = vld [vmem:[%s4075 + $0x24] sm:$0xf]
      %v4083 = vld [vmem:[%s4075 + $0x28] sm:$0xf]
      %v4084 = vld [vmem:[%s4075 + $0x30] sm:$0xf]
      %v4085 = vld [vmem:[%s4075 + $0x34] sm:$0xf]
      %v4086 = vld [vmem:[%s4075 + $0x3c] sm:$0xf]
      %v4087 = vld [vmem:[%s4075 + $0x40] sm:$0xf]
      %v4088 = vld [vmem:[%s4075 + $0x48] sm:$0xf]
      %v4089 = vld [vmem:[%s4075 + $0x4c] sm:$0xf]
      %v4090 = vld [vmem:[%s4075 + $0x54] sm:$0xf]
      %v4091 = vld [vmem:[%s4075 + $0x58] sm:$0xf]
      %v4092 = vld [vmem:[%s4075 + $0x60] sm:$0xf]
      %v4093 = vld [vmem:[%s4075 + $0x64] sm:$0xf]
      %v4094 = vld [vmem:[%s4075 + $0x6c] sm:$0xf]
      %v4095 = vld [vmem:[%s4075 + $0x70] sm:$0xf]
      %v4096 = vld [vmem:[%s4075 + $0x78] sm:$0xf]
      %v4097 = vld [vmem:[%s4075 + $0x7c] sm:$0xf]
      %v4098 = vld [vmem:[%s4075 + $0x84] sm:$0xf]
      %v4099 = vld [vmem:[%s4075 + $0x88] sm:$0xf]
      %v4100 = vld [vmem:[%s4075 + $0x90] sm:$0xf]
      %v4101 = vld [vmem:[%s4075 + $0x94] sm:$0xf]
      %v4102 = vld [vmem:[%s4075 + $0x9c] sm:$0xf]
      %v4103 = vld [vmem:[%s4075 + $0xa0] sm:$0xf]
      %v4104 = vld [vmem:[%s4075 + $0xa8] sm:$0xf]
      %v4105 = vld [vmem:[%s4075 + $0xac] sm:$0xf]
      %v4106 = vld [vmem:[%s4075 + $0xb4] sm:$0xf]
      %v4107 = vld [vmem:[%s4075 + $0xb8] sm:$0xf]
      %v4140 = vunpack.c.l.b16 %v4076
      %v4141 = vunpack.c.l.b16 %v4077
      %v4142 = vunpack.c.l.b16 %v4078
      %v4143 = vunpack.c.l.b16 %v4079
      %v4144 = vunpack.c.l.b16 %v4080
      %v4145 = vunpack.c.l.b16 %v4081
      %v4146 = vunpack.c.l.b16 %v4082
      %v4147 = vunpack.c.l.b16 %v4083
      %v4148 = vunpack.c.l.b16 %v4084
      %v4149 = vunpack.c.l.b16 %v4085
      %v4150 = vunpack.c.l.b16 %v4086
      %v4151 = vunpack.c.l.b16 %v4087
      %v4152 = vunpack.c.l.b16 %v4088
      %v4153 = vunpack.c.l.b16 %v4089
      %v4154 = vunpack.c.l.b16 %v4090
      %v4155 = vunpack.c.l.b16 %v4091
      %v4156 = vunpack.c.l.b16 %v4092
      %v4157 = vunpack.c.l.b16 %v4093
      %v4158 = vunpack.c.l.b16 %v4094
      %v4159 = vunpack.c.l.b16 %v4095
      %v4160 = vunpack.c.l.b16 %v4096
      %v4161 = vunpack.c.l.b16 %v4097
      %v4162 = vunpack.c.l.b16 %v4098
      %v4163 = vunpack.c.l.b16 %v4099
      %v4164 = vunpack.c.l.b16 %v4100
      %v4165 = vunpack.c.l.b16 %v4101
      %v4166 = vunpack.c.l.b16 %v4102
      %v4167 = vunpack.c.l.b16 %v4103
      %v4168 = vunpack.c.l.b16 %v4104
      %v4169 = vunpack.c.l.b16 %v4105
      %v4170 = vunpack.c.l.b16 %v4106
      %v4171 = vunpack.c.l.b16 %v4107
      %v4172 = vpack.c.b16 %v4141, %v4140
      %v4173 = vpack.c.b16 %v4143, %v4142
      %v4174 = vpack.c.b16 %v4145, %v4144
      %v4175 = vpack.c.b16 %v4147, %v4146
      %v4176 = vpack.c.b16 %v4149, %v4148
      %v4177 = vpack.c.b16 %v4151, %v4150
      %v4178 = vpack.c.b16 %v4153, %v4152
      %v4179 = vpack.c.b16 %v4155, %v4154
      %v4180 = vpack.c.b16 %v4157, %v4156
      %v4181 = vpack.c.b16 %v4159, %v4158
      %v4182 = vpack.c.b16 %v4161, %v4160
      %v4183 = vpack.c.b16 %v4163, %v4162
      %v4184 = vpack.c.b16 %v4165, %v4164
      %v4185 = vpack.c.b16 %v4167, %v4166
      %v4186 = vpack.c.b16 %v4169, %v4168
      %v4187 = vpack.c.b16 %v4171, %v4170
      %v4189 = vsel %vm1566, %v4172, 0
      %v4192 = vsel %vm1566, %v4173, 0
      %v4195 = vsel %vm1566, %v4174, 0
      %v4198 = vsel %vm1566, %v4175, 0
      %v4201 = vsel %vm1566, %v4176, 0
      %v4204 = vsel %vm1566, %v4177, 0
      %v4207 = vsel %vm1566, %v4178, 0
      %v4210 = vsel %vm1566, %v4179, 0
      %v4213 = vsel %vm1566, %v4180, 0
      %v4216 = vsel %vm1566, %v4181, 0
      %v4219 = vsel %vm1566, %v4182, 0
      %v4222 = vsel %vm1566, %v4183, 0
      %v4225 = vsel %vm1566, %v4184, 0
      %v4228 = vsel %vm1566, %v4185, 0
      %v4231 = vsel %vm1566, %v4186, 0
      %v4234 = vsel %vm1566, %v4187, 0
      %v4237 = vsel %vm1615, %v1078, 0
      %4239 = vmatprep.subr.bf16.mxu0 0
      %4240 = vmatpush1.bf16.msra.mxu0 %v4237
      %4241 = vmatprep.subr.bf16.mxu0 0
      %4242 = vmatpush1.bf16.msra.mxu0 0
      %4243 = vmatprep.subr.bf16.mxu0 0
      %4244 = vmatpush1.bf16.msra.mxu0 0
      %4245 = vmatprep.subr.bf16.mxu0 0
      %4246 = vmatpush1.bf16.msra.mxu0 0
      %4247 = vmatprep.subr.bf16.mxu0 0
      %4248 = vmatpush1.bf16.msra.mxu0 0
      %4249 = vmatprep.subr.bf16.mxu0 0
      %4250 = vmatpush1.bf16.msra.mxu0 0
      %4251 = vmatprep.subr.bf16.mxu0 0
      %4252 = vmatpush1.bf16.msra.mxu0 0
      %4253 = vmatprep.subr.bf16.mxu0 0
      %4254 = vmatpush1.bf16.msra.mxu0 0
      %4255 = vmatprep.subr.bf16.mxu0 0
      %4256 = vmatpush1.bf16.msra.mxu0 0
      %4257 = vmatprep.subr.bf16.mxu0 0
      %4258 = vmatpush1.bf16.msra.mxu0 0
      %4259 = vmatprep.subr.bf16.mxu0 0
      %4260 = vmatpush1.bf16.msra.mxu0 0
      %4261 = vmatprep.subr.bf16.mxu0 0
      %4262 = vmatpush1.bf16.msra.mxu0 0
      %4263 = vmatprep.subr.bf16.mxu0 0
      %4264 = vmatpush1.bf16.msra.mxu0 0
      %4265 = vmatprep.subr.bf16.mxu0 0
      %4266 = vmatpush1.bf16.msra.mxu0 0
      %4267 = vmatprep.subr.bf16.mxu0 0
      %4268 = vmatpush1.bf16.msra.mxu0 0
      %4269 = vmatprep.subr.bf16.mxu0 0
      %4270 = vmatpush1.bf16.msra.mxu0 0
      %4271 = vmatprep.mubr.bf16.mxu0 0
      %4272 = vmatmul.mubr.bf16.gmra.mrb[0].mxu0 %v4189
      %v4273 = vpop.f32.mrb[0].mxu0
      %v4274 = vadd.f32 0.0, %v4273
      %v4275 = vpop.f32.mrb[0].mxu0
      %v4276 = vpop.f32.mrb[0].mxu0
      %v4277 = vadd.f32 0.0, %v4276
      %v4278 = vpop.f32.mrb[0].mxu0
      %4279 = vmatprep.mubr.bf16.mxu0 0
      %4280 = vmatmul.mubr.bf16.gmra.mrb[0].mxu0 %v4192
      %v4281 = vpop.f32.mrb[0].mxu0
      %v4282 = vadd.f32 0.0, %v4281
      %v4283 = vpop.f32.mrb[0].mxu0
      %v4284 = vpop.f32.mrb[0].mxu0
      %v4285 = vadd.f32 0.0, %v4284
      %v4286 = vpop.f32.mrb[0].mxu0
      %4287 = vmatprep.mubr.bf16.mxu0 0
      %4288 = vmatmul.mubr.bf16.gmra.mrb[0].mxu0 %v4195
      %v4289 = vpop.f32.mrb[0].mxu0
      %v4290 = vadd.f32 0.0, %v4289
      %v4291 = vpop.f32.mrb[0].mxu0
      %v4292 = vpop.f32.mrb[0].mxu0
      %v4293 = vadd.f32 0.0, %v4292
      %v4294 = vpop.f32.mrb[0].mxu0
      %4295 = vmatprep.mubr.bf16.mxu0 0
      %4296 = vmatmul.mubr.bf16.gmra.mrb[0].mxu0 %v4198
      %v4297 = vpop.f32.mrb[0].mxu0
      %v4298 = vadd.f32 0.0, %v4297
      %v4299 = vpop.f32.mrb[0].mxu0
      %v4300 = vpop.f32.mrb[0].mxu0
      %v4301 = vadd.f32 0.0, %v4300
      %v4302 = vpop.f32.mrb[0].mxu0
      %4303 = vmatprep.mubr.bf16.mxu0 0
      %4304 = vmatmul.mubr.bf16.gmra.mrb[0].mxu0 %v4201
      %v4305 = vpop.f32.mrb[0].mxu0
      %v4306 = vadd.f32 0.0, %v4305
      %v4307 = vpop.f32.mrb[0].mxu0
      %v4308 = vpop.f32.mrb[0].mxu0
      %v4309 = vadd.f32 0.0, %v4308
      %v4310 = vpop.f32.mrb[0].mxu0
      %4311 = vmatprep.mubr.bf16.mxu0 0
      %4312 = vmatmul.mubr.bf16.gmra.mrb[0].mxu0 %v4204
      %v4313 = vpop.f32.mrb[0].mxu0
      %v4314 = vadd.f32 0.0, %v4313
      %v4315 = vpop.f32.mrb[0].mxu0
      %v4316 = vpop.f32.mrb[0].mxu0
      %v4317 = vadd.f32 0.0, %v4316
      %v4318 = vpop.f32.mrb[0].mxu0
      %4319 = vmatprep.mubr.bf16.mxu0 0
      %4320 = vmatmul.mubr.bf16.gmra.mrb[0].mxu0 %v4207
      %v4321 = vpop.f32.mrb[0].mxu0
      %v4322 = vadd.f32 0.0, %v4321
      %v4323 = vpop.f32.mrb[0].mxu0
      %v4324 = vpop.f32.mrb[0].mxu0
      %v4325 = vadd.f32 0.0, %v4324
      %v4326 = vpop.f32.mrb[0].mxu0
      %4327 = vmatprep.mubr.bf16.mxu0 0
      %4328 = vmatmul.mubr.bf16.gmra.mrb[0].mxu0 %v4210
      %v4329 = vpop.f32.mrb[0].mxu0
      %v4330 = vadd.f32 0.0, %v4329
      %v4331 = vpop.f32.mrb[0].mxu0
      %v4332 = vpop.f32.mrb[0].mxu0
      %v4333 = vadd.f32 0.0, %v4332
      %v4334 = vpop.f32.mrb[0].mxu0
      %4335 = vmatprep.mubr.bf16.mxu0 0
      %4336 = vmatmul.mubr.bf16.gmra.mrb[0].mxu0 %v4213
      %v4337 = vpop.f32.mrb[0].mxu0
      %v4338 = vadd.f32 0.0, %v4337
      %v4339 = vpop.f32.mrb[0].mxu0
      %v4340 = vpop.f32.mrb[0].mxu0
      %v4341 = vadd.f32 0.0, %v4340
      %v4342 = vpop.f32.mrb[0].mxu0
      %4343 = vmatprep.mubr.bf16.mxu0 0
      %4344 = vmatmul.mubr.bf16.gmra.mrb[0].mxu0 %v4216
      %v4345 = vpop.f32.mrb[0].mxu0
      %v4346 = vadd.f32 0.0, %v4345
      %v4347 = vpop.f32.mrb[0].mxu0
      %v4348 = vpop.f32.mrb[0].mxu0
      %v4349 = vadd.f32 0.0, %v4348
      %v4350 = vpop.f32.mrb[0].mxu0
      %4351 = vmatprep.mubr.bf16.mxu0 0
      %4352 = vmatmul.mubr.bf16.gmra.mrb[0].mxu0 %v4219
      %v4353 = vpop.f32.mrb[0].mxu0
      %v4354 = vadd.f32 0.0, %v4353
      %v4355 = vpop.f32.mrb[0].mxu0
      %v4356 = vpop.f32.mrb[0].mxu0
      %v4357 = vadd.f32 0.0, %v4356
      %v4358 = vpop.f32.mrb[0].mxu0
      %4359 = vmatprep.mubr.bf16.mxu0 0
      %4360 = vmatmul.mubr.bf16.gmra.mrb[0].mxu0 %v4222
      %v4361 = vpop.f32.mrb[0].mxu0
      %v4362 = vadd.f32 0.0, %v4361
      %v4363 = vpop.f32.mrb[0].mxu0
      %v4364 = vpop.f32.mrb[0].mxu0
      %v4365 = vadd.f32 0.0, %v4364
      %v4366 = vpop.f32.mrb[0].mxu0
      %4367 = vmatprep.mubr.bf16.mxu0 0
      %4368 = vmatmul.mubr.bf16.gmra.mrb[0].mxu0 %v4225
      %v4369 = vpop.f32.mrb[0].mxu0
      %v4370 = vadd.f32 0.0, %v4369
      %v4371 = vpop.f32.mrb[0].mxu0
      %v4372 = vpop.f32.mrb[0].mxu0
      %v4373 = vadd.f32 0.0, %v4372
      %v4374 = vpop.f32.mrb[0].mxu0
      %4375 = vmatprep.mubr.bf16.mxu0 0
      %4376 = vmatmul.mubr.bf16.gmra.mrb[0].mxu0 %v4228
      %v4377 = vpop.f32.mrb[0].mxu0
      %v4378 = vadd.f32 0.0, %v4377
      %v4379 = vpop.f32.mrb[0].mxu0
      %v4380 = vpop.f32.mrb[0].mxu0
      %v4381 = vadd.f32 0.0, %v4380
      %v4382 = vpop.f32.mrb[0].mxu0
      %4383 = vmatprep.mubr.bf16.mxu0 0
      %4384 = vmatmul.mubr.bf16.gmra.mrb[0].mxu0 %v4231
      %v4385 = vpop.f32.mrb[0].mxu0
      %v4386 = vadd.f32 0.0, %v4385
      %v4387 = vpop.f32.mrb[0].mxu0
      %v4388 = vpop.f32.mrb[0].mxu0
      %v4389 = vadd.f32 0.0, %v4388
      %v4390 = vpop.f32.mrb[0].mxu0
      %4391 = vmatprep.mubr.bf16.mxu0 0
      %4392 = vmatmul.mubr.bf16.gmra.mrb[0].mxu0 %v4234
      %v4393 = vpop.f32.mrb[0].mxu0
      %v4394 = vadd.f32 0.0, %v4393
      %v4395 = vpop.f32.mrb[0].mxu0
      %v4396 = vpop.f32.mrb[0].mxu0
      %v4397 = vadd.f32 0.0, %v4396
      %v4398 = vpop.f32.mrb[0].mxu0
      %4399 = vdwg.mxu0
      %v4400 = vadd.f32 %v4043, %v4274
      %v4401 = vadd.f32 %v4044, %v4277
      %v4402 = vadd.f32 %v4045, %v4282
      %v4403 = vadd.f32 %v4046, %v4285
      %v4404 = vadd.f32 %v4047, %v4290
      %v4405 = vadd.f32 %v4048, %v4293
      %v4406 = vadd.f32 %v4049, %v4298
      %v4407 = vadd.f32 %v4050, %v4301
      %v4408 = vadd.f32 %v4051, %v4306
      %v4409 = vadd.f32 %v4052, %v4309
      %v4410 = vadd.f32 %v4053, %v4314
      %v4411 = vadd.f32 %v4054, %v4317
      %v4412 = vadd.f32 %v4055, %v4322
      %v4413 = vadd.f32 %v4056, %v4325
      %v4414 = vadd.f32 %v4057, %v4330
      %v4415 = vadd.f32 %v4058, %v4333
      %v4416 = vadd.f32 %v4059, %v4338
      %v4417 = vadd.f32 %v4060, %v4341
      %v4418 = vadd.f32 %v4061, %v4346
      %v4419 = vadd.f32 %v4062, %v4349
      %v4420 = vadd.f32 %v4063, %v4354
      %v4421 = vadd.f32 %v4064, %v4357
      %v4422 = vadd.f32 %v4065, %v4362
      %v4423 = vadd.f32 %v4066, %v4365
      %v4424 = vadd.f32 %v4067, %v4370
      %v4425 = vadd.f32 %v4068, %v4373
      %v4426 = vadd.f32 %v4069, %v4378
      %v4427 = vadd.f32 %v4070, %v4381
      %v4428 = vadd.f32 %v4071, %v4386
      %v4429 = vadd.f32 %v4072, %v4389
      %v4430 = vadd.f32 %v4073, %v4394
      %v4431 = vadd.f32 %v4074, %v4397
      %v4432 = vld [vmem:[%s4075] sm:$0xf]
      %v4433 = vld [vmem:[%s4075 + $0x4] sm:$0xf]
      %v4434 = vld [vmem:[%s4075 + $0x8] sm:$0x1]
      %v4435 = vld [vmem:[%s4075 + $0xc] sm:$0xf]
      %v4436 = vld [vmem:[%s4075 + $0x10] sm:$0xf]
      %v4437 = vld [vmem:[%s4075 + $0x14] sm:$0x1]
      %v4438 = vld [vmem:[%s4075 + $0x18] sm:$0xf]
      %v4439 = vld [vmem:[%s4075 + $0x1c] sm:$0xf]
      %v4440 = vld [vmem:[%s4075 + $0x20] sm:$0x1]
      %v4441 = vld [vmem:[%s4075 + $0x24] sm:$0xf]
      %v4442 = vld [vmem:[%s4075 + $0x28] sm:$0xf]
      %v4443 = vld [vmem:[%s4075 + $0x2c] sm:$0x1]
      %v4444 = vld [vmem:[%s4075 + $0x30] sm:$0xf]
      %v4445 = vld [vmem:[%s4075 + $0x34] sm:$0xf]
      %v4446 = vld [vmem:[%s4075 + $0x38] sm:$0x1]
      %v4447 = vld [vmem:[%s4075 + $0x3c] sm:$0xf]
      %v4448 = vld [vmem:[%s4075 + $0x40] sm:$0xf]
      %v4449 = vld [vmem:[%s4075 + $0x44] sm:$0x1]
      %v4450 = vld [vmem:[%s4075 + $0x48] sm:$0xf]
      %v4451 = vld [vmem:[%s4075 + $0x4c] sm:$0xf]
      %v4452 = vld [vmem:[%s4075 + $0x50] sm:$0x1]
      %v4453 = vld [vmem:[%s4075 + $0x54] sm:$0xf]
      %v4454 = vld [vmem:[%s4075 + $0x58] sm:$0xf]
      %v4455 = vld [vmem:[%s4075 + $0x5c] sm:$0x1]
      %v4456 = vld [vmem:[%s4075 + $0x60] sm:$0xf]
      %v4457 = vld [vmem:[%s4075 + $0x64] sm:$0xf]
      %v4458 = vld [vmem:[%s4075 + $0x68] sm:$0x1]
      %v4459 = vld [vmem:[%s4075 + $0x6c] sm:$0xf]
      %v4460 = vld [vmem:[%s4075 + $0x70] sm:$0xf]
      %v4461 = vld [vmem:[%s4075 + $0x74] sm:$0x1]
      %v4462 = vld [vmem:[%s4075 + $0x78] sm:$0xf]
      %v4463 = vld [vmem:[%s4075 + $0x7c] sm:$0xf]
      %v4464 = vld [vmem:[%s4075 + $0x80] sm:$0x1]
      %v4465 = vld [vmem:[%s4075 + $0x84] sm:$0xf]
      %v4466 = vld [vmem:[%s4075 + $0x88] sm:$0xf]
      %v4467 = vld [vmem:[%s4075 + $0x8c] sm:$0x1]
      %v4468 = vld [vmem:[%s4075 + $0x90] sm:$0xf]
      %v4469 = vld [vmem:[%s4075 + $0x94] sm:$0xf]
      %v4470 = vld [vmem:[%s4075 + $0x98] sm:$0x1]
      %v4471 = vld [vmem:[%s4075 + $0x9c] sm:$0xf]
      %v4472 = vld [vmem:[%s4075 + $0xa0] sm:$0xf]
      %v4473 = vld [vmem:[%s4075 + $0xa4] sm:$0x1]
      %v4474 = vld [vmem:[%s4075 + $0xa8] sm:$0xf]
      %v4475 = vld [vmem:[%s4075 + $0xac] sm:$0xf]
      %v4476 = vld [vmem:[%s4075 + $0xb0] sm:$0x1]
      %v4477 = vld [vmem:[%s4075 + $0xb4] sm:$0xf]
      %v4478 = vld [vmem:[%s4075 + $0xb8] sm:$0xf]
      %v4479 = vld [vmem:[%s4075 + $0xbc] sm:$0x1]
      %v4481 = vshrl.u32 %v4432, 16
      %v4483 = vrot.slane %v4481, 4
      %v4484 = vshll.u32 %v4432, 16
      %v4486 = vrot.slane %v4484, 5
      %v4487 = vor.u32 %v4483, %v4486
      %v4488 = vrot.slane %v4487, 4
      %v4490 = vshll.u32 %v4433, 16
      %v4492 = vrot.slane %v4490, 5
      %v4493 = vsel %vm1133, %v4488, %v4492
      %v4494 = vshrl.u32 %v4433, 16
      %v4496 = vrot.slane %v4494, 4
      %v4497 = vor.u32 %v4496, %v4492
      %v4498 = vrot.slane %v4497, 4
      %v4500 = vshll.u32 %v4434, 16
      %v4502 = vrot.slane %v4500, 5
      %v4503 = vsel %vm1133, %v4498, %v4502
      %v4505 = vshrl.u32 %v4435, 16
      %v4507 = vrot.slane %v4505, 4
      %v4508 = vshll.u32 %v4435, 16
      %v4510 = vrot.slane %v4508, 5
      %v4511 = vor.u32 %v4507, %v4510
      %v4512 = vrot.slane %v4511, 4
      %v4514 = vshll.u32 %v4436, 16
      %v4516 = vrot.slane %v4514, 5
      %v4517 = vsel %vm1133, %v4512, %v4516
      %v4518 = vshrl.u32 %v4436, 16
      %v4520 = vrot.slane %v4518, 4
      %v4521 = vor.u32 %v4520, %v4516
      %v4522 = vrot.slane %v4521, 4
      %v4524 = vshll.u32 %v4437, 16
      %v4526 = vrot.slane %v4524, 5
      %v4527 = vsel %vm1133, %v4522, %v4526
      %v4529 = vshrl.u32 %v4438, 16
      %v4531 = vrot.slane %v4529, 4
      %v4532 = vshll.u32 %v4438, 16
      %v4534 = vrot.slane %v4532, 5
      %v4535 = vor.u32 %v4531, %v4534
      %v4536 = vrot.slane %v4535, 4
      %v4538 = vshll.u32 %v4439, 16
      %v4540 = vrot.slane %v4538, 5
      %v4541 = vsel %vm1133, %v4536, %v4540
      %v4542 = vshrl.u32 %v4439, 16
      %v4544 = vrot.slane %v4542, 4
      %v4545 = vor.u32 %v4544, %v4540
      %v4546 = vrot.slane %v4545, 4
      %v4548 = vshll.u32 %v4440, 16
      %v4550 = vrot.slane %v4548, 5
      %v4551 = vsel %vm1133, %v4546, %v4550
      %v4553 = vshrl.u32 %v4441, 16
      %v4555 = vrot.slane %v4553, 4
      %v4556 = vshll.u32 %v4441, 16
      %v4558 = vrot.slane %v4556, 5
      %v4559 = vor.u32 %v4555, %v4558
      %v4560 = vrot.slane %v4559, 4
      %v4562 = vshll.u32 %v4442, 16
      %v4564 = vrot.slane %v4562, 5
      %v4565 = vsel %vm1133, %v4560, %v4564
      %v4566 = vshrl.u32 %v4442, 16
      %v4568 = vrot.slane %v4566, 4
      %v4569 = vor.u32 %v4568, %v4564
      %v4570 = vrot.slane %v4569, 4
      %v4572 = vshll.u32 %v4443, 16
      %v4574 = vrot.slane %v4572, 5
      %v4575 = vsel %vm1133, %v4570, %v4574
      %v4577 = vshrl.u32 %v4444, 16
      %v4579 = vrot.slane %v4577, 4
      %v4580 = vshll.u32 %v4444, 16
      %v4582 = vrot.slane %v4580, 5
      %v4583 = vor.u32 %v4579, %v4582
      %v4584 = vrot.slane %v4583, 4
      %v4586 = vshll.u32 %v4445, 16
      %v4588 = vrot.slane %v4586, 5
      %v4589 = vsel %vm1133, %v4584, %v4588
      %v4590 = vshrl.u32 %v4445, 16
      %v4592 = vrot.slane %v4590, 4
      %v4593 = vor.u32 %v4592, %v4588
      %v4594 = vrot.slane %v4593, 4
      %v4596 = vshll.u32 %v4446, 16
      %v4598 = vrot.slane %v4596, 5
      %v4599 = vsel %vm1133, %v4594, %v4598
      %v4601 = vshrl.u32 %v4447, 16
      %v4603 = vrot.slane %v4601, 4
      %v4604 = vshll.u32 %v4447, 16
      %v4606 = vrot.slane %v4604, 5
      %v4607 = vor.u32 %v4603, %v4606
      %v4608 = vrot.slane %v4607, 4
      %v4610 = vshll.u32 %v4448, 16
      %v4612 = vrot.slane %v4610, 5
      %v4613 = vsel %vm1133, %v4608, %v4612
      %v4614 = vshrl.u32 %v4448, 16
      %v4616 = vrot.slane %v4614, 4
      %v4617 = vor.u32 %v4616, %v4612
      %v4618 = vrot.slane %v4617, 4
      %v4620 = vshll.u32 %v4449, 16
      %v4622 = vrot.slane %v4620, 5
      %v4623 = vsel %vm1133, %v4618, %v4622
      %v4625 = vshrl.u32 %v4450, 16
      %v4627 = vrot.slane %v4625, 4
      %v4628 = vshll.u32 %v4450, 16
      %v4630 = vrot.slane %v4628, 5
      %v4631 = vor.u32 %v4627, %v4630
      %v4632 = vrot.slane %v4631, 4
      %v4634 = vshll.u32 %v4451, 16
      %v4636 = vrot.slane %v4634, 5
      %v4637 = vsel %vm1133, %v4632, %v4636
      %v4638 = vshrl.u32 %v4451, 16
      %v4640 = vrot.slane %v4638, 4
      %v4641 = vor.u32 %v4640, %v4636
      %v4642 = vrot.slane %v4641, 4
      %v4644 = vshll.u32 %v4452, 16
      %v4646 = vrot.slane %v4644, 5
      %v4647 = vsel %vm1133, %v4642, %v4646
      %v4649 = vshrl.u32 %v4453, 16
      %v4651 = vrot.slane %v4649, 4
      %v4652 = vshll.u32 %v4453, 16
      %v4654 = vrot.slane %v4652, 5
      %v4655 = vor.u32 %v4651, %v4654
      %v4656 = vrot.slane %v4655, 4
      %v4658 = vshll.u32 %v4454, 16
      %v4660 = vrot.slane %v4658, 5
      %v4661 = vsel %vm1133, %v4656, %v4660
      %v4662 = vshrl.u32 %v4454, 16
      %v4664 = vrot.slane %v4662, 4
      %v4665 = vor.u32 %v4664, %v4660
      %v4666 = vrot.slane %v4665, 4
      %v4668 = vshll.u32 %v4455, 16
      %v4670 = vrot.slane %v4668, 5
      %v4671 = vsel %vm1133, %v4666, %v4670
      %v4673 = vshrl.u32 %v4456, 16
      %v4675 = vrot.slane %v4673, 4
      %v4676 = vshll.u32 %v4456, 16
      %v4678 = vrot.slane %v4676, 5
      %v4679 = vor.u32 %v4675, %v4678
      %v4680 = vrot.slane %v4679, 4
      %v4682 = vshll.u32 %v4457, 16
      %v4684 = vrot.slane %v4682, 5
      %v4685 = vsel %vm1133, %v4680, %v4684
      %v4686 = vshrl.u32 %v4457, 16
      %v4688 = vrot.slane %v4686, 4
      %v4689 = vor.u32 %v4688, %v4684
      %v4690 = vrot.slane %v4689, 4
      %v4692 = vshll.u32 %v4458, 16
      %v4694 = vrot.slane %v4692, 5
      %v4695 = vsel %vm1133, %v4690, %v4694
      %v4697 = vshrl.u32 %v4459, 16
      %v4699 = vrot.slane %v4697, 4
      %v4700 = vshll.u32 %v4459, 16
      %v4702 = vrot.slane %v4700, 5
      %v4703 = vor.u32 %v4699, %v4702
      %v4704 = vrot.slane %v4703, 4
      %v4706 = vshll.u32 %v4460, 16
      %v4708 = vrot.slane %v4706, 5
      %v4709 = vsel %vm1133, %v4704, %v4708
      %v4710 = vshrl.u32 %v4460, 16
      %v4712 = vrot.slane %v4710, 4
      %v4713 = vor.u32 %v4712, %v4708
      %v4714 = vrot.slane %v4713, 4
      %v4716 = vshll.u32 %v4461, 16
      %v4718 = vrot.slane %v4716, 5
      %v4719 = vsel %vm1133, %v4714, %v4718
      %v4721 = vshrl.u32 %v4462, 16
      %v4723 = vrot.slane %v4721, 4
      %v4724 = vshll.u32 %v4462, 16
      %v4726 = vrot.slane %v4724, 5
      %v4727 = vor.u32 %v4723, %v4726
      %v4728 = vrot.slane %v4727, 4
      %v4730 = vshll.u32 %v4463, 16
      %v4732 = vrot.slane %v4730, 5
      %v4733 = vsel %vm1133, %v4728, %v4732
      %v4734 = vshrl.u32 %v4463, 16
      %v4736 = vrot.slane %v4734, 4
      %v4737 = vor.u32 %v4736, %v4732
      %v4738 = vrot.slane %v4737, 4
      %v4740 = vshll.u32 %v4464, 16
      %v4742 = vrot.slane %v4740, 5
      %v4743 = vsel %vm1133, %v4738, %v4742
      %v4745 = vshrl.u32 %v4465, 16
      %v4747 = vrot.slane %v4745, 4
      %v4748 = vshll.u32 %v4465, 16
      %v4750 = vrot.slane %v4748, 5
      %v4751 = vor.u32 %v4747, %v4750
      %v4752 = vrot.slane %v4751, 4
      %v4754 = vshll.u32 %v4466, 16
      %v4756 = vrot.slane %v4754, 5
      %v4757 = vsel %vm1133, %v4752, %v4756
      %v4758 = vshrl.u32 %v4466, 16
      %v4760 = vrot.slane %v4758, 4
      %v4761 = vor.u32 %v4760, %v4756
      %v4762 = vrot.slane %v4761, 4
      %v4764 = vshll.u32 %v4467, 16
      %v4766 = vrot.slane %v4764, 5
      %v4767 = vsel %vm1133, %v4762, %v4766
      %v4769 = vshrl.u32 %v4468, 16
      %v4771 = vrot.slane %v4769, 4
      %v4772 = vshll.u32 %v4468, 16
      %v4774 = vrot.slane %v4772, 5
      %v4775 = vor.u32 %v4771, %v4774
      %v4776 = vrot.slane %v4775, 4
      %v4778 = vshll.u32 %v4469, 16
      %v4780 = vrot.slane %v4778, 5
      %v4781 = vsel %vm1133, %v4776, %v4780
      %v4782 = vshrl.u32 %v4469, 16
      %v4784 = vrot.slane %v4782, 4
      %v4785 = vor.u32 %v4784, %v4780
      %v4786 = vrot.slane %v4785, 4
      %v4788 = vshll.u32 %v4470, 16
      %v4790 = vrot.slane %v4788, 5
      %v4791 = vsel %vm1133, %v4786, %v4790
      %v4793 = vshrl.u32 %v4471, 16
      %v4795 = vrot.slane %v4793, 4
      %v4796 = vshll.u32 %v4471, 16
      %v4798 = vrot.slane %v4796, 5
      %v4799 = vor.u32 %v4795, %v4798
      %v4800 = vrot.slane %v4799, 4
      %v4802 = vshll.u32 %v4472, 16
      %v4804 = vrot.slane %v4802, 5
      %v4805 = vsel %vm1133, %v4800, %v4804
      %v4806 = vshrl.u32 %v4472, 16
      %v4808 = vrot.slane %v4806, 4
      %v4809 = vor.u32 %v4808, %v4804
      %v4810 = vrot.slane %v4809, 4
      %v4812 = vshll.u32 %v4473, 16
      %v4814 = vrot.slane %v4812, 5
      %v4815 = vsel %vm1133, %v4810, %v4814
      %v4817 = vshrl.u32 %v4474, 16
      %v4819 = vrot.slane %v4817, 4
      %v4820 = vshll.u32 %v4474, 16
      %v4822 = vrot.slane %v4820, 5
      %v4823 = vor.u32 %v4819, %v4822
      %v4824 = vrot.slane %v4823, 4
      %v4826 = vshll.u32 %v4475, 16
      %v4828 = vrot.slane %v4826, 5
      %v4829 = vsel %vm1133, %v4824, %v4828
      %v4830 = vshrl.u32 %v4475, 16
      %v4832 = vrot.slane %v4830, 4
      %v4833 = vor.u32 %v4832, %v4828
      %v4834 = vrot.slane %v4833, 4
      %v4836 = vshll.u32 %v4476, 16
      %v4838 = vrot.slane %v4836, 5
      %v4839 = vsel %vm1133, %v4834, %v4838
      %v4841 = vshrl.u32 %v4477, 16
      %v4843 = vrot.slane %v4841, 4
      %v4844 = vshll.u32 %v4477, 16
      %v4846 = vrot.slane %v4844, 5
      %v4847 = vor.u32 %v4843, %v4846
      %v4848 = vrot.slane %v4847, 4
      %v4850 = vshll.u32 %v4478, 16
      %v4852 = vrot.slane %v4850, 5
      %v4853 = vsel %vm1133, %v4848, %v4852
      %v4854 = vshrl.u32 %v4478, 16
      %v4856 = vrot.slane %v4854, 4
      %v4857 = vor.u32 %v4856, %v4852
      %v4858 = vrot.slane %v4857, 4
      %v4860 = vshll.u32 %v4479, 16
      %v4862 = vrot.slane %v4860, 5
      %v4863 = vsel %vm1133, %v4858, %v4862
      %v4864 = vunpack.c.l.b16 %v4493
      %v4865 = vunpack.c.l.b16 %v4503
      %v4866 = vunpack.c.l.b16 %v4517
      %v4867 = vunpack.c.l.b16 %v4527
      %v4868 = vunpack.c.l.b16 %v4541
      %v4869 = vunpack.c.l.b16 %v4551
      %v4870 = vunpack.c.l.b16 %v4565
      %v4871 = vunpack.c.l.b16 %v4575
      %v4872 = vunpack.c.l.b16 %v4589
      %v4873 = vunpack.c.l.b16 %v4599
      %v4874 = vunpack.c.l.b16 %v4613
      %v4875 = vunpack.c.l.b16 %v4623
      %v4876 = vunpack.c.l.b16 %v4637
      %v4877 = vunpack.c.l.b16 %v4647
      %v4878 = vunpack.c.l.b16 %v4661
      %v4879 = vunpack.c.l.b16 %v4671
      %v4880 = vunpack.c.l.b16 %v4685
      %v4881 = vunpack.c.l.b16 %v4695
      %v4882 = vunpack.c.l.b16 %v4709
      %v4883 = vunpack.c.l.b16 %v4719
      %v4884 = vunpack.c.l.b16 %v4733
      %v4885 = vunpack.c.l.b16 %v4743
      %v4886 = vunpack.c.l.b16 %v4757
      %v4887 = vunpack.c.l.b16 %v4767
      %v4888 = vunpack.c.l.b16 %v4781
      %v4889 = vunpack.c.l.b16 %v4791
      %v4890 = vunpack.c.l.b16 %v4805
      %v4891 = vunpack.c.l.b16 %v4815
      %v4892 = vunpack.c.l.b16 %v4829
      %v4893 = vunpack.c.l.b16 %v4839
      %v4894 = vunpack.c.l.b16 %v4853
      %v4895 = vunpack.c.l.b16 %v4863
      %v4896 = vpack.c.b16 %v4865, %v4864
      %v4897 = vpack.c.b16 %v4867, %v4866
      %v4898 = vpack.c.b16 %v4869, %v4868
      %v4899 = vpack.c.b16 %v4871, %v4870
      %v4900 = vpack.c.b16 %v4873, %v4872
      %v4901 = vpack.c.b16 %v4875, %v4874
      %v4902 = vpack.c.b16 %v4877, %v4876
      %v4903 = vpack.c.b16 %v4879, %v4878
      %v4904 = vpack.c.b16 %v4881, %v4880
      %v4905 = vpack.c.b16 %v4883, %v4882
      %v4906 = vpack.c.b16 %v4885, %v4884
      %v4907 = vpack.c.b16 %v4887, %v4886
      %v4908 = vpack.c.b16 %v4889, %v4888
      %v4909 = vpack.c.b16 %v4891, %v4890
      %v4910 = vpack.c.b16 %v4893, %v4892
      %v4911 = vpack.c.b16 %v4895, %v4894
      %v4913 = vsel %vm1566, %v4896, 0
      %v4916 = vsel %vm1566, %v4897, 0
      %v4919 = vsel %vm1566, %v4898, 0
      %v4922 = vsel %vm1566, %v4899, 0
      %v4925 = vsel %vm1566, %v4900, 0
      %v4928 = vsel %vm1566, %v4901, 0
      %v4931 = vsel %vm1566, %v4902, 0
      %v4934 = vsel %vm1566, %v4903, 0
      %v4937 = vsel %vm1566, %v4904, 0
      %v4940 = vsel %vm1566, %v4905, 0
      %v4943 = vsel %vm1566, %v4906, 0
      %v4946 = vsel %vm1566, %v4907, 0
      %v4949 = vsel %vm1566, %v4908, 0
      %v4952 = vsel %vm1566, %v4909, 0
      %v4955 = vsel %vm1566, %v4910, 0
      %v4958 = vsel %vm1566, %v4911, 0
      %v4961 = vsel %vm1615, %v1080, 0
      %4963 = vmatprep.subr.bf16.mxu0 0
      %4964 = vmatpush1.bf16.msra.mxu0 %v4961
      %4965 = vmatprep.subr.bf16.mxu0 0
      %4966 = vmatpush1.bf16.msra.mxu0 0
      %4967 = vmatprep.subr.bf16.mxu0 0
      %4968 = vmatpush1.bf16.msra.mxu0 0
      %4969 = vmatprep.subr.bf16.mxu0 0
      %4970 = vmatpush1.bf16.msra.mxu0 0
      %4971 = vmatprep.subr.bf16.mxu0 0
      %4972 = vmatpush1.bf16.msra.mxu0 0
      %4973 = vmatprep.subr.bf16.mxu0 0
      %4974 = vmatpush1.bf16.msra.mxu0 0
      %4975 = vmatprep.subr.bf16.mxu0 0
      %4976 = vmatpush1.bf16.msra.mxu0 0
      %4977 = vmatprep.subr.bf16.mxu0 0
      %4978 = vmatpush1.bf16.msra.mxu0 0
      %4979 = vmatprep.subr.bf16.mxu0 0
      %4980 = vmatpush1.bf16.msra.mxu0 0
      %4981 = vmatprep.subr.bf16.mxu0 0
      %4982 = vmatpush1.bf16.msra.mxu0 0
      %4983 = vmatprep.subr.bf16.mxu0 0
      %4984 = vmatpush1.bf16.msra.mxu0 0
      %4985 = vmatprep.subr.bf16.mxu0 0
      %4986 = vmatpush1.bf16.msra.mxu0 0
      %4987 = vmatprep.subr.bf16.mxu0 0
      %4988 = vmatpush1.bf16.msra.mxu0 0
      %4989 = vmatprep.subr.bf16.mxu0 0
      %4990 = vmatpush1.bf16.msra.mxu0 0
      %4991 = vmatprep.subr.bf16.mxu0 0
      %4992 = vmatpush1.bf16.msra.mxu0 0
      %4993 = vmatprep.subr.bf16.mxu0 0
      %4994 = vmatpush1.bf16.msra.mxu0 0
      %4995 = vmatprep.mubr.bf16.mxu0 0
      %4996 = vmatmul.mubr.bf16.gmra.mrb[0].mxu0 %v4913
      %v4997 = vpop.f32.mrb[0].mxu0
      %v4998 = vadd.f32 0.0, %v4997
      %v4999 = vpop.f32.mrb[0].mxu0
      %v5000 = vpop.f32.mrb[0].mxu0
      %v5001 = vadd.f32 0.0, %v5000
      %v5002 = vpop.f32.mrb[0].mxu0
      %5003 = vmatprep.mubr.bf16.mxu0 0
      %5004 = vmatmul.mubr.bf16.gmra.mrb[0].mxu0 %v4916
      %v5005 = vpop.f32.mrb[0].mxu0
      %v5006 = vadd.f32 0.0, %v5005
      %v5007 = vpop.f32.mrb[0].mxu0
      %v5008 = vpop.f32.mrb[0].mxu0
      %v5009 = vadd.f32 0.0, %v5008
      %v5010 = vpop.f32.mrb[0].mxu0
      %5011 = vmatprep.mubr.bf16.mxu0 0
      %5012 = vmatmul.mubr.bf16.gmra.mrb[0].mxu0 %v4919
      %v5013 = vpop.f32.mrb[0].mxu0
      %v5014 = vadd.f32 0.0, %v5013
      %v5015 = vpop.f32.mrb[0].mxu0
      %v5016 = vpop.f32.mrb[0].mxu0
      %v5017 = vadd.f32 0.0, %v5016
      %v5018 = vpop.f32.mrb[0].mxu0
      %5019 = vmatprep.mubr.bf16.mxu0 0
      %5020 = vmatmul.mubr.bf16.gmra.mrb[0].mxu0 %v4922
      %v5021 = vpop.f32.mrb[0].mxu0
      %v5022 = vadd.f32 0.0, %v5021
      %v5023 = vpop.f32.mrb[0].mxu0
      %v5024 = vpop.f32.mrb[0].mxu0
      %v5025 = vadd.f32 0.0, %v5024
      %v5026 = vpop.f32.mrb[0].mxu0
      %5027 = vmatprep.mubr.bf16.mxu0 0
      %5028 = vmatmul.mubr.bf16.gmra.mrb[0].mxu0 %v4925
      %v5029 = vpop.f32.mrb[0].mxu0
      %v5030 = vadd.f32 0.0, %v5029
      %v5031 = vpop.f32.mrb[0].mxu0
      %v5032 = vpop.f32.mrb[0].mxu0
      %v5033 = vadd.f32 0.0, %v5032
      %v5034 = vpop.f32.mrb[0].mxu0
      %5035 = vmatprep.mubr.bf16.mxu0 0
      %5036 = vmatmul.mubr.bf16.gmra.mrb[0].mxu0 %v4928
      %v5037 = vpop.f32.mrb[0].mxu0
      %v5038 = vadd.f32 0.0, %v5037
      %v5039 = vpop.f32.mrb[0].mxu0
      %v5040 = vpop.f32.mrb[0].mxu0
      %v5041 = vadd.f32 0.0, %v5040
      %v5042 = vpop.f32.mrb[0].mxu0
      %5043 = vmatprep.mubr.bf16.mxu0 0
      %5044 = vmatmul.mubr.bf16.gmra.mrb[0].mxu0 %v4931
      %v5045 = vpop.f32.mrb[0].mxu0
      %v5046 = vadd.f32 0.0, %v5045
      %v5047 = vpop.f32.mrb[0].mxu0
      %v5048 = vpop.f32.mrb[0].mxu0
      %v5049 = vadd.f32 0.0, %v5048
      %v5050 = vpop.f32.mrb[0].mxu0
      %5051 = vmatprep.mubr.bf16.mxu0 0
      %5052 = vmatmul.mubr.bf16.gmra.mrb[0].mxu0 %v4934
      %v5053 = vpop.f32.mrb[0].mxu0
      %v5054 = vadd.f32 0.0, %v5053
      %v5055 = vpop.f32.mrb[0].mxu0
      %v5056 = vpop.f32.mrb[0].mxu0
      %v5057 = vadd.f32 0.0, %v5056
      %v5058 = vpop.f32.mrb[0].mxu0
      %5059 = vmatprep.mubr.bf16.mxu0 0
      %5060 = vmatmul.mubr.bf16.gmra.mrb[0].mxu0 %v4937
      %v5061 = vpop.f32.mrb[0].mxu0
      %v5062 = vadd.f32 0.0, %v5061
      %v5063 = vpop.f32.mrb[0].mxu0
      %v5064 = vpop.f32.mrb[0].mxu0
      %v5065 = vadd.f32 0.0, %v5064
      %v5066 = vpop.f32.mrb[0].mxu0
      %5067 = vmatprep.mubr.bf16.mxu0 0
      %5068 = vmatmul.mubr.bf16.gmra.mrb[0].mxu0 %v4940
      %v5069 = vpop.f32.mrb[0].mxu0
      %v5070 = vadd.f32 0.0, %v5069
      %v5071 = vpop.f32.mrb[0].mxu0
      %v5072 = vpop.f32.mrb[0].mxu0
      %v5073 = vadd.f32 0.0, %v5072
      %v5074 = vpop.f32.mrb[0].mxu0
      %5075 = vmatprep.mubr.bf16.mxu0 0
      %5076 = vmatmul.mubr.bf16.gmra.mrb[0].mxu0 %v4943
      %v5077 = vpop.f32.mrb[0].mxu0
      %v5078 = vadd.f32 0.0, %v5077
      %v5079 = vpop.f32.mrb[0].mxu0
      %v5080 = vpop.f32.mrb[0].mxu0
      %v5081 = vadd.f32 0.0, %v5080
      %v5082 = vpop.f32.mrb[0].mxu0
      %5083 = vmatprep.mubr.bf16.mxu0 0
      %5084 = vmatmul.mubr.bf16.gmra.mrb[0].mxu0 %v4946
      %v5085 = vpop.f32.mrb[0].mxu0
      %v5086 = vadd.f32 0.0, %v5085
      %v5087 = vpop.f32.mrb[0].mxu0
      %v5088 = vpop.f32.mrb[0].mxu0
      %v5089 = vadd.f32 0.0, %v5088
      %v5090 = vpop.f32.mrb[0].mxu0
      %5091 = vmatprep.mubr.bf16.mxu0 0
      %5092 = vmatmul.mubr.bf16.gmra.mrb[0].mxu0 %v4949
      %v5093 = vpop.f32.mrb[0].mxu0
      %v5094 = vadd.f32 0.0, %v5093
      %v5095 = vpop.f32.mrb[0].mxu0
      %v5096 = vpop.f32.mrb[0].mxu0
      %v5097 = vadd.f32 0.0, %v5096
      %v5098 = vpop.f32.mrb[0].mxu0
      %5099 = vmatprep.mubr.bf16.mxu0 0
      %5100 = vmatmul.mubr.bf16.gmra.mrb[0].mxu0 %v4952
      %v5101 = vpop.f32.mrb[0].mxu0
      %v5102 = vadd.f32 0.0, %v5101
      %v5103 = vpop.f32.mrb[0].mxu0
      %v5104 = vpop.f32.mrb[0].mxu0
      %v5105 = vadd.f32 0.0, %v5104
      %v5106 = vpop.f32.mrb[0].mxu0
      %5107 = vmatprep.mubr.bf16.mxu0 0
      %5108 = vmatmul.mubr.bf16.gmra.mrb[0].mxu0 %v4955
      %v5109 = vpop.f32.mrb[0].mxu0
      %v5110 = vadd.f32 0.0, %v5109
      %v5111 = vpop.f32.mrb[0].mxu0
      %v5112 = vpop.f32.mrb[0].mxu0
      %v5113 = vadd.f32 0.0, %v5112
      %v5114 = vpop.f32.mrb[0].mxu0
      %5115 = vmatprep.mubr.bf16.mxu0 0
      %5116 = vmatmul.mubr.bf16.gmra.mrb[0].mxu0 %v4958
      %v5117 = vpop.f32.mrb[0].mxu0
      %v5118 = vadd.f32 0.0, %v5117
      %v5119 = vpop.f32.mrb[0].mxu0
      %v5120 = vpop.f32.mrb[0].mxu0
      %v5121 = vadd.f32 0.0, %v5120
      %v5122 = vpop.f32.mrb[0].mxu0
      %5123 = vdwg.mxu0
      %v5124 = vadd.f32 %v4400, %v4998
      %v5125 = vadd.f32 %v4401, %v5001
      %v5126 = vadd.f32 %v4402, %v5006
      %v5127 = vadd.f32 %v4403, %v5009
      %v5128 = vadd.f32 %v4404, %v5014
      %v5129 = vadd.f32 %v4405, %v5017
      %v5130 = vadd.f32 %v4406, %v5022
      %v5131 = vadd.f32 %v4407, %v5025
      %v5132 = vadd.f32 %v4408, %v5030
      %v5133 = vadd.f32 %v4409, %v5033
      %v5134 = vadd.f32 %v4410, %v5038
      %v5135 = vadd.f32 %v4411, %v5041
      %v5136 = vadd.f32 %v4412, %v5046
      %v5137 = vadd.f32 %v4413, %v5049
      %v5138 = vadd.f32 %v4414, %v5054
      %v5139 = vadd.f32 %v4415, %v5057
      %v5140 = vadd.f32 %v4416, %v5062
      %v5141 = vadd.f32 %v4417, %v5065
      %v5142 = vadd.f32 %v4418, %v5070
      %v5143 = vadd.f32 %v4419, %v5073
      %v5144 = vadd.f32 %v4420, %v5078
      %v5145 = vadd.f32 %v4421, %v5081
      %v5146 = vadd.f32 %v4422, %v5086
      %v5147 = vadd.f32 %v4423, %v5089
      %v5148 = vadd.f32 %v4424, %v5094
      %v5149 = vadd.f32 %v4425, %v5097
      %v5150 = vadd.f32 %v4426, %v5102
      %v5151 = vadd.f32 %v4427, %v5105
      %v5152 = vadd.f32 %v4428, %v5110
      %v5153 = vadd.f32 %v4429, %v5113
      %v5154 = vadd.f32 %v4430, %v5118
      %v5155 = vadd.f32 %v4431, %v5121
      %v5156 = vld [vmem:[%s4075] sm:$0xe]
      %v5157 = vld [vmem:[%s4075 + $0xc] sm:$0xe]
      %v5158 = vld [vmem:[%s4075 + $0x18] sm:$0xe]
      %v5159 = vld [vmem:[%s4075 + $0x24] sm:$0xe]
      %v5160 = vld [vmem:[%s4075 + $0x30] sm:$0xe]
      %v5161 = vld [vmem:[%s4075 + $0x3c] sm:$0xe]
      %v5162 = vld [vmem:[%s4075 + $0x48] sm:$0xe]
      %v5163 = vld [vmem:[%s4075 + $0x54] sm:$0xe]
      %v5164 = vld [vmem:[%s4075 + $0x60] sm:$0xe]
      %v5165 = vld [vmem:[%s4075 + $0x6c] sm:$0xe]
      %v5166 = vld [vmem:[%s4075 + $0x78] sm:$0xe]
      %v5167 = vld [vmem:[%s4075 + $0x84] sm:$0xe]
      %v5168 = vld [vmem:[%s4075 + $0x90] sm:$0xe]
      %v5169 = vld [vmem:[%s4075 + $0x9c] sm:$0xe]
      %v5170 = vld [vmem:[%s4075 + $0xa8] sm:$0xe]
      %v5171 = vld [vmem:[%s4075 + $0xb4] sm:$0xe]
      %v5220 = vrot.slane %v5156, 5
      %v5221 = vrot.slane %v5220, 4
      %v5222 = vrot.slane %v4433, 5
      %v5223 = vsel %vm2122, %v5221, %v5222
      %v5224 = vrot.slane %v5222, 4
      %v5225 = vrot.slane %v4434, 5
      %v5226 = vsel %vm2122, %v5224, %v5225
      %v5227 = vrot.slane %v5157, 5
      %v5228 = vrot.slane %v5227, 4
      %v5229 = vrot.slane %v4436, 5
      %v5230 = vsel %vm2122, %v5228, %v5229
      %v5231 = vrot.slane %v5229, 4
      %v5232 = vrot.slane %v4437, 5
      %v5233 = vsel %vm2122, %v5231, %v5232
      %v5234 = vrot.slane %v5158, 5
      %v5235 = vrot.slane %v5234, 4
      %v5236 = vrot.slane %v4439, 5
      %v5237 = vsel %vm2122, %v5235, %v5236
      %v5238 = vrot.slane %v5236, 4
      %v5239 = vrot.slane %v4440, 5
      %v5240 = vsel %vm2122, %v5238, %v5239
      %v5241 = vrot.slane %v5159, 5
      %v5242 = vrot.slane %v5241, 4
      %v5243 = vrot.slane %v4442, 5
      %v5244 = vsel %vm2122, %v5242, %v5243
      %v5245 = vrot.slane %v5243, 4
      %v5246 = vrot.slane %v4443, 5
      %v5247 = vsel %vm2122, %v5245, %v5246
      %v5248 = vrot.slane %v5160, 5
      %v5249 = vrot.slane %v5248, 4
      %v5250 = vrot.slane %v4445, 5
      %v5251 = vsel %vm2122, %v5249, %v5250
      %v5252 = vrot.slane %v5250, 4
      %v5253 = vrot.slane %v4446, 5
      %v5254 = vsel %vm2122, %v5252, %v5253
      %v5255 = vrot.slane %v5161, 5
      %v5256 = vrot.slane %v5255, 4
      %v5257 = vrot.slane %v4448, 5
      %v5258 = vsel %vm2122, %v5256, %v5257
      %v5259 = vrot.slane %v5257, 4
      %v5260 = vrot.slane %v4449, 5
      %v5261 = vsel %vm2122, %v5259, %v5260
      %v5262 = vrot.slane %v5162, 5
      %v5263 = vrot.slane %v5262, 4
      %v5264 = vrot.slane %v4451, 5
      %v5265 = vsel %vm2122, %v5263, %v5264
      %v5266 = vrot.slane %v5264, 4
      %v5267 = vrot.slane %v4452, 5
      %v5268 = vsel %vm2122, %v5266, %v5267
      %v5269 = vrot.slane %v5163, 5
      %v5270 = vrot.slane %v5269, 4
      %v5271 = vrot.slane %v4454, 5
      %v5272 = vsel %vm2122, %v5270, %v5271
      %v5273 = vrot.slane %v5271, 4
      %v5274 = vrot.slane %v4455, 5
      %v5275 = vsel %vm2122, %v5273, %v5274
      %v5276 = vrot.slane %v5164, 5
      %v5277 = vrot.slane %v5276, 4
      %v5278 = vrot.slane %v4457, 5
      %v5279 = vsel %vm2122, %v5277, %v5278
      %v5280 = vrot.slane %v5278, 4
      %v5281 = vrot.slane %v4458, 5
      %v5282 = vsel %vm2122, %v5280, %v5281
      %v5283 = vrot.slane %v5165, 5
      %v5284 = vrot.slane %v5283, 4
      %v5285 = vrot.slane %v4460, 5
      %v5286 = vsel %vm2122, %v5284, %v5285
      %v5287 = vrot.slane %v5285, 4
      %v5288 = vrot.slane %v4461, 5
      %v5289 = vsel %vm2122, %v5287, %v5288
      %v5290 = vrot.slane %v5166, 5
      %v5291 = vrot.slane %v5290, 4
      %v5292 = vrot.slane %v4463, 5
      %v5293 = vsel %vm2122, %v5291, %v5292
      %v5294 = vrot.slane %v5292, 4
      %v5295 = vrot.slane %v4464, 5
      %v5296 = vsel %vm2122, %v5294, %v5295
      %v5297 = vrot.slane %v5167, 5
      %v5298 = vrot.slane %v5297, 4
      %v5299 = vrot.slane %v4466, 5
      %v5300 = vsel %vm2122, %v5298, %v5299
      %v5301 = vrot.slane %v5299, 4
      %v5302 = vrot.slane %v4467, 5
      %v5303 = vsel %vm2122, %v5301, %v5302
      %v5304 = vrot.slane %v5168, 5
      %v5305 = vrot.slane %v5304, 4
      %v5306 = vrot.slane %v4469, 5
      %v5307 = vsel %vm2122, %v5305, %v5306
      %v5308 = vrot.slane %v5306, 4
      %v5309 = vrot.slane %v4470, 5
      %v5310 = vsel %vm2122, %v5308, %v5309
      %v5311 = vrot.slane %v5169, 5
      %v5312 = vrot.slane %v5311, 4
      %v5313 = vrot.slane %v4472, 5
      %v5314 = vsel %vm2122, %v5312, %v5313
      %v5315 = vrot.slane %v5313, 4
      %v5316 = vrot.slane %v4473, 5
      %v5317 = vsel %vm2122, %v5315, %v5316
      %v5318 = vrot.slane %v5170, 5
      %v5319 = vrot.slane %v5318, 4
      %v5320 = vrot.slane %v4475, 5
      %v5321 = vsel %vm2122, %v5319, %v5320
      %v5322 = vrot.slane %v5320, 4
      %v5323 = vrot.slane %v4476, 5
      %v5324 = vsel %vm2122, %v5322, %v5323
      %v5325 = vrot.slane %v5171, 5
      %v5326 = vrot.slane %v5325, 4
      %v5327 = vrot.slane %v4478, 5
      %v5328 = vsel %vm2122, %v5326, %v5327
      %v5329 = vrot.slane %v5327, 4
      %v5330 = vrot.slane %v4479, 5
      %v5331 = vsel %vm2122, %v5329, %v5330
      %v5332 = vunpack.c.l.b16 %v5223
      %v5333 = vunpack.c.l.b16 %v5226
      %v5334 = vunpack.c.l.b16 %v5230
      %v5335 = vunpack.c.l.b16 %v5233
      %v5336 = vunpack.c.l.b16 %v5237
      %v5337 = vunpack.c.l.b16 %v5240
      %v5338 = vunpack.c.l.b16 %v5244
      %v5339 = vunpack.c.l.b16 %v5247
      %v5340 = vunpack.c.l.b16 %v5251
      %v5341 = vunpack.c.l.b16 %v5254
      %v5342 = vunpack.c.l.b16 %v5258
      %v5343 = vunpack.c.l.b16 %v5261
      %v5344 = vunpack.c.l.b16 %v5265
      %v5345 = vunpack.c.l.b16 %v5268
      %v5346 = vunpack.c.l.b16 %v5272
      %v5347 = vunpack.c.l.b16 %v5275
      %v5348 = vunpack.c.l.b16 %v5279
      %v5349 = vunpack.c.l.b16 %v5282
      %v5350 = vunpack.c.l.b16 %v5286
      %v5351 = vunpack.c.l.b16 %v5289
      %v5352 = vunpack.c.l.b16 %v5293
      %v5353 = vunpack.c.l.b16 %v5296
      %v5354 = vunpack.c.l.b16 %v5300
      %v5355 = vunpack.c.l.b16 %v5303
      %v5356 = vunpack.c.l.b16 %v5307
      %v5357 = vunpack.c.l.b16 %v5310
      %v5358 = vunpack.c.l.b16 %v5314
      %v5359 = vunpack.c.l.b16 %v5317
      %v5360 = vunpack.c.l.b16 %v5321
      %v5361 = vunpack.c.l.b16 %v5324
      %v5362 = vunpack.c.l.b16 %v5328
      %v5363 = vunpack.c.l.b16 %v5331
      %v5364 = vpack.c.b16 %v5333, %v5332
      %v5365 = vpack.c.b16 %v5335, %v5334
      %v5366 = vpack.c.b16 %v5337, %v5336
      %v5367 = vpack.c.b16 %v5339, %v5338
      %v5368 = vpack.c.b16 %v5341, %v5340
      %v5369 = vpack.c.b16 %v5343, %v5342
      %v5370 = vpack.c.b16 %v5345, %v5344
      %v5371 = vpack.c.b16 %v5347, %v5346
      %v5372 = vpack.c.b16 %v5349, %v5348
      %v5373 = vpack.c.b16 %v5351, %v5350
      %v5374 = vpack.c.b16 %v5353, %v5352
      %v5375 = vpack.c.b16 %v5355, %v5354
      %v5376 = vpack.c.b16 %v5357, %v5356
      %v5377 = vpack.c.b16 %v5359, %v5358
      %v5378 = vpack.c.b16 %v5361, %v5360
      %v5379 = vpack.c.b16 %v5363, %v5362
      %v5381 = vsel %vm1566, %v5364, 0
      %v5384 = vsel %vm1566, %v5365, 0
      %v5387 = vsel %vm1566, %v5366, 0
      %v5390 = vsel %vm1566, %v5367, 0
      %v5393 = vsel %vm1566, %v5368, 0
      %v5396 = vsel %vm1566, %v5369, 0
      %v5399 = vsel %vm1566, %v5370, 0
      %v5402 = vsel %vm1566, %v5371, 0
      %v5405 = vsel %vm1566, %v5372, 0
      %v5408 = vsel %vm1566, %v5373, 0
      %v5411 = vsel %vm1566, %v5374, 0
      %v5414 = vsel %vm1566, %v5375, 0
      %v5417 = vsel %vm1566, %v5376, 0
      %v5420 = vsel %vm1566, %v5377, 0
      %v5423 = vsel %vm1566, %v5378, 0
      %v5426 = vsel %vm1566, %v5379, 0
      %v5429 = vsel %vm1615, %v1082, 0
      %5431 = vmatprep.subr.bf16.mxu0 0
      %5432 = vmatpush1.bf16.msra.mxu0 %v5429
      %5433 = vmatprep.subr.bf16.mxu0 0
      %5434 = vmatpush1.bf16.msra.mxu0 0
      %5435 = vmatprep.subr.bf16.mxu0 0
      %5436 = vmatpush1.bf16.msra.mxu0 0
      %5437 = vmatprep.subr.bf16.mxu0 0
      %5438 = vmatpush1.bf16.msra.mxu0 0
      %5439 = vmatprep.subr.bf16.mxu0 0
      %5440 = vmatpush1.bf16.msra.mxu0 0
      %5441 = vmatprep.subr.bf16.mxu0 0
      %5442 = vmatpush1.bf16.msra.mxu0 0
      %5443 = vmatprep.subr.bf16.mxu0 0
      %5444 = vmatpush1.bf16.msra.mxu0 0
      %5445 = vmatprep.subr.bf16.mxu0 0
      %5446 = vmatpush1.bf16.msra.mxu0 0
      %5447 = vmatprep.subr.bf16.mxu0 0
      %5448 = vmatpush1.bf16.msra.mxu0 0
      %5449 = vmatprep.subr.bf16.mxu0 0
      %5450 = vmatpush1.bf16.msra.mxu0 0
      %5451 = vmatprep.subr.bf16.mxu0 0
      %5452 = vmatpush1.bf16.msra.mxu0 0
      %5453 = vmatprep.subr.bf16.mxu0 0
      %5454 = vmatpush1.bf16.msra.mxu0 0
      %5455 = vmatprep.subr.bf16.mxu0 0
      %5456 = vmatpush1.bf16.msra.mxu0 0
      %5457 = vmatprep.subr.bf16.mxu0 0
      %5458 = vmatpush1.bf16.msra.mxu0 0
      %5459 = vmatprep.subr.bf16.mxu0 0
      %5460 = vmatpush1.bf16.msra.mxu0 0
      %5461 = vmatprep.subr.bf16.mxu0 0
      %5462 = vmatpush1.bf16.msra.mxu0 0
      %5463 = vmatprep.mubr.bf16.mxu0 0
      %5464 = vmatmul.mubr.bf16.gmra.mrb[0].mxu0 %v5381
      %v5465 = vpop.f32.mrb[0].mxu0
      %v5466 = vadd.f32 0.0, %v5465
      %v5467 = vpop.f32.mrb[0].mxu0
      %v5468 = vpop.f32.mrb[0].mxu0
      %v5469 = vadd.f32 0.0, %v5468
      %v5470 = vpop.f32.mrb[0].mxu0
      %5471 = vmatprep.mubr.bf16.mxu0 0
      %5472 = vmatmul.mubr.bf16.gmra.mrb[0].mxu0 %v5384
      %v5473 = vpop.f32.mrb[0].mxu0
      %v5474 = vadd.f32 0.0, %v5473
      %v5475 = vpop.f32.mrb[0].mxu0
      %v5476 = vpop.f32.mrb[0].mxu0
      %v5477 = vadd.f32 0.0, %v5476
      %v5478 = vpop.f32.mrb[0].mxu0
      %5479 = vmatprep.mubr.bf16.mxu0 0
      %5480 = vmatmul.mubr.bf16.gmra.mrb[0].mxu0 %v5387
      %v5481 = vpop.f32.mrb[0].mxu0
      %v5482 = vadd.f32 0.0, %v5481
      %v5483 = vpop.f32.mrb[0].mxu0
      %v5484 = vpop.f32.mrb[0].mxu0
      %v5485 = vadd.f32 0.0, %v5484
      %v5486 = vpop.f32.mrb[0].mxu0
      %5487 = vmatprep.mubr.bf16.mxu0 0
      %5488 = vmatmul.mubr.bf16.gmra.mrb[0].mxu0 %v5390
      %v5489 = vpop.f32.mrb[0].mxu0
      %v5490 = vadd.f32 0.0, %v5489
      %v5491 = vpop.f32.mrb[0].mxu0
      %v5492 = vpop.f32.mrb[0].mxu0
      %v5493 = vadd.f32 0.0, %v5492
      %v5494 = vpop.f32.mrb[0].mxu0
      %5495 = vmatprep.mubr.bf16.mxu0 0
      %5496 = vmatmul.mubr.bf16.gmra.mrb[0].mxu0 %v5393
      %v5497 = vpop.f32.mrb[0].mxu0
      %v5498 = vadd.f32 0.0, %v5497
      %v5499 = vpop.f32.mrb[0].mxu0
      %v5500 = vpop.f32.mrb[0].mxu0
      %v5501 = vadd.f32 0.0, %v5500
      %v5502 = vpop.f32.mrb[0].mxu0
      %5503 = vmatprep.mubr.bf16.mxu0 0
      %5504 = vmatmul.mubr.bf16.gmra.mrb[0].mxu0 %v5396
      %v5505 = vpop.f32.mrb[0].mxu0
      %v5506 = vadd.f32 0.0, %v5505
      %v5507 = vpop.f32.mrb[0].mxu0
      %v5508 = vpop.f32.mrb[0].mxu0
      %v5509 = vadd.f32 0.0, %v5508
      %v5510 = vpop.f32.mrb[0].mxu0
      %5511 = vmatprep.mubr.bf16.mxu0 0
      %5512 = vmatmul.mubr.bf16.gmra.mrb[0].mxu0 %v5399
      %v5513 = vpop.f32.mrb[0].mxu0
      %v5514 = vadd.f32 0.0, %v5513
      %v5515 = vpop.f32.mrb[0].mxu0
      %v5516 = vpop.f32.mrb[0].mxu0
      %v5517 = vadd.f32 0.0, %v5516
      %v5518 = vpop.f32.mrb[0].mxu0
      %5519 = vmatprep.mubr.bf16.mxu0 0
      %5520 = vmatmul.mubr.bf16.gmra.mrb[0].mxu0 %v5402
      %v5521 = vpop.f32.mrb[0].mxu0
      %v5522 = vadd.f32 0.0, %v5521
      %v5523 = vpop.f32.mrb[0].mxu0
      %v5524 = vpop.f32.mrb[0].mxu0
      %v5525 = vadd.f32 0.0, %v5524
      %v5526 = vpop.f32.mrb[0].mxu0
      %5527 = vmatprep.mubr.bf16.mxu0 0
      %5528 = vmatmul.mubr.bf16.gmra.mrb[0].mxu0 %v5405
      %v5529 = vpop.f32.mrb[0].mxu0
      %v5530 = vadd.f32 0.0, %v5529
      %v5531 = vpop.f32.mrb[0].mxu0
      %v5532 = vpop.f32.mrb[0].mxu0
      %v5533 = vadd.f32 0.0, %v5532
      %v5534 = vpop.f32.mrb[0].mxu0
      %5535 = vmatprep.mubr.bf16.mxu0 0
      %5536 = vmatmul.mubr.bf16.gmra.mrb[0].mxu0 %v5408
      %v5537 = vpop.f32.mrb[0].mxu0
      %v5538 = vadd.f32 0.0, %v5537
      %v5539 = vpop.f32.mrb[0].mxu0
      %v5540 = vpop.f32.mrb[0].mxu0
      %v5541 = vadd.f32 0.0, %v5540
      %v5542 = vpop.f32.mrb[0].mxu0
      %5543 = vmatprep.mubr.bf16.mxu0 0
      %5544 = vmatmul.mubr.bf16.gmra.mrb[0].mxu0 %v5411
      %v5545 = vpop.f32.mrb[0].mxu0
      %v5546 = vadd.f32 0.0, %v5545
      %v5547 = vpop.f32.mrb[0].mxu0
      %v5548 = vpop.f32.mrb[0].mxu0
      %v5549 = vadd.f32 0.0, %v5548
      %v5550 = vpop.f32.mrb[0].mxu0
      %5551 = vmatprep.mubr.bf16.mxu0 0
      %5552 = vmatmul.mubr.bf16.gmra.mrb[0].mxu0 %v5414
      %v5553 = vpop.f32.mrb[0].mxu0
      %v5554 = vadd.f32 0.0, %v5553
      %v5555 = vpop.f32.mrb[0].mxu0
      %v5556 = vpop.f32.mrb[0].mxu0
      %v5557 = vadd.f32 0.0, %v5556
      %v5558 = vpop.f32.mrb[0].mxu0
      %5559 = vmatprep.mubr.bf16.mxu0 0
      %5560 = vmatmul.mubr.bf16.gmra.mrb[0].mxu0 %v5417
      %v5561 = vpop.f32.mrb[0].mxu0
      %v5562 = vadd.f32 0.0, %v5561
      %v5563 = vpop.f32.mrb[0].mxu0
      %v5564 = vpop.f32.mrb[0].mxu0
      %v5565 = vadd.f32 0.0, %v5564
      %v5566 = vpop.f32.mrb[0].mxu0
      %5567 = vmatprep.mubr.bf16.mxu0 0
      %5568 = vmatmul.mubr.bf16.gmra.mrb[0].mxu0 %v5420
      %v5569 = vpop.f32.mrb[0].mxu0
      %v5570 = vadd.f32 0.0, %v5569
      %v5571 = vpop.f32.mrb[0].mxu0
      %v5572 = vpop.f32.mrb[0].mxu0
      %v5573 = vadd.f32 0.0, %v5572
      %v5574 = vpop.f32.mrb[0].mxu0
      %5575 = vmatprep.mubr.bf16.mxu0 0
      %5576 = vmatmul.mubr.bf16.gmra.mrb[0].mxu0 %v5423
      %v5577 = vpop.f32.mrb[0].mxu0
      %v5578 = vadd.f32 0.0, %v5577
      %v5579 = vpop.f32.mrb[0].mxu0
      %v5580 = vpop.f32.mrb[0].mxu0
      %v5581 = vadd.f32 0.0, %v5580
      %v5582 = vpop.f32.mrb[0].mxu0
      %5583 = vmatprep.mubr.bf16.mxu0 0
      %5584 = vmatmul.mubr.bf16.gmra.mrb[0].mxu0 %v5426
      %v5585 = vpop.f32.mrb[0].mxu0
      %v5586 = vadd.f32 0.0, %v5585
      %v5587 = vpop.f32.mrb[0].mxu0
      %v5588 = vpop.f32.mrb[0].mxu0
      %v5589 = vadd.f32 0.0, %v5588
      %v5590 = vpop.f32.mrb[0].mxu0
      %5591 = vdwg.mxu0
      %v5592 = vadd.f32 %v5124, %v5466
      %v5593 = vadd.f32 %v5125, %v5469
      %v5594 = vadd.f32 %v5126, %v5474
      %v5595 = vadd.f32 %v5127, %v5477
      %v5596 = vadd.f32 %v5128, %v5482
      %v5597 = vadd.f32 %v5129, %v5485
      %v5598 = vadd.f32 %v5130, %v5490
      %v5599 = vadd.f32 %v5131, %v5493
      %v5600 = vadd.f32 %v5132, %v5498
      %v5601 = vadd.f32 %v5133, %v5501
      %v5602 = vadd.f32 %v5134, %v5506
      %v5603 = vadd.f32 %v5135, %v5509
      %v5604 = vadd.f32 %v5136, %v5514
      %v5605 = vadd.f32 %v5137, %v5517
      %v5606 = vadd.f32 %v5138, %v5522
      %v5607 = vadd.f32 %v5139, %v5525
      %v5608 = vadd.f32 %v5140, %v5530
      %v5609 = vadd.f32 %v5141, %v5533
      %v5610 = vadd.f32 %v5142, %v5538
      %v5611 = vadd.f32 %v5143, %v5541
      %v5612 = vadd.f32 %v5144, %v5546
      %v5613 = vadd.f32 %v5145, %v5549
      %v5614 = vadd.f32 %v5146, %v5554
      %v5615 = vadd.f32 %v5147, %v5557
      %v5616 = vadd.f32 %v5148, %v5562
      %v5617 = vadd.f32 %v5149, %v5565
      %v5618 = vadd.f32 %v5150, %v5570
      %v5619 = vadd.f32 %v5151, %v5573
      %v5620 = vadd.f32 %v5152, %v5578
      %v5621 = vadd.f32 %v5153, %v5581
      %v5622 = vadd.f32 %v5154, %v5586
      %v5623 = vadd.f32 %v5155, %v5589
      %v5624 = vpack.c.bf16 %v5593, %v5592
      %v5625 = vpack.c.bf16 %v5595, %v5594
      %v5626 = vpack.c.bf16 %v5597, %v5596
      %v5627 = vpack.c.bf16 %v5599, %v5598
      %v5628 = vpack.c.bf16 %v5601, %v5600
      %v5629 = vpack.c.bf16 %v5603, %v5602
      %v5630 = vpack.c.bf16 %v5605, %v5604
      %v5631 = vpack.c.bf16 %v5607, %v5606
      %v5632 = vpack.c.bf16 %v5609, %v5608
      %v5633 = vpack.c.bf16 %v5611, %v5610
      %v5634 = vpack.c.bf16 %v5613, %v5612
      %v5635 = vpack.c.bf16 %v5615, %v5614
      %v5636 = vpack.c.bf16 %v5617, %v5616
      %v5637 = vpack.c.bf16 %v5619, %v5618
      %v5638 = vpack.c.bf16 %v5621, %v5620
      %v5639 = vpack.c.bf16 %v5623, %v5622
      %v5656 = vunpack.c.l.b16 %v5624
      %v5657 = vunpack.c.h.b16 %v5624
      %v5658 = vunpack.c.l.b16 %v5625
      %v5659 = vunpack.c.h.b16 %v5625
      %v5660 = vunpack.c.l.b16 %v5626
      %v5661 = vunpack.c.h.b16 %v5626
      %v5662 = vunpack.c.l.b16 %v5627
      %v5663 = vunpack.c.h.b16 %v5627
      %v5664 = vunpack.c.l.b16 %v5628
      %v5665 = vunpack.c.h.b16 %v5628
      %v5666 = vunpack.c.l.b16 %v5629
      %v5667 = vunpack.c.h.b16 %v5629
      %v5668 = vunpack.c.l.b16 %v5630
      %v5669 = vunpack.c.h.b16 %v5630
      %v5670 = vunpack.c.l.b16 %v5631
      %v5671 = vunpack.c.h.b16 %v5631
      %v5672 = vunpack.c.l.b16 %v5632
      %v5673 = vunpack.c.h.b16 %v5632
      %v5674 = vunpack.c.l.b16 %v5633
      %v5675 = vunpack.c.h.b16 %v5633
      %v5676 = vunpack.c.l.b16 %v5634
      %v5677 = vunpack.c.h.b16 %v5634
      %v5678 = vunpack.c.l.b16 %v5635
      %v5679 = vunpack.c.h.b16 %v5635
      %v5680 = vunpack.c.l.b16 %v5636
      %v5681 = vunpack.c.h.b16 %v5636
      %v5682 = vunpack.c.l.b16 %v5637
      %v5683 = vunpack.c.h.b16 %v5637
      %v5684 = vunpack.c.l.b16 %v5638
      %v5685 = vunpack.c.h.b16 %v5638
      %v5686 = vunpack.c.l.b16 %v5639
      %v5687 = vunpack.c.h.b16 %v5639
      %v5688 = vpack.c.b16 %v5656, %v5656
      %v5689 = vpack.c.b16 %v5657, %v5657
      %v5690 = vpack.c.b16 %v5658, %v5658
      %v5691 = vpack.c.b16 %v5659, %v5659
      %v5692 = vpack.c.b16 %v5660, %v5660
      %v5693 = vpack.c.b16 %v5661, %v5661
      %v5694 = vpack.c.b16 %v5662, %v5662
      %v5695 = vpack.c.b16 %v5663, %v5663
      %v5696 = vpack.c.b16 %v5664, %v5664
      %v5697 = vpack.c.b16 %v5665, %v5665
      %v5698 = vpack.c.b16 %v5666, %v5666
      %v5699 = vpack.c.b16 %v5667, %v5667
      %v5700 = vpack.c.b16 %v5668, %v5668
      %v5701 = vpack.c.b16 %v5669, %v5669
      %v5702 = vpack.c.b16 %v5670, %v5670
      %v5703 = vpack.c.b16 %v5671, %v5671
      %v5704 = vpack.c.b16 %v5672, %v5672
      %v5705 = vpack.c.b16 %v5673, %v5673
      %v5706 = vpack.c.b16 %v5674, %v5674
      %v5707 = vpack.c.b16 %v5675, %v5675
      %v5708 = vpack.c.b16 %v5676, %v5676
      %v5709 = vpack.c.b16 %v5677, %v5677
      %v5710 = vpack.c.b16 %v5678, %v5678
      %v5711 = vpack.c.b16 %v5679, %v5679
      %v5712 = vpack.c.b16 %v5680, %v5680
      %v5713 = vpack.c.b16 %v5681, %v5681
      %v5714 = vpack.c.b16 %v5682, %v5682
      %v5715 = vpack.c.b16 %v5683, %v5683
      %v5716 = vpack.c.b16 %v5684, %v5684
      %v5717 = vpack.c.b16 %v5685, %v5685
      %v5718 = vpack.c.b16 %v5686, %v5686
      %v5719 = vpack.c.b16 %v5687, %v5687
      %5752 = vst.msk [vmem:[%s231] sm:$0xf] %vm237, %v5688
      %5753 = vst.msk [vmem:[%s231 + $0x4] sm:$0xf] %vm237, %v5689
      %5754 = vst.msk [vmem:[%s231 + $0x8] sm:$0xf] %vm237, %v5690
      %5755 = vst.msk [vmem:[%s231 + $0xc] sm:$0xf] %vm237, %v5691
      %5756 = vst.msk [vmem:[%s231 + $0x10] sm:$0xf] %vm237, %v5692
      %5757 = vst.msk [vmem:[%s231 + $0x14] sm:$0xf] %vm237, %v5693
      %5758 = vst.msk [vmem:[%s231 + $0x18] sm:$0xf] %vm237, %v5694
      %5759 = vst.msk [vmem:[%s231 + $0x1c] sm:$0xf] %vm237, %v5695
      %5760 = vst.msk [vmem:[%s231 + $0x20] sm:$0xf] %vm237, %v5696
      %5761 = vst.msk [vmem:[%s231 + $0x24] sm:$0xf] %vm237, %v5697
      %5762 = vst.msk [vmem:[%s231 + $0x28] sm:$0xf] %vm237, %v5698
      %5763 = vst.msk [vmem:[%s231 + $0x2c] sm:$0xf] %vm237, %v5699
      %5764 = vst.msk [vmem:[%s231 + $0x30] sm:$0xf] %vm237, %v5700
      %5765 = vst.msk [vmem:[%s231 + $0x34] sm:$0xf] %vm237, %v5701
      %5766 = vst.msk [vmem:[%s231 + $0x38] sm:$0xf] %vm237, %v5702
      %5767 = vst.msk [vmem:[%s231 + $0x3c] sm:$0xf] %vm237, %v5703
      %5768 = vst.msk [vmem:[%s231 + $0x40] sm:$0xf] %vm237, %v5704
      %5769 = vst.msk [vmem:[%s231 + $0x44] sm:$0xf] %vm237, %v5705
      %5770 = vst.msk [vmem:[%s231 + $0x48] sm:$0xf] %vm237, %v5706
      %5771 = vst.msk [vmem:[%s231 + $0x4c] sm:$0xf] %vm237, %v5707
      %5772 = vst.msk [vmem:[%s231 + $0x50] sm:$0xf] %vm237, %v5708
      %5773 = vst.msk [vmem:[%s231 + $0x54] sm:$0xf] %vm237, %v5709
      %5774 = vst.msk [vmem:[%s231 + $0x58] sm:$0xf] %vm237, %v5710
      %5775 = vst.msk [vmem:[%s231 + $0x5c] sm:$0xf] %vm237, %v5711
      %5776 = vst.msk [vmem:[%s231 + $0x60] sm:$0xf] %vm237, %v5712
      %5777 = vst.msk [vmem:[%s231 + $0x64] sm:$0xf] %vm237, %v5713
      %5778 = vst.msk [vmem:[%s231 + $0x68] sm:$0xf] %vm237, %v5714
      %5779 = vst.msk [vmem:[%s231 + $0x6c] sm:$0xf] %vm237, %v5715
      %5780 = vst.msk [vmem:[%s231 + $0x70] sm:$0xf] %vm237, %v5716
      %5781 = vst.msk [vmem:[%s231 + $0x74] sm:$0xf] %vm237, %v5717
      %5782 = vst.msk [vmem:[%s231 + $0x78] sm:$0xf] %vm237, %v5718
      %5783 = vst.msk [vmem:[%s231 + $0x7c] sm:$0xf] %vm237, %v5719
      %v5784 = vsel %vm1566, %v5592, 0.0
      %v5785 = vsel %vm1566, %v5593, 0.0
      %v5786 = vadd.f32 %v5784, %v5785
      %v5787 = vsel %vm1566, %v5594, 0.0
      %v5788 = vadd.f32 %v5786, %v5787
      %v5789 = vsel %vm1566, %v5595, 0.0
      %v5790 = vadd.f32 %v5788, %v5789
      %v5791 = vsel %vm1566, %v5596, 0.0
      %v5792 = vadd.f32 %v5790, %v5791
      %v5793 = vsel %vm1566, %v5597, 0.0
      %v5794 = vadd.f32 %v5792, %v5793
      %v5795 = vsel %vm1566, %v5598, 0.0
      %v5796 = vadd.f32 %v5794, %v5795
      %v5797 = vsel %vm1566, %v5599, 0.0
      %v5798 = vadd.f32 %v5796, %v5797
      %v5799 = vsel %vm1566, %v5600, 0.0
      %v5800 = vadd.f32 %v5798, %v5799
      %v5801 = vsel %vm1566, %v5601, 0.0
      %v5802 = vadd.f32 %v5800, %v5801
      %v5803 = vsel %vm1566, %v5602, 0.0
      %v5804 = vadd.f32 %v5802, %v5803
      %v5805 = vsel %vm1566, %v5603, 0.0
      %v5806 = vadd.f32 %v5804, %v5805
      %v5807 = vsel %vm1566, %v5604, 0.0
      %v5808 = vadd.f32 %v5806, %v5807
      %v5809 = vsel %vm1566, %v5605, 0.0
      %v5810 = vadd.f32 %v5808, %v5809
      %v5811 = vsel %vm1566, %v5606, 0.0
      %v5812 = vadd.f32 %v5810, %v5811
      %v5813 = vsel %vm1566, %v5607, 0.0
      %v5814 = vadd.f32 %v5812, %v5813
      %v5815 = vsel %vm1566, %v5608, 0.0
      %v5816 = vadd.f32 %v5814, %v5815
      %v5817 = vsel %vm1566, %v5609, 0.0
      %v5818 = vadd.f32 %v5816, %v5817
      %v5819 = vsel %vm1566, %v5610, 0.0
      %v5820 = vadd.f32 %v5818, %v5819
      %v5821 = vsel %vm1566, %v5611, 0.0
      %v5822 = vadd.f32 %v5820, %v5821
      %v5823 = vsel %vm1566, %v5612, 0.0
      %v5824 = vadd.f32 %v5822, %v5823
      %v5825 = vsel %vm1566, %v5613, 0.0
      %v5826 = vadd.f32 %v5824, %v5825
      %v5827 = vsel %vm1566, %v5614, 0.0
      %v5828 = vadd.f32 %v5826, %v5827
      %v5829 = vsel %vm1566, %v5615, 0.0
      %v5830 = vadd.f32 %v5828, %v5829
      %v5831 = vsel %vm1566, %v5616, 0.0
      %v5832 = vadd.f32 %v5830, %v5831
      %v5833 = vsel %vm1566, %v5617, 0.0
      %v5834 = vadd.f32 %v5832, %v5833
      %v5835 = vsel %vm1566, %v5618, 0.0
      %v5836 = vadd.f32 %v5834, %v5835
      %v5837 = vsel %vm1566, %v5619, 0.0
      %v5838 = vadd.f32 %v5836, %v5837
      %v5839 = vsel %vm1566, %v5620, 0.0
      %v5840 = vadd.f32 %v5838, %v5839
      %v5841 = vsel %vm1566, %v5621, 0.0
      %v5842 = vadd.f32 %v5840, %v5841
      %v5843 = vsel %vm1566, %v5622, 0.0
      %v5844 = vadd.f32 %v5842, %v5843
      %v5845 = vsel %vm1566, %v5623, 0.0
      %v5846 = vadd.f32 %v5844, %v5845
      %v5847 = vrot.slane %v5846, 4
      %v5848 = vadd.f32 %v5846, %v5847
      %v5849 = vrot.slane %v5848, 2
      %v5850 = vadd.f32 %v5848, %v5849
      %v5851 = vrot.slane %v5850, 1
      %v5852 = vadd.f32 %v5850, %v5851
      %v5853 = vadd.f32 %v5852, 0.0
      %v5854 = vmul.f32 %v5592, %v5592
      %v5855 = vmul.f32 %v5593, %v5593
      %v5856 = vmul.f32 %v5594, %v5594
      %v5857 = vmul.f32 %v5595, %v5595
      %v5858 = vmul.f32 %v5596, %v5596
      %v5859 = vmul.f32 %v5597, %v5597
      %v5860 = vmul.f32 %v5598, %v5598
      %v5861 = vmul.f32 %v5599, %v5599
      %v5862 = vmul.f32 %v5600, %v5600
      %v5863 = vmul.f32 %v5601, %v5601
      %v5864 = vmul.f32 %v5602, %v5602
      %v5865 = vmul.f32 %v5603, %v5603
      %v5866 = vmul.f32 %v5604, %v5604
      %v5867 = vmul.f32 %v5605, %v5605
      %v5868 = vmul.f32 %v5606, %v5606
      %v5869 = vmul.f32 %v5607, %v5607
      %v5870 = vmul.f32 %v5608, %v5608
      %v5871 = vmul.f32 %v5609, %v5609
      %v5872 = vmul.f32 %v5610, %v5610
      %v5873 = vmul.f32 %v5611, %v5611
      %v5874 = vmul.f32 %v5612, %v5612
      %v5875 = vmul.f32 %v5613, %v5613
      %v5876 = vmul.f32 %v5614, %v5614
      %v5877 = vmul.f32 %v5615, %v5615
      %v5878 = vmul.f32 %v5616, %v5616
      %v5879 = vmul.f32 %v5617, %v5617
      %v5880 = vmul.f32 %v5618, %v5618
      %v5881 = vmul.f32 %v5619, %v5619
      %v5882 = vmul.f32 %v5620, %v5620
      %v5883 = vmul.f32 %v5621, %v5621
      %v5884 = vmul.f32 %v5622, %v5622
      %v5885 = vmul.f32 %v5623, %v5623
      %v5886 = vsel %vm1566, %v5854, 0.0
      %v5887 = vsel %vm1566, %v5855, 0.0
      %v5888 = vadd.f32 %v5886, %v5887
      %v5889 = vsel %vm1566, %v5856, 0.0
      %v5890 = vadd.f32 %v5888, %v5889
      %v5891 = vsel %vm1566, %v5857, 0.0
      %v5892 = vadd.f32 %v5890, %v5891
      %v5893 = vsel %vm1566, %v5858, 0.0
      %v5894 = vadd.f32 %v5892, %v5893
      %v5895 = vsel %vm1566, %v5859, 0.0
      %v5896 = vadd.f32 %v5894, %v5895
      %v5897 = vsel %vm1566, %v5860, 0.0
      %v5898 = vadd.f32 %v5896, %v5897
      %v5899 = vsel %vm1566, %v5861, 0.0
      %v5900 = vadd.f32 %v5898, %v5899
      %v5901 = vsel %vm1566, %v5862, 0.0
      %v5902 = vadd.f32 %v5900, %v5901
      %v5903 = vsel %vm1566, %v5863, 0.0
      %v5904 = vadd.f32 %v5902, %v5903
      %v5905 = vsel %vm1566, %v5864, 0.0
      %v5906 = vadd.f32 %v5904, %v5905
      %v5907 = vsel %vm1566, %v5865, 0.0
      %v5908 = vadd.f32 %v5906, %v5907
      %v5909 = vsel %vm1566, %v5866, 0.0
      %v5910 = vadd.f32 %v5908, %v5909
      %v5911 = vsel %vm1566, %v5867, 0.0
      %v5912 = vadd.f32 %v5910, %v5911
      %v5913 = vsel %vm1566, %v5868, 0.0
      %v5914 = vadd.f32 %v5912, %v5913
      %v5915 = vsel %vm1566, %v5869, 0.0
      %v5916 = vadd.f32 %v5914, %v5915
      %v5917 = vsel %vm1566, %v5870, 0.0
      %v5918 = vadd.f32 %v5916, %v5917
      %v5919 = vsel %vm1566, %v5871, 0.0
      %v5920 = vadd.f32 %v5918, %v5919
      %v5921 = vsel %vm1566, %v5872, 0.0
      %v5922 = vadd.f32 %v5920, %v5921
      %v5923 = vsel %vm1566, %v5873, 0.0
      %v5924 = vadd.f32 %v5922, %v5923
      %v5925 = vsel %vm1566, %v5874, 0.0
      %v5926 = vadd.f32 %v5924, %v5925
      %v5927 = vsel %vm1566, %v5875, 0.0
      %v5928 = vadd.f32 %v5926, %v5927
      %v5929 = vsel %vm1566, %v5876, 0.0
      %v5930 = vadd.f32 %v5928, %v5929
      %v5931 = vsel %vm1566, %v5877, 0.0
      %v5932 = vadd.f32 %v5930, %v5931
      %v5933 = vsel %vm1566, %v5878, 0.0
      %v5934 = vadd.f32 %v5932, %v5933
      %v5935 = vsel %vm1566, %v5879, 0.0
      %v5936 = vadd.f32 %v5934, %v5935
      %v5937 = vsel %vm1566, %v5880, 0.0
      %v5938 = vadd.f32 %v5936, %v5937
      %v5939 = vsel %vm1566, %v5881, 0.0
      %v5940 = vadd.f32 %v5938, %v5939
      %v5941 = vsel %vm1566, %v5882, 0.0
      %v5942 = vadd.f32 %v5940, %v5941
      %v5943 = vsel %vm1566, %v5883, 0.0
      %v5944 = vadd.f32 %v5942, %v5943
      %v5945 = vsel %vm1566, %v5884, 0.0
      %v5946 = vadd.f32 %v5944, %v5945
      %v5947 = vsel %vm1566, %v5885, 0.0
      %v5948 = vadd.f32 %v5946, %v5947
      %v5949 = vrot.slane %v5948, 4
      %v5950 = vadd.f32 %v5948, %v5949
      %v5951 = vrot.slane %v5950, 2
      %v5952 = vadd.f32 %v5950, %v5951
      %v5953 = vrot.slane %v5952, 1
      %v5954 = vadd.f32 %v5952, %v5953
      %v5955 = vadd.f32 %v5954, 0.0
      %5956 = vst.msk [vmem:[%s235] sm:$0x1] %vm240, %v5853
      %5957 = vst.msk [vmem:[%s235 + $0x1] sm:$0x1] %vm240, %v5955
      %p5958 = scmp.lt.s32.totalorder %s17, 1
      %s5959 = scalar_select %p5958, %s17, 1
      %s5960 = smul.addr %s5959, 32
      %s5961 = smul.addr %s5960, 4
      %s5962 = scalar_lea.vmem %s4, %s5961
      %p5963 = scmp.lt.s32.totalorder %s17, 1
      %s5964 = scalar_select %p5963, %s17, 1
      %s5965 = smul.addr %s5964, 2
      %s5966 = scalar_lea.vmem %s5, %s5965
      // Predicated region
      $region37: #{bottleneck_forward.5} parent=35 // pred_check
        %p5967 = pneg %p124
      $region38: #{bottleneck_forward.5} parent=35 // pred_check_branch
        %5969 = sbr.rel (%p5967) target = $region40
      $region39: #{bottleneck_forward.5} parent=35 // pred_region
        _
      $region40: #{bottleneck_forward.5} parent=35 // pred_fallthru
        _
      // Predicated region
      $region41: #{bottleneck_forward.5} parent=35 // pred_check
        %p5970 = pneg %p150
      $region42: #{bottleneck_forward.5} parent=35 // pred_check_branch
        %5972 = sbr.rel (%p5970) target = $region44
      $region43: #{bottleneck_forward.5} parent=35 // pred_region
        _
      $region44: #{bottleneck_forward.5} parent=35 // pred_fallthru
        _
    $region36: #{bottleneck_forward.5} parent=5 // pred_fallthru
      _
    %p5973 = scmp.le.s32.totalorder 2, %s12
    // Predicated region
    $region45: #{bottleneck_forward.5} parent=5 // pred_check
      %p5974 = pneg %p5973
    $region46: #{bottleneck_forward.5} parent=5 // pred_check_branch
      %5976 = sbr.rel (%p5974) target = $region48
    $region47: #{bottleneck_forward.5} parent=5 // pred_region
      %s5977 = ssub.s32 %s12, 2
      // Predicated region
      $region49: #{bottleneck_forward.5} parent=47 // pred_check
        %p5978 = pneg %p130
      $region50: #{bottleneck_forward.5} parent=47 // pred_check_branch
        %5980 = sbr.rel (%p5978) target = $region52
      $region51: #{bottleneck_forward.5} parent=47 // pred_region
        %p5981 = scmp.lt.s32.totalorder %s18, 1
        %s5982 = scalar_select %p5981, %s18, 1
        %s5983 = smul.addr %s5982, 32
        %s5984 = smul.addr %s5983, 4
        %s5985 = scalar_lea.vmem %s4, %s5984
      $region52: #{bottleneck_forward.5} parent=47 // pred_fallthru
        _
      // Predicated region
      $region53: #{bottleneck_forward.5} parent=47 // pred_check
        %p5986 = pneg %p156
      $region54: #{bottleneck_forward.5} parent=47 // pred_check_branch
        %5988 = sbr.rel (%p5986) target = $region56
      $region55: #{bottleneck_forward.5} parent=47 // pred_region
        %p5989 = scmp.lt.s32.totalorder %s18, 1
        %s5990 = scalar_select %p5989, %s18, 1
        %s5991 = smul.addr %s5990, 2
        %s5992 = scalar_lea.vmem %s5, %s5991
      $region56: #{bottleneck_forward.5} parent=47 // pred_fallthru
        _
    $region48: #{bottleneck_forward.5} parent=5 // pred_fallthru
      _
  $region6: #{bottleneck_forward.5} parent=0 // loop_footer
    %s16 = sadd.s32 1, %s12
  $region7: #{bottleneck_forward.5} parent=0 // loop_footer_branch
    %11 = sbr.rel target = $region3
  $region8: #{bottleneck_forward.5} parent=0 // loop_exit
    _

</llo_original>
